<compile_context>
chip_gen: v7x
topology: tpu7x:2x2x1
jax: 0.10.0
libtpu: 0.0.40
codegen_flags: <defaults>
</compile_context>

<pallas_src>
import functools

import jax
import jax.numpy as jnp
from jax import lax
from jax.experimental import pallas as pl
from jax.experimental.pallas import tpu as pltpu

EMB = 128           # embedding_size
HID = 300           # hidden_size (PyTorch nn.GRU)
HPAD = 384          # per-gate hidden padded to 3x128 lanes
GATES = 3 * HPAD    # fused [r | z | n] width; slices at 0 / 384 / 768
FC2 = 100
NCLS = 2            # num_classes
MAX_CHUNK = 64      # timesteps handled per pipelined grid step
UNROLL = 8          # partial unroll of the in-chunk timestep loop


def _round_up(x, m):
    return (x + m - 1) // m * m


# --------------------------------------------------------------------------- #
# Kernel
# --------------------------------------------------------------------------- #
def _rcf_kernel(emb_ref, wi_ref, wh_ref, bi_ref, bhn_ref, perm_ref, w23_ref,
                b23_ref, out_ref, h_scr, m_scr, xproj_scr, *, seq, chunk,
                need_mask):
    s = pl.program_id(0)
    bpad = h_scr.shape[0]          # packed rows: [old(batch) | new(batch) | pad]

    # Initialize the recurrence carries on the first chunk.
    @pl.when(s == 0)
    def _init():
        h_scr[...] = jnp.zeros_like(h_scr)
        m_scr[...] = jnp.full_like(m_scr, -jnp.inf)

    wh = wh_ref[...]                                        # bf16, VMEM-resident
    # b_hn must stay inside the recurrence (it multiplies r); hoist broadcast.
    bhn_b = jnp.broadcast_to(bhn_ref[...], (bpad, HPAD))    # f32

    # ---- Hoisted input projection: one wide bf16 MXU matmul for the chunk.
    #      (b_ir + b_hr, b_iz + b_hz, b_in are pre-folded into bi.)
    x2d = emb_ref[...].reshape(chunk * bpad, EMB)           # bf16
    xproj = jnp.dot(x2d, wi_ref[...],
                    preferred_element_type=jnp.float32) + bi_ref[...]
    xproj_scr[...] = xproj.reshape(chunk, bpad, GATES)      # f32 scratch

    # ---- Serial GRU recurrence over this chunk (only h @ W_h on the critical
    #      path). Fused gates sliced at lane-aligned offsets 0/384/768.
    def step(t, carry):
        h, m = carry                                        # f32 carries
        gx = xproj_scr[t]                                   # (bpad, GATES) f32
        gh = jnp.dot(h.astype(jnp.bfloat16), wh,
                     preferred_element_type=jnp.float32)
        r = jax.nn.sigmoid(gx[:, :HPAD] + gh[:, :HPAD])
        z = jax.nn.sigmoid(gx[:, HPAD:2 * HPAD] + gh[:, HPAD:2 * HPAD])
        n = jnp.tanh(gx[:, 2 * HPAD:] + r * (gh[:, 2 * HPAD:] + bhn_b))
        h_cand = n + z * (h - n)
        if need_mask:  # seq padded up to a chunk multiple: freeze padded steps
            valid = (s * chunk + t) < seq
            h_new = jnp.where(valid, h_cand, h)
            m_new = jnp.where(valid, jnp.maximum(m, h_cand), m)
        else:
            h_new = h_cand
            m_new = jnp.maximum(m, h_cand)
        return h_new, m_new

    h_fin, m_fin = lax.fori_loop(0, chunk, step, (h_scr[...], m_scr[...]),
                                 unroll=min(chunk, UNROLL))
    h_scr[...] = h_fin
    m_scr[...] = m_fin

    # ---- Finalize on the last chunk: |od - on| @ (fc2w @ fc3w) + b23.
    @pl.when(s == pl.num_programs(0) - 1)
    def _finalize():
        # Row-shift the "new" rows up under the matching "old" rows with a tiny
        # permutation matmul; keeps every shape 8-row / 128-lane aligned.
        shifted = jnp.dot(perm_ref[...], m_fin,
                          preferred_element_type=jnp.float32)
        abs_dist = jnp.abs(m_fin - shifted)                 # rows [0,batch) valid
        out_ref[...] = (jnp.dot(abs_dist, w23_ref[...],
                                preferred_element_type=jnp.float32)
                        + b23_ref[...])


# --------------------------------------------------------------------------- #
# Weight fusion / padding (wrapper-side, cheap, done once per call)
# --------------------------------------------------------------------------- #
def _fuse_params(p):
    def pad_cols(w):   # (r, HID) -> (r, HPAD); padded cols stay exactly zero
        return jnp.pad(w, ((0, 0), (0, HPAD - HID)))

    def pad_rows(w):   # (HID, c) -> (HPAD, c); padded rows zero (no leak)
        return jnp.pad(w, ((0, HPAD - HID), (0, 0)))

    wi = jnp.concatenate(
        [pad_cols(p["wir"]), pad_cols(p["wiz"]), pad_cols(p["win"])],
        axis=1).astype(jnp.bfloat16)
    wh = jnp.concatenate(
        [pad_rows(pad_cols(p["whr"])),
         pad_rows(pad_cols(p["whz"])),
         pad_rows(pad_cols(p["whn"]))], axis=1).astype(jnp.bfloat16)
    # b_hr / b_hz commute into the input-side bias; b_hn multiplies r -> stays.
    bi = jnp.concatenate(
        [pad_cols(p["bir"] + p["bhr"]),
         pad_cols(p["biz"] + p["bhz"]),
         pad_cols(p["bin"])], axis=1)                       # f32 (1, GATES)
    bhn = pad_cols(p["bhn"])                                # f32 (1, HPAD)
    # No activation between fc2 and fc3 in the original model -> fold them.
    w23 = pad_rows(p["fc2w"] @ p["fc3w"])                   # f32 (HPAD, NCLS)
    b23 = p["fc2b"] @ p["fc3w"] + p["fc3b"]                 # f32 (1, NCLS)
    return dict(wi=wi, wh=wh, bi=bi, bhn=bhn, w23=w23, b23=b23)


# --------------------------------------------------------------------------- #
# Wrapper
# --------------------------------------------------------------------------- #
def rcf_forward(old_ids, new_ids, p):
    assert old_ids.shape == new_ids.shape
    seq, batch = old_ids.shape

    # Embedding gather = glue, kept in plain JAX.
    emb_old = jnp.take(p["embedding"], old_ids, axis=0)     # (seq, batch, EMB)
    emb_new = jnp.take(p["embedding"], new_ids, axis=0)

    bpad = _round_up(2 * batch, 8)         # both branches share one sublane group
    chunk = min(seq, MAX_CHUNK)
    num_chunks = (seq + chunk - 1) // chunk
    seq_pad = num_chunks * chunk

    # Packed row layout: [old_0..old_{b-1}, new_0..new_{b-1}, zero pad].
    emb = jnp.concatenate([emb_old, emb_new], axis=1)        # (seq, 2b, EMB)
    emb = jnp.pad(emb, ((0, seq_pad - seq), (0, bpad - 2 * batch), (0, 0)))
    emb = emb.astype(jnp.bfloat16)

    f = _fuse_params(p)

    # Permutation mapping row i -> row (i + batch) % bpad, so rows [0, batch)
    # of (perm @ m) hold the "new"-branch pooled states under the "old" rows.
    perm = jnp.zeros((bpad, bpad), jnp.float32)
    perm = perm.at[jnp.arange(bpad), (jnp.arange(bpad) + batch) % bpad].set(1.0)

    kernel = functools.partial(_rcf_kernel, seq=seq, chunk=chunk,
                               need_mask=(seq_pad != seq))

    flops = (2 * seq_pad * bpad * (EMB + HPAD) * GATES
             + 2 * bpad * bpad * HPAD + 2 * bpad * HPAD * NCLS)
    transcendentals = seq_pad * bpad * 3 * HPAD
    bytes_accessed = (2 * (emb.size + f["wi"].size + f["wh"].size)
                      + 4 * (f["bi"].size + f["bhn"].size + f["w23"].size
                             + f["b23"].size + perm.size + bpad * NCLS))

    out = pl.pallas_call(
        kernel,
        out_shape=jax.ShapeDtypeStruct((bpad, NCLS), jnp.float32),
        grid_spec=pltpu.PrefetchScalarGridSpec(
            num_scalar_prefetch=0,
            grid=(num_chunks,),
            in_specs=[
                # Streamed (double-buffered) bf16 embedding chunks.
                pl.BlockSpec((chunk, bpad, EMB), lambda s: (s, 0, 0)),
                # Weights: constant block index -> DMA'd once, VMEM-resident.
                pl.BlockSpec(f["wi"].shape, lambda s: (0, 0)),
                pl.BlockSpec(f["wh"].shape, lambda s: (0, 0)),
                pl.BlockSpec(f["bi"].shape, lambda s: (0, 0)),
                pl.BlockSpec(f["bhn"].shape, lambda s: (0, 0)),
                pl.BlockSpec(perm.shape, lambda s: (0, 0)),
                pl.BlockSpec(f["w23"].shape, lambda s: (0, 0)),
                pl.BlockSpec(f["b23"].shape, lambda s: (0, 0)),
            ],
            out_specs=pl.BlockSpec((bpad, NCLS), lambda s: (0, 0)),
            scratch_shapes=[
                pltpu.VMEM((bpad, HPAD), jnp.float32),           # h carry
                pltpu.VMEM((bpad, HPAD), jnp.float32),           # running time-max
                pltpu.VMEM((chunk, bpad, GATES), jnp.float32),   # hoisted x @ W_i
            ],
        ),
        compiler_params=pltpu.CompilerParams(
            dimension_semantics=("arbitrary",)),
        cost_estimate=pl.CostEstimate(flops=flops,
                                      transcendentals=transcendentals,
                                      bytes_accessed=bytes_accessed),
    )(emb, f["wi"], f["wh"], f["bi"], f["bhn"], perm, f["w23"], f["b23"])

    return out[:batch]


# --------------------------------------------------------------------------- #
# Params + pure-JAX reference
# --------------------------------------------------------------------------- #
def init_params(key, vocab_size):
    ks = jax.random.split(key, 17)
    s_gru = 1.0 / float(HID) ** 0.5
    s_fc2 = 1.0 / float(HID) ** 0.5
    s_fc3 = 1.0 / float(FC2) ** 0.5

    def u(k, shape, s):
        return jax.random.uniform(k, shape, jnp.float32, -s, s)

    return dict(
        embedding=(jax.random.normal(ks[0], (vocab_size, EMB), jnp.float32) * 0.1),
        wir=u(ks[1], (EMB, HID), s_gru), wiz=u(ks[2], (EMB, HID), s_gru),
        win=u(ks[3], (EMB, HID), s_gru),
        whr=u(ks[4], (HID, HID), s_gru), whz=u(ks[5], (HID, HID), s_gru),
        whn=u(ks[6], (HID, HID), s_gru),
        bir=u(ks[7], (1, HID), s_gru), biz=u(ks[8], (1, HID), s_gru),
        bin=u(ks[9], (1, HID), s_gru),
        bhr=u(ks[10], (1, HID), s_gru), bhz=u(ks[11], (1, HID), s_gru),
        bhn=u(ks[12], (1, HID), s_gru),
        fc2w=u(ks[13], (HID, FC2), s_fc2), fc2b=u(ks[14], (1, FC2), s_fc2),
        fc3w=u(ks[15], (FC2, NCLS), s_fc3), fc3b=u(ks[16], (1, NCLS), s_fc3),
    )


def rcf_reference(old_ids, new_ids, p):
    """Pure-JAX reference with identical semantics (unfused, f32)."""
    def gru_max(ids):
        emb = jnp.take(p["embedding"], ids, axis=0)
        h0 = jnp.zeros((ids.shape[1], HID), jnp.float32)

        def step(h, x):
            r = jax.nn.sigmoid(x @ p["wir"] + p["bir"] + h @ p["whr"] + p["bhr"])
            z = jax.nn.sigmoid(x @ p["wiz"] + p["biz"] + h @ p["whz"] + p["bhz"])
            n = jnp.tanh(x @ p["win"] + p["bin"] + r * (h @ p["whn"] + p["bhn"]))
            h_new = (1.0 - z) * n + z * h
            return h_new, h_new

        _, hs = lax.scan(step, h0, emb)
        return jnp.max(hs, axis=0)

    abs_dist = jnp.abs(gru_max(old_ids) - gru_max(new_ids))
    return (abs_dist @ p["fc2w"] + p["fc2b"]) @ p["fc3w"] + p["fc3b"]


if __name__ == "__main__":
    SEQ, BATCH, VOCAB = 8, 2, 64
    key = jax.random.PRNGKey(0)
    k_p, k_old, k_new = jax.random.split(key, 3)

    params = init_params(k_p, VOCAB)
    old_ids = jax.random.randint(k_old, (SEQ, BATCH), 0, VOCAB, dtype=jnp.int32)
    new_ids = jax.random.randint(k_new, (SEQ, BATCH), 0, VOCAB, dtype=jnp.int32)

    out = jax.block_until_ready(rcf_forward(old_ids, new_ids, params))
    ref = jax.block_until_ready(rcf_reference(old_ids, new_ids, params))

    assert out.shape == (BATCH, NCLS), out.shape
    assert jnp.allclose(out, ref, atol=1e-2, rtol=1e-2), (out, ref)
    print("KERNEL_OK")
</pallas_src>

<mosaic_0001>
module attributes {stable_mosaic.version = 11 : i64} {
  func.func @_rcf_kernel(%arg0: i32, %arg1: memref<8x8x128xbf16, #tpu.memory_space<vmem>>, %arg2: memref<128x1152xbf16, #tpu.memory_space<vmem>>, %arg3: memref<384x1152xbf16, #tpu.memory_space<vmem>>, %arg4: memref<1x1152xf32, #tpu.memory_space<vmem>>, %arg5: memref<1x384xf32, #tpu.memory_space<vmem>>, %arg6: memref<8x8xf32, #tpu.memory_space<vmem>>, %arg7: memref<384x2xf32, #tpu.memory_space<vmem>>, %arg8: memref<1x2xf32, #tpu.memory_space<vmem>>, %arg9: memref<8x2xf32, #tpu.memory_space<vmem>>, %arg10: memref<8x384xf32, #tpu.memory_space<vmem>>, %arg11: memref<8x384xf32, #tpu.memory_space<vmem>>, %arg12: memref<8x8x1152xf32, #tpu.memory_space<vmem>>) attributes {dimension_semantics = [#tpu.dimension_semantics<arbitrary>], iteration_bounds = array<i64: 1>, scalar_prefetch = 0 : i64, scratch_operands = 3 : i64, tpu.core_type = #tpu.core_type<tc>, window_params = [{transform_indices = @transform_0, window_bounds = array<i64: 8, 8, 128>}, {pipeline_mode = #tpu.pipeline_mode<synchronous>, transform_indices = @transform_1, window_bounds = array<i64: 128, 1152>}, {pipeline_mode = #tpu.pipeline_mode<synchronous>, transform_indices = @transform_2, window_bounds = array<i64: 384, 1152>}, {pipeline_mode = #tpu.pipeline_mode<synchronous>, transform_indices = @transform_3, window_bounds = array<i64: 1, 1152>}, {pipeline_mode = #tpu.pipeline_mode<synchronous>, transform_indices = @transform_4, window_bounds = array<i64: 1, 384>}, {pipeline_mode = #tpu.pipeline_mode<synchronous>, transform_indices = @transform_5, window_bounds = array<i64: 8, 8>}, {pipeline_mode = #tpu.pipeline_mode<synchronous>, transform_indices = @transform_6, window_bounds = array<i64: 384, 2>}, {pipeline_mode = #tpu.pipeline_mode<synchronous>, transform_indices = @transform_7, window_bounds = array<i64: 1, 2>}, {pipeline_mode = #tpu.pipeline_mode<synchronous>, transform_indices = @transform_8, window_bounds = array<i64: 8, 2>}]} {
    %c0_i32 = arith.constant 0 : i32
    %0 = arith.cmpi eq, %arg0, %c0_i32 : i32
    %1 = arith.extui %0 : i1 to i32
    %c0_i32_0 = arith.constant 0 : i32
    %2 = arith.cmpi ne, %1, %c0_i32_0 : i32
    scf.if %2 {
      %cst_65 = arith.constant 0.000000e+00 : f32
      %271 = vector.broadcast %cst_65 : f32 to vector<8x384xf32>
      %c0_66 = arith.constant 0 : index
      %c0_67 = arith.constant 0 : index
      %272 = vector.load %arg10[%c0_66, %c0_67] : memref<8x384xf32, #tpu.memory_space<vmem>>, vector<8x384xf32>
      tpu.vector_store %arg10[%c0_66, %c0_67], %271 {strides = array<i32>} : memref<8x384xf32, #tpu.memory_space<vmem>>, vector<8x384xf32>,
      %cst_68 = arith.constant 0xFF800000 : f32
      %273 = vector.broadcast %cst_68 : f32 to vector<8x384xf32>
      %c0_69 = arith.constant 0 : index
      %c0_70 = arith.constant 0 : index
      %274 = vector.load %arg11[%c0_69, %c0_70] : memref<8x384xf32, #tpu.memory_space<vmem>>, vector<8x384xf32>
      tpu.vector_store %arg11[%c0_69, %c0_70], %273 {strides = array<i32>} : memref<8x384xf32, #tpu.memory_space<vmem>>, vector<8x384xf32>,
    } else {
    }
    %c0 = arith.constant 0 : index
    %c0_1 = arith.constant 0 : index
    %3 = vector.load %arg3[%c0, %c0_1] : memref<384x1152xbf16, #tpu.memory_space<vmem>>, vector<384x1152xbf16>
    %c0_2 = arith.constant 0 : index
    %c0_3 = arith.constant 0 : index
    %4 = vector.load %arg5[%c0_2, %c0_3] : memref<1x384xf32, #tpu.memory_space<vmem>>, vector<1x384xf32>
    %5 = vector.shape_cast %4 : vector<1x384xf32> to vector<1x384xf32>
    %6 = vector.broadcast %5 : vector<1x384xf32> to vector<8x384xf32>
    %c0_4 = arith.constant 0 : index
    %c0_5 = arith.constant 0 : index
    %c0_6 = arith.constant 0 : index
    %7 = vector.load %arg1[%c0_4, %c0_5, %c0_6] : memref<8x8x128xbf16, #tpu.memory_space<vmem>>, vector<8x8x128xbf16>
    %8 = vector.shape_cast %7 : vector<8x8x128xbf16> to vector<64x128xbf16>
    %c0_7 = arith.constant 0 : index
    %c0_8 = arith.constant 0 : index
    %9 = vector.load %arg2[%c0_7, %c0_8] : memref<128x1152xbf16, #tpu.memory_space<vmem>>, vector<128x1152xbf16>
    %cst = arith.constant dense<0.000000e+00> : vector<64x1152xf32>
    %10 = tpu.matmul %8, %9, %cst {dimension_numbers = #tpu.dot_dimension_numbers<[1], [0], [0], [1], [0, 0, 1, 1], [], []>} : vector<64x128xbf16>, vector<128x1152xbf16>, vector<64x1152xf32> -> vector<64x1152xf32>
    %c0_9 = arith.constant 0 : index
    %c0_10 = arith.constant 0 : index
    %11 = vector.load %arg4[%c0_9, %c0_10] : memref<1x1152xf32, #tpu.memory_space<vmem>>, vector<1x1152xf32>
    %12 = vector.broadcast %11 : vector<1x1152xf32> to vector<64x1152xf32>
    %13 = arith.addf %10, %12 : vector<64x1152xf32>
    %14 = vector.shape_cast %13 : vector<64x1152xf32> to vector<8x8x1152xf32>
    %c0_11 = arith.constant 0 : index
    %c0_12 = arith.constant 0 : index
    %c0_13 = arith.constant 0 : index
    %15 = vector.load %arg12[%c0_11, %c0_12, %c0_13] : memref<8x8x1152xf32, #tpu.memory_space<vmem>>, vector<8x8x1152xf32>
    tpu.vector_store %arg12[%c0_11, %c0_12, %c0_13], %14 {strides = array<i32>} : memref<8x8x1152xf32, #tpu.memory_space<vmem>>, vector<8x8x1152xf32>,
    %c0_14 = arith.constant 0 : index
    %c0_15 = arith.constant 0 : index
    %16 = vector.load %arg10[%c0_14, %c0_15] : memref<8x384xf32, #tpu.memory_space<vmem>>, vector<8x384xf32>
    %c0_16 = arith.constant 0 : index
    %c0_17 = arith.constant 0 : index
    %17 = vector.load %arg11[%c0_16, %c0_17] : memref<8x384xf32, #tpu.memory_space<vmem>>, vector<8x384xf32>
    %c0_i32_18 = arith.constant 0 : i32
    %18 = arith.index_cast %c0_i32_18 : i32 to index
    %c0_19 = arith.constant 0 : index
    %c0_20 = arith.constant 0 : index
    %19 = vector.load %arg12[%18, %c0_19, %c0_20] : memref<8x8x1152xf32, #tpu.memory_space<vmem>>, vector<1x8x1152xf32>
    %20 = vector.shape_cast %19 : vector<1x8x1152xf32> to vector<8x1152xf32>
    %21 = arith.truncf %16 : vector<8x384xf32> to vector<8x384xbf16>
    %cst_21 = arith.constant dense<0.000000e+00> : vector<8x1152xf32>
    %22 = tpu.matmul %21, %3, %cst_21 {dimension_numbers = #tpu.dot_dimension_numbers<[1], [0], [0], [1], [0, 0, 1, 1], [], []>} : vector<8x384xbf16>, vector<384x1152xbf16>, vector<8x1152xf32> -> vector<8x1152xf32>
    %23 = vector.extract_strided_slice %20 {offsets = [0, 0], sizes = [8, 384], strides = [1, 1]} : vector<8x1152xf32> to vector<8x384xf32>
    %24 = vector.extract_strided_slice %22 {offsets = [0, 0], sizes = [8, 384], strides = [1, 1]} : vector<8x1152xf32> to vector<8x384xf32>
    %25 = arith.addf %23, %24 : vector<8x384xf32>
    %26 = arith.negf %25 : vector<8x384xf32>
    %27 = math.exp %26 : vector<8x384xf32>
    %cst_22 = arith.constant 1.000000e+00 : f32
    %28 = vector.broadcast %cst_22 : f32 to vector<8x384xf32>
    %29 = arith.addf %28, %27 : vector<8x384xf32>
    %30 = arith.divf %28, %29 : vector<8x384xf32>
    %31 = vector.extract_strided_slice %20 {offsets = [0, 384], sizes = [8, 384], strides = [1, 1]} : vector<8x1152xf32> to vector<8x384xf32>
    %32 = vector.extract_strided_slice %22 {offsets = [0, 384], sizes = [8, 384], strides = [1, 1]} : vector<8x1152xf32> to vector<8x384xf32>
    %33 = arith.addf %31, %32 : vector<8x384xf32>
    %34 = arith.negf %33 : vector<8x384xf32>
    %35 = math.exp %34 : vector<8x384xf32>
    %cst_23 = arith.constant 1.000000e+00 : f32
    %36 = vector.broadcast %cst_23 : f32 to vector<8x384xf32>
    %37 = arith.addf %36, %35 : vector<8x384xf32>
    %38 = arith.divf %36, %37 : vector<8x384xf32>
    %39 = vector.extract_strided_slice %20 {offsets = [0, 768], sizes = [8, 384], strides = [1, 1]} : vector<8x1152xf32> to vector<8x384xf32>
    %40 = vector.extract_strided_slice %22 {offsets = [0, 768], sizes = [8, 384], strides = [1, 1]} : vector<8x1152xf32> to vector<8x384xf32>
    %41 = arith.addf %40, %6 : vector<8x384xf32>
    %42 = arith.mulf %30, %41 : vector<8x384xf32>
    %43 = arith.addf %39, %42 : vector<8x384xf32>
    %44 = math.tanh %43 : vector<8x384xf32>
    %45 = arith.subf %16, %44 : vector<8x384xf32>
    %46 = arith.mulf %38, %45 : vector<8x384xf32>
    %47 = arith.addf %44, %46 : vector<8x384xf32>
    %48 = arith.maximumf %17, %47 : vector<8x384xf32>
    %c1_i32 = arith.constant 1 : i32
    %49 = arith.index_cast %c1_i32 : i32 to index
    %c0_24 = arith.constant 0 : index
    %c0_25 = arith.constant 0 : index
    %50 = vector.load %arg12[%49, %c0_24, %c0_25] : memref<8x8x1152xf32, #tpu.memory_space<vmem>>, vector<1x8x1152xf32>
    %51 = vector.shape_cast %50 : vector<1x8x1152xf32> to vector<8x1152xf32>
    %52 = arith.truncf %47 : vector<8x384xf32> to vector<8x384xbf16>
    %cst_26 = arith.constant dense<0.000000e+00> : vector<8x1152xf32>
    %53 = tpu.matmul %52, %3, %cst_26 {dimension_numbers = #tpu.dot_dimension_numbers<[1], [0], [0], [1], [0, 0, 1, 1], [], []>} : vector<8x384xbf16>, vector<384x1152xbf16>, vector<8x1152xf32> -> vector<8x1152xf32>
    %54 = vector.extract_strided_slice %51 {offsets = [0, 0], sizes = [8, 384], strides = [1, 1]} : vector<8x1152xf32> to vector<8x384xf32>
    %55 = vector.extract_strided_slice %53 {offsets = [0, 0], sizes = [8, 384], strides = [1, 1]} : vector<8x1152xf32> to vector<8x384xf32>
    %56 = arith.addf %54, %55 : vector<8x384xf32>
    %57 = arith.negf %56 : vector<8x384xf32>
    %58 = math.exp %57 : vector<8x384xf32>
    %cst_27 = arith.constant 1.000000e+00 : f32
    %59 = vector.broadcast %cst_27 : f32 to vector<8x384xf32>
    %60 = arith.addf %59, %58 : vector<8x384xf32>
    %61 = arith.divf %59, %60 : vector<8x384xf32>
    %62 = vector.extract_strided_slice %51 {offsets = [0, 384], sizes = [8, 384], strides = [1, 1]} : vector<8x1152xf32> to vector<8x384xf32>
    %63 = vector.extract_strided_slice %53 {offsets = [0, 384], sizes = [8, 384], strides = [1, 1]} : vector<8x1152xf32> to vector<8x384xf32>
    %64 = arith.addf %62, %63 : vector<8x384xf32>
    %65 = arith.negf %64 : vector<8x384xf32>
    %66 = math.exp %65 : vector<8x384xf32>
    %cst_28 = arith.constant 1.000000e+00 : f32
    %67 = vector.broadcast %cst_28 : f32 to vector<8x384xf32>
    %68 = arith.addf %67, %66 : vector<8x384xf32>
    %69 = arith.divf %67, %68 : vector<8x384xf32>
    %70 = vector.extract_strided_slice %51 {offsets = [0, 768], sizes = [8, 384], strides = [1, 1]} : vector<8x1152xf32> to vector<8x384xf32>
    %71 = vector.extract_strided_slice %53 {offsets = [0, 768], sizes = [8, 384], strides = [1, 1]} : vector<8x1152xf32> to vector<8x384xf32>
    %72 = arith.addf %71, %6 : vector<8x384xf32>
    %73 = arith.mulf %61, %72 : vector<8x384xf32>
    %74 = arith.addf %70, %73 : vector<8x384xf32>
    %75 = math.tanh %74 : vector<8x384xf32>
    %76 = arith.subf %47, %75 : vector<8x384xf32>
    %77 = arith.mulf %69, %76 : vector<8x384xf32>
    %78 = arith.addf %75, %77 : vector<8x384xf32>
    %79 = arith.maximumf %48, %78 : vector<8x384xf32>
    %c2_i32 = arith.constant 2 : i32
    %80 = arith.index_cast %c2_i32 : i32 to index
    %c0_29 = arith.constant 0 : index
    %c0_30 = arith.constant 0 : index
    %81 = vector.load %arg12[%80, %c0_29, %c0_30] : memref<8x8x1152xf32, #tpu.memory_space<vmem>>, vector<1x8x1152xf32>
    %82 = vector.shape_cast %81 : vector<1x8x1152xf32> to vector<8x1152xf32>
    %83 = arith.truncf %78 : vector<8x384xf32> to vector<8x384xbf16>
    %cst_31 = arith.constant dense<0.000000e+00> : vector<8x1152xf32>
    %84 = tpu.matmul %83, %3, %cst_31 {dimension_numbers = #tpu.dot_dimension_numbers<[1], [0], [0], [1], [0, 0, 1, 1], [], []>} : vector<8x384xbf16>, vector<384x1152xbf16>, vector<8x1152xf32> -> vector<8x1152xf32>
    %85 = vector.extract_strided_slice %82 {offsets = [0, 0], sizes = [8, 384], strides = [1, 1]} : vector<8x1152xf32> to vector<8x384xf32>
    %86 = vector.extract_strided_slice %84 {offsets = [0, 0], sizes = [8, 384], strides = [1, 1]} : vector<8x1152xf32> to vector<8x384xf32>
    %87 = arith.addf %85, %86 : vector<8x384xf32>
    %88 = arith.negf %87 : vector<8x384xf32>
    %89 = math.exp %88 : vector<8x384xf32>
    %cst_32 = arith.constant 1.000000e+00 : f32
    %90 = vector.broadcast %cst_32 : f32 to vector<8x384xf32>
    %91 = arith.addf %90, %89 : vector<8x384xf32>
    %92 = arith.divf %90, %91 : vector<8x384xf32>
    %93 = vector.extract_strided_slice %82 {offsets = [0, 384], sizes = [8, 384], strides = [1, 1]} : vector<8x1152xf32> to vector<8x384xf32>
    %94 = vector.extract_strided_slice %84 {offsets = [0, 384], sizes = [8, 384], strides = [1, 1]} : vector<8x1152xf32> to vector<8x384xf32>
    %95 = arith.addf %93, %94 : vector<8x384xf32>
    %96 = arith.negf %95 : vector<8x384xf32>
    %97 = math.exp %96 : vector<8x384xf32>
    %cst_33 = arith.constant 1.000000e+00 : f32
    %98 = vector.broadcast %cst_33 : f32 to vector<8x384xf32>
    %99 = arith.addf %98, %97 : vector<8x384xf32>
    %100 = arith.divf %98, %99 : vector<8x384xf32>
    %101 = vector.extract_strided_slice %82 {offsets = [0, 768], sizes = [8, 384], strides = [1, 1]} : vector<8x1152xf32> to vector<8x384xf32>
    %102 = vector.extract_strided_slice %84 {offsets = [0, 768], sizes = [8, 384], strides = [1, 1]} : vector<8x1152xf32> to vector<8x384xf32>
    %103 = arith.addf %102, %6 : vector<8x384xf32>
    %104 = arith.mulf %92, %103 : vector<8x384xf32>
    %105 = arith.addf %101, %104 : vector<8x384xf32>
    %106 = math.tanh %105 : vector<8x384xf32>
    %107 = arith.subf %78, %106 : vector<8x384xf32>
    %108 = arith.mulf %100, %107 : vector<8x384xf32>
    %109 = arith.addf %106, %108 : vector<8x384xf32>
    %110 = arith.maximumf %79, %109 : vector<8x384xf32>
    %c3_i32 = arith.constant 3 : i32
    %111 = arith.index_cast %c3_i32 : i32 to index
    %c0_34 = arith.constant 0 : index
    %c0_35 = arith.constant 0 : index
    %112 = vector.load %arg12[%111, %c0_34, %c0_35] : memref<8x8x1152xf32, #tpu.memory_space<vmem>>, vector<1x8x1152xf32>
    %113 = vector.shape_cast %112 : vector<1x8x1152xf32> to vector<8x1152xf32>
    %114 = arith.truncf %109 : vector<8x384xf32> to vector<8x384xbf16>
    %cst_36 = arith.constant dense<0.000000e+00> : vector<8x1152xf32>
    %115 = tpu.matmul %114, %3, %cst_36 {dimension_numbers = #tpu.dot_dimension_numbers<[1], [0], [0], [1], [0, 0, 1, 1], [], []>} : vector<8x384xbf16>, vector<384x1152xbf16>, vector<8x1152xf32> -> vector<8x1152xf32>
    %116 = vector.extract_strided_slice %113 {offsets = [0, 0], sizes = [8, 384], strides = [1, 1]} : vector<8x1152xf32> to vector<8x384xf32>
    %117 = vector.extract_strided_slice %115 {offsets = [0, 0], sizes = [8, 384], strides = [1, 1]} : vector<8x1152xf32> to vector<8x384xf32>
    %118 = arith.addf %116, %117 : vector<8x384xf32>
    %119 = arith.negf %118 : vector<8x384xf32>
    %120 = math.exp %119 : vector<8x384xf32>
    %cst_37 = arith.constant 1.000000e+00 : f32
    %121 = vector.broadcast %cst_37 : f32 to vector<8x384xf32>
    %122 = arith.addf %121, %120 : vector<8x384xf32>
    %123 = arith.divf %121, %122 : vector<8x384xf32>
    %124 = vector.extract_strided_slice %113 {offsets = [0, 384], sizes = [8, 384], strides = [1, 1]} : vector<8x1152xf32> to vector<8x384xf32>
    %125 = vector.extract_strided_slice %115 {offsets = [0, 384], sizes = [8, 384], strides = [1, 1]} : vector<8x1152xf32> to vector<8x384xf32>
    %126 = arith.addf %124, %125 : vector<8x384xf32>
    %127 = arith.negf %126 : vector<8x384xf32>
    %128 = math.exp %127 : vector<8x384xf32>
    %cst_38 = arith.constant 1.000000e+00 : f32
    %129 = vector.broadcast %cst_38 : f32 to vector<8x384xf32>
    %130 = arith.addf %129, %128 : vector<8x384xf32>
    %131 = arith.divf %129, %130 : vector<8x384xf32>
    %132 = vector.extract_strided_slice %113 {offsets = [0, 768], sizes = [8, 384], strides = [1, 1]} : vector<8x1152xf32> to vector<8x384xf32>
    %133 = vector.extract_strided_slice %115 {offsets = [0, 768], sizes = [8, 384], strides = [1, 1]} : vector<8x1152xf32> to vector<8x384xf32>
    %134 = arith.addf %133, %6 : vector<8x384xf32>
    %135 = arith.mulf %123, %134 : vector<8x384xf32>
    %136 = arith.addf %132, %135 : vector<8x384xf32>
    %137 = math.tanh %136 : vector<8x384xf32>
    %138 = arith.subf %109, %137 : vector<8x384xf32>
    %139 = arith.mulf %131, %138 : vector<8x384xf32>
    %140 = arith.addf %137, %139 : vector<8x384xf32>
    %141 = arith.maximumf %110, %140 : vector<8x384xf32>
    %c4_i32 = arith.constant 4 : i32
    %142 = arith.index_cast %c4_i32 : i32 to index
    %c0_39 = arith.constant 0 : index
    %c0_40 = arith.constant 0 : index
    %143 = vector.load %arg12[%142, %c0_39, %c0_40] : memref<8x8x1152xf32, #tpu.memory_space<vmem>>, vector<1x8x1152xf32>
    %144 = vector.shape_cast %143 : vector<1x8x1152xf32> to vector<8x1152xf32>
    %145 = arith.truncf %140 : vector<8x384xf32> to vector<8x384xbf16>
    %cst_41 = arith.constant dense<0.000000e+00> : vector<8x1152xf32>
    %146 = tpu.matmul %145, %3, %cst_41 {dimension_numbers = #tpu.dot_dimension_numbers<[1], [0], [0], [1], [0, 0, 1, 1], [], []>} : vector<8x384xbf16>, vector<384x1152xbf16>, vector<8x1152xf32> -> vector<8x1152xf32>
    %147 = vector.extract_strided_slice %144 {offsets = [0, 0], sizes = [8, 384], strides = [1, 1]} : vector<8x1152xf32> to vector<8x384xf32>
    %148 = vector.extract_strided_slice %146 {offsets = [0, 0], sizes = [8, 384], strides = [1, 1]} : vector<8x1152xf32> to vector<8x384xf32>
    %149 = arith.addf %147, %148 : vector<8x384xf32>
    %150 = arith.negf %149 : vector<8x384xf32>
    %151 = math.exp %150 : vector<8x384xf32>
    %cst_42 = arith.constant 1.000000e+00 : f32
    %152 = vector.broadcast %cst_42 : f32 to vector<8x384xf32>
    %153 = arith.addf %152, %151 : vector<8x384xf32>
    %154 = arith.divf %152, %153 : vector<8x384xf32>
    %155 = vector.extract_strided_slice %144 {offsets = [0, 384], sizes = [8, 384], strides = [1, 1]} : vector<8x1152xf32> to vector<8x384xf32>
    %156 = vector.extract_strided_slice %146 {offsets = [0, 384], sizes = [8, 384], strides = [1, 1]} : vector<8x1152xf32> to vector<8x384xf32>
    %157 = arith.addf %155, %156 : vector<8x384xf32>
    %158 = arith.negf %157 : vector<8x384xf32>
    %159 = math.exp %158 : vector<8x384xf32>
    %cst_43 = arith.constant 1.000000e+00 : f32
    %160 = vector.broadcast %cst_43 : f32 to vector<8x384xf32>
    %161 = arith.addf %160, %159 : vector<8x384xf32>
    %162 = arith.divf %160, %161 : vector<8x384xf32>
    %163 = vector.extract_strided_slice %144 {offsets = [0, 768], sizes = [8, 384], strides = [1, 1]} : vector<8x1152xf32> to vector<8x384xf32>
    %164 = vector.extract_strided_slice %146 {offsets = [0, 768], sizes = [8, 384], strides = [1, 1]} : vector<8x1152xf32> to vector<8x384xf32>
    %165 = arith.addf %164, %6 : vector<8x384xf32>
    %166 = arith.mulf %154, %165 : vector<8x384xf32>
    %167 = arith.addf %163, %166 : vector<8x384xf32>
    %168 = math.tanh %167 : vector<8x384xf32>
    %169 = arith.subf %140, %168 : vector<8x384xf32>
    %170 = arith.mulf %162, %169 : vector<8x384xf32>
    %171 = arith.addf %168, %170 : vector<8x384xf32>
    %172 = arith.maximumf %141, %171 : vector<8x384xf32>
    %c5_i32 = arith.constant 5 : i32
    %173 = arith.index_cast %c5_i32 : i32 to index
    %c0_44 = arith.constant 0 : index
    %c0_45 = arith.constant 0 : index
    %174 = vector.load %arg12[%173, %c0_44, %c0_45] : memref<8x8x1152xf32, #tpu.memory_space<vmem>>, vector<1x8x1152xf32>
    %175 = vector.shape_cast %174 : vector<1x8x1152xf32> to vector<8x1152xf32>
    %176 = arith.truncf %171 : vector<8x384xf32> to vector<8x384xbf16>
    %cst_46 = arith.constant dense<0.000000e+00> : vector<8x1152xf32>
    %177 = tpu.matmul %176, %3, %cst_46 {dimension_numbers = #tpu.dot_dimension_numbers<[1], [0], [0], [1], [0, 0, 1, 1], [], []>} : vector<8x384xbf16>, vector<384x1152xbf16>, vector<8x1152xf32> -> vector<8x1152xf32>
    %178 = vector.extract_strided_slice %175 {offsets = [0, 0], sizes = [8, 384], strides = [1, 1]} : vector<8x1152xf32> to vector<8x384xf32>
    %179 = vector.extract_strided_slice %177 {offsets = [0, 0], sizes = [8, 384], strides = [1, 1]} : vector<8x1152xf32> to vector<8x384xf32>
    %180 = arith.addf %178, %179 : vector<8x384xf32>
    %181 = arith.negf %180 : vector<8x384xf32>
    %182 = math.exp %181 : vector<8x384xf32>
    %cst_47 = arith.constant 1.000000e+00 : f32
    %183 = vector.broadcast %cst_47 : f32 to vector<8x384xf32>
    %184 = arith.addf %183, %182 : vector<8x384xf32>
    %185 = arith.divf %183, %184 : vector<8x384xf32>
    %186 = vector.extract_strided_slice %175 {offsets = [0, 384], sizes = [8, 384], strides = [1, 1]} : vector<8x1152xf32> to vector<8x384xf32>
    %187 = vector.extract_strided_slice %177 {offsets = [0, 384], sizes = [8, 384], strides = [1, 1]} : vector<8x1152xf32> to vector<8x384xf32>
    %188 = arith.addf %186, %187 : vector<8x384xf32>
    %189 = arith.negf %188 : vector<8x384xf32>
    %190 = math.exp %189 : vector<8x384xf32>
    %cst_48 = arith.constant 1.000000e+00 : f32
    %191 = vector.broadcast %cst_48 : f32 to vector<8x384xf32>
    %192 = arith.addf %191, %190 : vector<8x384xf32>
    %193 = arith.divf %191, %192 : vector<8x384xf32>
    %194 = vector.extract_strided_slice %175 {offsets = [0, 768], sizes = [8, 384], strides = [1, 1]} : vector<8x1152xf32> to vector<8x384xf32>
    %195 = vector.extract_strided_slice %177 {offsets = [0, 768], sizes = [8, 384], strides = [1, 1]} : vector<8x1152xf32> to vector<8x384xf32>
    %196 = arith.addf %195, %6 : vector<8x384xf32>
    %197 = arith.mulf %185, %196 : vector<8x384xf32>
    %198 = arith.addf %194, %197 : vector<8x384xf32>
    %199 = math.tanh %198 : vector<8x384xf32>
    %200 = arith.subf %171, %199 : vector<8x384xf32>
    %201 = arith.mulf %193, %200 : vector<8x384xf32>
    %202 = arith.addf %199, %201 : vector<8x384xf32>
    %203 = arith.maximumf %172, %202 : vector<8x384xf32>
    %c6_i32 = arith.constant 6 : i32
    %204 = arith.index_cast %c6_i32 : i32 to index
    %c0_49 = arith.constant 0 : index
    %c0_50 = arith.constant 0 : index
    %205 = vector.load %arg12[%204, %c0_49, %c0_50] : memref<8x8x1152xf32, #tpu.memory_space<vmem>>, vector<1x8x1152xf32>
    %206 = vector.shape_cast %205 : vector<1x8x1152xf32> to vector<8x1152xf32>
    %207 = arith.truncf %202 : vector<8x384xf32> to vector<8x384xbf16>
    %cst_51 = arith.constant dense<0.000000e+00> : vector<8x1152xf32>
    %208 = tpu.matmul %207, %3, %cst_51 {dimension_numbers = #tpu.dot_dimension_numbers<[1], [0], [0], [1], [0, 0, 1, 1], [], []>} : vector<8x384xbf16>, vector<384x1152xbf16>, vector<8x1152xf32> -> vector<8x1152xf32>
    %209 = vector.extract_strided_slice %206 {offsets = [0, 0], sizes = [8, 384], strides = [1, 1]} : vector<8x1152xf32> to vector<8x384xf32>
    %210 = vector.extract_strided_slice %208 {offsets = [0, 0], sizes = [8, 384], strides = [1, 1]} : vector<8x1152xf32> to vector<8x384xf32>
    %211 = arith.addf %209, %210 : vector<8x384xf32>
    %212 = arith.negf %211 : vector<8x384xf32>
    %213 = math.exp %212 : vector<8x384xf32>
    %cst_52 = arith.constant 1.000000e+00 : f32
    %214 = vector.broadcast %cst_52 : f32 to vector<8x384xf32>
    %215 = arith.addf %214, %213 : vector<8x384xf32>
    %216 = arith.divf %214, %215 : vector<8x384xf32>
    %217 = vector.extract_strided_slice %206 {offsets = [0, 384], sizes = [8, 384], strides = [1, 1]} : vector<8x1152xf32> to vector<8x384xf32>
    %218 = vector.extract_strided_slice %208 {offsets = [0, 384], sizes = [8, 384], strides = [1, 1]} : vector<8x1152xf32> to vector<8x384xf32>
    %219 = arith.addf %217, %218 : vector<8x384xf32>
    %220 = arith.negf %219 : vector<8x384xf32>
    %221 = math.exp %220 : vector<8x384xf32>
    %cst_53 = arith.constant 1.000000e+00 : f32
    %222 = vector.broadcast %cst_53 : f32 to vector<8x384xf32>
    %223 = arith.addf %222, %221 : vector<8x384xf32>
    %224 = arith.divf %222, %223 : vector<8x384xf32>
    %225 = vector.extract_strided_slice %206 {offsets = [0, 768], sizes = [8, 384], strides = [1, 1]} : vector<8x1152xf32> to vector<8x384xf32>
    %226 = vector.extract_strided_slice %208 {offsets = [0, 768], sizes = [8, 384], strides = [1, 1]} : vector<8x1152xf32> to vector<8x384xf32>
    %227 = arith.addf %226, %6 : vector<8x384xf32>
    %228 = arith.mulf %216, %227 : vector<8x384xf32>
    %229 = arith.addf %225, %228 : vector<8x384xf32>
    %230 = math.tanh %229 : vector<8x384xf32>
    %231 = arith.subf %202, %230 : vector<8x384xf32>
    %232 = arith.mulf %224, %231 : vector<8x384xf32>
    %233 = arith.addf %230, %232 : vector<8x384xf32>
    %234 = arith.maximumf %203, %233 : vector<8x384xf32>
    %c7_i32 = arith.constant 7 : i32
    %235 = arith.index_cast %c7_i32 : i32 to index
    %c0_54 = arith.constant 0 : index
    %c0_55 = arith.constant 0 : index
    %236 = vector.load %arg12[%235, %c0_54, %c0_55] : memref<8x8x1152xf32, #tpu.memory_space<vmem>>, vector<1x8x1152xf32>
    %237 = vector.shape_cast %236 : vector<1x8x1152xf32> to vector<8x1152xf32>
    %238 = arith.truncf %233 : vector<8x384xf32> to vector<8x384xbf16>
    %cst_56 = arith.constant dense<0.000000e+00> : vector<8x1152xf32>
    %239 = tpu.matmul %238, %3, %cst_56 {dimension_numbers = #tpu.dot_dimension_numbers<[1], [0], [0], [1], [0, 0, 1, 1], [], []>} : vector<8x384xbf16>, vector<384x1152xbf16>, vector<8x1152xf32> -> vector<8x1152xf32>
    %240 = vector.extract_strided_slice %237 {offsets = [0, 0], sizes = [8, 384], strides = [1, 1]} : vector<8x1152xf32> to vector<8x384xf32>
    %241 = vector.extract_strided_slice %239 {offsets = [0, 0], sizes = [8, 384], strides = [1, 1]} : vector<8x1152xf32> to vector<8x384xf32>
    %242 = arith.addf %240, %241 : vector<8x384xf32>
    %243 = arith.negf %242 : vector<8x384xf32>
    %244 = math.exp %243 : vector<8x384xf32>
    %cst_57 = arith.constant 1.000000e+00 : f32
    %245 = vector.broadcast %cst_57 : f32 to vector<8x384xf32>
    %246 = arith.addf %245, %244 : vector<8x384xf32>
    %247 = arith.divf %245, %246 : vector<8x384xf32>
    %248 = vector.extract_strided_slice %237 {offsets = [0, 384], sizes = [8, 384], strides = [1, 1]} : vector<8x1152xf32> to vector<8x384xf32>
    %249 = vector.extract_strided_slice %239 {offsets = [0, 384], sizes = [8, 384], strides = [1, 1]} : vector<8x1152xf32> to vector<8x384xf32>
    %250 = arith.addf %248, %249 : vector<8x384xf32>
    %251 = arith.negf %250 : vector<8x384xf32>
    %252 = math.exp %251 : vector<8x384xf32>
    %cst_58 = arith.constant 1.000000e+00 : f32
    %253 = vector.broadcast %cst_58 : f32 to vector<8x384xf32>
    %254 = arith.addf %253, %252 : vector<8x384xf32>
    %255 = arith.divf %253, %254 : vector<8x384xf32>
    %256 = vector.extract_strided_slice %237 {offsets = [0, 768], sizes = [8, 384], strides = [1, 1]} : vector<8x1152xf32> to vector<8x384xf32>
    %257 = vector.extract_strided_slice %239 {offsets = [0, 768], sizes = [8, 384], strides = [1, 1]} : vector<8x1152xf32> to vector<8x384xf32>
    %258 = arith.addf %257, %6 : vector<8x384xf32>
    %259 = arith.mulf %247, %258 : vector<8x384xf32>
    %260 = arith.addf %256, %259 : vector<8x384xf32>
    %261 = math.tanh %260 : vector<8x384xf32>
    %262 = arith.subf %233, %261 : vector<8x384xf32>
    %263 = arith.mulf %255, %262 : vector<8x384xf32>
    %264 = arith.addf %261, %263 : vector<8x384xf32>
    %265 = arith.maximumf %234, %264 : vector<8x384xf32>
    %c8_i32 = arith.constant 8 : i32
    %c0_59 = arith.constant 0 : index
    %c0_60 = arith.constant 0 : index
    %266 = vector.load %arg10[%c0_59, %c0_60] : memref<8x384xf32, #tpu.memory_space<vmem>>, vector<8x384xf32>
    tpu.vector_store %arg10[%c0_59, %c0_60], %264 {strides = array<i32>} : memref<8x384xf32, #tpu.memory_space<vmem>>, vector<8x384xf32>,
    %c0_61 = arith.constant 0 : index
    %c0_62 = arith.constant 0 : index
    %267 = vector.load %arg11[%c0_61, %c0_62] : memref<8x384xf32, #tpu.memory_space<vmem>>, vector<8x384xf32>
    tpu.vector_store %arg11[%c0_61, %c0_62], %265 {strides = array<i32>} : memref<8x384xf32, #tpu.memory_space<vmem>>, vector<8x384xf32>,
    %c0_i32_63 = arith.constant 0 : i32
    %268 = arith.cmpi eq, %arg0, %c0_i32_63 : i32
    %269 = arith.extui %268 : i1 to i32
    %c0_i32_64 = arith.constant 0 : i32
    %270 = arith.cmpi ne, %269, %c0_i32_64 : i32
    scf.if %270 {
      %c0_65 = arith.constant 0 : index
      %c0_66 = arith.constant 0 : index
      %271 = vector.load %arg6[%c0_65, %c0_66] : memref<8x8xf32, #tpu.memory_space<vmem>>, vector<8x8xf32>
      %cst_67 = arith.constant dense<0.000000e+00> : vector<8x384xf32>
      %272 = tpu.matmul %271, %265, %cst_67 {dimension_numbers = #tpu.dot_dimension_numbers<[1], [0], [0], [1], [0, 0, 1, 1], [], []>} : vector<8x8xf32>, vector<8x384xf32>, vector<8x384xf32> -> vector<8x384xf32>
      %273 = arith.subf %265, %272 : vector<8x384xf32>
      %274 = math.absf %273 : vector<8x384xf32>
      %c0_68 = arith.constant 0 : index
      %c0_69 = arith.constant 0 : index
      %275 = vector.load %arg7[%c0_68, %c0_69] : memref<384x2xf32, #tpu.memory_space<vmem>>, vector<384x2xf32>
      %cst_70 = arith.constant dense<0.000000e+00> : vector<8x2xf32>
      %276 = tpu.matmul %274, %275, %cst_70 {dimension_numbers = #tpu.dot_dimension_numbers<[1], [0], [0], [1], [0, 0, 1, 1], [], []>} : vector<8x384xf32>, vector<384x2xf32>, vector<8x2xf32> -> vector<8x2xf32>
      %c0_71 = arith.constant 0 : index
      %c0_72 = arith.constant 0 : index
      %277 = vector.load %arg8[%c0_71, %c0_72] : memref<1x2xf32, #tpu.memory_space<vmem>>, vector<1x2xf32>
      %278 = vector.broadcast %277 : vector<1x2xf32> to vector<8x2xf32>
      %279 = arith.addf %276, %278 : vector<8x2xf32>
      %c0_73 = arith.constant 0 : index
      %c0_74 = arith.constant 0 : index
      %280 = vector.load %arg9[%c0_73, %c0_74] : memref<8x2xf32, #tpu.memory_space<vmem>>, vector<8x2xf32>
      tpu.vector_store %arg9[%c0_73, %c0_74], %279 {strides = array<i32>} : memref<8x2xf32, #tpu.memory_space<vmem>>, vector<8x2xf32>,
    } else {
    }
    return
  }
  func.func @transform_0(%arg0: i32) -> (i32, i32, i32) {
    %c0_i32 = arith.constant 0 : i32
    %c0_i32_0 = arith.constant 0 : i32
    %c0_i32_1 = arith.constant 0 : i32
    return %arg0, %c0_i32, %c0_i32_0 : i32, i32, i32
  }
  func.func @transform_1(%arg0: i32) -> (i32, i32) {
    %c0_i32 = arith.constant 0 : i32
    %c0_i32_0 = arith.constant 0 : i32
    %c0_i32_1 = arith.constant 0 : i32
    return %c0_i32, %c0_i32_0 : i32, i32
  }
  func.func @transform_2(%arg0: i32) -> (i32, i32) {
    %c0_i32 = arith.constant 0 : i32
    %c0_i32_0 = arith.constant 0 : i32
    %c0_i32_1 = arith.constant 0 : i32
    return %c0_i32, %c0_i32_0 : i32, i32
  }
  func.func @transform_3(%arg0: i32) -> (i32, i32) {
    %c0_i32 = arith.constant 0 : i32
    %c0_i32_0 = arith.constant 0 : i32
    %c0_i32_1 = arith.constant 0 : i32
    return %c0_i32, %c0_i32_0 : i32, i32
  }
  func.func @transform_4(%arg0: i32) -> (i32, i32) {
    %c0_i32 = arith.constant 0 : i32
    %c0_i32_0 = arith.constant 0 : i32
    %c0_i32_1 = arith.constant 0 : i32
    return %c0_i32, %c0_i32_0 : i32, i32
  }
  func.func @transform_5(%arg0: i32) -> (i32, i32) {
    %c0_i32 = arith.constant 0 : i32
    %c0_i32_0 = arith.constant 0 : i32
    %c0_i32_1 = arith.constant 0 : i32
    return %c0_i32, %c0_i32_0 : i32, i32
  }
  func.func @transform_6(%arg0: i32) -> (i32, i32) {
    %c0_i32 = arith.constant 0 : i32
    %c0_i32_0 = arith.constant 0 : i32
    %c0_i32_1 = arith.constant 0 : i32
    return %c0_i32, %c0_i32_0 : i32, i32
  }
  func.func @transform_7(%arg0: i32) -> (i32, i32) {
    %c0_i32 = arith.constant 0 : i32
    %c0_i32_0 = arith.constant 0 : i32
    %c0_i32_1 = arith.constant 0 : i32
    return %c0_i32, %c0_i32_0 : i32, i32
  }
  func.func @transform_8(%arg0: i32) -> (i32, i32) {
    %c0_i32 = arith.constant 0 : i32
    %c0_i32_0 = arith.constant 0 : i32
    %c0_i32_1 = arith.constant 0 : i32
    return %c0_i32, %c0_i32_0 : i32, i32
  }
}

</mosaic_0001>

<llo_original>
// kernel: tpu_custom_call.1
$region0: #{tpu_custom_call.1}
  #allocation0 [shape = 'u32[]', space=smem, size = 0x4, offset = 0x4, fixed_abs, tag = 'smem constant byte address 0x4 - core index']
  #allocation1 [shape = 'u32[144,128]{1,0:T(1,128)}', space=vmem, size = 0x12000, scoped, tag = 'internal scratch']
  #allocation2 [shape = 'f32[8,384]{1,0:T(8,128)}', space=vmem, size = 0x3000, scoped, tag = 'scratch operand']
  #allocation3 [shape = 'f32[8,384]{1,0:T(8,128)}', space=vmem, size = 0x3000, scoped, tag = 'scratch operand']
  #allocation4 [shape = 'f32[8,8,1152]{2,1,0:T(8,128)}', space=vmem, size = 0x48000, scoped, tag = 'scratch operand']
  %s0 = inlined_call_operand.vmem [shape: bf16[8,8,128], index: 0, kind: input, shape index: {}]
  %s1 = inlined_call_operand.hbm [shape: bf16[128,1152], index: 1, kind: input, shape index: {}]
  %s2 = inlined_call_operand.hbm [shape: bf16[384,1152], index: 2, kind: input, shape index: {}]
  %s3 = inlined_call_operand.vmem [shape: f32[1,1152], index: 3, kind: input, shape index: {}]
  %s4 = inlined_call_operand.vmem [shape: f32[1,384], index: 4, kind: input, shape index: {}]
  %s5 = inlined_call_operand.vmem [shape: f32[8,8], index: 5, kind: input, shape index: {}]
  %s6 = inlined_call_operand.vmem [shape: f32[384,2], index: 6, kind: input, shape index: {}]
  %s7 = inlined_call_operand.vmem [shape: f32[1,2], index: 7, kind: input, shape index: {}]
  %s8 = inlined_call_operand.vmem [shape: f32[8,2], index: 8, kind: output, shape index: {}]
  %s9 = sld [smem:[#allocation0]]
  $region58: #{tpu_custom_call.1} parent=0
    _
  %s11 = ssub.s32 1, %s9
  %s12 = scalar_select 0, %s11, %s9
  $region1: #{tpu_custom_call.1} parent=0
    #allocation5 [shape = 'u8[294912]{0}', space=vmem, size = 0x48000, scoped, tag = 'input window, operand 1, single buffered']
    #allocation6 [shape = 's32[1]{0}', space=sflag, size = 0x4, scoped, tag = 'scoped memory for tpu_custom_call.1']
    #allocation7 [shape = 'u8[884736]{0}', space=vmem, size = 0xd8000, scoped, tag = 'input window, operand 2, single buffered']
    #allocation8 [shape = 's32[1]{0}', space=sflag, size = 0x4, scoped, tag = 'scoped memory for tpu_custom_call.1']
    %13 = vsyncpa [#allocation6], 0
    %14 = vsyncpa [#allocation8], 0
    // Predicated region
    $region2: #{tpu_custom_call.1} parent=1 // pred_check
      _
    $region3: #{tpu_custom_call.1} parent=1 // pred_check_branch
      %16 = sbr.rel (0) target = $region5
    $region4: #{tpu_custom_call.1} parent=1 // pred_region
      _
    $region5: #{tpu_custom_call.1} parent=1 // pred_fallthru
      _
    // Predicated region
    $region6: #{tpu_custom_call.1} parent=1 // pred_check
      _
    $region7: #{tpu_custom_call.1} parent=1 // pred_check_branch
      %18 = sbr.rel (0) target = $region9
    $region8: #{tpu_custom_call.1} parent=1 // pred_region
      %s20 = ssub.s32 9216, 9216
      %21 = vsyncadd [#allocation6], %s20
      %s22 = sshll.u32 [#allocation5], 4
      %s23 = int_to_ptr.vmem [resolvable:$true] %s22
      %28 = dma.hbm_to_vmem [thread:$0]  %s1, 9216, %s23, [#allocation6], 576, 576, 36
    $region9: #{tpu_custom_call.1} parent=1 // pred_fallthru
      _
    // Predicated region
    $region10: #{tpu_custom_call.1} parent=1 // pred_check
      _
    $region11: #{tpu_custom_call.1} parent=1 // pred_check_branch
      %30 = sbr.rel (0) target = $region13
    $region12: #{tpu_custom_call.1} parent=1 // pred_region
      %s32 = ssub.s32 27648, 27648
      %33 = vsyncadd [#allocation8], %s32
      %s34 = sshll.u32 [#allocation7], 4
      %s35 = int_to_ptr.vmem [resolvable:$true] %s34
      %40 = dma.hbm_to_vmem [thread:$0]  %s2, 27648, %s35, [#allocation8], 576, 576, 36
    $region13: #{tpu_custom_call.1} parent=1 // pred_fallthru
      _
    // Predicated region
    $region14: #{tpu_custom_call.1} parent=1 // pred_check
      _
    $region15: #{tpu_custom_call.1} parent=1 // pred_check_branch
      %42 = sbr.rel (0) target = $region17
    $region16: #{tpu_custom_call.1} parent=1 // pred_region
      _
    $region17: #{tpu_custom_call.1} parent=1 // pred_fallthru
      _
    // Predicated region
    $region18: #{tpu_custom_call.1} parent=1 // pred_check
      _
    $region19: #{tpu_custom_call.1} parent=1 // pred_check_branch
      %44 = sbr.rel (0) target = $region21
    $region20: #{tpu_custom_call.1} parent=1 // pred_region
      _
    $region21: #{tpu_custom_call.1} parent=1 // pred_fallthru
      _
    // Predicated region
    $region22: #{tpu_custom_call.1} parent=1 // pred_check
      _
    $region23: #{tpu_custom_call.1} parent=1 // pred_check_branch
      %46 = sbr.rel (0) target = $region25
    $region24: #{tpu_custom_call.1} parent=1 // pred_region
      _
    $region25: #{tpu_custom_call.1} parent=1 // pred_fallthru
      _
    // Predicated region
    $region26: #{tpu_custom_call.1} parent=1 // pred_check
      _
    $region27: #{tpu_custom_call.1} parent=1 // pred_check_branch
      %48 = sbr.rel (0) target = $region29
    $region28: #{tpu_custom_call.1} parent=1 // pred_region
      _
    $region29: #{tpu_custom_call.1} parent=1 // pred_fallthru
      _
    // Predicated region
    $region30: #{tpu_custom_call.1} parent=1 // pred_check
      _
    $region31: #{tpu_custom_call.1} parent=1 // pred_check_branch
      %50 = sbr.rel (0) target = $region33
    $region32: #{tpu_custom_call.1} parent=1 // pred_region
      _
    $region33: #{tpu_custom_call.1} parent=1 // pred_fallthru
      _
    // Predicated region
    $region34: #{tpu_custom_call.1} parent=1 // pred_check
      _
    $region35: #{tpu_custom_call.1} parent=1 // pred_check_branch
      %52 = sbr.rel (0) target = $region37
    $region36: #{tpu_custom_call.1} parent=1 // pred_region
      %53 = dma.done [#allocation6], 9216
    $region37: #{tpu_custom_call.1} parent=1 // pred_fallthru
      _
    // Predicated region
    $region38: #{tpu_custom_call.1} parent=1 // pred_check
      _
    $region39: #{tpu_custom_call.1} parent=1 // pred_check_branch
      %55 = sbr.rel (0) target = $region41
    $region40: #{tpu_custom_call.1} parent=1 // pred_region
      %56 = dma.done [#allocation8], 27648
    $region41: #{tpu_custom_call.1} parent=1 // pred_fallthru
      _
    %p58 = scmp.eq.s32.totalorder 0, 0
    // Predicated region
    $region42: #{tpu_custom_call.1} parent=1 // pred_check
      %p59 = pneg %p58
    $region43: #{tpu_custom_call.1} parent=1 // pred_check_branch
      %61 = sbr.rel (%p59) target = $region45
    $region44: #{tpu_custom_call.1} parent=1 // pred_region
      %62 = vst [vmem:[#allocation2] sm:$0xff] 0.0
      %63 = vst [vmem:[#allocation2 + $0x8] sm:$0xff] 0.0
      %64 = vst [vmem:[#allocation2 + $0x10] sm:$0xff] 0.0
      %65 = vst [vmem:[#allocation3] sm:$0xff] -inf
      %66 = vst [vmem:[#allocation3 + $0x8] sm:$0xff] -inf
      %67 = vst [vmem:[#allocation3 + $0x10] sm:$0xff] -inf
    $region45: #{tpu_custom_call.1} parent=1 // pred_fallthru
      _
    %v68 = vld [vmem:[#allocation7] sm:$0xff]
    %v69 = vld [vmem:[#allocation7 + $0x8] sm:$0xff]
    %v70 = vld [vmem:[#allocation7 + $0x10] sm:$0xff]
    %v71 = vld [vmem:[#allocation7 + $0x18] sm:$0xff]
    %v72 = vld [vmem:[#allocation7 + $0x20] sm:$0xf]
    %v73 = vld [vmem:[#allocation7 + $0x24] sm:$0xff]
    %v74 = vld [vmem:[#allocation7 + $0x2c] sm:$0xff]
    %v75 = vld [vmem:[#allocation7 + $0x34] sm:$0xff]
    %v76 = vld [vmem:[#allocation7 + $0x3c] sm:$0xff]
    %v77 = vld [vmem:[#allocation7 + $0x44] sm:$0xf]
    %v78 = vld [vmem:[#allocation7 + $0x48] sm:$0xff]
    %v79 = vld [vmem:[#allocation7 + $0x50] sm:$0xff]
    %v80 = vld [vmem:[#allocation7 + $0x58] sm:$0xff]
    %v81 = vld [vmem:[#allocation7 + $0x60] sm:$0xff]
    %v82 = vld [vmem:[#allocation7 + $0x68] sm:$0xf]
    %v83 = vld [vmem:[#allocation7 + $0x6c] sm:$0xff]
    %v84 = vld [vmem:[#allocation7 + $0x74] sm:$0xff]
    %v85 = vld [vmem:[#allocation7 + $0x7c] sm:$0xff]
    %v86 = vld [vmem:[#allocation7 + $0x84] sm:$0xff]
    %v87 = vld [vmem:[#allocation7 + $0x8c] sm:$0xf]
    %v88 = vld [vmem:[#allocation7 + $0x90] sm:$0xff]
    %v89 = vld [vmem:[#allocation7 + $0x98] sm:$0xff]
    %v90 = vld [vmem:[#allocation7 + $0xa0] sm:$0xff]
    %v91 = vld [vmem:[#allocation7 + $0xa8] sm:$0xff]
    %v92 = vld [vmem:[#allocation7 + $0xb0] sm:$0xf]
    %v93 = vld [vmem:[#allocation7 + $0xb4] sm:$0xff]
    %v94 = vld [vmem:[#allocation7 + $0xbc] sm:$0xff]
    %v95 = vld [vmem:[#allocation7 + $0xc4] sm:$0xff]
    %v96 = vld [vmem:[#allocation7 + $0xcc] sm:$0xff]
    %v97 = vld [vmem:[#allocation7 + $0xd4] sm:$0xf]
    %v98 = vld [vmem:[#allocation7 + $0xd8] sm:$0xff]
    %v99 = vld [vmem:[#allocation7 + $0xe0] sm:$0xff]
    %v100 = vld [vmem:[#allocation7 + $0xe8] sm:$0xff]
    %v101 = vld [vmem:[#allocation7 + $0xf0] sm:$0xff]
    %v102 = vld [vmem:[#allocation7 + $0xf8] sm:$0xf]
    %v103 = vld [vmem:[#allocation7 + $0xfc] sm:$0xff]
    %v104 = vld [vmem:[#allocation7 + $0x104] sm:$0xff]
    %v105 = vld [vmem:[#allocation7 + $0x10c] sm:$0xff]
    %v106 = vld [vmem:[#allocation7 + $0x114] sm:$0xff]
    %v107 = vld [vmem:[#allocation7 + $0x11c] sm:$0xf]
    %v108 = vld [vmem:[#allocation7 + $0x120] sm:$0xff]
    %v109 = vld [vmem:[#allocation7 + $0x128] sm:$0xff]
    %v110 = vld [vmem:[#allocation7 + $0x130] sm:$0xff]
    %v111 = vld [vmem:[#allocation7 + $0x138] sm:$0xff]
    %v112 = vld [vmem:[#allocation7 + $0x140] sm:$0xf]
    %v113 = vld [vmem:[#allocation7 + $0x144] sm:$0xff]
    %v114 = vld [vmem:[#allocation7 + $0x14c] sm:$0xff]
    %v115 = vld [vmem:[#allocation7 + $0x154] sm:$0xff]
    %v116 = vld [vmem:[#allocation7 + $0x15c] sm:$0xff]
    %v117 = vld [vmem:[#allocation7 + $0x164] sm:$0xf]
    %v118 = vld [vmem:[#allocation7 + $0x168] sm:$0xff]
    %v119 = vld [vmem:[#allocation7 + $0x170] sm:$0xff]
    %v120 = vld [vmem:[#allocation7 + $0x178] sm:$0xff]
    %v121 = vld [vmem:[#allocation7 + $0x180] sm:$0xff]
    %v122 = vld [vmem:[#allocation7 + $0x188] sm:$0xf]
    %v123 = vld [vmem:[#allocation7 + $0x18c] sm:$0xff]
    %v124 = vld [vmem:[#allocation7 + $0x194] sm:$0xff]
    %v125 = vld [vmem:[#allocation7 + $0x19c] sm:$0xff]
    %v126 = vld [vmem:[#allocation7 + $0x1a4] sm:$0xff]
    %v127 = vld [vmem:[#allocation7 + $0x1ac] sm:$0xf]
    %v128 = vld [vmem:[#allocation7 + $0x1b0] sm:$0xff]
    %v129 = vld [vmem:[#allocation7 + $0x1b8] sm:$0xff]
    %v130 = vld [vmem:[#allocation7 + $0x1c0] sm:$0xff]
    %v131 = vld [vmem:[#allocation7 + $0x1c8] sm:$0xff]
    %v132 = vld [vmem:[#allocation7 + $0x1d0] sm:$0xf]
    %v133 = vld [vmem:[#allocation7 + $0x1d4] sm:$0xff]
    %v134 = vld [vmem:[#allocation7 + $0x1dc] sm:$0xff]
    %v135 = vld [vmem:[#allocation7 + $0x1e4] sm:$0xff]
    %v136 = vld [vmem:[#allocation7 + $0x1ec] sm:$0xff]
    %v137 = vld [vmem:[#allocation7 + $0x1f4] sm:$0xf]
    %v138 = vld [vmem:[#allocation7 + $0x1f8] sm:$0xff]
    %v139 = vld [vmem:[#allocation7 + $0x200] sm:$0xff]
    %v140 = vld [vmem:[#allocation7 + $0x208] sm:$0xff]
    %v141 = vld [vmem:[#allocation7 + $0x210] sm:$0xff]
    %v142 = vld [vmem:[#allocation7 + $0x218] sm:$0xf]
    %v143 = vld [vmem:[#allocation7 + $0x21c] sm:$0xff]
    %v144 = vld [vmem:[#allocation7 + $0x224] sm:$0xff]
    %v145 = vld [vmem:[#allocation7 + $0x22c] sm:$0xff]
    %v146 = vld [vmem:[#allocation7 + $0x234] sm:$0xff]
    %v147 = vld [vmem:[#allocation7 + $0x23c] sm:$0xf]
    %v148 = vld [vmem:[#allocation7 + $0x240] sm:$0xff]
    %v149 = vld [vmem:[#allocation7 + $0x248] sm:$0xff]
    %v150 = vld [vmem:[#allocation7 + $0x250] sm:$0xff]
    %v151 = vld [vmem:[#allocation7 + $0x258] sm:$0xff]
    %v152 = vld [vmem:[#allocation7 + $0x260] sm:$0xf]
    %v153 = vld [vmem:[#allocation7 + $0x264] sm:$0xff]
    %v154 = vld [vmem:[#allocation7 + $0x26c] sm:$0xff]
    %v155 = vld [vmem:[#allocation7 + $0x274] sm:$0xff]
    %v156 = vld [vmem:[#allocation7 + $0x27c] sm:$0xff]
    %v157 = vld [vmem:[#allocation7 + $0x284] sm:$0xf]
    %v158 = vld [vmem:[#allocation7 + $0x288] sm:$0xff]
    %v159 = vld [vmem:[#allocation7 + $0x290] sm:$0xff]
    %v160 = vld [vmem:[#allocation7 + $0x298] sm:$0xff]
    %v161 = vld [vmem:[#allocation7 + $0x2a0] sm:$0xff]
    %v162 = vld [vmem:[#allocation7 + $0x2a8] sm:$0xf]
    %v163 = vld [vmem:[#allocation7 + $0x2ac] sm:$0xff]
    %v164 = vld [vmem:[#allocation7 + $0x2b4] sm:$0xff]
    %v165 = vld [vmem:[#allocation7 + $0x2bc] sm:$0xff]
    %v166 = vld [vmem:[#allocation7 + $0x2c4] sm:$0xff]
    %v167 = vld [vmem:[#allocation7 + $0x2cc] sm:$0xf]
    %v168 = vld [vmem:[#allocation7 + $0x2d0] sm:$0xff]
    %v169 = vld [vmem:[#allocation7 + $0x2d8] sm:$0xff]
    %v170 = vld [vmem:[#allocation7 + $0x2e0] sm:$0xff]
    %v171 = vld [vmem:[#allocation7 + $0x2e8] sm:$0xff]
    %v172 = vld [vmem:[#allocation7 + $0x2f0] sm:$0xf]
    %v173 = vld [vmem:[#allocation7 + $0x2f4] sm:$0xff]
    %v174 = vld [vmem:[#allocation7 + $0x2fc] sm:$0xff]
    %v175 = vld [vmem:[#allocation7 + $0x304] sm:$0xff]
    %v176 = vld [vmem:[#allocation7 + $0x30c] sm:$0xff]
    %v177 = vld [vmem:[#allocation7 + $0x314] sm:$0xf]
    %v178 = vld [vmem:[#allocation7 + $0x318] sm:$0xff]
    %v179 = vld [vmem:[#allocation7 + $0x320] sm:$0xff]
    %v180 = vld [vmem:[#allocation7 + $0x328] sm:$0xff]
    %v181 = vld [vmem:[#allocation7 + $0x330] sm:$0xff]
    %v182 = vld [vmem:[#allocation7 + $0x338] sm:$0xf]
    %v183 = vld [vmem:[#allocation7 + $0x33c] sm:$0xff]
    %v184 = vld [vmem:[#allocation7 + $0x344] sm:$0xff]
    %v185 = vld [vmem:[#allocation7 + $0x34c] sm:$0xff]
    %v186 = vld [vmem:[#allocation7 + $0x354] sm:$0xff]
    %v187 = vld [vmem:[#allocation7 + $0x35c] sm:$0xf]
    %v188 = vld [vmem:[#allocation7 + $0x360] sm:$0xff]
    %v189 = vld [vmem:[#allocation7 + $0x368] sm:$0xff]
    %v190 = vld [vmem:[#allocation7 + $0x370] sm:$0xff]
    %v191 = vld [vmem:[#allocation7 + $0x378] sm:$0xff]
    %v192 = vld [vmem:[#allocation7 + $0x380] sm:$0xf]
    %v193 = vld [vmem:[#allocation7 + $0x384] sm:$0xff]
    %v194 = vld [vmem:[#allocation7 + $0x38c] sm:$0xff]
    %v195 = vld [vmem:[#allocation7 + $0x394] sm:$0xff]
    %v196 = vld [vmem:[#allocation7 + $0x39c] sm:$0xff]
    %v197 = vld [vmem:[#allocation7 + $0x3a4] sm:$0xf]
    %v198 = vld [vmem:[#allocation7 + $0x3a8] sm:$0xff]
    %v199 = vld [vmem:[#allocation7 + $0x3b0] sm:$0xff]
    %v200 = vld [vmem:[#allocation7 + $0x3b8] sm:$0xff]
    %v201 = vld [vmem:[#allocation7 + $0x3c0] sm:$0xff]
    %v202 = vld [vmem:[#allocation7 + $0x3c8] sm:$0xf]
    %v203 = vld [vmem:[#allocation7 + $0x3cc] sm:$0xff]
    %v204 = vld [vmem:[#allocation7 + $0x3d4] sm:$0xff]
    %v205 = vld [vmem:[#allocation7 + $0x3dc] sm:$0xff]
    %v206 = vld [vmem:[#allocation7 + $0x3e4] sm:$0xff]
    %v207 = vld [vmem:[#allocation7 + $0x3ec] sm:$0xf]
    %v208 = vld [vmem:[#allocation7 + $0x3f0] sm:$0xff]
    %v209 = vld [vmem:[#allocation7 + $0x3f8] sm:$0xff]
    %v210 = vld [vmem:[#allocation7 + $0x400] sm:$0xff]
    %v211 = vld [vmem:[#allocation7 + $0x408] sm:$0xff]
    %v212 = vld [vmem:[#allocation7 + $0x410] sm:$0xf]
    %v213 = vld [vmem:[#allocation7 + $0x414] sm:$0xff]
    %v214 = vld [vmem:[#allocation7 + $0x41c] sm:$0xff]
    %v215 = vld [vmem:[#allocation7 + $0x424] sm:$0xff]
    %v216 = vld [vmem:[#allocation7 + $0x42c] sm:$0xff]
    %v217 = vld [vmem:[#allocation7 + $0x434] sm:$0xf]
    %v218 = vld [vmem:[#allocation7 + $0x438] sm:$0xff]
    %v219 = vld [vmem:[#allocation7 + $0x440] sm:$0xff]
    %v220 = vld [vmem:[#allocation7 + $0x448] sm:$0xff]
    %v221 = vld [vmem:[#allocation7 + $0x450] sm:$0xff]
    %v222 = vld [vmem:[#allocation7 + $0x458] sm:$0xf]
    %v223 = vld [vmem:[#allocation7 + $0x45c] sm:$0xff]
    %v224 = vld [vmem:[#allocation7 + $0x464] sm:$0xff]
    %v225 = vld [vmem:[#allocation7 + $0x46c] sm:$0xff]
    %v226 = vld [vmem:[#allocation7 + $0x474] sm:$0xff]
    %v227 = vld [vmem:[#allocation7 + $0x47c] sm:$0xf]
    %v228 = vld [vmem:[#allocation7 + $0x480] sm:$0xff]
    %v229 = vld [vmem:[#allocation7 + $0x488] sm:$0xff]
    %v230 = vld [vmem:[#allocation7 + $0x490] sm:$0xff]
    %v231 = vld [vmem:[#allocation7 + $0x498] sm:$0xff]
    %v232 = vld [vmem:[#allocation7 + $0x4a0] sm:$0xf]
    %v233 = vld [vmem:[#allocation7 + $0x4a4] sm:$0xff]
    %v234 = vld [vmem:[#allocation7 + $0x4ac] sm:$0xff]
    %v235 = vld [vmem:[#allocation7 + $0x4b4] sm:$0xff]
    %v236 = vld [vmem:[#allocation7 + $0x4bc] sm:$0xff]
    %v237 = vld [vmem:[#allocation7 + $0x4c4] sm:$0xf]
    %v238 = vld [vmem:[#allocation7 + $0x4c8] sm:$0xff]
    %v239 = vld [vmem:[#allocation7 + $0x4d0] sm:$0xff]
    %v240 = vld [vmem:[#allocation7 + $0x4d8] sm:$0xff]
    %v241 = vld [vmem:[#allocation7 + $0x4e0] sm:$0xff]
    %v242 = vld [vmem:[#allocation7 + $0x4e8] sm:$0xf]
    %v243 = vld [vmem:[#allocation7 + $0x4ec] sm:$0xff]
    %v244 = vld [vmem:[#allocation7 + $0x4f4] sm:$0xff]
    %v245 = vld [vmem:[#allocation7 + $0x4fc] sm:$0xff]
    %v246 = vld [vmem:[#allocation7 + $0x504] sm:$0xff]
    %v247 = vld [vmem:[#allocation7 + $0x50c] sm:$0xf]
    %v248 = vld [vmem:[#allocation7 + $0x510] sm:$0xff]
    %v249 = vld [vmem:[#allocation7 + $0x518] sm:$0xff]
    %v250 = vld [vmem:[#allocation7 + $0x520] sm:$0xff]
    %v251 = vld [vmem:[#allocation7 + $0x528] sm:$0xff]
    %v252 = vld [vmem:[#allocation7 + $0x530] sm:$0xf]
    %v253 = vld [vmem:[#allocation7 + $0x534] sm:$0xff]
    %v254 = vld [vmem:[#allocation7 + $0x53c] sm:$0xff]
    %v255 = vld [vmem:[#allocation7 + $0x544] sm:$0xff]
    %v256 = vld [vmem:[#allocation7 + $0x54c] sm:$0xff]
    %v257 = vld [vmem:[#allocation7 + $0x554] sm:$0xf]
    %v258 = vld [vmem:[#allocation7 + $0x558] sm:$0xff]
    %v259 = vld [vmem:[#allocation7 + $0x560] sm:$0xff]
    %v260 = vld [vmem:[#allocation7 + $0x568] sm:$0xff]
    %v261 = vld [vmem:[#allocation7 + $0x570] sm:$0xff]
    %v262 = vld [vmem:[#allocation7 + $0x578] sm:$0xf]
    %v263 = vld [vmem:[#allocation7 + $0x57c] sm:$0xff]
    %v264 = vld [vmem:[#allocation7 + $0x584] sm:$0xff]
    %v265 = vld [vmem:[#allocation7 + $0x58c] sm:$0xff]
    %v266 = vld [vmem:[#allocation7 + $0x594] sm:$0xff]
    %v267 = vld [vmem:[#allocation7 + $0x59c] sm:$0xf]
    %v268 = vld [vmem:[#allocation7 + $0x5a0] sm:$0xff]
    %v269 = vld [vmem:[#allocation7 + $0x5a8] sm:$0xff]
    %v270 = vld [vmem:[#allocation7 + $0x5b0] sm:$0xff]
    %v271 = vld [vmem:[#allocation7 + $0x5b8] sm:$0xff]
    %v272 = vld [vmem:[#allocation7 + $0x5c0] sm:$0xf]
    %v273 = vld [vmem:[#allocation7 + $0x5c4] sm:$0xff]
    %v274 = vld [vmem:[#allocation7 + $0x5cc] sm:$0xff]
    %v275 = vld [vmem:[#allocation7 + $0x5d4] sm:$0xff]
    %v276 = vld [vmem:[#allocation7 + $0x5dc] sm:$0xff]
    %v277 = vld [vmem:[#allocation7 + $0x5e4] sm:$0xf]
    %v278 = vld [vmem:[#allocation7 + $0x5e8] sm:$0xff]
    %v279 = vld [vmem:[#allocation7 + $0x5f0] sm:$0xff]
    %v280 = vld [vmem:[#allocation7 + $0x5f8] sm:$0xff]
    %v281 = vld [vmem:[#allocation7 + $0x600] sm:$0xff]
    %v282 = vld [vmem:[#allocation7 + $0x608] sm:$0xf]
    %v283 = vld [vmem:[#allocation7 + $0x60c] sm:$0xff]
    %v284 = vld [vmem:[#allocation7 + $0x614] sm:$0xff]
    %v285 = vld [vmem:[#allocation7 + $0x61c] sm:$0xff]
    %v286 = vld [vmem:[#allocation7 + $0x624] sm:$0xff]
    %v287 = vld [vmem:[#allocation7 + $0x62c] sm:$0xf]
    %v288 = vld [vmem:[#allocation7 + $0x630] sm:$0xff]
    %v289 = vld [vmem:[#allocation7 + $0x638] sm:$0xff]
    %v290 = vld [vmem:[#allocation7 + $0x640] sm:$0xff]
    %v291 = vld [vmem:[#allocation7 + $0x648] sm:$0xff]
    %v292 = vld [vmem:[#allocation7 + $0x650] sm:$0xf]
    %v293 = vld [vmem:[#allocation7 + $0x654] sm:$0xff]
    %v294 = vld [vmem:[#allocation7 + $0x65c] sm:$0xff]
    %v295 = vld [vmem:[#allocation7 + $0x664] sm:$0xff]
    %v296 = vld [vmem:[#allocation7 + $0x66c] sm:$0xff]
    %v297 = vld [vmem:[#allocation7 + $0x674] sm:$0xf]
    %v298 = vld [vmem:[#allocation7 + $0x678] sm:$0xff]
    %v299 = vld [vmem:[#allocation7 + $0x680] sm:$0xff]
    %v300 = vld [vmem:[#allocation7 + $0x688] sm:$0xff]
    %v301 = vld [vmem:[#allocation7 + $0x690] sm:$0xff]
    %v302 = vld [vmem:[#allocation7 + $0x698] sm:$0xf]
    %v303 = vld [vmem:[#allocation7 + $0x69c] sm:$0xff]
    %v304 = vld [vmem:[#allocation7 + $0x6a4] sm:$0xff]
    %v305 = vld [vmem:[#allocation7 + $0x6ac] sm:$0xff]
    %v306 = vld [vmem:[#allocation7 + $0x6b4] sm:$0xff]
    %v307 = vld [vmem:[#allocation7 + $0x6bc] sm:$0xf]
    %v308 = vld [vmem:[%s4] sm:$0x7]
    %v310 = vlaneseq
    %v311 = vshrl.u32 %v310, 7
    %v312 = vsub.s32 0, %v311
    %v313 = vrot.slane %v308, %v312
    %v314 = vlaneseq
    %v315 = vshrl.u32 %v314, 7
    %v316 = vsub.s32 1, %v315
    %v317 = vrot.slane %v308, %v316
    %v318 = vlaneseq
    %v319 = vshrl.u32 %v318, 7
    %v320 = vsub.s32 2, %v319
    %v321 = vrot.slane %v308, %v320
    %v325 = vld [vmem:[%s0] sm:$0xf]
    %v326 = vld [vmem:[%s0 + $0x4] sm:$0xf]
    %v327 = vld [vmem:[%s0 + $0x8] sm:$0xf]
    %v328 = vld [vmem:[%s0 + $0xc] sm:$0xf]
    %v329 = vld [vmem:[%s0 + $0x10] sm:$0xf]
    %v330 = vld [vmem:[%s0 + $0x14] sm:$0xf]
    %v331 = vld [vmem:[%s0 + $0x18] sm:$0xf]
    %v332 = vld [vmem:[%s0 + $0x1c] sm:$0xf]
    %v333 = vld [vmem:[#allocation5] sm:$0xff]
    %v334 = vld [vmem:[#allocation5 + $0x8] sm:$0xff]
    %v335 = vld [vmem:[#allocation5 + $0x10] sm:$0xff]
    %v336 = vld [vmem:[#allocation5 + $0x18] sm:$0xff]
    %v337 = vld [vmem:[#allocation5 + $0x20] sm:$0xf]
    %v338 = vld [vmem:[#allocation5 + $0x24] sm:$0xff]
    %v339 = vld [vmem:[#allocation5 + $0x2c] sm:$0xff]
    %v340 = vld [vmem:[#allocation5 + $0x34] sm:$0xff]
    %v341 = vld [vmem:[#allocation5 + $0x3c] sm:$0xff]
    %v342 = vld [vmem:[#allocation5 + $0x44] sm:$0xf]
    %v343 = vld [vmem:[#allocation5 + $0x48] sm:$0xff]
    %v344 = vld [vmem:[#allocation5 + $0x50] sm:$0xff]
    %v345 = vld [vmem:[#allocation5 + $0x58] sm:$0xff]
    %v346 = vld [vmem:[#allocation5 + $0x60] sm:$0xff]
    %v347 = vld [vmem:[#allocation5 + $0x68] sm:$0xf]
    %v348 = vld [vmem:[#allocation5 + $0x6c] sm:$0xff]
    %v349 = vld [vmem:[#allocation5 + $0x74] sm:$0xff]
    %v350 = vld [vmem:[#allocation5 + $0x7c] sm:$0xff]
    %v351 = vld [vmem:[#allocation5 + $0x84] sm:$0xff]
    %v352 = vld [vmem:[#allocation5 + $0x8c] sm:$0xf]
    %v353 = vld [vmem:[#allocation5 + $0x90] sm:$0xff]
    %v354 = vld [vmem:[#allocation5 + $0x98] sm:$0xff]
    %v355 = vld [vmem:[#allocation5 + $0xa0] sm:$0xff]
    %v356 = vld [vmem:[#allocation5 + $0xa8] sm:$0xff]
    %v357 = vld [vmem:[#allocation5 + $0xb0] sm:$0xf]
    %v358 = vld [vmem:[#allocation5 + $0xb4] sm:$0xff]
    %v359 = vld [vmem:[#allocation5 + $0xbc] sm:$0xff]
    %v360 = vld [vmem:[#allocation5 + $0xc4] sm:$0xff]
    %v361 = vld [vmem:[#allocation5 + $0xcc] sm:$0xff]
    %v362 = vld [vmem:[#allocation5 + $0xd4] sm:$0xf]
    %v363 = vld [vmem:[#allocation5 + $0xd8] sm:$0xff]
    %v364 = vld [vmem:[#allocation5 + $0xe0] sm:$0xff]
    %v365 = vld [vmem:[#allocation5 + $0xe8] sm:$0xff]
    %v366 = vld [vmem:[#allocation5 + $0xf0] sm:$0xff]
    %v367 = vld [vmem:[#allocation5 + $0xf8] sm:$0xf]
    %v368 = vld [vmem:[#allocation5 + $0xfc] sm:$0xff]
    %v369 = vld [vmem:[#allocation5 + $0x104] sm:$0xff]
    %v370 = vld [vmem:[#allocation5 + $0x10c] sm:$0xff]
    %v371 = vld [vmem:[#allocation5 + $0x114] sm:$0xff]
    %v372 = vld [vmem:[#allocation5 + $0x11c] sm:$0xf]
    %v373 = vld [vmem:[#allocation5 + $0x120] sm:$0xff]
    %v374 = vld [vmem:[#allocation5 + $0x128] sm:$0xff]
    %v375 = vld [vmem:[#allocation5 + $0x130] sm:$0xff]
    %v376 = vld [vmem:[#allocation5 + $0x138] sm:$0xff]
    %v377 = vld [vmem:[#allocation5 + $0x140] sm:$0xf]
    %v378 = vld [vmem:[#allocation5 + $0x144] sm:$0xff]
    %v379 = vld [vmem:[#allocation5 + $0x14c] sm:$0xff]
    %v380 = vld [vmem:[#allocation5 + $0x154] sm:$0xff]
    %v381 = vld [vmem:[#allocation5 + $0x15c] sm:$0xff]
    %v382 = vld [vmem:[#allocation5 + $0x164] sm:$0xf]
    %v383 = vld [vmem:[#allocation5 + $0x168] sm:$0xff]
    %v384 = vld [vmem:[#allocation5 + $0x170] sm:$0xff]
    %v385 = vld [vmem:[#allocation5 + $0x178] sm:$0xff]
    %v386 = vld [vmem:[#allocation5 + $0x180] sm:$0xff]
    %v387 = vld [vmem:[#allocation5 + $0x188] sm:$0xf]
    %v388 = vld [vmem:[#allocation5 + $0x18c] sm:$0xff]
    %v389 = vld [vmem:[#allocation5 + $0x194] sm:$0xff]
    %v390 = vld [vmem:[#allocation5 + $0x19c] sm:$0xff]
    %v391 = vld [vmem:[#allocation5 + $0x1a4] sm:$0xff]
    %v392 = vld [vmem:[#allocation5 + $0x1ac] sm:$0xf]
    %v393 = vld [vmem:[#allocation5 + $0x1b0] sm:$0xff]
    %v394 = vld [vmem:[#allocation5 + $0x1b8] sm:$0xff]
    %v395 = vld [vmem:[#allocation5 + $0x1c0] sm:$0xff]
    %v396 = vld [vmem:[#allocation5 + $0x1c8] sm:$0xff]
    %v397 = vld [vmem:[#allocation5 + $0x1d0] sm:$0xf]
    %v398 = vld [vmem:[#allocation5 + $0x1d4] sm:$0xff]
    %v399 = vld [vmem:[#allocation5 + $0x1dc] sm:$0xff]
    %v400 = vld [vmem:[#allocation5 + $0x1e4] sm:$0xff]
    %v401 = vld [vmem:[#allocation5 + $0x1ec] sm:$0xff]
    %v402 = vld [vmem:[#allocation5 + $0x1f4] sm:$0xf]
    %v403 = vld [vmem:[#allocation5 + $0x1f8] sm:$0xff]
    %v404 = vld [vmem:[#allocation5 + $0x200] sm:$0xff]
    %v405 = vld [vmem:[#allocation5 + $0x208] sm:$0xff]
    %v406 = vld [vmem:[#allocation5 + $0x210] sm:$0xff]
    %v407 = vld [vmem:[#allocation5 + $0x218] sm:$0xf]
    %v408 = vld [vmem:[#allocation5 + $0x21c] sm:$0xff]
    %v409 = vld [vmem:[#allocation5 + $0x224] sm:$0xff]
    %v410 = vld [vmem:[#allocation5 + $0x22c] sm:$0xff]
    %v411 = vld [vmem:[#allocation5 + $0x234] sm:$0xff]
    %v412 = vld [vmem:[#allocation5 + $0x23c] sm:$0xf]
    %v413 = vld [vmem:[%s3] sm:$0xff]
    %v414 = vld [vmem:[%s3 + $0x8] sm:$0x1]
    %v417 = vlaneseq
    %v418 = vshrl.u32 %v417, 7
    %v419 = vsub.s32 0, %v418
    %v420 = vrot.slane %v413, %v419
    %v421 = vlaneseq
    %v422 = vshrl.u32 %v421, 7
    %v423 = vsub.s32 1, %v422
    %v424 = vrot.slane %v413, %v423
    %v425 = vlaneseq
    %v426 = vshrl.u32 %v425, 7
    %v427 = vsub.s32 2, %v426
    %v428 = vrot.slane %v413, %v427
    %v429 = vlaneseq
    %v430 = vshrl.u32 %v429, 7
    %v431 = vsub.s32 3, %v430
    %v432 = vrot.slane %v413, %v431
    %v433 = vlaneseq
    %v434 = vshrl.u32 %v433, 7
    %v435 = vsub.s32 4, %v434
    %v436 = vrot.slane %v413, %v435
    %v437 = vlaneseq
    %v438 = vshrl.u32 %v437, 7
    %v439 = vsub.s32 5, %v438
    %v440 = vrot.slane %v413, %v439
    %v441 = vlaneseq
    %v442 = vshrl.u32 %v441, 7
    %v443 = vsub.s32 6, %v442
    %v444 = vrot.slane %v413, %v443
    %v445 = vlaneseq
    %v446 = vshrl.u32 %v445, 7
    %v447 = vsub.s32 7, %v446
    %v448 = vrot.slane %v413, %v447
    %v449 = vlaneseq
    %v450 = vshrl.u32 %v449, 7
    %v451 = vsub.s32 0, %v450
    %v452 = vrot.slane %v414, %v451
    %v470 = vunpack.c.l.b16 %v325
    %v471 = vunpack.c.l.b16 %v326
    %v472 = vunpack.c.l.b16 %v327
    %v473 = vunpack.c.l.b16 %v328
    %v474 = vunpack.c.l.b16 %v329
    %v475 = vunpack.c.l.b16 %v330
    %v476 = vunpack.c.l.b16 %v331
    %v477 = vunpack.c.l.b16 %v332
    %v478 = vpack.c.b16 %v471, %v470
    %v479 = vpack.c.b16 %v473, %v472
    %v480 = vpack.c.b16 %v475, %v474
    %v481 = vpack.c.b16 %v477, %v476
    %v566 = vunpack.c.l.b16 %v333
    %v567 = vunpack.c.h.b16 %v333
    %v568 = vunpack.c.l.b16 %v334
    %v569 = vunpack.c.h.b16 %v334
    %v570 = vunpack.c.l.b16 %v335
    %v571 = vunpack.c.h.b16 %v335
    %v572 = vunpack.c.l.b16 %v336
    %v573 = vunpack.c.h.b16 %v336
    %v574 = vunpack.c.l.b16 %v337
    %v575 = vunpack.c.l.b16 %v338
    %v576 = vunpack.c.h.b16 %v338
    %v577 = vunpack.c.l.b16 %v339
    %v578 = vunpack.c.h.b16 %v339
    %v579 = vunpack.c.l.b16 %v340
    %v580 = vunpack.c.h.b16 %v340
    %v581 = vunpack.c.l.b16 %v341
    %v582 = vunpack.c.h.b16 %v341
    %v583 = vunpack.c.l.b16 %v342
    %v584 = vunpack.c.l.b16 %v343
    %v585 = vunpack.c.h.b16 %v343
    %v586 = vunpack.c.l.b16 %v344
    %v587 = vunpack.c.h.b16 %v344
    %v588 = vunpack.c.l.b16 %v345
    %v589 = vunpack.c.h.b16 %v345
    %v590 = vunpack.c.l.b16 %v346
    %v591 = vunpack.c.h.b16 %v346
    %v592 = vunpack.c.l.b16 %v347
    %v593 = vunpack.c.l.b16 %v348
    %v594 = vunpack.c.h.b16 %v348
    %v595 = vunpack.c.l.b16 %v349
    %v596 = vunpack.c.h.b16 %v349
    %v597 = vunpack.c.l.b16 %v350
    %v598 = vunpack.c.h.b16 %v350
    %v599 = vunpack.c.l.b16 %v351
    %v600 = vunpack.c.h.b16 %v351
    %v601 = vunpack.c.l.b16 %v352
    %v602 = vunpack.c.l.b16 %v353
    %v603 = vunpack.c.h.b16 %v353
    %v604 = vunpack.c.l.b16 %v354
    %v605 = vunpack.c.h.b16 %v354
    %v606 = vunpack.c.l.b16 %v355
    %v607 = vunpack.c.h.b16 %v355
    %v608 = vunpack.c.l.b16 %v356
    %v609 = vunpack.c.h.b16 %v356
    %v610 = vunpack.c.l.b16 %v357
    %v611 = vunpack.c.l.b16 %v358
    %v612 = vunpack.c.h.b16 %v358
    %v613 = vunpack.c.l.b16 %v359
    %v614 = vunpack.c.h.b16 %v359
    %v615 = vunpack.c.l.b16 %v360
    %v616 = vunpack.c.h.b16 %v360
    %v617 = vunpack.c.l.b16 %v361
    %v618 = vunpack.c.h.b16 %v361
    %v619 = vunpack.c.l.b16 %v362
    %v620 = vunpack.c.l.b16 %v363
    %v621 = vunpack.c.h.b16 %v363
    %v622 = vunpack.c.l.b16 %v364
    %v623 = vunpack.c.h.b16 %v364
    %v624 = vunpack.c.l.b16 %v365
    %v625 = vunpack.c.h.b16 %v365
    %v626 = vunpack.c.l.b16 %v366
    %v627 = vunpack.c.h.b16 %v366
    %v628 = vunpack.c.l.b16 %v367
    %v629 = vunpack.c.l.b16 %v368
    %v630 = vunpack.c.h.b16 %v368
    %v631 = vunpack.c.l.b16 %v369
    %v632 = vunpack.c.h.b16 %v369
    %v633 = vunpack.c.l.b16 %v370
    %v634 = vunpack.c.h.b16 %v370
    %v635 = vunpack.c.l.b16 %v371
    %v636 = vunpack.c.h.b16 %v371
    %v637 = vunpack.c.l.b16 %v372
    %v638 = vunpack.c.l.b16 %v373
    %v639 = vunpack.c.h.b16 %v373
    %v640 = vunpack.c.l.b16 %v374
    %v641 = vunpack.c.h.b16 %v374
    %v642 = vunpack.c.l.b16 %v375
    %v643 = vunpack.c.h.b16 %v375
    %v644 = vunpack.c.l.b16 %v376
    %v645 = vunpack.c.h.b16 %v376
    %v646 = vunpack.c.l.b16 %v377
    %v647 = vunpack.c.l.b16 %v378
    %v648 = vunpack.c.h.b16 %v378
    %v649 = vunpack.c.l.b16 %v379
    %v650 = vunpack.c.h.b16 %v379
    %v651 = vunpack.c.l.b16 %v380
    %v652 = vunpack.c.h.b16 %v380
    %v653 = vunpack.c.l.b16 %v381
    %v654 = vunpack.c.h.b16 %v381
    %v655 = vunpack.c.l.b16 %v382
    %v656 = vunpack.c.l.b16 %v383
    %v657 = vunpack.c.h.b16 %v383
    %v658 = vunpack.c.l.b16 %v384
    %v659 = vunpack.c.h.b16 %v384
    %v660 = vunpack.c.l.b16 %v385
    %v661 = vunpack.c.h.b16 %v385
    %v662 = vunpack.c.l.b16 %v386
    %v663 = vunpack.c.h.b16 %v386
    %v664 = vunpack.c.l.b16 %v387
    %v665 = vunpack.c.l.b16 %v388
    %v666 = vunpack.c.h.b16 %v388
    %v667 = vunpack.c.l.b16 %v389
    %v668 = vunpack.c.h.b16 %v389
    %v669 = vunpack.c.l.b16 %v390
    %v670 = vunpack.c.h.b16 %v390
    %v671 = vunpack.c.l.b16 %v391
    %v672 = vunpack.c.h.b16 %v391
    %v673 = vunpack.c.l.b16 %v392
    %v674 = vunpack.c.l.b16 %v393
    %v675 = vunpack.c.h.b16 %v393
    %v676 = vunpack.c.l.b16 %v394
    %v677 = vunpack.c.h.b16 %v394
    %v678 = vunpack.c.l.b16 %v395
    %v679 = vunpack.c.h.b16 %v395
    %v680 = vunpack.c.l.b16 %v396
    %v681 = vunpack.c.h.b16 %v396
    %v682 = vunpack.c.l.b16 %v397
    %v683 = vunpack.c.l.b16 %v398
    %v684 = vunpack.c.h.b16 %v398
    %v685 = vunpack.c.l.b16 %v399
    %v686 = vunpack.c.h.b16 %v399
    %v687 = vunpack.c.l.b16 %v400
    %v688 = vunpack.c.h.b16 %v400
    %v689 = vunpack.c.l.b16 %v401
    %v690 = vunpack.c.h.b16 %v401
    %v691 = vunpack.c.l.b16 %v402
    %v692 = vunpack.c.l.b16 %v403
    %v693 = vunpack.c.h.b16 %v403
    %v694 = vunpack.c.l.b16 %v404
    %v695 = vunpack.c.h.b16 %v404
    %v696 = vunpack.c.l.b16 %v405
    %v697 = vunpack.c.h.b16 %v405
    %v698 = vunpack.c.l.b16 %v406
    %v699 = vunpack.c.h.b16 %v406
    %v700 = vunpack.c.l.b16 %v407
    %v701 = vunpack.c.l.b16 %v408
    %v702 = vunpack.c.h.b16 %v408
    %v703 = vunpack.c.l.b16 %v409
    %v704 = vunpack.c.h.b16 %v409
    %v705 = vunpack.c.l.b16 %v410
    %v706 = vunpack.c.h.b16 %v410
    %v707 = vunpack.c.l.b16 %v411
    %v708 = vunpack.c.h.b16 %v411
    %v709 = vunpack.c.l.b16 %v412
    %v710 = vpack.c.b16 %v575, %v566
    %v711 = vpack.c.b16 %v576, %v567
    %v712 = vpack.c.b16 %v577, %v568
    %v713 = vpack.c.b16 %v578, %v569
    %v714 = vpack.c.b16 %v579, %v570
    %v715 = vpack.c.b16 %v580, %v571
    %v716 = vpack.c.b16 %v581, %v572
    %v717 = vpack.c.b16 %v582, %v573
    %v718 = vpack.c.b16 %v583, %v574
    %v719 = vpack.c.b16 %v593, %v584
    %v720 = vpack.c.b16 %v594, %v585
    %v721 = vpack.c.b16 %v595, %v586
    %v722 = vpack.c.b16 %v596, %v587
    %v723 = vpack.c.b16 %v597, %v588
    %v724 = vpack.c.b16 %v598, %v589
    %v725 = vpack.c.b16 %v599, %v590
    %v726 = vpack.c.b16 %v600, %v591
    %v727 = vpack.c.b16 %v601, %v592
    %v728 = vpack.c.b16 %v611, %v602
    %v729 = vpack.c.b16 %v612, %v603
    %v730 = vpack.c.b16 %v613, %v604
    %v731 = vpack.c.b16 %v614, %v605
    %v732 = vpack.c.b16 %v615, %v606
    %v733 = vpack.c.b16 %v616, %v607
    %v734 = vpack.c.b16 %v617, %v608
    %v735 = vpack.c.b16 %v618, %v609
    %v736 = vpack.c.b16 %v619, %v610
    %v737 = vpack.c.b16 %v629, %v620
    %v738 = vpack.c.b16 %v630, %v621
    %v739 = vpack.c.b16 %v631, %v622
    %v740 = vpack.c.b16 %v632, %v623
    %v741 = vpack.c.b16 %v633, %v624
    %v742 = vpack.c.b16 %v634, %v625
    %v743 = vpack.c.b16 %v635, %v626
    %v744 = vpack.c.b16 %v636, %v627
    %v745 = vpack.c.b16 %v637, %v628
    %v746 = vpack.c.b16 %v647, %v638
    %v747 = vpack.c.b16 %v648, %v639
    %v748 = vpack.c.b16 %v649, %v640
    %v749 = vpack.c.b16 %v650, %v641
    %v750 = vpack.c.b16 %v651, %v642
    %v751 = vpack.c.b16 %v652, %v643
    %v752 = vpack.c.b16 %v653, %v644
    %v753 = vpack.c.b16 %v654, %v645
    %v754 = vpack.c.b16 %v655, %v646
    %v755 = vpack.c.b16 %v665, %v656
    %v756 = vpack.c.b16 %v666, %v657
    %v757 = vpack.c.b16 %v667, %v658
    %v758 = vpack.c.b16 %v668, %v659
    %v759 = vpack.c.b16 %v669, %v660
    %v760 = vpack.c.b16 %v670, %v661
    %v761 = vpack.c.b16 %v671, %v662
    %v762 = vpack.c.b16 %v672, %v663
    %v763 = vpack.c.b16 %v673, %v664
    %v764 = vpack.c.b16 %v683, %v674
    %v765 = vpack.c.b16 %v684, %v675
    %v766 = vpack.c.b16 %v685, %v676
    %v767 = vpack.c.b16 %v686, %v677
    %v768 = vpack.c.b16 %v687, %v678
    %v769 = vpack.c.b16 %v688, %v679
    %v770 = vpack.c.b16 %v689, %v680
    %v771 = vpack.c.b16 %v690, %v681
    %v772 = vpack.c.b16 %v691, %v682
    %v773 = vpack.c.b16 %v701, %v692
    %v774 = vpack.c.b16 %v702, %v693
    %v775 = vpack.c.b16 %v703, %v694
    %v776 = vpack.c.b16 %v704, %v695
    %v777 = vpack.c.b16 %v705, %v696
    %v778 = vpack.c.b16 %v706, %v697
    %v779 = vpack.c.b16 %v707, %v698
    %v780 = vpack.c.b16 %v708, %v699
    %v781 = vpack.c.b16 %v709, %v700
    %854 = vmatprep.subr.bf16.mxu0 %v711
    %855 = vmatpush1.bf16.msra.mxu0 %v710
    %856 = vmatprep.subr.bf16.mxu0 %v720
    %857 = vmatpush1.bf16.msra.mxu0 %v719
    %858 = vmatprep.subr.bf16.mxu0 %v729
    %859 = vmatpush1.bf16.msra.mxu0 %v728
    %860 = vmatprep.subr.bf16.mxu0 %v738
    %861 = vmatpush1.bf16.msra.mxu0 %v737
    %862 = vmatprep.subr.bf16.mxu0 %v747
    %863 = vmatpush1.bf16.msra.mxu0 %v746
    %864 = vmatprep.subr.bf16.mxu0 %v756
    %865 = vmatpush1.bf16.msra.mxu0 %v755
    %866 = vmatprep.subr.bf16.mxu0 %v765
    %867 = vmatpush1.bf16.msra.mxu0 %v764
    %868 = vmatprep.subr.bf16.mxu0 %v774
    %869 = vmatpush1.bf16.msra.mxu0 %v773
    %870 = vmatprep.subr.bf16.mxu0 0
    %871 = vmatpush1.bf16.msra.mxu0 0
    %872 = vmatprep.subr.bf16.mxu0 0
    %873 = vmatpush1.bf16.msra.mxu0 0
    %874 = vmatprep.subr.bf16.mxu0 0
    %875 = vmatpush1.bf16.msra.mxu0 0
    %876 = vmatprep.subr.bf16.mxu0 0
    %877 = vmatpush1.bf16.msra.mxu0 0
    %878 = vmatprep.subr.bf16.mxu0 0
    %879 = vmatpush1.bf16.msra.mxu0 0
    %880 = vmatprep.subr.bf16.mxu0 0
    %881 = vmatpush1.bf16.msra.mxu0 0
    %882 = vmatprep.subr.bf16.mxu0 0
    %883 = vmatpush1.bf16.msra.mxu0 0
    %884 = vmatprep.subr.bf16.mxu0 0
    %885 = vmatpush1.bf16.msra.mxu0 0
    %886 = vmatprep.mubr.bf16.mxu0 0
    %887 = vmatmul.mubr.bf16.gmra.mrb[0].mxu0 %v478
    %v888 = vpop.f32.mrb[0].mxu0
    %v889 = vadd.f32 %v420, %v888
    %v890 = vpop.f32.mrb[0].mxu0
    %v891 = vadd.f32 %v424, %v890
    %v892 = vpop.f32.mrb[0].mxu0
    %v893 = vadd.f32 %v420, %v892
    %v894 = vpop.f32.mrb[0].mxu0
    %v895 = vadd.f32 %v424, %v894
    %896 = vmatprep.mubr.bf16.mxu0 0
    %897 = vmatmul.mubr.bf16.gmra.mrb[0].mxu0 %v479
    %v898 = vpop.f32.mrb[0].mxu0
    %v899 = vadd.f32 %v420, %v898
    %v900 = vpop.f32.mrb[0].mxu0
    %v901 = vadd.f32 %v424, %v900
    %v902 = vpop.f32.mrb[0].mxu0
    %v903 = vadd.f32 %v420, %v902
    %v904 = vpop.f32.mrb[0].mxu0
    %v905 = vadd.f32 %v424, %v904
    %906 = vmatprep.mubr.bf16.mxu0 0
    %907 = vmatmul.mubr.bf16.gmra.mrb[0].mxu0 %v480
    %v908 = vpop.f32.mrb[0].mxu0
    %v909 = vadd.f32 %v420, %v908
    %v910 = vpop.f32.mrb[0].mxu0
    %v911 = vadd.f32 %v424, %v910
    %v912 = vpop.f32.mrb[0].mxu0
    %v913 = vadd.f32 %v420, %v912
    %v914 = vpop.f32.mrb[0].mxu0
    %v915 = vadd.f32 %v424, %v914
    %916 = vmatprep.mubr.bf16.mxu0 0
    %917 = vmatmul.mubr.bf16.gmra.mrb[0].mxu0 %v481
    %v918 = vpop.f32.mrb[0].mxu0
    %v919 = vadd.f32 %v420, %v918
    %v920 = vpop.f32.mrb[0].mxu0
    %v921 = vadd.f32 %v424, %v920
    %v922 = vpop.f32.mrb[0].mxu0
    %v923 = vadd.f32 %v420, %v922
    %v924 = vpop.f32.mrb[0].mxu0
    %v925 = vadd.f32 %v424, %v924
    %926 = vdwg.mxu0
    %927 = vmatprep.subr.bf16.mxu0 %v713
    %928 = vmatpush1.bf16.msra.mxu0 %v712
    %929 = vmatprep.subr.bf16.mxu0 %v722
    %930 = vmatpush1.bf16.msra.mxu0 %v721
    %931 = vmatprep.subr.bf16.mxu0 %v731
    %932 = vmatpush1.bf16.msra.mxu0 %v730
    %933 = vmatprep.subr.bf16.mxu0 %v740
    %934 = vmatpush1.bf16.msra.mxu0 %v739
    %935 = vmatprep.subr.bf16.mxu0 %v749
    %936 = vmatpush1.bf16.msra.mxu0 %v748
    %937 = vmatprep.subr.bf16.mxu0 %v758
    %938 = vmatpush1.bf16.msra.mxu0 %v757
    %939 = vmatprep.subr.bf16.mxu0 %v767
    %940 = vmatpush1.bf16.msra.mxu0 %v766
    %941 = vmatprep.subr.bf16.mxu0 %v776
    %942 = vmatpush1.bf16.msra.mxu0 %v775
    %943 = vmatprep.subr.bf16.mxu0 0
    %944 = vmatpush1.bf16.msra.mxu0 0
    %945 = vmatprep.subr.bf16.mxu0 0
    %946 = vmatpush1.bf16.msra.mxu0 0
    %947 = vmatprep.subr.bf16.mxu0 0
    %948 = vmatpush1.bf16.msra.mxu0 0
    %949 = vmatprep.subr.bf16.mxu0 0
    %950 = vmatpush1.bf16.msra.mxu0 0
    %951 = vmatprep.subr.bf16.mxu0 0
    %952 = vmatpush1.bf16.msra.mxu0 0
    %953 = vmatprep.subr.bf16.mxu0 0
    %954 = vmatpush1.bf16.msra.mxu0 0
    %955 = vmatprep.subr.bf16.mxu0 0
    %956 = vmatpush1.bf16.msra.mxu0 0
    %957 = vmatprep.subr.bf16.mxu0 0
    %958 = vmatpush1.bf16.msra.mxu0 0
    %959 = vmatprep.mubr.bf16.mxu0 0
    %960 = vmatmul.mubr.bf16.gmra.mrb[0].mxu0 %v478
    %v961 = vpop.f32.mrb[0].mxu0
    %v962 = vadd.f32 %v428, %v961
    %v963 = vpop.f32.mrb[0].mxu0
    %v964 = vadd.f32 %v432, %v963
    %v965 = vpop.f32.mrb[0].mxu0
    %v966 = vadd.f32 %v428, %v965
    %v967 = vpop.f32.mrb[0].mxu0
    %v968 = vadd.f32 %v432, %v967
    %969 = vmatprep.mubr.bf16.mxu0 0
    %970 = vmatmul.mubr.bf16.gmra.mrb[0].mxu0 %v479
    %v971 = vpop.f32.mrb[0].mxu0
    %v972 = vadd.f32 %v428, %v971
    %v973 = vpop.f32.mrb[0].mxu0
    %v974 = vadd.f32 %v432, %v973
    %v975 = vpop.f32.mrb[0].mxu0
    %v976 = vadd.f32 %v428, %v975
    %v977 = vpop.f32.mrb[0].mxu0
    %v978 = vadd.f32 %v432, %v977
    %979 = vmatprep.mubr.bf16.mxu0 0
    %980 = vmatmul.mubr.bf16.gmra.mrb[0].mxu0 %v480
    %v981 = vpop.f32.mrb[0].mxu0
    %v982 = vadd.f32 %v428, %v981
    %v983 = vpop.f32.mrb[0].mxu0
    %v984 = vadd.f32 %v432, %v983
    %v985 = vpop.f32.mrb[0].mxu0
    %v986 = vadd.f32 %v428, %v985
    %v987 = vpop.f32.mrb[0].mxu0
    %v988 = vadd.f32 %v432, %v987
    %989 = vmatprep.mubr.bf16.mxu0 0
    %990 = vmatmul.mubr.bf16.gmra.mrb[0].mxu0 %v481
    %v991 = vpop.f32.mrb[0].mxu0
    %v992 = vadd.f32 %v428, %v991
    %v993 = vpop.f32.mrb[0].mxu0
    %v994 = vadd.f32 %v432, %v993
    %v995 = vpop.f32.mrb[0].mxu0
    %v996 = vadd.f32 %v428, %v995
    %v997 = vpop.f32.mrb[0].mxu0
    %v998 = vadd.f32 %v432, %v997
    %999 = vdwg.mxu0
    %1000 = vmatprep.subr.bf16.mxu0 %v715
    %1001 = vmatpush1.bf16.msra.mxu0 %v714
    %1002 = vmatprep.subr.bf16.mxu0 %v724
    %1003 = vmatpush1.bf16.msra.mxu0 %v723
    %1004 = vmatprep.subr.bf16.mxu0 %v733
    %1005 = vmatpush1.bf16.msra.mxu0 %v732
    %1006 = vmatprep.subr.bf16.mxu0 %v742
    %1007 = vmatpush1.bf16.msra.mxu0 %v741
    %1008 = vmatprep.subr.bf16.mxu0 %v751
    %1009 = vmatpush1.bf16.msra.mxu0 %v750
    %1010 = vmatprep.subr.bf16.mxu0 %v760
    %1011 = vmatpush1.bf16.msra.mxu0 %v759
    %1012 = vmatprep.subr.bf16.mxu0 %v769
    %1013 = vmatpush1.bf16.msra.mxu0 %v768
    %1014 = vmatprep.subr.bf16.mxu0 %v778
    %1015 = vmatpush1.bf16.msra.mxu0 %v777
    %1016 = vmatprep.subr.bf16.mxu0 0
    %1017 = vmatpush1.bf16.msra.mxu0 0
    %1018 = vmatprep.subr.bf16.mxu0 0
    %1019 = vmatpush1.bf16.msra.mxu0 0
    %1020 = vmatprep.subr.bf16.mxu0 0
    %1021 = vmatpush1.bf16.msra.mxu0 0
    %1022 = vmatprep.subr.bf16.mxu0 0
    %1023 = vmatpush1.bf16.msra.mxu0 0
    %1024 = vmatprep.subr.bf16.mxu0 0
    %1025 = vmatpush1.bf16.msra.mxu0 0
    %1026 = vmatprep.subr.bf16.mxu0 0
    %1027 = vmatpush1.bf16.msra.mxu0 0
    %1028 = vmatprep.subr.bf16.mxu0 0
    %1029 = vmatpush1.bf16.msra.mxu0 0
    %1030 = vmatprep.subr.bf16.mxu0 0
    %1031 = vmatpush1.bf16.msra.mxu0 0
    %1032 = vmatprep.mubr.bf16.mxu0 0
    %1033 = vmatmul.mubr.bf16.gmra.mrb[0].mxu0 %v478
    %v1034 = vpop.f32.mrb[0].mxu0
    %v1035 = vadd.f32 %v436, %v1034
    %v1036 = vpop.f32.mrb[0].mxu0
    %v1037 = vadd.f32 %v440, %v1036
    %v1038 = vpop.f32.mrb[0].mxu0
    %v1039 = vadd.f32 %v436, %v1038
    %v1040 = vpop.f32.mrb[0].mxu0
    %v1041 = vadd.f32 %v440, %v1040
    %1042 = vmatprep.mubr.bf16.mxu0 0
    %1043 = vmatmul.mubr.bf16.gmra.mrb[0].mxu0 %v479
    %v1044 = vpop.f32.mrb[0].mxu0
    %v1045 = vadd.f32 %v436, %v1044
    %v1046 = vpop.f32.mrb[0].mxu0
    %v1047 = vadd.f32 %v440, %v1046
    %v1048 = vpop.f32.mrb[0].mxu0
    %v1049 = vadd.f32 %v436, %v1048
    %v1050 = vpop.f32.mrb[0].mxu0
    %v1051 = vadd.f32 %v440, %v1050
    %1052 = vmatprep.mubr.bf16.mxu0 0
    %1053 = vmatmul.mubr.bf16.gmra.mrb[0].mxu0 %v480
    %v1054 = vpop.f32.mrb[0].mxu0
    %v1055 = vadd.f32 %v436, %v1054
    %v1056 = vpop.f32.mrb[0].mxu0
    %v1057 = vadd.f32 %v440, %v1056
    %v1058 = vpop.f32.mrb[0].mxu0
    %v1059 = vadd.f32 %v436, %v1058
    %v1060 = vpop.f32.mrb[0].mxu0
    %v1061 = vadd.f32 %v440, %v1060
    %1062 = vmatprep.mubr.bf16.mxu0 0
    %1063 = vmatmul.mubr.bf16.gmra.mrb[0].mxu0 %v481
    %v1064 = vpop.f32.mrb[0].mxu0
    %v1065 = vadd.f32 %v436, %v1064
    %v1066 = vpop.f32.mrb[0].mxu0
    %v1067 = vadd.f32 %v440, %v1066
    %v1068 = vpop.f32.mrb[0].mxu0
    %v1069 = vadd.f32 %v436, %v1068
    %v1070 = vpop.f32.mrb[0].mxu0
    %v1071 = vadd.f32 %v440, %v1070
    %1072 = vdwg.mxu0
    %1073 = vmatprep.subr.bf16.mxu0 %v717
    %1074 = vmatpush1.bf16.msra.mxu0 %v716
    %1075 = vmatprep.subr.bf16.mxu0 %v726
    %1076 = vmatpush1.bf16.msra.mxu0 %v725
    %1077 = vmatprep.subr.bf16.mxu0 %v735
    %1078 = vmatpush1.bf16.msra.mxu0 %v734
    %1079 = vmatprep.subr.bf16.mxu0 %v744
    %1080 = vmatpush1.bf16.msra.mxu0 %v743
    %1081 = vmatprep.subr.bf16.mxu0 %v753
    %1082 = vmatpush1.bf16.msra.mxu0 %v752
    %1083 = vmatprep.subr.bf16.mxu0 %v762
    %1084 = vmatpush1.bf16.msra.mxu0 %v761
    %1085 = vmatprep.subr.bf16.mxu0 %v771
    %1086 = vmatpush1.bf16.msra.mxu0 %v770
    %1087 = vmatprep.subr.bf16.mxu0 %v780
    %1088 = vmatpush1.bf16.msra.mxu0 %v779
    %1089 = vmatprep.subr.bf16.mxu0 0
    %1090 = vmatpush1.bf16.msra.mxu0 0
    %1091 = vmatprep.subr.bf16.mxu0 0
    %1092 = vmatpush1.bf16.msra.mxu0 0
    %1093 = vmatprep.subr.bf16.mxu0 0
    %1094 = vmatpush1.bf16.msra.mxu0 0
    %1095 = vmatprep.subr.bf16.mxu0 0
    %1096 = vmatpush1.bf16.msra.mxu0 0
    %1097 = vmatprep.subr.bf16.mxu0 0
    %1098 = vmatpush1.bf16.msra.mxu0 0
    %1099 = vmatprep.subr.bf16.mxu0 0
    %1100 = vmatpush1.bf16.msra.mxu0 0
    %1101 = vmatprep.subr.bf16.mxu0 0
    %1102 = vmatpush1.bf16.msra.mxu0 0
    %1103 = vmatprep.subr.bf16.mxu0 0
    %1104 = vmatpush1.bf16.msra.mxu0 0
    %1105 = vmatprep.mubr.bf16.mxu0 0
    %1106 = vmatmul.mubr.bf16.gmra.mrb[0].mxu0 %v478
    %v1107 = vpop.f32.mrb[0].mxu0
    %v1108 = vadd.f32 %v444, %v1107
    %v1109 = vpop.f32.mrb[0].mxu0
    %v1110 = vadd.f32 %v448, %v1109
    %v1111 = vpop.f32.mrb[0].mxu0
    %v1112 = vadd.f32 %v444, %v1111
    %v1113 = vpop.f32.mrb[0].mxu0
    %v1114 = vadd.f32 %v448, %v1113
    %1115 = vmatprep.mubr.bf16.mxu0 0
    %1116 = vmatmul.mubr.bf16.gmra.mrb[0].mxu0 %v479
    %v1117 = vpop.f32.mrb[0].mxu0
    %v1118 = vadd.f32 %v444, %v1117
    %v1119 = vpop.f32.mrb[0].mxu0
    %v1120 = vadd.f32 %v448, %v1119
    %v1121 = vpop.f32.mrb[0].mxu0
    %v1122 = vadd.f32 %v444, %v1121
    %v1123 = vpop.f32.mrb[0].mxu0
    %v1124 = vadd.f32 %v448, %v1123
    %1125 = vmatprep.mubr.bf16.mxu0 0
    %1126 = vmatmul.mubr.bf16.gmra.mrb[0].mxu0 %v480
    %v1127 = vpop.f32.mrb[0].mxu0
    %v1128 = vadd.f32 %v444, %v1127
    %v1129 = vpop.f32.mrb[0].mxu0
    %v1130 = vadd.f32 %v448, %v1129
    %v1131 = vpop.f32.mrb[0].mxu0
    %v1132 = vadd.f32 %v444, %v1131
    %v1133 = vpop.f32.mrb[0].mxu0
    %v1134 = vadd.f32 %v448, %v1133
    %1135 = vmatprep.mubr.bf16.mxu0 0
    %1136 = vmatmul.mubr.bf16.gmra.mrb[0].mxu0 %v481
    %v1137 = vpop.f32.mrb[0].mxu0
    %v1138 = vadd.f32 %v444, %v1137
    %v1139 = vpop.f32.mrb[0].mxu0
    %v1140 = vadd.f32 %v448, %v1139
    %v1141 = vpop.f32.mrb[0].mxu0
    %v1142 = vadd.f32 %v444, %v1141
    %v1143 = vpop.f32.mrb[0].mxu0
    %v1144 = vadd.f32 %v448, %v1143
    %1145 = vdwg.mxu0
    %1146 = vmatprep.subr.bf16.mxu0 0
    %1147 = vmatpush1.bf16.msra.mxu0 %v718
    %1148 = vmatprep.subr.bf16.mxu0 0
    %1149 = vmatpush1.bf16.msra.mxu0 %v727
    %1150 = vmatprep.subr.bf16.mxu0 0
    %1151 = vmatpush1.bf16.msra.mxu0 %v736
    %1152 = vmatprep.subr.bf16.mxu0 0
    %1153 = vmatpush1.bf16.msra.mxu0 %v745
    %1154 = vmatprep.subr.bf16.mxu0 0
    %1155 = vmatpush1.bf16.msra.mxu0 %v754
    %1156 = vmatprep.subr.bf16.mxu0 0
    %1157 = vmatpush1.bf16.msra.mxu0 %v763
    %1158 = vmatprep.subr.bf16.mxu0 0
    %1159 = vmatpush1.bf16.msra.mxu0 %v772
    %1160 = vmatprep.subr.bf16.mxu0 0
    %1161 = vmatpush1.bf16.msra.mxu0 %v781
    %1162 = vmatprep.subr.bf16.mxu0 0
    %1163 = vmatpush1.bf16.msra.mxu0 0
    %1164 = vmatprep.subr.bf16.mxu0 0
    %1165 = vmatpush1.bf16.msra.mxu0 0
    %1166 = vmatprep.subr.bf16.mxu0 0
    %1167 = vmatpush1.bf16.msra.mxu0 0
    %1168 = vmatprep.subr.bf16.mxu0 0
    %1169 = vmatpush1.bf16.msra.mxu0 0
    %1170 = vmatprep.subr.bf16.mxu0 0
    %1171 = vmatpush1.bf16.msra.mxu0 0
    %1172 = vmatprep.subr.bf16.mxu0 0
    %1173 = vmatpush1.bf16.msra.mxu0 0
    %1174 = vmatprep.subr.bf16.mxu0 0
    %1175 = vmatpush1.bf16.msra.mxu0 0
    %1176 = vmatprep.subr.bf16.mxu0 0
    %1177 = vmatpush1.bf16.msra.mxu0 0
    %1178 = vmatprep.mubr.bf16.mxu0 0
    %1179 = vmatmul.mubr.bf16.gmra.mrb[0].mxu0 %v478
    %v1180 = vpop.f32.mrb[0].mxu0
    %v1181 = vadd.f32 %v452, %v1180
    %v1182 = vpop.f32.mrb[0].mxu0
    %v1183 = vpop.f32.mrb[0].mxu0
    %v1184 = vadd.f32 %v452, %v1183
    %v1185 = vpop.f32.mrb[0].mxu0
    %1186 = vmatprep.mubr.bf16.mxu0 0
    %1187 = vmatmul.mubr.bf16.gmra.mrb[0].mxu0 %v479
    %v1188 = vpop.f32.mrb[0].mxu0
    %v1189 = vadd.f32 %v452, %v1188
    %v1190 = vpop.f32.mrb[0].mxu0
    %v1191 = vpop.f32.mrb[0].mxu0
    %v1192 = vadd.f32 %v452, %v1191
    %v1193 = vpop.f32.mrb[0].mxu0
    %1194 = vmatprep.mubr.bf16.mxu0 0
    %1195 = vmatmul.mubr.bf16.gmra.mrb[0].mxu0 %v480
    %v1196 = vpop.f32.mrb[0].mxu0
    %v1197 = vadd.f32 %v452, %v1196
    %v1198 = vpop.f32.mrb[0].mxu0
    %v1199 = vpop.f32.mrb[0].mxu0
    %v1200 = vadd.f32 %v452, %v1199
    %v1201 = vpop.f32.mrb[0].mxu0
    %1202 = vmatprep.mubr.bf16.mxu0 0
    %1203 = vmatmul.mubr.bf16.gmra.mrb[0].mxu0 %v481
    %v1204 = vpop.f32.mrb[0].mxu0
    %v1205 = vadd.f32 %v452, %v1204
    %v1206 = vpop.f32.mrb[0].mxu0
    %v1207 = vpop.f32.mrb[0].mxu0
    %v1208 = vadd.f32 %v452, %v1207
    %v1209 = vpop.f32.mrb[0].mxu0
    %1210 = vdwg.mxu0
    %1211 = vst [vmem:[#allocation4] sm:$0xff] %v889
    %1212 = vst [vmem:[#allocation4 + $0x8] sm:$0xff] %v891
    %1213 = vst [vmem:[#allocation4 + $0x10] sm:$0xff] %v962
    %1214 = vst [vmem:[#allocation4 + $0x18] sm:$0xff] %v964
    %1215 = vst [vmem:[#allocation4 + $0x20] sm:$0xff] %v1035
    %1216 = vst [vmem:[#allocation4 + $0x28] sm:$0xff] %v1037
    %1217 = vst [vmem:[#allocation4 + $0x30] sm:$0xff] %v1108
    %1218 = vst [vmem:[#allocation4 + $0x38] sm:$0xff] %v1110
    %1219 = vst [vmem:[#allocation4 + $0x40] sm:$0xff] %v1181
    %1220 = vst [vmem:[#allocation4 + $0x48] sm:$0xff] %v893
    %1221 = vst [vmem:[#allocation4 + $0x50] sm:$0xff] %v895
    %1222 = vst [vmem:[#allocation4 + $0x58] sm:$0xff] %v966
    %1223 = vst [vmem:[#allocation4 + $0x60] sm:$0xff] %v968
    %1224 = vst [vmem:[#allocation4 + $0x68] sm:$0xff] %v1039
    %1225 = vst [vmem:[#allocation4 + $0x70] sm:$0xff] %v1041
    %1226 = vst [vmem:[#allocation4 + $0x78] sm:$0xff] %v1112
    %1227 = vst [vmem:[#allocation4 + $0x80] sm:$0xff] %v1114
    %1228 = vst [vmem:[#allocation4 + $0x88] sm:$0xff] %v1184
    %1229 = vst [vmem:[#allocation4 + $0x90] sm:$0xff] %v899
    %1230 = vst [vmem:[#allocation4 + $0x98] sm:$0xff] %v901
    %1231 = vst [vmem:[#allocation4 + $0xa0] sm:$0xff] %v972
    %1232 = vst [vmem:[#allocation4 + $0xa8] sm:$0xff] %v974
    %1233 = vst [vmem:[#allocation4 + $0xb0] sm:$0xff] %v1045
    %1234 = vst [vmem:[#allocation4 + $0xb8] sm:$0xff] %v1047
    %1235 = vst [vmem:[#allocation4 + $0xc0] sm:$0xff] %v1118
    %1236 = vst [vmem:[#allocation4 + $0xc8] sm:$0xff] %v1120
    %1237 = vst [vmem:[#allocation4 + $0xd0] sm:$0xff] %v1189
    %1238 = vst [vmem:[#allocation4 + $0xd8] sm:$0xff] %v903
    %1239 = vst [vmem:[#allocation4 + $0xe0] sm:$0xff] %v905
    %1240 = vst [vmem:[#allocation4 + $0xe8] sm:$0xff] %v976
    %1241 = vst [vmem:[#allocation4 + $0xf0] sm:$0xff] %v978
    %1242 = vst [vmem:[#allocation4 + $0xf8] sm:$0xff] %v1049
    %1243 = vst [vmem:[#allocation4 + $0x100] sm:$0xff] %v1051
    %1244 = vst [vmem:[#allocation4 + $0x108] sm:$0xff] %v1122
    %1245 = vst [vmem:[#allocation4 + $0x110] sm:$0xff] %v1124
    %1246 = vst [vmem:[#allocation4 + $0x118] sm:$0xff] %v1192
    %1247 = vst [vmem:[#allocation4 + $0x120] sm:$0xff] %v909
    %1248 = vst [vmem:[#allocation4 + $0x128] sm:$0xff] %v911
    %1249 = vst [vmem:[#allocation4 + $0x130] sm:$0xff] %v982
    %1250 = vst [vmem:[#allocation4 + $0x138] sm:$0xff] %v984
    %1251 = vst [vmem:[#allocation4 + $0x140] sm:$0xff] %v1055
    %1252 = vst [vmem:[#allocation4 + $0x148] sm:$0xff] %v1057
    %1253 = vst [vmem:[#allocation4 + $0x150] sm:$0xff] %v1128
    %1254 = vst [vmem:[#allocation4 + $0x158] sm:$0xff] %v1130
    %1255 = vst [vmem:[#allocation4 + $0x160] sm:$0xff] %v1197
    %1256 = vst [vmem:[#allocation4 + $0x168] sm:$0xff] %v913
    %1257 = vst [vmem:[#allocation4 + $0x170] sm:$0xff] %v915
    %1258 = vst [vmem:[#allocation4 + $0x178] sm:$0xff] %v986
    %1259 = vst [vmem:[#allocation4 + $0x180] sm:$0xff] %v988
    %1260 = vst [vmem:[#allocation4 + $0x188] sm:$0xff] %v1059
    %1261 = vst [vmem:[#allocation4 + $0x190] sm:$0xff] %v1061
    %1262 = vst [vmem:[#allocation4 + $0x198] sm:$0xff] %v1132
    %1263 = vst [vmem:[#allocation4 + $0x1a0] sm:$0xff] %v1134
    %1264 = vst [vmem:[#allocation4 + $0x1a8] sm:$0xff] %v1200
    %1265 = vst [vmem:[#allocation4 + $0x1b0] sm:$0xff] %v919
    %1266 = vst [vmem:[#allocation4 + $0x1b8] sm:$0xff] %v921
    %1267 = vst [vmem:[#allocation4 + $0x1c0] sm:$0xff] %v992
    %1268 = vst [vmem:[#allocation4 + $0x1c8] sm:$0xff] %v994
    %1269 = vst [vmem:[#allocation4 + $0x1d0] sm:$0xff] %v1065
    %1270 = vst [vmem:[#allocation4 + $0x1d8] sm:$0xff] %v1067
    %1271 = vst [vmem:[#allocation4 + $0x1e0] sm:$0xff] %v1138
    %1272 = vst [vmem:[#allocation4 + $0x1e8] sm:$0xff] %v1140
    %1273 = vst [vmem:[#allocation4 + $0x1f0] sm:$0xff] %v1205
    %1274 = vst [vmem:[#allocation4 + $0x1f8] sm:$0xff] %v923
    %1275 = vst [vmem:[#allocation4 + $0x200] sm:$0xff] %v925
    %1276 = vst [vmem:[#allocation4 + $0x208] sm:$0xff] %v996
    %1277 = vst [vmem:[#allocation4 + $0x210] sm:$0xff] %v998
    %1278 = vst [vmem:[#allocation4 + $0x218] sm:$0xff] %v1069
    %1279 = vst [vmem:[#allocation4 + $0x220] sm:$0xff] %v1071
    %1280 = vst [vmem:[#allocation4 + $0x228] sm:$0xff] %v1142
    %1281 = vst [vmem:[#allocation4 + $0x230] sm:$0xff] %v1144
    %1282 = vst [vmem:[#allocation4 + $0x238] sm:$0xff] %v1208
    %v1283 = vld [vmem:[#allocation2] sm:$0xff]
    %v1284 = vld [vmem:[#allocation2 + $0x8] sm:$0xff]
    %v1285 = vld [vmem:[#allocation2 + $0x10] sm:$0xff]
    %v1286 = vld [vmem:[#allocation3] sm:$0xff]
    %v1287 = vld [vmem:[#allocation3 + $0x8] sm:$0xff]
    %v1288 = vld [vmem:[#allocation3 + $0x10] sm:$0xff]
    %v1289 = vld [vmem:[#allocation4] sm:$0xff]
    %v1290 = vld [vmem:[#allocation4 + $0x8] sm:$0xff]
    %v1291 = vld [vmem:[#allocation4 + $0x10] sm:$0xff]
    %v1292 = vld [vmem:[#allocation4 + $0x18] sm:$0xff]
    %v1293 = vld [vmem:[#allocation4 + $0x20] sm:$0xff]
    %v1294 = vld [vmem:[#allocation4 + $0x28] sm:$0xff]
    %v1295 = vld [vmem:[#allocation4 + $0x30] sm:$0xff]
    %v1296 = vld [vmem:[#allocation4 + $0x38] sm:$0xff]
    %v1297 = vld [vmem:[#allocation4 + $0x40] sm:$0xff]
    %v1298 = vpack.c.bf16 %v1283, %v1283
    %v1299 = vpack.c.bf16 %v1284, %v1284
    %v1300 = vpack.c.bf16 %v1285, %v1285
    %v1541 = vunpack.c.l.b16 %v68
    %v1542 = vunpack.c.h.b16 %v68
    %v1543 = vunpack.c.l.b16 %v69
    %v1544 = vunpack.c.h.b16 %v69
    %v1545 = vunpack.c.l.b16 %v70
    %v1546 = vunpack.c.h.b16 %v70
    %v1547 = vunpack.c.l.b16 %v71
    %v1548 = vunpack.c.h.b16 %v71
    %v1549 = vunpack.c.l.b16 %v72
    %v1550 = vunpack.c.l.b16 %v73
    %v1551 = vunpack.c.h.b16 %v73
    %v1552 = vunpack.c.l.b16 %v74
    %v1553 = vunpack.c.h.b16 %v74
    %v1554 = vunpack.c.l.b16 %v75
    %v1555 = vunpack.c.h.b16 %v75
    %v1556 = vunpack.c.l.b16 %v76
    %v1557 = vunpack.c.h.b16 %v76
    %v1558 = vunpack.c.l.b16 %v77
    %v1559 = vunpack.c.l.b16 %v78
    %v1560 = vunpack.c.h.b16 %v78
    %v1561 = vunpack.c.l.b16 %v79
    %v1562 = vunpack.c.h.b16 %v79
    %v1563 = vunpack.c.l.b16 %v80
    %v1564 = vunpack.c.h.b16 %v80
    %v1565 = vunpack.c.l.b16 %v81
    %v1566 = vunpack.c.h.b16 %v81
    %v1567 = vunpack.c.l.b16 %v82
    %v1568 = vunpack.c.l.b16 %v83
    %v1569 = vunpack.c.h.b16 %v83
    %v1570 = vunpack.c.l.b16 %v84
    %v1571 = vunpack.c.h.b16 %v84
    %v1572 = vunpack.c.l.b16 %v85
    %v1573 = vunpack.c.h.b16 %v85
    %v1574 = vunpack.c.l.b16 %v86
    %v1575 = vunpack.c.h.b16 %v86
    %v1576 = vunpack.c.l.b16 %v87
    %v1577 = vunpack.c.l.b16 %v88
    %v1578 = vunpack.c.h.b16 %v88
    %v1579 = vunpack.c.l.b16 %v89
    %v1580 = vunpack.c.h.b16 %v89
    %v1581 = vunpack.c.l.b16 %v90
    %v1582 = vunpack.c.h.b16 %v90
    %v1583 = vunpack.c.l.b16 %v91
    %v1584 = vunpack.c.h.b16 %v91
    %v1585 = vunpack.c.l.b16 %v92
    %v1586 = vunpack.c.l.b16 %v93
    %v1587 = vunpack.c.h.b16 %v93
    %v1588 = vunpack.c.l.b16 %v94
    %v1589 = vunpack.c.h.b16 %v94
    %v1590 = vunpack.c.l.b16 %v95
    %v1591 = vunpack.c.h.b16 %v95
    %v1592 = vunpack.c.l.b16 %v96
    %v1593 = vunpack.c.h.b16 %v96
    %v1594 = vunpack.c.l.b16 %v97
    %v1595 = vunpack.c.l.b16 %v98
    %v1596 = vunpack.c.h.b16 %v98
    %v1597 = vunpack.c.l.b16 %v99
    %v1598 = vunpack.c.h.b16 %v99
    %v1599 = vunpack.c.l.b16 %v100
    %v1600 = vunpack.c.h.b16 %v100
    %v1601 = vunpack.c.l.b16 %v101
    %v1602 = vunpack.c.h.b16 %v101
    %v1603 = vunpack.c.l.b16 %v102
    %v1604 = vunpack.c.l.b16 %v103
    %v1605 = vunpack.c.h.b16 %v103
    %v1606 = vunpack.c.l.b16 %v104
    %v1607 = vunpack.c.h.b16 %v104
    %v1608 = vunpack.c.l.b16 %v105
    %v1609 = vunpack.c.h.b16 %v105
    %v1610 = vunpack.c.l.b16 %v106
    %v1611 = vunpack.c.h.b16 %v106
    %v1612 = vunpack.c.l.b16 %v107
    %v1613 = vunpack.c.l.b16 %v108
    %v1614 = vunpack.c.h.b16 %v108
    %v1615 = vunpack.c.l.b16 %v109
    %v1616 = vunpack.c.h.b16 %v109
    %v1617 = vunpack.c.l.b16 %v110
    %v1618 = vunpack.c.h.b16 %v110
    %v1619 = vunpack.c.l.b16 %v111
    %v1620 = vunpack.c.h.b16 %v111
    %v1621 = vunpack.c.l.b16 %v112
    %v1622 = vunpack.c.l.b16 %v113
    %v1623 = vunpack.c.h.b16 %v113
    %v1624 = vunpack.c.l.b16 %v114
    %v1625 = vunpack.c.h.b16 %v114
    %v1626 = vunpack.c.l.b16 %v115
    %v1627 = vunpack.c.h.b16 %v115
    %v1628 = vunpack.c.l.b16 %v116
    %v1629 = vunpack.c.h.b16 %v116
    %v1630 = vunpack.c.l.b16 %v117
    %v1631 = vunpack.c.l.b16 %v118
    %v1632 = vunpack.c.h.b16 %v118
    %v1633 = vunpack.c.l.b16 %v119
    %v1634 = vunpack.c.h.b16 %v119
    %v1635 = vunpack.c.l.b16 %v120
    %v1636 = vunpack.c.h.b16 %v120
    %v1637 = vunpack.c.l.b16 %v121
    %v1638 = vunpack.c.h.b16 %v121
    %v1639 = vunpack.c.l.b16 %v122
    %v1640 = vunpack.c.l.b16 %v123
    %v1641 = vunpack.c.h.b16 %v123
    %v1642 = vunpack.c.l.b16 %v124
    %v1643 = vunpack.c.h.b16 %v124
    %v1644 = vunpack.c.l.b16 %v125
    %v1645 = vunpack.c.h.b16 %v125
    %v1646 = vunpack.c.l.b16 %v126
    %v1647 = vunpack.c.h.b16 %v126
    %v1648 = vunpack.c.l.b16 %v127
    %v1649 = vunpack.c.l.b16 %v128
    %v1650 = vunpack.c.h.b16 %v128
    %v1651 = vunpack.c.l.b16 %v129
    %v1652 = vunpack.c.h.b16 %v129
    %v1653 = vunpack.c.l.b16 %v130
    %v1654 = vunpack.c.h.b16 %v130
    %v1655 = vunpack.c.l.b16 %v131
    %v1656 = vunpack.c.h.b16 %v131
    %v1657 = vunpack.c.l.b16 %v132
    %v1658 = vunpack.c.l.b16 %v133
    %v1659 = vunpack.c.h.b16 %v133
    %v1660 = vunpack.c.l.b16 %v134
    %v1661 = vunpack.c.h.b16 %v134
    %v1662 = vunpack.c.l.b16 %v135
    %v1663 = vunpack.c.h.b16 %v135
    %v1664 = vunpack.c.l.b16 %v136
    %v1665 = vunpack.c.h.b16 %v136
    %v1666 = vunpack.c.l.b16 %v137
    %v1667 = vunpack.c.l.b16 %v138
    %v1668 = vunpack.c.h.b16 %v138
    %v1669 = vunpack.c.l.b16 %v139
    %v1670 = vunpack.c.h.b16 %v139
    %v1671 = vunpack.c.l.b16 %v140
    %v1672 = vunpack.c.h.b16 %v140
    %v1673 = vunpack.c.l.b16 %v141
    %v1674 = vunpack.c.h.b16 %v141
    %v1675 = vunpack.c.l.b16 %v142
    %v1676 = vunpack.c.l.b16 %v143
    %v1677 = vunpack.c.h.b16 %v143
    %v1678 = vunpack.c.l.b16 %v144
    %v1679 = vunpack.c.h.b16 %v144
    %v1680 = vunpack.c.l.b16 %v145
    %v1681 = vunpack.c.h.b16 %v145
    %v1682 = vunpack.c.l.b16 %v146
    %v1683 = vunpack.c.h.b16 %v146
    %v1684 = vunpack.c.l.b16 %v147
    %v1685 = vunpack.c.l.b16 %v148
    %v1686 = vunpack.c.h.b16 %v148
    %v1687 = vunpack.c.l.b16 %v149
    %v1688 = vunpack.c.h.b16 %v149
    %v1689 = vunpack.c.l.b16 %v150
    %v1690 = vunpack.c.h.b16 %v150
    %v1691 = vunpack.c.l.b16 %v151
    %v1692 = vunpack.c.h.b16 %v151
    %v1693 = vunpack.c.l.b16 %v152
    %v1694 = vunpack.c.l.b16 %v153
    %v1695 = vunpack.c.h.b16 %v153
    %v1696 = vunpack.c.l.b16 %v154
    %v1697 = vunpack.c.h.b16 %v154
    %v1698 = vunpack.c.l.b16 %v155
    %v1699 = vunpack.c.h.b16 %v155
    %v1700 = vunpack.c.l.b16 %v156
    %v1701 = vunpack.c.h.b16 %v156
    %v1702 = vunpack.c.l.b16 %v157
    %v1703 = vunpack.c.l.b16 %v158
    %v1704 = vunpack.c.h.b16 %v158
    %v1705 = vunpack.c.l.b16 %v159
    %v1706 = vunpack.c.h.b16 %v159
    %v1707 = vunpack.c.l.b16 %v160
    %v1708 = vunpack.c.h.b16 %v160
    %v1709 = vunpack.c.l.b16 %v161
    %v1710 = vunpack.c.h.b16 %v161
    %v1711 = vunpack.c.l.b16 %v162
    %v1712 = vunpack.c.l.b16 %v163
    %v1713 = vunpack.c.h.b16 %v163
    %v1714 = vunpack.c.l.b16 %v164
    %v1715 = vunpack.c.h.b16 %v164
    %v1716 = vunpack.c.l.b16 %v165
    %v1717 = vunpack.c.h.b16 %v165
    %v1718 = vunpack.c.l.b16 %v166
    %v1719 = vunpack.c.h.b16 %v166
    %v1720 = vunpack.c.l.b16 %v167
    %v1721 = vunpack.c.l.b16 %v168
    %v1722 = vunpack.c.h.b16 %v168
    %v1723 = vunpack.c.l.b16 %v169
    %v1724 = vunpack.c.h.b16 %v169
    %v1725 = vunpack.c.l.b16 %v170
    %v1726 = vunpack.c.h.b16 %v170
    %v1727 = vunpack.c.l.b16 %v171
    %v1728 = vunpack.c.h.b16 %v171
    %v1729 = vunpack.c.l.b16 %v172
    %v1730 = vunpack.c.l.b16 %v173
    %v1731 = vunpack.c.h.b16 %v173
    %v1732 = vunpack.c.l.b16 %v174
    %v1733 = vunpack.c.h.b16 %v174
    %v1734 = vunpack.c.l.b16 %v175
    %v1735 = vunpack.c.h.b16 %v175
    %v1736 = vunpack.c.l.b16 %v176
    %v1737 = vunpack.c.h.b16 %v176
    %v1738 = vunpack.c.l.b16 %v177
    %v1739 = vunpack.c.l.b16 %v178
    %v1740 = vunpack.c.h.b16 %v178
    %v1741 = vunpack.c.l.b16 %v179
    %v1742 = vunpack.c.h.b16 %v179
    %v1743 = vunpack.c.l.b16 %v180
    %v1744 = vunpack.c.h.b16 %v180
    %v1745 = vunpack.c.l.b16 %v181
    %v1746 = vunpack.c.h.b16 %v181
    %v1747 = vunpack.c.l.b16 %v182
    %v1748 = vunpack.c.l.b16 %v183
    %v1749 = vunpack.c.h.b16 %v183
    %v1750 = vunpack.c.l.b16 %v184
    %v1751 = vunpack.c.h.b16 %v184
    %v1752 = vunpack.c.l.b16 %v185
    %v1753 = vunpack.c.h.b16 %v185
    %v1754 = vunpack.c.l.b16 %v186
    %v1755 = vunpack.c.h.b16 %v186
    %v1756 = vunpack.c.l.b16 %v187
    %v1757 = vunpack.c.l.b16 %v188
    %v1758 = vunpack.c.h.b16 %v188
    %v1759 = vunpack.c.l.b16 %v189
    %v1760 = vunpack.c.h.b16 %v189
    %v1761 = vunpack.c.l.b16 %v190
    %v1762 = vunpack.c.h.b16 %v190
    %v1763 = vunpack.c.l.b16 %v191
    %v1764 = vunpack.c.h.b16 %v191
    %v1765 = vunpack.c.l.b16 %v192
    %v1766 = vunpack.c.l.b16 %v193
    %v1767 = vunpack.c.h.b16 %v193
    %v1768 = vunpack.c.l.b16 %v194
    %v1769 = vunpack.c.h.b16 %v194
    %v1770 = vunpack.c.l.b16 %v195
    %v1771 = vunpack.c.h.b16 %v195
    %v1772 = vunpack.c.l.b16 %v196
    %v1773 = vunpack.c.h.b16 %v196
    %v1774 = vunpack.c.l.b16 %v197
    %v1775 = vunpack.c.l.b16 %v198
    %v1776 = vunpack.c.h.b16 %v198
    %v1777 = vunpack.c.l.b16 %v199
    %v1778 = vunpack.c.h.b16 %v199
    %v1779 = vunpack.c.l.b16 %v200
    %v1780 = vunpack.c.h.b16 %v200
    %v1781 = vunpack.c.l.b16 %v201
    %v1782 = vunpack.c.h.b16 %v201
    %v1783 = vunpack.c.l.b16 %v202
    %v1784 = vunpack.c.l.b16 %v203
    %v1785 = vunpack.c.h.b16 %v203
    %v1786 = vunpack.c.l.b16 %v204
    %v1787 = vunpack.c.h.b16 %v204
    %v1788 = vunpack.c.l.b16 %v205
    %v1789 = vunpack.c.h.b16 %v205
    %v1790 = vunpack.c.l.b16 %v206
    %v1791 = vunpack.c.h.b16 %v206
    %v1792 = vunpack.c.l.b16 %v207
    %v1793 = vunpack.c.l.b16 %v208
    %v1794 = vunpack.c.h.b16 %v208
    %v1795 = vunpack.c.l.b16 %v209
    %v1796 = vunpack.c.h.b16 %v209
    %v1797 = vunpack.c.l.b16 %v210
    %v1798 = vunpack.c.h.b16 %v210
    %v1799 = vunpack.c.l.b16 %v211
    %v1800 = vunpack.c.h.b16 %v211
    %v1801 = vunpack.c.l.b16 %v212
    %v1802 = vunpack.c.l.b16 %v213
    %v1803 = vunpack.c.h.b16 %v213
    %v1804 = vunpack.c.l.b16 %v214
    %v1805 = vunpack.c.h.b16 %v214
    %v1806 = vunpack.c.l.b16 %v215
    %v1807 = vunpack.c.h.b16 %v215
    %v1808 = vunpack.c.l.b16 %v216
    %v1809 = vunpack.c.h.b16 %v216
    %v1810 = vunpack.c.l.b16 %v217
    %v1811 = vunpack.c.l.b16 %v218
    %v1812 = vunpack.c.h.b16 %v218
    %v1813 = vunpack.c.l.b16 %v219
    %v1814 = vunpack.c.h.b16 %v219
    %v1815 = vunpack.c.l.b16 %v220
    %v1816 = vunpack.c.h.b16 %v220
    %v1817 = vunpack.c.l.b16 %v221
    %v1818 = vunpack.c.h.b16 %v221
    %v1819 = vunpack.c.l.b16 %v222
    %v1820 = vunpack.c.l.b16 %v223
    %v1821 = vunpack.c.h.b16 %v223
    %v1822 = vunpack.c.l.b16 %v224
    %v1823 = vunpack.c.h.b16 %v224
    %v1824 = vunpack.c.l.b16 %v225
    %v1825 = vunpack.c.h.b16 %v225
    %v1826 = vunpack.c.l.b16 %v226
    %v1827 = vunpack.c.h.b16 %v226
    %v1828 = vunpack.c.l.b16 %v227
    %v1829 = vunpack.c.l.b16 %v228
    %v1830 = vunpack.c.h.b16 %v228
    %v1831 = vunpack.c.l.b16 %v229
    %v1832 = vunpack.c.h.b16 %v229
    %v1833 = vunpack.c.l.b16 %v230
    %v1834 = vunpack.c.h.b16 %v230
    %v1835 = vunpack.c.l.b16 %v231
    %v1836 = vunpack.c.h.b16 %v231
    %v1837 = vunpack.c.l.b16 %v232
    %v1838 = vunpack.c.l.b16 %v233
    %v1839 = vunpack.c.h.b16 %v233
    %v1840 = vunpack.c.l.b16 %v234
    %v1841 = vunpack.c.h.b16 %v234
    %v1842 = vunpack.c.l.b16 %v235
    %v1843 = vunpack.c.h.b16 %v235
    %v1844 = vunpack.c.l.b16 %v236
    %v1845 = vunpack.c.h.b16 %v236
    %v1846 = vunpack.c.l.b16 %v237
    %v1847 = vunpack.c.l.b16 %v238
    %v1848 = vunpack.c.h.b16 %v238
    %v1849 = vunpack.c.l.b16 %v239
    %v1850 = vunpack.c.h.b16 %v239
    %v1851 = vunpack.c.l.b16 %v240
    %v1852 = vunpack.c.h.b16 %v240
    %v1853 = vunpack.c.l.b16 %v241
    %v1854 = vunpack.c.h.b16 %v241
    %v1855 = vunpack.c.l.b16 %v242
    %v1856 = vunpack.c.l.b16 %v243
    %v1857 = vunpack.c.h.b16 %v243
    %v1858 = vunpack.c.l.b16 %v244
    %v1859 = vunpack.c.h.b16 %v244
    %v1860 = vunpack.c.l.b16 %v245
    %v1861 = vunpack.c.h.b16 %v245
    %v1862 = vunpack.c.l.b16 %v246
    %v1863 = vunpack.c.h.b16 %v246
    %v1864 = vunpack.c.l.b16 %v247
    %v1865 = vunpack.c.l.b16 %v248
    %v1866 = vunpack.c.h.b16 %v248
    %v1867 = vunpack.c.l.b16 %v249
    %v1868 = vunpack.c.h.b16 %v249
    %v1869 = vunpack.c.l.b16 %v250
    %v1870 = vunpack.c.h.b16 %v250
    %v1871 = vunpack.c.l.b16 %v251
    %v1872 = vunpack.c.h.b16 %v251
    %v1873 = vunpack.c.l.b16 %v252
    %v1874 = vunpack.c.l.b16 %v253
    %v1875 = vunpack.c.h.b16 %v253
    %v1876 = vunpack.c.l.b16 %v254
    %v1877 = vunpack.c.h.b16 %v254
    %v1878 = vunpack.c.l.b16 %v255
    %v1879 = vunpack.c.h.b16 %v255
    %v1880 = vunpack.c.l.b16 %v256
    %v1881 = vunpack.c.h.b16 %v256
    %v1882 = vunpack.c.l.b16 %v257
    %v1883 = vunpack.c.l.b16 %v258
    %v1884 = vunpack.c.h.b16 %v258
    %v1885 = vunpack.c.l.b16 %v259
    %v1886 = vunpack.c.h.b16 %v259
    %v1887 = vunpack.c.l.b16 %v260
    %v1888 = vunpack.c.h.b16 %v260
    %v1889 = vunpack.c.l.b16 %v261
    %v1890 = vunpack.c.h.b16 %v261
    %v1891 = vunpack.c.l.b16 %v262
    %v1892 = vunpack.c.l.b16 %v263
    %v1893 = vunpack.c.h.b16 %v263
    %v1894 = vunpack.c.l.b16 %v264
    %v1895 = vunpack.c.h.b16 %v264
    %v1896 = vunpack.c.l.b16 %v265
    %v1897 = vunpack.c.h.b16 %v265
    %v1898 = vunpack.c.l.b16 %v266
    %v1899 = vunpack.c.h.b16 %v266
    %v1900 = vunpack.c.l.b16 %v267
    %v1901 = vunpack.c.l.b16 %v268
    %v1902 = vunpack.c.h.b16 %v268
    %v1903 = vunpack.c.l.b16 %v269
    %v1904 = vunpack.c.h.b16 %v269
    %v1905 = vunpack.c.l.b16 %v270
    %v1906 = vunpack.c.h.b16 %v270
    %v1907 = vunpack.c.l.b16 %v271
    %v1908 = vunpack.c.h.b16 %v271
    %v1909 = vunpack.c.l.b16 %v272
    %v1910 = vunpack.c.l.b16 %v273
    %v1911 = vunpack.c.h.b16 %v273
    %v1912 = vunpack.c.l.b16 %v274
    %v1913 = vunpack.c.h.b16 %v274
    %v1914 = vunpack.c.l.b16 %v275
    %v1915 = vunpack.c.h.b16 %v275
    %v1916 = vunpack.c.l.b16 %v276
    %v1917 = vunpack.c.h.b16 %v276
    %v1918 = vunpack.c.l.b16 %v277
    %v1919 = vunpack.c.l.b16 %v278
    %v1920 = vunpack.c.h.b16 %v278
    %v1921 = vunpack.c.l.b16 %v279
    %v1922 = vunpack.c.h.b16 %v279
    %v1923 = vunpack.c.l.b16 %v280
    %v1924 = vunpack.c.h.b16 %v280
    %v1925 = vunpack.c.l.b16 %v281
    %v1926 = vunpack.c.h.b16 %v281
    %v1927 = vunpack.c.l.b16 %v282
    %v1928 = vunpack.c.l.b16 %v283
    %v1929 = vunpack.c.h.b16 %v283
    %v1930 = vunpack.c.l.b16 %v284
    %v1931 = vunpack.c.h.b16 %v284
    %v1932 = vunpack.c.l.b16 %v285
    %v1933 = vunpack.c.h.b16 %v285
    %v1934 = vunpack.c.l.b16 %v286
    %v1935 = vunpack.c.h.b16 %v286
    %v1936 = vunpack.c.l.b16 %v287
    %v1937 = vunpack.c.l.b16 %v288
    %v1938 = vunpack.c.h.b16 %v288
    %v1939 = vunpack.c.l.b16 %v289
    %v1940 = vunpack.c.h.b16 %v289
    %v1941 = vunpack.c.l.b16 %v290
    %v1942 = vunpack.c.h.b16 %v290
    %v1943 = vunpack.c.l.b16 %v291
    %v1944 = vunpack.c.h.b16 %v291
    %v1945 = vunpack.c.l.b16 %v292
    %v1946 = vunpack.c.l.b16 %v293
    %v1947 = vunpack.c.h.b16 %v293
    %v1948 = vunpack.c.l.b16 %v294
    %v1949 = vunpack.c.h.b16 %v294
    %v1950 = vunpack.c.l.b16 %v295
    %v1951 = vunpack.c.h.b16 %v295
    %v1952 = vunpack.c.l.b16 %v296
    %v1953 = vunpack.c.h.b16 %v296
    %v1954 = vunpack.c.l.b16 %v297
    %v1955 = vunpack.c.l.b16 %v298
    %v1956 = vunpack.c.h.b16 %v298
    %v1957 = vunpack.c.l.b16 %v299
    %v1958 = vunpack.c.h.b16 %v299
    %v1959 = vunpack.c.l.b16 %v300
    %v1960 = vunpack.c.h.b16 %v300
    %v1961 = vunpack.c.l.b16 %v301
    %v1962 = vunpack.c.h.b16 %v301
    %v1963 = vunpack.c.l.b16 %v302
    %v1964 = vunpack.c.l.b16 %v303
    %v1965 = vunpack.c.h.b16 %v303
    %v1966 = vunpack.c.l.b16 %v304
    %v1967 = vunpack.c.h.b16 %v304
    %v1968 = vunpack.c.l.b16 %v305
    %v1969 = vunpack.c.h.b16 %v305
    %v1970 = vunpack.c.l.b16 %v306
    %v1971 = vunpack.c.h.b16 %v306
    %v1972 = vunpack.c.l.b16 %v307
    %v1973 = vpack.c.b16 %v1550, %v1541
    %v1974 = vpack.c.b16 %v1551, %v1542
    %v1975 = vpack.c.b16 %v1552, %v1543
    %v1976 = vpack.c.b16 %v1553, %v1544
    %v1977 = vpack.c.b16 %v1554, %v1545
    %v1978 = vpack.c.b16 %v1555, %v1546
    %v1979 = vpack.c.b16 %v1556, %v1547
    %v1980 = vpack.c.b16 %v1557, %v1548
    %v1981 = vpack.c.b16 %v1558, %v1549
    %v1982 = vpack.c.b16 %v1568, %v1559
    %v1983 = vpack.c.b16 %v1569, %v1560
    %v1984 = vpack.c.b16 %v1570, %v1561
    %v1985 = vpack.c.b16 %v1571, %v1562
    %v1986 = vpack.c.b16 %v1572, %v1563
    %v1987 = vpack.c.b16 %v1573, %v1564
    %v1988 = vpack.c.b16 %v1574, %v1565
    %v1989 = vpack.c.b16 %v1575, %v1566
    %v1990 = vpack.c.b16 %v1576, %v1567
    %v1991 = vpack.c.b16 %v1586, %v1577
    %v1992 = vpack.c.b16 %v1587, %v1578
    %v1993 = vpack.c.b16 %v1588, %v1579
    %v1994 = vpack.c.b16 %v1589, %v1580
    %v1995 = vpack.c.b16 %v1590, %v1581
    %v1996 = vpack.c.b16 %v1591, %v1582
    %v1997 = vpack.c.b16 %v1592, %v1583
    %v1998 = vpack.c.b16 %v1593, %v1584
    %v1999 = vpack.c.b16 %v1594, %v1585
    %v2000 = vpack.c.b16 %v1604, %v1595
    %v2001 = vpack.c.b16 %v1605, %v1596
    %v2002 = vpack.c.b16 %v1606, %v1597
    %v2003 = vpack.c.b16 %v1607, %v1598
    %v2004 = vpack.c.b16 %v1608, %v1599
    %v2005 = vpack.c.b16 %v1609, %v1600
    %v2006 = vpack.c.b16 %v1610, %v1601
    %v2007 = vpack.c.b16 %v1611, %v1602
    %v2008 = vpack.c.b16 %v1612, %v1603
    %v2009 = vpack.c.b16 %v1622, %v1613
    %v2010 = vpack.c.b16 %v1623, %v1614
    %v2011 = vpack.c.b16 %v1624, %v1615
    %v2012 = vpack.c.b16 %v1625, %v1616
    %v2013 = vpack.c.b16 %v1626, %v1617
    %v2014 = vpack.c.b16 %v1627, %v1618
    %v2015 = vpack.c.b16 %v1628, %v1619
    %v2016 = vpack.c.b16 %v1629, %v1620
    %v2017 = vpack.c.b16 %v1630, %v1621
    %v2018 = vpack.c.b16 %v1640, %v1631
    %v2019 = vpack.c.b16 %v1641, %v1632
    %v2020 = vpack.c.b16 %v1642, %v1633
    %v2021 = vpack.c.b16 %v1643, %v1634
    %v2022 = vpack.c.b16 %v1644, %v1635
    %v2023 = vpack.c.b16 %v1645, %v1636
    %v2024 = vpack.c.b16 %v1646, %v1637
    %v2025 = vpack.c.b16 %v1647, %v1638
    %v2026 = vpack.c.b16 %v1648, %v1639
    %v2027 = vpack.c.b16 %v1658, %v1649
    %v2028 = vpack.c.b16 %v1659, %v1650
    %v2029 = vpack.c.b16 %v1660, %v1651
    %v2030 = vpack.c.b16 %v1661, %v1652
    %v2031 = vpack.c.b16 %v1662, %v1653
    %v2032 = vpack.c.b16 %v1663, %v1654
    %v2033 = vpack.c.b16 %v1664, %v1655
    %v2034 = vpack.c.b16 %v1665, %v1656
    %v2035 = vpack.c.b16 %v1666, %v1657
    %v2036 = vpack.c.b16 %v1676, %v1667
    %v2037 = vpack.c.b16 %v1677, %v1668
    %v2038 = vpack.c.b16 %v1678, %v1669
    %v2039 = vpack.c.b16 %v1679, %v1670
    %v2040 = vpack.c.b16 %v1680, %v1671
    %v2041 = vpack.c.b16 %v1681, %v1672
    %v2042 = vpack.c.b16 %v1682, %v1673
    %v2043 = vpack.c.b16 %v1683, %v1674
    %v2044 = vpack.c.b16 %v1684, %v1675
    %v2045 = vpack.c.b16 %v1694, %v1685
    %v2046 = vpack.c.b16 %v1695, %v1686
    %v2047 = vpack.c.b16 %v1696, %v1687
    %v2048 = vpack.c.b16 %v1697, %v1688
    %v2049 = vpack.c.b16 %v1698, %v1689
    %v2050 = vpack.c.b16 %v1699, %v1690
    %v2051 = vpack.c.b16 %v1700, %v1691
    %v2052 = vpack.c.b16 %v1701, %v1692
    %v2053 = vpack.c.b16 %v1702, %v1693
    %v2054 = vpack.c.b16 %v1712, %v1703
    %v2055 = vpack.c.b16 %v1713, %v1704
    %v2056 = vpack.c.b16 %v1714, %v1705
    %v2057 = vpack.c.b16 %v1715, %v1706
    %v2058 = vpack.c.b16 %v1716, %v1707
    %v2059 = vpack.c.b16 %v1717, %v1708
    %v2060 = vpack.c.b16 %v1718, %v1709
    %v2061 = vpack.c.b16 %v1719, %v1710
    %v2062 = vpack.c.b16 %v1720, %v1711
    %v2063 = vpack.c.b16 %v1730, %v1721
    %v2064 = vpack.c.b16 %v1731, %v1722
    %v2065 = vpack.c.b16 %v1732, %v1723
    %v2066 = vpack.c.b16 %v1733, %v1724
    %v2067 = vpack.c.b16 %v1734, %v1725
    %v2068 = vpack.c.b16 %v1735, %v1726
    %v2069 = vpack.c.b16 %v1736, %v1727
    %v2070 = vpack.c.b16 %v1737, %v1728
    %v2071 = vpack.c.b16 %v1738, %v1729
    %v2072 = vpack.c.b16 %v1748, %v1739
    %v2073 = vpack.c.b16 %v1749, %v1740
    %v2074 = vpack.c.b16 %v1750, %v1741
    %v2075 = vpack.c.b16 %v1751, %v1742
    %v2076 = vpack.c.b16 %v1752, %v1743
    %v2077 = vpack.c.b16 %v1753, %v1744
    %v2078 = vpack.c.b16 %v1754, %v1745
    %v2079 = vpack.c.b16 %v1755, %v1746
    %v2080 = vpack.c.b16 %v1756, %v1747
    %v2081 = vpack.c.b16 %v1766, %v1757
    %v2082 = vpack.c.b16 %v1767, %v1758
    %v2083 = vpack.c.b16 %v1768, %v1759
    %v2084 = vpack.c.b16 %v1769, %v1760
    %v2085 = vpack.c.b16 %v1770, %v1761
    %v2086 = vpack.c.b16 %v1771, %v1762
    %v2087 = vpack.c.b16 %v1772, %v1763
    %v2088 = vpack.c.b16 %v1773, %v1764
    %v2089 = vpack.c.b16 %v1774, %v1765
    %v2090 = vpack.c.b16 %v1784, %v1775
    %v2091 = vpack.c.b16 %v1785, %v1776
    %v2092 = vpack.c.b16 %v1786, %v1777
    %v2093 = vpack.c.b16 %v1787, %v1778
    %v2094 = vpack.c.b16 %v1788, %v1779
    %v2095 = vpack.c.b16 %v1789, %v1780
    %v2096 = vpack.c.b16 %v1790, %v1781
    %v2097 = vpack.c.b16 %v1791, %v1782
    %v2098 = vpack.c.b16 %v1792, %v1783
    %v2099 = vpack.c.b16 %v1802, %v1793
    %v2100 = vpack.c.b16 %v1803, %v1794
    %v2101 = vpack.c.b16 %v1804, %v1795
    %v2102 = vpack.c.b16 %v1805, %v1796
    %v2103 = vpack.c.b16 %v1806, %v1797
    %v2104 = vpack.c.b16 %v1807, %v1798
    %v2105 = vpack.c.b16 %v1808, %v1799
    %v2106 = vpack.c.b16 %v1809, %v1800
    %v2107 = vpack.c.b16 %v1810, %v1801
    %v2108 = vpack.c.b16 %v1820, %v1811
    %v2109 = vpack.c.b16 %v1821, %v1812
    %v2110 = vpack.c.b16 %v1822, %v1813
    %v2111 = vpack.c.b16 %v1823, %v1814
    %v2112 = vpack.c.b16 %v1824, %v1815
    %v2113 = vpack.c.b16 %v1825, %v1816
    %v2114 = vpack.c.b16 %v1826, %v1817
    %v2115 = vpack.c.b16 %v1827, %v1818
    %v2116 = vpack.c.b16 %v1828, %v1819
    %v2117 = vpack.c.b16 %v1838, %v1829
    %v2118 = vpack.c.b16 %v1839, %v1830
    %v2119 = vpack.c.b16 %v1840, %v1831
    %v2120 = vpack.c.b16 %v1841, %v1832
    %v2121 = vpack.c.b16 %v1842, %v1833
    %v2122 = vpack.c.b16 %v1843, %v1834
    %v2123 = vpack.c.b16 %v1844, %v1835
    %v2124 = vpack.c.b16 %v1845, %v1836
    %v2125 = vpack.c.b16 %v1846, %v1837
    %v2126 = vpack.c.b16 %v1856, %v1847
    %v2127 = vpack.c.b16 %v1857, %v1848
    %v2128 = vpack.c.b16 %v1858, %v1849
    %v2129 = vpack.c.b16 %v1859, %v1850
    %v2130 = vpack.c.b16 %v1860, %v1851
    %v2131 = vpack.c.b16 %v1861, %v1852
    %v2132 = vpack.c.b16 %v1862, %v1853
    %v2133 = vpack.c.b16 %v1863, %v1854
    %v2134 = vpack.c.b16 %v1864, %v1855
    %v2135 = vpack.c.b16 %v1874, %v1865
    %v2136 = vpack.c.b16 %v1875, %v1866
    %v2137 = vpack.c.b16 %v1876, %v1867
    %v2138 = vpack.c.b16 %v1877, %v1868
    %v2139 = vpack.c.b16 %v1878, %v1869
    %v2140 = vpack.c.b16 %v1879, %v1870
    %v2141 = vpack.c.b16 %v1880, %v1871
    %v2142 = vpack.c.b16 %v1881, %v1872
    %v2143 = vpack.c.b16 %v1882, %v1873
    %v2144 = vpack.c.b16 %v1892, %v1883
    %v2145 = vpack.c.b16 %v1893, %v1884
    %v2146 = vpack.c.b16 %v1894, %v1885
    %v2147 = vpack.c.b16 %v1895, %v1886
    %v2148 = vpack.c.b16 %v1896, %v1887
    %v2149 = vpack.c.b16 %v1897, %v1888
    %v2150 = vpack.c.b16 %v1898, %v1889
    %v2151 = vpack.c.b16 %v1899, %v1890
    %v2152 = vpack.c.b16 %v1900, %v1891
    %v2153 = vpack.c.b16 %v1910, %v1901
    %v2154 = vpack.c.b16 %v1911, %v1902
    %v2155 = vpack.c.b16 %v1912, %v1903
    %v2156 = vpack.c.b16 %v1913, %v1904
    %v2157 = vpack.c.b16 %v1914, %v1905
    %v2158 = vpack.c.b16 %v1915, %v1906
    %v2159 = vpack.c.b16 %v1916, %v1907
    %v2160 = vpack.c.b16 %v1917, %v1908
    %v2161 = vpack.c.b16 %v1918, %v1909
    %v2162 = vpack.c.b16 %v1928, %v1919
    %v2163 = vpack.c.b16 %v1929, %v1920
    %v2164 = vpack.c.b16 %v1930, %v1921
    %v2165 = vpack.c.b16 %v1931, %v1922
    %v2166 = vpack.c.b16 %v1932, %v1923
    %v2167 = vpack.c.b16 %v1933, %v1924
    %v2168 = vpack.c.b16 %v1934, %v1925
    %v2169 = vpack.c.b16 %v1935, %v1926
    %v2170 = vpack.c.b16 %v1936, %v1927
    %v2171 = vpack.c.b16 %v1946, %v1937
    %v2172 = vpack.c.b16 %v1947, %v1938
    %v2173 = vpack.c.b16 %v1948, %v1939
    %v2174 = vpack.c.b16 %v1949, %v1940
    %v2175 = vpack.c.b16 %v1950, %v1941
    %v2176 = vpack.c.b16 %v1951, %v1942
    %v2177 = vpack.c.b16 %v1952, %v1943
    %v2178 = vpack.c.b16 %v1953, %v1944
    %v2179 = vpack.c.b16 %v1954, %v1945
    %v2180 = vpack.c.b16 %v1964, %v1955
    %v2181 = vpack.c.b16 %v1965, %v1956
    %v2182 = vpack.c.b16 %v1966, %v1957
    %v2183 = vpack.c.b16 %v1967, %v1958
    %v2184 = vpack.c.b16 %v1968, %v1959
    %v2185 = vpack.c.b16 %v1969, %v1960
    %v2186 = vpack.c.b16 %v1970, %v1961
    %v2187 = vpack.c.b16 %v1971, %v1962
    %v2188 = vpack.c.b16 %v1972, %v1963
    %2405 = vmatprep.subr.bf16.mxu0 %v1974
    %2406 = vmatpush1.bf16.msra.mxu0 %v1973
    %2407 = vmatprep.subr.bf16.mxu0 %v1983
    %2408 = vmatpush1.bf16.msra.mxu0 %v1982
    %2409 = vmatprep.subr.bf16.mxu0 %v1992
    %2410 = vmatpush1.bf16.msra.mxu0 %v1991
    %2411 = vmatprep.subr.bf16.mxu0 %v2001
    %2412 = vmatpush1.bf16.msra.mxu0 %v2000
    %2413 = vmatprep.subr.bf16.mxu0 %v2010
    %2414 = vmatpush1.bf16.msra.mxu0 %v2009
    %2415 = vmatprep.subr.bf16.mxu0 %v2019
    %2416 = vmatpush1.bf16.msra.mxu0 %v2018
    %2417 = vmatprep.subr.bf16.mxu0 %v2028
    %2418 = vmatpush1.bf16.msra.mxu0 %v2027
    %2419 = vmatprep.subr.bf16.mxu0 %v2037
    %2420 = vmatpush1.bf16.msra.mxu0 %v2036
    %2421 = vmatprep.subr.bf16.mxu0 %v2046
    %2422 = vmatpush1.bf16.msra.mxu0 %v2045
    %2423 = vmatprep.subr.bf16.mxu0 %v2055
    %2424 = vmatpush1.bf16.msra.mxu0 %v2054
    %2425 = vmatprep.subr.bf16.mxu0 %v2064
    %2426 = vmatpush1.bf16.msra.mxu0 %v2063
    %2427 = vmatprep.subr.bf16.mxu0 %v2073
    %2428 = vmatpush1.bf16.msra.mxu0 %v2072
    %2429 = vmatprep.subr.bf16.mxu0 %v2082
    %2430 = vmatpush1.bf16.msra.mxu0 %v2081
    %2431 = vmatprep.subr.bf16.mxu0 %v2091
    %2432 = vmatpush1.bf16.msra.mxu0 %v2090
    %2433 = vmatprep.subr.bf16.mxu0 %v2100
    %2434 = vmatpush1.bf16.msra.mxu0 %v2099
    %2435 = vmatprep.subr.bf16.mxu0 %v2109
    %2436 = vmatpush1.bf16.msra.mxu0 %v2108
    %2437 = vmatprep.mubr.bf16.mxu0 %v1299
    %2438 = vmatmul.mubr.bf16.gmra.mrb[0].mxu0 %v1298
    %v2439 = vpop.f32.mrb[0].mxu0
    %v2440 = vadd.f32 0.0, %v2439
    %v2441 = vpop.f32.mrb[0].mxu0
    %v2442 = vadd.f32 0.0, %v2441
    %v2443 = vpop.f32.mrb[0].mxu0
    %v2444 = vpop.f32.mrb[0].mxu0
    %2445 = vdwg.mxu0
    %2446 = vmatprep.subr.bf16.mxu0 %v2118
    %2447 = vmatpush1.bf16.msra.mxu0 %v2117
    %2448 = vmatprep.subr.bf16.mxu0 %v2127
    %2449 = vmatpush1.bf16.msra.mxu0 %v2126
    %2450 = vmatprep.subr.bf16.mxu0 %v2136
    %2451 = vmatpush1.bf16.msra.mxu0 %v2135
    %2452 = vmatprep.subr.bf16.mxu0 %v2145
    %2453 = vmatpush1.bf16.msra.mxu0 %v2144
    %2454 = vmatprep.subr.bf16.mxu0 %v2154
    %2455 = vmatpush1.bf16.msra.mxu0 %v2153
    %2456 = vmatprep.subr.bf16.mxu0 %v2163
    %2457 = vmatpush1.bf16.msra.mxu0 %v2162
    %2458 = vmatprep.subr.bf16.mxu0 %v2172
    %2459 = vmatpush1.bf16.msra.mxu0 %v2171
    %2460 = vmatprep.subr.bf16.mxu0 %v2181
    %2461 = vmatpush1.bf16.msra.mxu0 %v2180
    %2462 = vmatprep.subr.bf16.mxu0 0
    %2463 = vmatpush1.bf16.msra.mxu0 0
    %2464 = vmatprep.subr.bf16.mxu0 0
    %2465 = vmatpush1.bf16.msra.mxu0 0
    %2466 = vmatprep.subr.bf16.mxu0 0
    %2467 = vmatpush1.bf16.msra.mxu0 0
    %2468 = vmatprep.subr.bf16.mxu0 0
    %2469 = vmatpush1.bf16.msra.mxu0 0
    %2470 = vmatprep.subr.bf16.mxu0 0
    %2471 = vmatpush1.bf16.msra.mxu0 0
    %2472 = vmatprep.subr.bf16.mxu0 0
    %2473 = vmatpush1.bf16.msra.mxu0 0
    %2474 = vmatprep.subr.bf16.mxu0 0
    %2475 = vmatpush1.bf16.msra.mxu0 0
    %2476 = vmatprep.subr.bf16.mxu0 0
    %2477 = vmatpush1.bf16.msra.mxu0 0
    %2478 = vmatprep.mubr.bf16.mxu0 0
    %2479 = vmatmul.mubr.bf16.gmra.mrb[0].mxu0 %v1300
    %v2480 = vpop.f32.mrb[0].mxu0
    %v2481 = vadd.f32 %v2440, %v2480
    %v2482 = vpop.f32.mrb[0].mxu0
    %v2483 = vadd.f32 %v2442, %v2482
    %v2484 = vpop.f32.mrb[0].mxu0
    %v2485 = vpop.f32.mrb[0].mxu0
    %2486 = vdwg.mxu0
    %2487 = vmatprep.subr.bf16.mxu0 %v1976
    %2488 = vmatpush1.bf16.msra.mxu0 %v1975
    %2489 = vmatprep.subr.bf16.mxu0 %v1985
    %2490 = vmatpush1.bf16.msra.mxu0 %v1984
    %2491 = vmatprep.subr.bf16.mxu0 %v1994
    %2492 = vmatpush1.bf16.msra.mxu0 %v1993
    %2493 = vmatprep.subr.bf16.mxu0 %v2003
    %2494 = vmatpush1.bf16.msra.mxu0 %v2002
    %2495 = vmatprep.subr.bf16.mxu0 %v2012
    %2496 = vmatpush1.bf16.msra.mxu0 %v2011
    %2497 = vmatprep.subr.bf16.mxu0 %v2021
    %2498 = vmatpush1.bf16.msra.mxu0 %v2020
    %2499 = vmatprep.subr.bf16.mxu0 %v2030
    %2500 = vmatpush1.bf16.msra.mxu0 %v2029
    %2501 = vmatprep.subr.bf16.mxu0 %v2039
    %2502 = vmatpush1.bf16.msra.mxu0 %v2038
    %2503 = vmatprep.subr.bf16.mxu0 %v2048
    %2504 = vmatpush1.bf16.msra.mxu0 %v2047
    %2505 = vmatprep.subr.bf16.mxu0 %v2057
    %2506 = vmatpush1.bf16.msra.mxu0 %v2056
    %2507 = vmatprep.subr.bf16.mxu0 %v2066
    %2508 = vmatpush1.bf16.msra.mxu0 %v2065
    %2509 = vmatprep.subr.bf16.mxu0 %v2075
    %2510 = vmatpush1.bf16.msra.mxu0 %v2074
    %2511 = vmatprep.subr.bf16.mxu0 %v2084
    %2512 = vmatpush1.bf16.msra.mxu0 %v2083
    %2513 = vmatprep.subr.bf16.mxu0 %v2093
    %2514 = vmatpush1.bf16.msra.mxu0 %v2092
    %2515 = vmatprep.subr.bf16.mxu0 %v2102
    %2516 = vmatpush1.bf16.msra.mxu0 %v2101
    %2517 = vmatprep.subr.bf16.mxu0 %v2111
    %2518 = vmatpush1.bf16.msra.mxu0 %v2110
    %2519 = vmatprep.mubr.bf16.mxu0 %v1299
    %2520 = vmatmul.mubr.bf16.gmra.mrb[0].mxu0 %v1298
    %v2521 = vpop.f32.mrb[0].mxu0
    %v2522 = vadd.f32 0.0, %v2521
    %v2523 = vpop.f32.mrb[0].mxu0
    %v2524 = vadd.f32 0.0, %v2523
    %v2525 = vpop.f32.mrb[0].mxu0
    %v2526 = vpop.f32.mrb[0].mxu0
    %2527 = vdwg.mxu0
    %2528 = vmatprep.subr.bf16.mxu0 %v2120
    %2529 = vmatpush1.bf16.msra.mxu0 %v2119
    %2530 = vmatprep.subr.bf16.mxu0 %v2129
    %2531 = vmatpush1.bf16.msra.mxu0 %v2128
    %2532 = vmatprep.subr.bf16.mxu0 %v2138
    %2533 = vmatpush1.bf16.msra.mxu0 %v2137
    %2534 = vmatprep.subr.bf16.mxu0 %v2147
    %2535 = vmatpush1.bf16.msra.mxu0 %v2146
    %2536 = vmatprep.subr.bf16.mxu0 %v2156
    %2537 = vmatpush1.bf16.msra.mxu0 %v2155
    %2538 = vmatprep.subr.bf16.mxu0 %v2165
    %2539 = vmatpush1.bf16.msra.mxu0 %v2164
    %2540 = vmatprep.subr.bf16.mxu0 %v2174
    %2541 = vmatpush1.bf16.msra.mxu0 %v2173
    %2542 = vmatprep.subr.bf16.mxu0 %v2183
    %2543 = vmatpush1.bf16.msra.mxu0 %v2182
    %2544 = vmatprep.subr.bf16.mxu0 0
    %2545 = vmatpush1.bf16.msra.mxu0 0
    %2546 = vmatprep.subr.bf16.mxu0 0
    %2547 = vmatpush1.bf16.msra.mxu0 0
    %2548 = vmatprep.subr.bf16.mxu0 0
    %2549 = vmatpush1.bf16.msra.mxu0 0
    %2550 = vmatprep.subr.bf16.mxu0 0
    %2551 = vmatpush1.bf16.msra.mxu0 0
    %2552 = vmatprep.subr.bf16.mxu0 0
    %2553 = vmatpush1.bf16.msra.mxu0 0
    %2554 = vmatprep.subr.bf16.mxu0 0
    %2555 = vmatpush1.bf16.msra.mxu0 0
    %2556 = vmatprep.subr.bf16.mxu0 0
    %2557 = vmatpush1.bf16.msra.mxu0 0
    %2558 = vmatprep.subr.bf16.mxu0 0
    %2559 = vmatpush1.bf16.msra.mxu0 0
    %2560 = vmatprep.mubr.bf16.mxu0 0
    %2561 = vmatmul.mubr.bf16.gmra.mrb[0].mxu0 %v1300
    %v2562 = vpop.f32.mrb[0].mxu0
    %v2563 = vadd.f32 %v2522, %v2562
    %v2564 = vpop.f32.mrb[0].mxu0
    %v2565 = vadd.f32 %v2524, %v2564
    %v2566 = vpop.f32.mrb[0].mxu0
    %v2567 = vpop.f32.mrb[0].mxu0
    %2568 = vdwg.mxu0
    %2569 = vmatprep.subr.bf16.mxu0 %v1978
    %2570 = vmatpush1.bf16.msra.mxu0 %v1977
    %2571 = vmatprep.subr.bf16.mxu0 %v1987
    %2572 = vmatpush1.bf16.msra.mxu0 %v1986
    %2573 = vmatprep.subr.bf16.mxu0 %v1996
    %2574 = vmatpush1.bf16.msra.mxu0 %v1995
    %2575 = vmatprep.subr.bf16.mxu0 %v2005
    %2576 = vmatpush1.bf16.msra.mxu0 %v2004
    %2577 = vmatprep.subr.bf16.mxu0 %v2014
    %2578 = vmatpush1.bf16.msra.mxu0 %v2013
    %2579 = vmatprep.subr.bf16.mxu0 %v2023
    %2580 = vmatpush1.bf16.msra.mxu0 %v2022
    %2581 = vmatprep.subr.bf16.mxu0 %v2032
    %2582 = vmatpush1.bf16.msra.mxu0 %v2031
    %2583 = vmatprep.subr.bf16.mxu0 %v2041
    %2584 = vmatpush1.bf16.msra.mxu0 %v2040
    %2585 = vmatprep.subr.bf16.mxu0 %v2050
    %2586 = vmatpush1.bf16.msra.mxu0 %v2049
    %2587 = vmatprep.subr.bf16.mxu0 %v2059
    %2588 = vmatpush1.bf16.msra.mxu0 %v2058
    %2589 = vmatprep.subr.bf16.mxu0 %v2068
    %2590 = vmatpush1.bf16.msra.mxu0 %v2067
    %2591 = vmatprep.subr.bf16.mxu0 %v2077
    %2592 = vmatpush1.bf16.msra.mxu0 %v2076
    %2593 = vmatprep.subr.bf16.mxu0 %v2086
    %2594 = vmatpush1.bf16.msra.mxu0 %v2085
    %2595 = vmatprep.subr.bf16.mxu0 %v2095
    %2596 = vmatpush1.bf16.msra.mxu0 %v2094
    %2597 = vmatprep.subr.bf16.mxu0 %v2104
    %2598 = vmatpush1.bf16.msra.mxu0 %v2103
    %2599 = vmatprep.subr.bf16.mxu0 %v2113
    %2600 = vmatpush1.bf16.msra.mxu0 %v2112
    %2601 = vmatprep.mubr.bf16.mxu0 %v1299
    %2602 = vmatmul.mubr.bf16.gmra.mrb[0].mxu0 %v1298
    %v2603 = vpop.f32.mrb[0].mxu0
    %v2604 = vadd.f32 0.0, %v2603
    %v2605 = vpop.f32.mrb[0].mxu0
    %v2606 = vadd.f32 0.0, %v2605
    %v2607 = vpop.f32.mrb[0].mxu0
    %v2608 = vpop.f32.mrb[0].mxu0
    %2609 = vdwg.mxu0
    %2610 = vmatprep.subr.bf16.mxu0 %v2122
    %2611 = vmatpush1.bf16.msra.mxu0 %v2121
    %2612 = vmatprep.subr.bf16.mxu0 %v2131
    %2613 = vmatpush1.bf16.msra.mxu0 %v2130
    %2614 = vmatprep.subr.bf16.mxu0 %v2140
    %2615 = vmatpush1.bf16.msra.mxu0 %v2139
    %2616 = vmatprep.subr.bf16.mxu0 %v2149
    %2617 = vmatpush1.bf16.msra.mxu0 %v2148
    %2618 = vmatprep.subr.bf16.mxu0 %v2158
    %2619 = vmatpush1.bf16.msra.mxu0 %v2157
    %2620 = vmatprep.subr.bf16.mxu0 %v2167
    %2621 = vmatpush1.bf16.msra.mxu0 %v2166
    %2622 = vmatprep.subr.bf16.mxu0 %v2176
    %2623 = vmatpush1.bf16.msra.mxu0 %v2175
    %2624 = vmatprep.subr.bf16.mxu0 %v2185
    %2625 = vmatpush1.bf16.msra.mxu0 %v2184
    %2626 = vmatprep.subr.bf16.mxu0 0
    %2627 = vmatpush1.bf16.msra.mxu0 0
    %2628 = vmatprep.subr.bf16.mxu0 0
    %2629 = vmatpush1.bf16.msra.mxu0 0
    %2630 = vmatprep.subr.bf16.mxu0 0
    %2631 = vmatpush1.bf16.msra.mxu0 0
    %2632 = vmatprep.subr.bf16.mxu0 0
    %2633 = vmatpush1.bf16.msra.mxu0 0
    %2634 = vmatprep.subr.bf16.mxu0 0
    %2635 = vmatpush1.bf16.msra.mxu0 0
    %2636 = vmatprep.subr.bf16.mxu0 0
    %2637 = vmatpush1.bf16.msra.mxu0 0
    %2638 = vmatprep.subr.bf16.mxu0 0
    %2639 = vmatpush1.bf16.msra.mxu0 0
    %2640 = vmatprep.subr.bf16.mxu0 0
    %2641 = vmatpush1.bf16.msra.mxu0 0
    %2642 = vmatprep.mubr.bf16.mxu0 0
    %2643 = vmatmul.mubr.bf16.gmra.mrb[0].mxu0 %v1300
    %v2644 = vpop.f32.mrb[0].mxu0
    %v2645 = vadd.f32 %v2604, %v2644
    %v2646 = vpop.f32.mrb[0].mxu0
    %v2647 = vadd.f32 %v2606, %v2646
    %v2648 = vpop.f32.mrb[0].mxu0
    %v2649 = vpop.f32.mrb[0].mxu0
    %2650 = vdwg.mxu0
    %2651 = vmatprep.subr.bf16.mxu0 %v1980
    %2652 = vmatpush1.bf16.msra.mxu0 %v1979
    %2653 = vmatprep.subr.bf16.mxu0 %v1989
    %2654 = vmatpush1.bf16.msra.mxu0 %v1988
    %2655 = vmatprep.subr.bf16.mxu0 %v1998
    %2656 = vmatpush1.bf16.msra.mxu0 %v1997
    %2657 = vmatprep.subr.bf16.mxu0 %v2007
    %2658 = vmatpush1.bf16.msra.mxu0 %v2006
    %2659 = vmatprep.subr.bf16.mxu0 %v2016
    %2660 = vmatpush1.bf16.msra.mxu0 %v2015
    %2661 = vmatprep.subr.bf16.mxu0 %v2025
    %2662 = vmatpush1.bf16.msra.mxu0 %v2024
    %2663 = vmatprep.subr.bf16.mxu0 %v2034
    %2664 = vmatpush1.bf16.msra.mxu0 %v2033
    %2665 = vmatprep.subr.bf16.mxu0 %v2043
    %2666 = vmatpush1.bf16.msra.mxu0 %v2042
    %2667 = vmatprep.subr.bf16.mxu0 %v2052
    %2668 = vmatpush1.bf16.msra.mxu0 %v2051
    %2669 = vmatprep.subr.bf16.mxu0 %v2061
    %2670 = vmatpush1.bf16.msra.mxu0 %v2060
    %2671 = vmatprep.subr.bf16.mxu0 %v2070
    %2672 = vmatpush1.bf16.msra.mxu0 %v2069
    %2673 = vmatprep.subr.bf16.mxu0 %v2079
    %2674 = vmatpush1.bf16.msra.mxu0 %v2078
    %2675 = vmatprep.subr.bf16.mxu0 %v2088
    %2676 = vmatpush1.bf16.msra.mxu0 %v2087
    %2677 = vmatprep.subr.bf16.mxu0 %v2097
    %2678 = vmatpush1.bf16.msra.mxu0 %v2096
    %2679 = vmatprep.subr.bf16.mxu0 %v2106
    %2680 = vmatpush1.bf16.msra.mxu0 %v2105
    %2681 = vmatprep.subr.bf16.mxu0 %v2115
    %2682 = vmatpush1.bf16.msra.mxu0 %v2114
    %2683 = vmatprep.mubr.bf16.mxu0 %v1299
    %2684 = vmatmul.mubr.bf16.gmra.mrb[0].mxu0 %v1298
    %v2685 = vpop.f32.mrb[0].mxu0
    %v2686 = vadd.f32 0.0, %v2685
    %v2687 = vpop.f32.mrb[0].mxu0
    %v2688 = vadd.f32 0.0, %v2687
    %v2689 = vpop.f32.mrb[0].mxu0
    %v2690 = vpop.f32.mrb[0].mxu0
    %2691 = vdwg.mxu0
    %2692 = vmatprep.subr.bf16.mxu0 %v2124
    %2693 = vmatpush1.bf16.msra.mxu0 %v2123
    %2694 = vmatprep.subr.bf16.mxu0 %v2133
    %2695 = vmatpush1.bf16.msra.mxu0 %v2132
    %2696 = vmatprep.subr.bf16.mxu0 %v2142
    %2697 = vmatpush1.bf16.msra.mxu0 %v2141
    %2698 = vmatprep.subr.bf16.mxu0 %v2151
    %2699 = vmatpush1.bf16.msra.mxu0 %v2150
    %2700 = vmatprep.subr.bf16.mxu0 %v2160
    %2701 = vmatpush1.bf16.msra.mxu0 %v2159
    %2702 = vmatprep.subr.bf16.mxu0 %v2169
    %2703 = vmatpush1.bf16.msra.mxu0 %v2168
    %2704 = vmatprep.subr.bf16.mxu0 %v2178
    %2705 = vmatpush1.bf16.msra.mxu0 %v2177
    %2706 = vmatprep.subr.bf16.mxu0 %v2187
    %2707 = vmatpush1.bf16.msra.mxu0 %v2186
    %2708 = vmatprep.subr.bf16.mxu0 0
    %2709 = vmatpush1.bf16.msra.mxu0 0
    %2710 = vmatprep.subr.bf16.mxu0 0
    %2711 = vmatpush1.bf16.msra.mxu0 0
    %2712 = vmatprep.subr.bf16.mxu0 0
    %2713 = vmatpush1.bf16.msra.mxu0 0
    %2714 = vmatprep.subr.bf16.mxu0 0
    %2715 = vmatpush1.bf16.msra.mxu0 0
    %2716 = vmatprep.subr.bf16.mxu0 0
    %2717 = vmatpush1.bf16.msra.mxu0 0
    %2718 = vmatprep.subr.bf16.mxu0 0
    %2719 = vmatpush1.bf16.msra.mxu0 0
    %2720 = vmatprep.subr.bf16.mxu0 0
    %2721 = vmatpush1.bf16.msra.mxu0 0
    %2722 = vmatprep.subr.bf16.mxu0 0
    %2723 = vmatpush1.bf16.msra.mxu0 0
    %2724 = vmatprep.mubr.bf16.mxu0 0
    %2725 = vmatmul.mubr.bf16.gmra.mrb[0].mxu0 %v1300
    %v2726 = vpop.f32.mrb[0].mxu0
    %v2727 = vadd.f32 %v2686, %v2726
    %v2728 = vpop.f32.mrb[0].mxu0
    %v2729 = vadd.f32 %v2688, %v2728
    %v2730 = vpop.f32.mrb[0].mxu0
    %v2731 = vpop.f32.mrb[0].mxu0
    %2732 = vdwg.mxu0
    %2733 = vmatprep.subr.bf16.mxu0 0
    %2734 = vmatpush1.bf16.msra.mxu0 %v1981
    %2735 = vmatprep.subr.bf16.mxu0 0
    %2736 = vmatpush1.bf16.msra.mxu0 %v1990
    %2737 = vmatprep.subr.bf16.mxu0 0
    %2738 = vmatpush1.bf16.msra.mxu0 %v1999
    %2739 = vmatprep.subr.bf16.mxu0 0
    %2740 = vmatpush1.bf16.msra.mxu0 %v2008
    %2741 = vmatprep.subr.bf16.mxu0 0
    %2742 = vmatpush1.bf16.msra.mxu0 %v2017
    %2743 = vmatprep.subr.bf16.mxu0 0
    %2744 = vmatpush1.bf16.msra.mxu0 %v2026
    %2745 = vmatprep.subr.bf16.mxu0 0
    %2746 = vmatpush1.bf16.msra.mxu0 %v2035
    %2747 = vmatprep.subr.bf16.mxu0 0
    %2748 = vmatpush1.bf16.msra.mxu0 %v2044
    %2749 = vmatprep.subr.bf16.mxu0 0
    %2750 = vmatpush1.bf16.msra.mxu0 %v2053
    %2751 = vmatprep.subr.bf16.mxu0 0
    %2752 = vmatpush1.bf16.msra.mxu0 %v2062
    %2753 = vmatprep.subr.bf16.mxu0 0
    %2754 = vmatpush1.bf16.msra.mxu0 %v2071
    %2755 = vmatprep.subr.bf16.mxu0 0
    %2756 = vmatpush1.bf16.msra.mxu0 %v2080
    %2757 = vmatprep.subr.bf16.mxu0 0
    %2758 = vmatpush1.bf16.msra.mxu0 %v2089
    %2759 = vmatprep.subr.bf16.mxu0 0
    %2760 = vmatpush1.bf16.msra.mxu0 %v2098
    %2761 = vmatprep.subr.bf16.mxu0 0
    %2762 = vmatpush1.bf16.msra.mxu0 %v2107
    %2763 = vmatprep.subr.bf16.mxu0 0
    %2764 = vmatpush1.bf16.msra.mxu0 %v2116
    %2765 = vmatprep.mubr.bf16.mxu0 %v1299
    %2766 = vmatmul.mubr.bf16.gmra.mrb[0].mxu0 %v1298
    %v2767 = vpop.f32.mrb[0].mxu0
    %v2768 = vadd.f32 0.0, %v2767
    %v2769 = vpop.f32.mrb[0].mxu0
    %v2770 = vpop.f32.mrb[0].mxu0
    %v2771 = vpop.f32.mrb[0].mxu0
    %2772 = vdwg.mxu0
    %2773 = vmatprep.subr.bf16.mxu0 0
    %2774 = vmatpush1.bf16.msra.mxu0 %v2125
    %2775 = vmatprep.subr.bf16.mxu0 0
    %2776 = vmatpush1.bf16.msra.mxu0 %v2134
    %2777 = vmatprep.subr.bf16.mxu0 0
    %2778 = vmatpush1.bf16.msra.mxu0 %v2143
    %2779 = vmatprep.subr.bf16.mxu0 0
    %2780 = vmatpush1.bf16.msra.mxu0 %v2152
    %2781 = vmatprep.subr.bf16.mxu0 0
    %2782 = vmatpush1.bf16.msra.mxu0 %v2161
    %2783 = vmatprep.subr.bf16.mxu0 0
    %2784 = vmatpush1.bf16.msra.mxu0 %v2170
    %2785 = vmatprep.subr.bf16.mxu0 0
    %2786 = vmatpush1.bf16.msra.mxu0 %v2179
    %2787 = vmatprep.subr.bf16.mxu0 0
    %2788 = vmatpush1.bf16.msra.mxu0 %v2188
    %2789 = vmatprep.subr.bf16.mxu0 0
    %2790 = vmatpush1.bf16.msra.mxu0 0
    %2791 = vmatprep.subr.bf16.mxu0 0
    %2792 = vmatpush1.bf16.msra.mxu0 0
    %2793 = vmatprep.subr.bf16.mxu0 0
    %2794 = vmatpush1.bf16.msra.mxu0 0
    %2795 = vmatprep.subr.bf16.mxu0 0
    %2796 = vmatpush1.bf16.msra.mxu0 0
    %2797 = vmatprep.subr.bf16.mxu0 0
    %2798 = vmatpush1.bf16.msra.mxu0 0
    %2799 = vmatprep.subr.bf16.mxu0 0
    %2800 = vmatpush1.bf16.msra.mxu0 0
    %2801 = vmatprep.subr.bf16.mxu0 0
    %2802 = vmatpush1.bf16.msra.mxu0 0
    %2803 = vmatprep.subr.bf16.mxu0 0
    %2804 = vmatpush1.bf16.msra.mxu0 0
    %2805 = vmatprep.mubr.bf16.mxu0 0
    %2806 = vmatmul.mubr.bf16.gmra.mrb[0].mxu0 %v1300
    %v2807 = vpop.f32.mrb[0].mxu0
    %v2808 = vadd.f32 %v2768, %v2807
    %v2809 = vpop.f32.mrb[0].mxu0
    %v2810 = vpop.f32.mrb[0].mxu0
    %v2811 = vpop.f32.mrb[0].mxu0
    %2812 = vdwg.mxu0
    %v2813 = vadd.f32 %v1289, %v2481
    %v2814 = vadd.f32 %v1290, %v2483
    %v2815 = vadd.f32 %v1291, %v2563
    %v2816 = vxor.u32 %v2813, 2147483648
    %v2817 = vxor.u32 %v2814, 2147483648
    %v2818 = vxor.u32 %v2815, 2147483648
    %v2819 = vmul.f32 %v2816, 1.442695
    %v2820 = vpow.pop %v2819
    %v2821 = vmul.f32 %v2817, 1.442695
    %v2822 = vpow.pop %v2821
    %v2823 = vmul.f32 %v2818, 1.442695
    %v2824 = vpow.pop %v2823
    %v2825 = vadd.f32 %v2820, 1.0
    %v2826 = vadd.f32 %v2822, 1.0
    %v2827 = vadd.f32 %v2824, 1.0
    %v2828 = vrcp.pop %v2825
    %v2829 = vmul.f32 1.0, %v2828
    %v2830 = vrcp.pop %v2826
    %v2831 = vmul.f32 1.0, %v2830
    %v2832 = vrcp.pop %v2827
    %v2833 = vmul.f32 1.0, %v2832
    %v2834 = vadd.f32 %v1292, %v2565
    %v2835 = vadd.f32 %v1293, %v2645
    %v2836 = vadd.f32 %v1294, %v2647
    %v2837 = vxor.u32 %v2834, 2147483648
    %v2838 = vxor.u32 %v2835, 2147483648
    %v2839 = vxor.u32 %v2836, 2147483648
    %v2840 = vmul.f32 %v2837, 1.442695
    %v2841 = vpow.pop %v2840
    %v2842 = vmul.f32 %v2838, 1.442695
    %v2843 = vpow.pop %v2842
    %v2844 = vmul.f32 %v2839, 1.442695
    %v2845 = vpow.pop %v2844
    %v2846 = vadd.f32 %v2841, 1.0
    %v2847 = vadd.f32 %v2843, 1.0
    %v2848 = vadd.f32 %v2845, 1.0
    %v2849 = vrcp.pop %v2846
    %v2850 = vmul.f32 1.0, %v2849
    %v2851 = vrcp.pop %v2847
    %v2852 = vmul.f32 1.0, %v2851
    %v2853 = vrcp.pop %v2848
    %v2854 = vmul.f32 1.0, %v2853
    %v2855 = vadd.f32 %v2727, %v313
    %v2856 = vadd.f32 %v2729, %v317
    %v2857 = vadd.f32 %v2808, %v321
    %v2858 = vmul.f32 %v2829, %v2855
    %v2859 = vmul.f32 %v2831, %v2856
    %v2860 = vmul.f32 %v2833, %v2857
    %v2861 = vadd.f32 %v1295, %v2858
    %v2862 = vadd.f32 %v1296, %v2859
    %v2863 = vadd.f32 %v1297, %v2860
    %v2864 = vtanh.pop %v2861
    %v2865 = vtanh.pop %v2862
    %v2866 = vtanh.pop %v2863
    %v2867 = vsub.f32 %v1283, %v2864
    %v2868 = vsub.f32 %v1284, %v2865
    %v2869 = vsub.f32 %v1285, %v2866
    %v2870 = vmul.f32 %v2850, %v2867
    %v2871 = vmul.f32 %v2852, %v2868
    %v2872 = vmul.f32 %v2854, %v2869
    %v2873 = vadd.f32 %v2864, %v2870
    %v2874 = vadd.f32 %v2865, %v2871
    %v2875 = vadd.f32 %v2866, %v2872
    %v2876 = vmax.f32 %v1286, %v2873
    %v2877 = vmax.f32 %v1287, %v2874
    %v2878 = vmax.f32 %v1288, %v2875
    %s2879 = scalar_lea.vmem [#allocation4], 72
    %v2880 = vld [vmem:[%s2879] sm:$0xff]
    %v2881 = vld [vmem:[%s2879 + $0x8] sm:$0xff]
    %v2882 = vld [vmem:[%s2879 + $0x10] sm:$0xff]
    %v2883 = vld [vmem:[%s2879 + $0x18] sm:$0xff]
    %v2884 = vld [vmem:[%s2879 + $0x20] sm:$0xff]
    %v2885 = vld [vmem:[%s2879 + $0x28] sm:$0xff]
    %v2886 = vld [vmem:[%s2879 + $0x30] sm:$0xff]
    %v2887 = vld [vmem:[%s2879 + $0x38] sm:$0xff]
    %v2888 = vld [vmem:[%s2879 + $0x40] sm:$0xff]
    %v2889 = vpack.c.bf16 %v2873, %v2873
    %v2890 = vpack.c.bf16 %v2874, %v2874
    %v2891 = vpack.c.bf16 %v2875, %v2875
    %2892 = vmatprep.subr.bf16.mxu0 %v1974
    %2893 = vmatpush1.bf16.msra.mxu0 %v1973
    %2894 = vmatprep.subr.bf16.mxu0 %v1983
    %2895 = vmatpush1.bf16.msra.mxu0 %v1982
    %2896 = vmatprep.subr.bf16.mxu0 %v1992
    %2897 = vmatpush1.bf16.msra.mxu0 %v1991
    %2898 = vmatprep.subr.bf16.mxu0 %v2001
    %2899 = vmatpush1.bf16.msra.mxu0 %v2000
    %2900 = vmatprep.subr.bf16.mxu0 %v2010
    %2901 = vmatpush1.bf16.msra.mxu0 %v2009
    %2902 = vmatprep.subr.bf16.mxu0 %v2019
    %2903 = vmatpush1.bf16.msra.mxu0 %v2018
    %2904 = vmatprep.subr.bf16.mxu0 %v2028
    %2905 = vmatpush1.bf16.msra.mxu0 %v2027
    %2906 = vmatprep.subr.bf16.mxu0 %v2037
    %2907 = vmatpush1.bf16.msra.mxu0 %v2036
    %2908 = vmatprep.subr.bf16.mxu0 %v2046
    %2909 = vmatpush1.bf16.msra.mxu0 %v2045
    %2910 = vmatprep.subr.bf16.mxu0 %v2055
    %2911 = vmatpush1.bf16.msra.mxu0 %v2054
    %2912 = vmatprep.subr.bf16.mxu0 %v2064
    %2913 = vmatpush1.bf16.msra.mxu0 %v2063
    %2914 = vmatprep.subr.bf16.mxu0 %v2073
    %2915 = vmatpush1.bf16.msra.mxu0 %v2072
    %2916 = vmatprep.subr.bf16.mxu0 %v2082
    %2917 = vmatpush1.bf16.msra.mxu0 %v2081
    %2918 = vmatprep.subr.bf16.mxu0 %v2091
    %2919 = vmatpush1.bf16.msra.mxu0 %v2090
    %2920 = vmatprep.subr.bf16.mxu0 %v2100
    %2921 = vmatpush1.bf16.msra.mxu0 %v2099
    %2922 = vmatprep.subr.bf16.mxu0 %v2109
    %2923 = vmatpush1.bf16.msra.mxu0 %v2108
    %2924 = vmatprep.mubr.bf16.mxu0 %v2890
    %2925 = vmatmul.mubr.bf16.gmra.mrb[0].mxu0 %v2889
    %v2926 = vpop.f32.mrb[0].mxu0
    %v2927 = vadd.f32 0.0, %v2926
    %v2928 = vpop.f32.mrb[0].mxu0
    %v2929 = vadd.f32 0.0, %v2928
    %v2930 = vpop.f32.mrb[0].mxu0
    %v2931 = vpop.f32.mrb[0].mxu0
    %2932 = vdwg.mxu0
    %2933 = vmatprep.subr.bf16.mxu0 %v2118
    %2934 = vmatpush1.bf16.msra.mxu0 %v2117
    %2935 = vmatprep.subr.bf16.mxu0 %v2127
    %2936 = vmatpush1.bf16.msra.mxu0 %v2126
    %2937 = vmatprep.subr.bf16.mxu0 %v2136
    %2938 = vmatpush1.bf16.msra.mxu0 %v2135
    %2939 = vmatprep.subr.bf16.mxu0 %v2145
    %2940 = vmatpush1.bf16.msra.mxu0 %v2144
    %2941 = vmatprep.subr.bf16.mxu0 %v2154
    %2942 = vmatpush1.bf16.msra.mxu0 %v2153
    %2943 = vmatprep.subr.bf16.mxu0 %v2163
    %2944 = vmatpush1.bf16.msra.mxu0 %v2162
    %2945 = vmatprep.subr.bf16.mxu0 %v2172
    %2946 = vmatpush1.bf16.msra.mxu0 %v2171
    %2947 = vmatprep.subr.bf16.mxu0 %v2181
    %2948 = vmatpush1.bf16.msra.mxu0 %v2180
    %2949 = vmatprep.subr.bf16.mxu0 0
    %2950 = vmatpush1.bf16.msra.mxu0 0
    %2951 = vmatprep.subr.bf16.mxu0 0
    %2952 = vmatpush1.bf16.msra.mxu0 0
    %2953 = vmatprep.subr.bf16.mxu0 0
    %2954 = vmatpush1.bf16.msra.mxu0 0
    %2955 = vmatprep.subr.bf16.mxu0 0
    %2956 = vmatpush1.bf16.msra.mxu0 0
    %2957 = vmatprep.subr.bf16.mxu0 0
    %2958 = vmatpush1.bf16.msra.mxu0 0
    %2959 = vmatprep.subr.bf16.mxu0 0
    %2960 = vmatpush1.bf16.msra.mxu0 0
    %2961 = vmatprep.subr.bf16.mxu0 0
    %2962 = vmatpush1.bf16.msra.mxu0 0
    %2963 = vmatprep.subr.bf16.mxu0 0
    %2964 = vmatpush1.bf16.msra.mxu0 0
    %2965 = vmatprep.mubr.bf16.mxu0 0
    %2966 = vmatmul.mubr.bf16.gmra.mrb[0].mxu0 %v2891
    %v2967 = vpop.f32.mrb[0].mxu0
    %v2968 = vadd.f32 %v2927, %v2967
    %v2969 = vpop.f32.mrb[0].mxu0
    %v2970 = vadd.f32 %v2929, %v2969
    %v2971 = vpop.f32.mrb[0].mxu0
    %v2972 = vpop.f32.mrb[0].mxu0
    %2973 = vdwg.mxu0
    %2974 = vmatprep.subr.bf16.mxu0 %v1976
    %2975 = vmatpush1.bf16.msra.mxu0 %v1975
    %2976 = vmatprep.subr.bf16.mxu0 %v1985
    %2977 = vmatpush1.bf16.msra.mxu0 %v1984
    %2978 = vmatprep.subr.bf16.mxu0 %v1994
    %2979 = vmatpush1.bf16.msra.mxu0 %v1993
    %2980 = vmatprep.subr.bf16.mxu0 %v2003
    %2981 = vmatpush1.bf16.msra.mxu0 %v2002
    %2982 = vmatprep.subr.bf16.mxu0 %v2012
    %2983 = vmatpush1.bf16.msra.mxu0 %v2011
    %2984 = vmatprep.subr.bf16.mxu0 %v2021
    %2985 = vmatpush1.bf16.msra.mxu0 %v2020
    %2986 = vmatprep.subr.bf16.mxu0 %v2030
    %2987 = vmatpush1.bf16.msra.mxu0 %v2029
    %2988 = vmatprep.subr.bf16.mxu0 %v2039
    %2989 = vmatpush1.bf16.msra.mxu0 %v2038
    %2990 = vmatprep.subr.bf16.mxu0 %v2048
    %2991 = vmatpush1.bf16.msra.mxu0 %v2047
    %2992 = vmatprep.subr.bf16.mxu0 %v2057
    %2993 = vmatpush1.bf16.msra.mxu0 %v2056
    %2994 = vmatprep.subr.bf16.mxu0 %v2066
    %2995 = vmatpush1.bf16.msra.mxu0 %v2065
    %2996 = vmatprep.subr.bf16.mxu0 %v2075
    %2997 = vmatpush1.bf16.msra.mxu0 %v2074
    %2998 = vmatprep.subr.bf16.mxu0 %v2084
    %2999 = vmatpush1.bf16.msra.mxu0 %v2083
    %3000 = vmatprep.subr.bf16.mxu0 %v2093
    %3001 = vmatpush1.bf16.msra.mxu0 %v2092
    %3002 = vmatprep.subr.bf16.mxu0 %v2102
    %3003 = vmatpush1.bf16.msra.mxu0 %v2101
    %3004 = vmatprep.subr.bf16.mxu0 %v2111
    %3005 = vmatpush1.bf16.msra.mxu0 %v2110
    %3006 = vmatprep.mubr.bf16.mxu0 %v2890
    %3007 = vmatmul.mubr.bf16.gmra.mrb[0].mxu0 %v2889
    %v3008 = vpop.f32.mrb[0].mxu0
    %v3009 = vadd.f32 0.0, %v3008
    %v3010 = vpop.f32.mrb[0].mxu0
    %v3011 = vadd.f32 0.0, %v3010
    %v3012 = vpop.f32.mrb[0].mxu0
    %v3013 = vpop.f32.mrb[0].mxu0
    %3014 = vdwg.mxu0
    %3015 = vmatprep.subr.bf16.mxu0 %v2120
    %3016 = vmatpush1.bf16.msra.mxu0 %v2119
    %3017 = vmatprep.subr.bf16.mxu0 %v2129
    %3018 = vmatpush1.bf16.msra.mxu0 %v2128
    %3019 = vmatprep.subr.bf16.mxu0 %v2138
    %3020 = vmatpush1.bf16.msra.mxu0 %v2137
    %3021 = vmatprep.subr.bf16.mxu0 %v2147
    %3022 = vmatpush1.bf16.msra.mxu0 %v2146
    %3023 = vmatprep.subr.bf16.mxu0 %v2156
    %3024 = vmatpush1.bf16.msra.mxu0 %v2155
    %3025 = vmatprep.subr.bf16.mxu0 %v2165
    %3026 = vmatpush1.bf16.msra.mxu0 %v2164
    %3027 = vmatprep.subr.bf16.mxu0 %v2174
    %3028 = vmatpush1.bf16.msra.mxu0 %v2173
    %3029 = vmatprep.subr.bf16.mxu0 %v2183
    %3030 = vmatpush1.bf16.msra.mxu0 %v2182
    %3031 = vmatprep.subr.bf16.mxu0 0
    %3032 = vmatpush1.bf16.msra.mxu0 0
    %3033 = vmatprep.subr.bf16.mxu0 0
    %3034 = vmatpush1.bf16.msra.mxu0 0
    %3035 = vmatprep.subr.bf16.mxu0 0
    %3036 = vmatpush1.bf16.msra.mxu0 0
    %3037 = vmatprep.subr.bf16.mxu0 0
    %3038 = vmatpush1.bf16.msra.mxu0 0
    %3039 = vmatprep.subr.bf16.mxu0 0
    %3040 = vmatpush1.bf16.msra.mxu0 0
    %3041 = vmatprep.subr.bf16.mxu0 0
    %3042 = vmatpush1.bf16.msra.mxu0 0
    %3043 = vmatprep.subr.bf16.mxu0 0
    %3044 = vmatpush1.bf16.msra.mxu0 0
    %3045 = vmatprep.subr.bf16.mxu0 0
    %3046 = vmatpush1.bf16.msra.mxu0 0
    %3047 = vmatprep.mubr.bf16.mxu0 0
    %3048 = vmatmul.mubr.bf16.gmra.mrb[0].mxu0 %v2891
    %v3049 = vpop.f32.mrb[0].mxu0
    %v3050 = vadd.f32 %v3009, %v3049
    %v3051 = vpop.f32.mrb[0].mxu0
    %v3052 = vadd.f32 %v3011, %v3051
    %v3053 = vpop.f32.mrb[0].mxu0
    %v3054 = vpop.f32.mrb[0].mxu0
    %3055 = vdwg.mxu0
    %3056 = vmatprep.subr.bf16.mxu0 %v1978
    %3057 = vmatpush1.bf16.msra.mxu0 %v1977
    %3058 = vmatprep.subr.bf16.mxu0 %v1987
    %3059 = vmatpush1.bf16.msra.mxu0 %v1986
    %3060 = vmatprep.subr.bf16.mxu0 %v1996
    %3061 = vmatpush1.bf16.msra.mxu0 %v1995
    %3062 = vmatprep.subr.bf16.mxu0 %v2005
    %3063 = vmatpush1.bf16.msra.mxu0 %v2004
    %3064 = vmatprep.subr.bf16.mxu0 %v2014
    %3065 = vmatpush1.bf16.msra.mxu0 %v2013
    %3066 = vmatprep.subr.bf16.mxu0 %v2023
    %3067 = vmatpush1.bf16.msra.mxu0 %v2022
    %3068 = vmatprep.subr.bf16.mxu0 %v2032
    %3069 = vmatpush1.bf16.msra.mxu0 %v2031
    %3070 = vmatprep.subr.bf16.mxu0 %v2041
    %3071 = vmatpush1.bf16.msra.mxu0 %v2040
    %3072 = vmatprep.subr.bf16.mxu0 %v2050
    %3073 = vmatpush1.bf16.msra.mxu0 %v2049
    %3074 = vmatprep.subr.bf16.mxu0 %v2059
    %3075 = vmatpush1.bf16.msra.mxu0 %v2058
    %3076 = vmatprep.subr.bf16.mxu0 %v2068
    %3077 = vmatpush1.bf16.msra.mxu0 %v2067
    %3078 = vmatprep.subr.bf16.mxu0 %v2077
    %3079 = vmatpush1.bf16.msra.mxu0 %v2076
    %3080 = vmatprep.subr.bf16.mxu0 %v2086
    %3081 = vmatpush1.bf16.msra.mxu0 %v2085
    %3082 = vmatprep.subr.bf16.mxu0 %v2095
    %3083 = vmatpush1.bf16.msra.mxu0 %v2094
    %3084 = vmatprep.subr.bf16.mxu0 %v2104
    %3085 = vmatpush1.bf16.msra.mxu0 %v2103
    %3086 = vmatprep.subr.bf16.mxu0 %v2113
    %3087 = vmatpush1.bf16.msra.mxu0 %v2112
    %3088 = vmatprep.mubr.bf16.mxu0 %v2890
    %3089 = vmatmul.mubr.bf16.gmra.mrb[0].mxu0 %v2889
    %v3090 = vpop.f32.mrb[0].mxu0
    %v3091 = vadd.f32 0.0, %v3090
    %v3092 = vpop.f32.mrb[0].mxu0
    %v3093 = vadd.f32 0.0, %v3092
    %v3094 = vpop.f32.mrb[0].mxu0
    %v3095 = vpop.f32.mrb[0].mxu0
    %3096 = vdwg.mxu0
    %3097 = vmatprep.subr.bf16.mxu0 %v2122
    %3098 = vmatpush1.bf16.msra.mxu0 %v2121
    %3099 = vmatprep.subr.bf16.mxu0 %v2131
    %3100 = vmatpush1.bf16.msra.mxu0 %v2130
    %3101 = vmatprep.subr.bf16.mxu0 %v2140
    %3102 = vmatpush1.bf16.msra.mxu0 %v2139
    %3103 = vmatprep.subr.bf16.mxu0 %v2149
    %3104 = vmatpush1.bf16.msra.mxu0 %v2148
    %3105 = vmatprep.subr.bf16.mxu0 %v2158
    %3106 = vmatpush1.bf16.msra.mxu0 %v2157
    %3107 = vmatprep.subr.bf16.mxu0 %v2167
    %3108 = vmatpush1.bf16.msra.mxu0 %v2166
    %3109 = vmatprep.subr.bf16.mxu0 %v2176
    %3110 = vmatpush1.bf16.msra.mxu0 %v2175
    %3111 = vmatprep.subr.bf16.mxu0 %v2185
    %3112 = vmatpush1.bf16.msra.mxu0 %v2184
    %3113 = vmatprep.subr.bf16.mxu0 0
    %3114 = vmatpush1.bf16.msra.mxu0 0
    %3115 = vmatprep.subr.bf16.mxu0 0
    %3116 = vmatpush1.bf16.msra.mxu0 0
    %3117 = vmatprep.subr.bf16.mxu0 0
    %3118 = vmatpush1.bf16.msra.mxu0 0
    %3119 = vmatprep.subr.bf16.mxu0 0
    %3120 = vmatpush1.bf16.msra.mxu0 0
    %3121 = vmatprep.subr.bf16.mxu0 0
    %3122 = vmatpush1.bf16.msra.mxu0 0
    %3123 = vmatprep.subr.bf16.mxu0 0
    %3124 = vmatpush1.bf16.msra.mxu0 0
    %3125 = vmatprep.subr.bf16.mxu0 0
    %3126 = vmatpush1.bf16.msra.mxu0 0
    %3127 = vmatprep.subr.bf16.mxu0 0
    %3128 = vmatpush1.bf16.msra.mxu0 0
    %3129 = vmatprep.mubr.bf16.mxu0 0
    %3130 = vmatmul.mubr.bf16.gmra.mrb[0].mxu0 %v2891
    %v3131 = vpop.f32.mrb[0].mxu0
    %v3132 = vadd.f32 %v3091, %v3131
    %v3133 = vpop.f32.mrb[0].mxu0
    %v3134 = vadd.f32 %v3093, %v3133
    %v3135 = vpop.f32.mrb[0].mxu0
    %v3136 = vpop.f32.mrb[0].mxu0
    %3137 = vdwg.mxu0
    %3138 = vmatprep.subr.bf16.mxu0 %v1980
    %3139 = vmatpush1.bf16.msra.mxu0 %v1979
    %3140 = vmatprep.subr.bf16.mxu0 %v1989
    %3141 = vmatpush1.bf16.msra.mxu0 %v1988
    %3142 = vmatprep.subr.bf16.mxu0 %v1998
    %3143 = vmatpush1.bf16.msra.mxu0 %v1997
    %3144 = vmatprep.subr.bf16.mxu0 %v2007
    %3145 = vmatpush1.bf16.msra.mxu0 %v2006
    %3146 = vmatprep.subr.bf16.mxu0 %v2016
    %3147 = vmatpush1.bf16.msra.mxu0 %v2015
    %3148 = vmatprep.subr.bf16.mxu0 %v2025
    %3149 = vmatpush1.bf16.msra.mxu0 %v2024
    %3150 = vmatprep.subr.bf16.mxu0 %v2034
    %3151 = vmatpush1.bf16.msra.mxu0 %v2033
    %3152 = vmatprep.subr.bf16.mxu0 %v2043
    %3153 = vmatpush1.bf16.msra.mxu0 %v2042
    %3154 = vmatprep.subr.bf16.mxu0 %v2052
    %3155 = vmatpush1.bf16.msra.mxu0 %v2051
    %3156 = vmatprep.subr.bf16.mxu0 %v2061
    %3157 = vmatpush1.bf16.msra.mxu0 %v2060
    %3158 = vmatprep.subr.bf16.mxu0 %v2070
    %3159 = vmatpush1.bf16.msra.mxu0 %v2069
    %3160 = vmatprep.subr.bf16.mxu0 %v2079
    %3161 = vmatpush1.bf16.msra.mxu0 %v2078
    %3162 = vmatprep.subr.bf16.mxu0 %v2088
    %3163 = vmatpush1.bf16.msra.mxu0 %v2087
    %3164 = vmatprep.subr.bf16.mxu0 %v2097
    %3165 = vmatpush1.bf16.msra.mxu0 %v2096
    %3166 = vmatprep.subr.bf16.mxu0 %v2106
    %3167 = vmatpush1.bf16.msra.mxu0 %v2105
    %3168 = vmatprep.subr.bf16.mxu0 %v2115
    %3169 = vmatpush1.bf16.msra.mxu0 %v2114
    %3170 = vmatprep.mubr.bf16.mxu0 %v2890
    %3171 = vmatmul.mubr.bf16.gmra.mrb[0].mxu0 %v2889
    %v3172 = vpop.f32.mrb[0].mxu0
    %v3173 = vadd.f32 0.0, %v3172
    %v3174 = vpop.f32.mrb[0].mxu0
    %v3175 = vadd.f32 0.0, %v3174
    %v3176 = vpop.f32.mrb[0].mxu0
    %v3177 = vpop.f32.mrb[0].mxu0
    %3178 = vdwg.mxu0
    %3179 = vmatprep.subr.bf16.mxu0 %v2124
    %3180 = vmatpush1.bf16.msra.mxu0 %v2123
    %3181 = vmatprep.subr.bf16.mxu0 %v2133
    %3182 = vmatpush1.bf16.msra.mxu0 %v2132
    %3183 = vmatprep.subr.bf16.mxu0 %v2142
    %3184 = vmatpush1.bf16.msra.mxu0 %v2141
    %3185 = vmatprep.subr.bf16.mxu0 %v2151
    %3186 = vmatpush1.bf16.msra.mxu0 %v2150
    %3187 = vmatprep.subr.bf16.mxu0 %v2160
    %3188 = vmatpush1.bf16.msra.mxu0 %v2159
    %3189 = vmatprep.subr.bf16.mxu0 %v2169
    %3190 = vmatpush1.bf16.msra.mxu0 %v2168
    %3191 = vmatprep.subr.bf16.mxu0 %v2178
    %3192 = vmatpush1.bf16.msra.mxu0 %v2177
    %3193 = vmatprep.subr.bf16.mxu0 %v2187
    %3194 = vmatpush1.bf16.msra.mxu0 %v2186
    %3195 = vmatprep.subr.bf16.mxu0 0
    %3196 = vmatpush1.bf16.msra.mxu0 0
    %3197 = vmatprep.subr.bf16.mxu0 0
    %3198 = vmatpush1.bf16.msra.mxu0 0
    %3199 = vmatprep.subr.bf16.mxu0 0
    %3200 = vmatpush1.bf16.msra.mxu0 0
    %3201 = vmatprep.subr.bf16.mxu0 0
    %3202 = vmatpush1.bf16.msra.mxu0 0
    %3203 = vmatprep.subr.bf16.mxu0 0
    %3204 = vmatpush1.bf16.msra.mxu0 0
    %3205 = vmatprep.subr.bf16.mxu0 0
    %3206 = vmatpush1.bf16.msra.mxu0 0
    %3207 = vmatprep.subr.bf16.mxu0 0
    %3208 = vmatpush1.bf16.msra.mxu0 0
    %3209 = vmatprep.subr.bf16.mxu0 0
    %3210 = vmatpush1.bf16.msra.mxu0 0
    %3211 = vmatprep.mubr.bf16.mxu0 0
    %3212 = vmatmul.mubr.bf16.gmra.mrb[0].mxu0 %v2891
    %v3213 = vpop.f32.mrb[0].mxu0
    %v3214 = vadd.f32 %v3173, %v3213
    %v3215 = vpop.f32.mrb[0].mxu0
    %v3216 = vadd.f32 %v3175, %v3215
    %v3217 = vpop.f32.mrb[0].mxu0
    %v3218 = vpop.f32.mrb[0].mxu0
    %3219 = vdwg.mxu0
    %3220 = vmatprep.subr.bf16.mxu0 0
    %3221 = vmatpush1.bf16.msra.mxu0 %v1981
    %3222 = vmatprep.subr.bf16.mxu0 0
    %3223 = vmatpush1.bf16.msra.mxu0 %v1990
    %3224 = vmatprep.subr.bf16.mxu0 0
    %3225 = vmatpush1.bf16.msra.mxu0 %v1999
    %3226 = vmatprep.subr.bf16.mxu0 0
    %3227 = vmatpush1.bf16.msra.mxu0 %v2008
    %3228 = vmatprep.subr.bf16.mxu0 0
    %3229 = vmatpush1.bf16.msra.mxu0 %v2017
    %3230 = vmatprep.subr.bf16.mxu0 0
    %3231 = vmatpush1.bf16.msra.mxu0 %v2026
    %3232 = vmatprep.subr.bf16.mxu0 0
    %3233 = vmatpush1.bf16.msra.mxu0 %v2035
    %3234 = vmatprep.subr.bf16.mxu0 0
    %3235 = vmatpush1.bf16.msra.mxu0 %v2044
    %3236 = vmatprep.subr.bf16.mxu0 0
    %3237 = vmatpush1.bf16.msra.mxu0 %v2053
    %3238 = vmatprep.subr.bf16.mxu0 0
    %3239 = vmatpush1.bf16.msra.mxu0 %v2062
    %3240 = vmatprep.subr.bf16.mxu0 0
    %3241 = vmatpush1.bf16.msra.mxu0 %v2071
    %3242 = vmatprep.subr.bf16.mxu0 0
    %3243 = vmatpush1.bf16.msra.mxu0 %v2080
    %3244 = vmatprep.subr.bf16.mxu0 0
    %3245 = vmatpush1.bf16.msra.mxu0 %v2089
    %3246 = vmatprep.subr.bf16.mxu0 0
    %3247 = vmatpush1.bf16.msra.mxu0 %v2098
    %3248 = vmatprep.subr.bf16.mxu0 0
    %3249 = vmatpush1.bf16.msra.mxu0 %v2107
    %3250 = vmatprep.subr.bf16.mxu0 0
    %3251 = vmatpush1.bf16.msra.mxu0 %v2116
    %3252 = vmatprep.mubr.bf16.mxu0 %v2890
    %3253 = vmatmul.mubr.bf16.gmra.mrb[0].mxu0 %v2889
    %v3254 = vpop.f32.mrb[0].mxu0
    %v3255 = vadd.f32 0.0, %v3254
    %v3256 = vpop.f32.mrb[0].mxu0
    %v3257 = vpop.f32.mrb[0].mxu0
    %v3258 = vpop.f32.mrb[0].mxu0
    %3259 = vdwg.mxu0
    %3260 = vmatprep.subr.bf16.mxu0 0
    %3261 = vmatpush1.bf16.msra.mxu0 %v2125
    %3262 = vmatprep.subr.bf16.mxu0 0
    %3263 = vmatpush1.bf16.msra.mxu0 %v2134
    %3264 = vmatprep.subr.bf16.mxu0 0
    %3265 = vmatpush1.bf16.msra.mxu0 %v2143
    %3266 = vmatprep.subr.bf16.mxu0 0
    %3267 = vmatpush1.bf16.msra.mxu0 %v2152
    %3268 = vmatprep.subr.bf16.mxu0 0
    %3269 = vmatpush1.bf16.msra.mxu0 %v2161
    %3270 = vmatprep.subr.bf16.mxu0 0
    %3271 = vmatpush1.bf16.msra.mxu0 %v2170
    %3272 = vmatprep.subr.bf16.mxu0 0
    %3273 = vmatpush1.bf16.msra.mxu0 %v2179
    %3274 = vmatprep.subr.bf16.mxu0 0
    %3275 = vmatpush1.bf16.msra.mxu0 %v2188
    %3276 = vmatprep.subr.bf16.mxu0 0
    %3277 = vmatpush1.bf16.msra.mxu0 0
    %3278 = vmatprep.subr.bf16.mxu0 0
    %3279 = vmatpush1.bf16.msra.mxu0 0
    %3280 = vmatprep.subr.bf16.mxu0 0
    %3281 = vmatpush1.bf16.msra.mxu0 0
    %3282 = vmatprep.subr.bf16.mxu0 0
    %3283 = vmatpush1.bf16.msra.mxu0 0
    %3284 = vmatprep.subr.bf16.mxu0 0
    %3285 = vmatpush1.bf16.msra.mxu0 0
    %3286 = vmatprep.subr.bf16.mxu0 0
    %3287 = vmatpush1.bf16.msra.mxu0 0
    %3288 = vmatprep.subr.bf16.mxu0 0
    %3289 = vmatpush1.bf16.msra.mxu0 0
    %3290 = vmatprep.subr.bf16.mxu0 0
    %3291 = vmatpush1.bf16.msra.mxu0 0
    %3292 = vmatprep.mubr.bf16.mxu0 0
    %3293 = vmatmul.mubr.bf16.gmra.mrb[0].mxu0 %v2891
    %v3294 = vpop.f32.mrb[0].mxu0
    %v3295 = vadd.f32 %v3255, %v3294
    %v3296 = vpop.f32.mrb[0].mxu0
    %v3297 = vpop.f32.mrb[0].mxu0
    %v3298 = vpop.f32.mrb[0].mxu0
    %3299 = vdwg.mxu0
    %v3300 = vadd.f32 %v2880, %v2968
    %v3301 = vadd.f32 %v2881, %v2970
    %v3302 = vadd.f32 %v2882, %v3050
    %v3303 = vxor.u32 %v3300, 2147483648
    %v3304 = vxor.u32 %v3301, 2147483648
    %v3305 = vxor.u32 %v3302, 2147483648
    %v3306 = vmul.f32 %v3303, 1.442695
    %v3307 = vpow.pop %v3306
    %v3308 = vmul.f32 %v3304, 1.442695
    %v3309 = vpow.pop %v3308
    %v3310 = vmul.f32 %v3305, 1.442695
    %v3311 = vpow.pop %v3310
    %v3312 = vadd.f32 %v3307, 1.0
    %v3313 = vadd.f32 %v3309, 1.0
    %v3314 = vadd.f32 %v3311, 1.0
    %v3315 = vrcp.pop %v3312
    %v3316 = vmul.f32 1.0, %v3315
    %v3317 = vrcp.pop %v3313
    %v3318 = vmul.f32 1.0, %v3317
    %v3319 = vrcp.pop %v3314
    %v3320 = vmul.f32 1.0, %v3319
    %v3321 = vadd.f32 %v2883, %v3052
    %v3322 = vadd.f32 %v2884, %v3132
    %v3323 = vadd.f32 %v2885, %v3134
    %v3324 = vxor.u32 %v3321, 2147483648
    %v3325 = vxor.u32 %v3322, 2147483648
    %v3326 = vxor.u32 %v3323, 2147483648
    %v3327 = vmul.f32 %v3324, 1.442695
    %v3328 = vpow.pop %v3327
    %v3329 = vmul.f32 %v3325, 1.442695
    %v3330 = vpow.pop %v3329
    %v3331 = vmul.f32 %v3326, 1.442695
    %v3332 = vpow.pop %v3331
    %v3333 = vadd.f32 %v3328, 1.0
    %v3334 = vadd.f32 %v3330, 1.0
    %v3335 = vadd.f32 %v3332, 1.0
    %v3336 = vrcp.pop %v3333
    %v3337 = vmul.f32 1.0, %v3336
    %v3338 = vrcp.pop %v3334
    %v3339 = vmul.f32 1.0, %v3338
    %v3340 = vrcp.pop %v3335
    %v3341 = vmul.f32 1.0, %v3340
    %v3342 = vadd.f32 %v3214, %v313
    %v3343 = vadd.f32 %v3216, %v317
    %v3344 = vadd.f32 %v3295, %v321
    %v3345 = vmul.f32 %v3316, %v3342
    %v3346 = vmul.f32 %v3318, %v3343
    %v3347 = vmul.f32 %v3320, %v3344
    %v3348 = vadd.f32 %v2886, %v3345
    %v3349 = vadd.f32 %v2887, %v3346
    %v3350 = vadd.f32 %v2888, %v3347
    %v3351 = vtanh.pop %v3348
    %v3352 = vtanh.pop %v3349
    %v3353 = vtanh.pop %v3350
    %v3354 = vsub.f32 %v2873, %v3351
    %v3355 = vsub.f32 %v2874, %v3352
    %v3356 = vsub.f32 %v2875, %v3353
    %v3357 = vmul.f32 %v3337, %v3354
    %v3358 = vmul.f32 %v3339, %v3355
    %v3359 = vmul.f32 %v3341, %v3356
    %v3360 = vadd.f32 %v3351, %v3357
    %v3361 = vadd.f32 %v3352, %v3358
    %v3362 = vadd.f32 %v3353, %v3359
    %v3363 = vmax.f32 %v2876, %v3360
    %v3364 = vmax.f32 %v2877, %v3361
    %v3365 = vmax.f32 %v2878, %v3362
    %s3366 = scalar_lea.vmem [#allocation4], 144
    %v3367 = vld [vmem:[%s3366] sm:$0xff]
    %v3368 = vld [vmem:[%s3366 + $0x8] sm:$0xff]
    %v3369 = vld [vmem:[%s3366 + $0x10] sm:$0xff]
    %v3370 = vld [vmem:[%s3366 + $0x18] sm:$0xff]
    %v3371 = vld [vmem:[%s3366 + $0x20] sm:$0xff]
    %v3372 = vld [vmem:[%s3366 + $0x28] sm:$0xff]
    %v3373 = vld [vmem:[%s3366 + $0x30] sm:$0xff]
    %v3374 = vld [vmem:[%s3366 + $0x38] sm:$0xff]
    %v3375 = vld [vmem:[%s3366 + $0x40] sm:$0xff]
    %v3376 = vpack.c.bf16 %v3360, %v3360
    %v3377 = vpack.c.bf16 %v3361, %v3361
    %v3378 = vpack.c.bf16 %v3362, %v3362
    %3379 = vmatprep.subr.bf16.mxu0 %v1974
    %3380 = vmatpush1.bf16.msra.mxu0 %v1973
    %3381 = vmatprep.subr.bf16.mxu0 %v1983
    %3382 = vmatpush1.bf16.msra.mxu0 %v1982
    %3383 = vmatprep.subr.bf16.mxu0 %v1992
    %3384 = vmatpush1.bf16.msra.mxu0 %v1991
    %3385 = vmatprep.subr.bf16.mxu0 %v2001
    %3386 = vmatpush1.bf16.msra.mxu0 %v2000
    %3387 = vmatprep.subr.bf16.mxu0 %v2010
    %3388 = vmatpush1.bf16.msra.mxu0 %v2009
    %3389 = vmatprep.subr.bf16.mxu0 %v2019
    %3390 = vmatpush1.bf16.msra.mxu0 %v2018
    %3391 = vmatprep.subr.bf16.mxu0 %v2028
    %3392 = vmatpush1.bf16.msra.mxu0 %v2027
    %3393 = vmatprep.subr.bf16.mxu0 %v2037
    %3394 = vmatpush1.bf16.msra.mxu0 %v2036
    %3395 = vmatprep.subr.bf16.mxu0 %v2046
    %3396 = vmatpush1.bf16.msra.mxu0 %v2045
    %3397 = vmatprep.subr.bf16.mxu0 %v2055
    %3398 = vmatpush1.bf16.msra.mxu0 %v2054
    %3399 = vmatprep.subr.bf16.mxu0 %v2064
    %3400 = vmatpush1.bf16.msra.mxu0 %v2063
    %3401 = vmatprep.subr.bf16.mxu0 %v2073
    %3402 = vmatpush1.bf16.msra.mxu0 %v2072
    %3403 = vmatprep.subr.bf16.mxu0 %v2082
    %3404 = vmatpush1.bf16.msra.mxu0 %v2081
    %3405 = vmatprep.subr.bf16.mxu0 %v2091
    %3406 = vmatpush1.bf16.msra.mxu0 %v2090
    %3407 = vmatprep.subr.bf16.mxu0 %v2100
    %3408 = vmatpush1.bf16.msra.mxu0 %v2099
    %3409 = vmatprep.subr.bf16.mxu0 %v2109
    %3410 = vmatpush1.bf16.msra.mxu0 %v2108
    %3411 = vmatprep.mubr.bf16.mxu0 %v3377
    %3412 = vmatmul.mubr.bf16.gmra.mrb[0].mxu0 %v3376
    %v3413 = vpop.f32.mrb[0].mxu0
    %v3414 = vadd.f32 0.0, %v3413
    %v3415 = vpop.f32.mrb[0].mxu0
    %v3416 = vadd.f32 0.0, %v3415
    %v3417 = vpop.f32.mrb[0].mxu0
    %v3418 = vpop.f32.mrb[0].mxu0
    %3419 = vdwg.mxu0
    %3420 = vmatprep.subr.bf16.mxu0 %v2118
    %3421 = vmatpush1.bf16.msra.mxu0 %v2117
    %3422 = vmatprep.subr.bf16.mxu0 %v2127
    %3423 = vmatpush1.bf16.msra.mxu0 %v2126
    %3424 = vmatprep.subr.bf16.mxu0 %v2136
    %3425 = vmatpush1.bf16.msra.mxu0 %v2135
    %3426 = vmatprep.subr.bf16.mxu0 %v2145
    %3427 = vmatpush1.bf16.msra.mxu0 %v2144
    %3428 = vmatprep.subr.bf16.mxu0 %v2154
    %3429 = vmatpush1.bf16.msra.mxu0 %v2153
    %3430 = vmatprep.subr.bf16.mxu0 %v2163
    %3431 = vmatpush1.bf16.msra.mxu0 %v2162
    %3432 = vmatprep.subr.bf16.mxu0 %v2172
    %3433 = vmatpush1.bf16.msra.mxu0 %v2171
    %3434 = vmatprep.subr.bf16.mxu0 %v2181
    %3435 = vmatpush1.bf16.msra.mxu0 %v2180
    %3436 = vmatprep.subr.bf16.mxu0 0
    %3437 = vmatpush1.bf16.msra.mxu0 0
    %3438 = vmatprep.subr.bf16.mxu0 0
    %3439 = vmatpush1.bf16.msra.mxu0 0
    %3440 = vmatprep.subr.bf16.mxu0 0
    %3441 = vmatpush1.bf16.msra.mxu0 0
    %3442 = vmatprep.subr.bf16.mxu0 0
    %3443 = vmatpush1.bf16.msra.mxu0 0
    %3444 = vmatprep.subr.bf16.mxu0 0
    %3445 = vmatpush1.bf16.msra.mxu0 0
    %3446 = vmatprep.subr.bf16.mxu0 0
    %3447 = vmatpush1.bf16.msra.mxu0 0
    %3448 = vmatprep.subr.bf16.mxu0 0
    %3449 = vmatpush1.bf16.msra.mxu0 0
    %3450 = vmatprep.subr.bf16.mxu0 0
    %3451 = vmatpush1.bf16.msra.mxu0 0
    %3452 = vmatprep.mubr.bf16.mxu0 0
    %3453 = vmatmul.mubr.bf16.gmra.mrb[0].mxu0 %v3378
    %v3454 = vpop.f32.mrb[0].mxu0
    %v3455 = vadd.f32 %v3414, %v3454
    %v3456 = vpop.f32.mrb[0].mxu0
    %v3457 = vadd.f32 %v3416, %v3456
    %v3458 = vpop.f32.mrb[0].mxu0
    %v3459 = vpop.f32.mrb[0].mxu0
    %3460 = vdwg.mxu0
    %3461 = vmatprep.subr.bf16.mxu0 %v1976
    %3462 = vmatpush1.bf16.msra.mxu0 %v1975
    %3463 = vmatprep.subr.bf16.mxu0 %v1985
    %3464 = vmatpush1.bf16.msra.mxu0 %v1984
    %3465 = vmatprep.subr.bf16.mxu0 %v1994
    %3466 = vmatpush1.bf16.msra.mxu0 %v1993
    %3467 = vmatprep.subr.bf16.mxu0 %v2003
    %3468 = vmatpush1.bf16.msra.mxu0 %v2002
    %3469 = vmatprep.subr.bf16.mxu0 %v2012
    %3470 = vmatpush1.bf16.msra.mxu0 %v2011
    %3471 = vmatprep.subr.bf16.mxu0 %v2021
    %3472 = vmatpush1.bf16.msra.mxu0 %v2020
    %3473 = vmatprep.subr.bf16.mxu0 %v2030
    %3474 = vmatpush1.bf16.msra.mxu0 %v2029
    %3475 = vmatprep.subr.bf16.mxu0 %v2039
    %3476 = vmatpush1.bf16.msra.mxu0 %v2038
    %3477 = vmatprep.subr.bf16.mxu0 %v2048
    %3478 = vmatpush1.bf16.msra.mxu0 %v2047
    %3479 = vmatprep.subr.bf16.mxu0 %v2057
    %3480 = vmatpush1.bf16.msra.mxu0 %v2056
    %3481 = vmatprep.subr.bf16.mxu0 %v2066
    %3482 = vmatpush1.bf16.msra.mxu0 %v2065
    %3483 = vmatprep.subr.bf16.mxu0 %v2075
    %3484 = vmatpush1.bf16.msra.mxu0 %v2074
    %3485 = vmatprep.subr.bf16.mxu0 %v2084
    %3486 = vmatpush1.bf16.msra.mxu0 %v2083
    %3487 = vmatprep.subr.bf16.mxu0 %v2093
    %3488 = vmatpush1.bf16.msra.mxu0 %v2092
    %3489 = vmatprep.subr.bf16.mxu0 %v2102
    %3490 = vmatpush1.bf16.msra.mxu0 %v2101
    %3491 = vmatprep.subr.bf16.mxu0 %v2111
    %3492 = vmatpush1.bf16.msra.mxu0 %v2110
    %3493 = vmatprep.mubr.bf16.mxu0 %v3377
    %3494 = vmatmul.mubr.bf16.gmra.mrb[0].mxu0 %v3376
    %v3495 = vpop.f32.mrb[0].mxu0
    %v3496 = vadd.f32 0.0, %v3495
    %v3497 = vpop.f32.mrb[0].mxu0
    %v3498 = vadd.f32 0.0, %v3497
    %v3499 = vpop.f32.mrb[0].mxu0
    %v3500 = vpop.f32.mrb[0].mxu0
    %3501 = vdwg.mxu0
    %3502 = vmatprep.subr.bf16.mxu0 %v2120
    %3503 = vmatpush1.bf16.msra.mxu0 %v2119
    %3504 = vmatprep.subr.bf16.mxu0 %v2129
    %3505 = vmatpush1.bf16.msra.mxu0 %v2128
    %3506 = vmatprep.subr.bf16.mxu0 %v2138
    %3507 = vmatpush1.bf16.msra.mxu0 %v2137
    %3508 = vmatprep.subr.bf16.mxu0 %v2147
    %3509 = vmatpush1.bf16.msra.mxu0 %v2146
    %3510 = vmatprep.subr.bf16.mxu0 %v2156
    %3511 = vmatpush1.bf16.msra.mxu0 %v2155
    %3512 = vmatprep.subr.bf16.mxu0 %v2165
    %3513 = vmatpush1.bf16.msra.mxu0 %v2164
    %3514 = vmatprep.subr.bf16.mxu0 %v2174
    %3515 = vmatpush1.bf16.msra.mxu0 %v2173
    %3516 = vmatprep.subr.bf16.mxu0 %v2183
    %3517 = vmatpush1.bf16.msra.mxu0 %v2182
    %3518 = vmatprep.subr.bf16.mxu0 0
    %3519 = vmatpush1.bf16.msra.mxu0 0
    %3520 = vmatprep.subr.bf16.mxu0 0
    %3521 = vmatpush1.bf16.msra.mxu0 0
    %3522 = vmatprep.subr.bf16.mxu0 0
    %3523 = vmatpush1.bf16.msra.mxu0 0
    %3524 = vmatprep.subr.bf16.mxu0 0
    %3525 = vmatpush1.bf16.msra.mxu0 0
    %3526 = vmatprep.subr.bf16.mxu0 0
    %3527 = vmatpush1.bf16.msra.mxu0 0
    %3528 = vmatprep.subr.bf16.mxu0 0
    %3529 = vmatpush1.bf16.msra.mxu0 0
    %3530 = vmatprep.subr.bf16.mxu0 0
    %3531 = vmatpush1.bf16.msra.mxu0 0
    %3532 = vmatprep.subr.bf16.mxu0 0
    %3533 = vmatpush1.bf16.msra.mxu0 0
    %3534 = vmatprep.mubr.bf16.mxu0 0
    %3535 = vmatmul.mubr.bf16.gmra.mrb[0].mxu0 %v3378
    %v3536 = vpop.f32.mrb[0].mxu0
    %v3537 = vadd.f32 %v3496, %v3536
    %v3538 = vpop.f32.mrb[0].mxu0
    %v3539 = vadd.f32 %v3498, %v3538
    %v3540 = vpop.f32.mrb[0].mxu0
    %v3541 = vpop.f32.mrb[0].mxu0
    %3542 = vdwg.mxu0
    %3543 = vmatprep.subr.bf16.mxu0 %v1978
    %3544 = vmatpush1.bf16.msra.mxu0 %v1977
    %3545 = vmatprep.subr.bf16.mxu0 %v1987
    %3546 = vmatpush1.bf16.msra.mxu0 %v1986
    %3547 = vmatprep.subr.bf16.mxu0 %v1996
    %3548 = vmatpush1.bf16.msra.mxu0 %v1995
    %3549 = vmatprep.subr.bf16.mxu0 %v2005
    %3550 = vmatpush1.bf16.msra.mxu0 %v2004
    %3551 = vmatprep.subr.bf16.mxu0 %v2014
    %3552 = vmatpush1.bf16.msra.mxu0 %v2013
    %3553 = vmatprep.subr.bf16.mxu0 %v2023
    %3554 = vmatpush1.bf16.msra.mxu0 %v2022
    %3555 = vmatprep.subr.bf16.mxu0 %v2032
    %3556 = vmatpush1.bf16.msra.mxu0 %v2031
    %3557 = vmatprep.subr.bf16.mxu0 %v2041
    %3558 = vmatpush1.bf16.msra.mxu0 %v2040
    %3559 = vmatprep.subr.bf16.mxu0 %v2050
    %3560 = vmatpush1.bf16.msra.mxu0 %v2049
    %3561 = vmatprep.subr.bf16.mxu0 %v2059
    %3562 = vmatpush1.bf16.msra.mxu0 %v2058
    %3563 = vmatprep.subr.bf16.mxu0 %v2068
    %3564 = vmatpush1.bf16.msra.mxu0 %v2067
    %3565 = vmatprep.subr.bf16.mxu0 %v2077
    %3566 = vmatpush1.bf16.msra.mxu0 %v2076
    %3567 = vmatprep.subr.bf16.mxu0 %v2086
    %3568 = vmatpush1.bf16.msra.mxu0 %v2085
    %3569 = vmatprep.subr.bf16.mxu0 %v2095
    %3570 = vmatpush1.bf16.msra.mxu0 %v2094
    %3571 = vmatprep.subr.bf16.mxu0 %v2104
    %3572 = vmatpush1.bf16.msra.mxu0 %v2103
    %3573 = vmatprep.subr.bf16.mxu0 %v2113
    %3574 = vmatpush1.bf16.msra.mxu0 %v2112
    %3575 = vmatprep.mubr.bf16.mxu0 %v3377
    %3576 = vmatmul.mubr.bf16.gmra.mrb[0].mxu0 %v3376
    %v3577 = vpop.f32.mrb[0].mxu0
    %v3578 = vadd.f32 0.0, %v3577
    %v3579 = vpop.f32.mrb[0].mxu0
    %v3580 = vadd.f32 0.0, %v3579
    %v3581 = vpop.f32.mrb[0].mxu0
    %v3582 = vpop.f32.mrb[0].mxu0
    %3583 = vdwg.mxu0
    %3584 = vmatprep.subr.bf16.mxu0 %v2122
    %3585 = vmatpush1.bf16.msra.mxu0 %v2121
    %3586 = vmatprep.subr.bf16.mxu0 %v2131
    %3587 = vmatpush1.bf16.msra.mxu0 %v2130
    %3588 = vmatprep.subr.bf16.mxu0 %v2140
    %3589 = vmatpush1.bf16.msra.mxu0 %v2139
    %3590 = vmatprep.subr.bf16.mxu0 %v2149
    %3591 = vmatpush1.bf16.msra.mxu0 %v2148
    %3592 = vmatprep.subr.bf16.mxu0 %v2158
    %3593 = vmatpush1.bf16.msra.mxu0 %v2157
    %3594 = vmatprep.subr.bf16.mxu0 %v2167
    %3595 = vmatpush1.bf16.msra.mxu0 %v2166
    %3596 = vmatprep.subr.bf16.mxu0 %v2176
    %3597 = vmatpush1.bf16.msra.mxu0 %v2175
    %3598 = vmatprep.subr.bf16.mxu0 %v2185
    %3599 = vmatpush1.bf16.msra.mxu0 %v2184
    %3600 = vmatprep.subr.bf16.mxu0 0
    %3601 = vmatpush1.bf16.msra.mxu0 0
    %3602 = vmatprep.subr.bf16.mxu0 0
    %3603 = vmatpush1.bf16.msra.mxu0 0
    %3604 = vmatprep.subr.bf16.mxu0 0
    %3605 = vmatpush1.bf16.msra.mxu0 0
    %3606 = vmatprep.subr.bf16.mxu0 0
    %3607 = vmatpush1.bf16.msra.mxu0 0
    %3608 = vmatprep.subr.bf16.mxu0 0
    %3609 = vmatpush1.bf16.msra.mxu0 0
    %3610 = vmatprep.subr.bf16.mxu0 0
    %3611 = vmatpush1.bf16.msra.mxu0 0
    %3612 = vmatprep.subr.bf16.mxu0 0
    %3613 = vmatpush1.bf16.msra.mxu0 0
    %3614 = vmatprep.subr.bf16.mxu0 0
    %3615 = vmatpush1.bf16.msra.mxu0 0
    %3616 = vmatprep.mubr.bf16.mxu0 0
    %3617 = vmatmul.mubr.bf16.gmra.mrb[0].mxu0 %v3378
    %v3618 = vpop.f32.mrb[0].mxu0
    %v3619 = vadd.f32 %v3578, %v3618
    %v3620 = vpop.f32.mrb[0].mxu0
    %v3621 = vadd.f32 %v3580, %v3620
    %v3622 = vpop.f32.mrb[0].mxu0
    %v3623 = vpop.f32.mrb[0].mxu0
    %3624 = vdwg.mxu0
    %3625 = vmatprep.subr.bf16.mxu0 %v1980
    %3626 = vmatpush1.bf16.msra.mxu0 %v1979
    %3627 = vmatprep.subr.bf16.mxu0 %v1989
    %3628 = vmatpush1.bf16.msra.mxu0 %v1988
    %3629 = vmatprep.subr.bf16.mxu0 %v1998
    %3630 = vmatpush1.bf16.msra.mxu0 %v1997
    %3631 = vmatprep.subr.bf16.mxu0 %v2007
    %3632 = vmatpush1.bf16.msra.mxu0 %v2006
    %3633 = vmatprep.subr.bf16.mxu0 %v2016
    %3634 = vmatpush1.bf16.msra.mxu0 %v2015
    %3635 = vmatprep.subr.bf16.mxu0 %v2025
    %3636 = vmatpush1.bf16.msra.mxu0 %v2024
    %3637 = vmatprep.subr.bf16.mxu0 %v2034
    %3638 = vmatpush1.bf16.msra.mxu0 %v2033
    %3639 = vmatprep.subr.bf16.mxu0 %v2043
    %3640 = vmatpush1.bf16.msra.mxu0 %v2042
    %3641 = vmatprep.subr.bf16.mxu0 %v2052
    %3642 = vmatpush1.bf16.msra.mxu0 %v2051
    %3643 = vmatprep.subr.bf16.mxu0 %v2061
    %3644 = vmatpush1.bf16.msra.mxu0 %v2060
    %3645 = vmatprep.subr.bf16.mxu0 %v2070
    %3646 = vmatpush1.bf16.msra.mxu0 %v2069
    %3647 = vmatprep.subr.bf16.mxu0 %v2079
    %3648 = vmatpush1.bf16.msra.mxu0 %v2078
    %3649 = vmatprep.subr.bf16.mxu0 %v2088
    %3650 = vmatpush1.bf16.msra.mxu0 %v2087
    %3651 = vmatprep.subr.bf16.mxu0 %v2097
    %3652 = vmatpush1.bf16.msra.mxu0 %v2096
    %3653 = vmatprep.subr.bf16.mxu0 %v2106
    %3654 = vmatpush1.bf16.msra.mxu0 %v2105
    %3655 = vmatprep.subr.bf16.mxu0 %v2115
    %3656 = vmatpush1.bf16.msra.mxu0 %v2114
    %3657 = vmatprep.mubr.bf16.mxu0 %v3377
    %3658 = vmatmul.mubr.bf16.gmra.mrb[0].mxu0 %v3376
    %v3659 = vpop.f32.mrb[0].mxu0
    %v3660 = vadd.f32 0.0, %v3659
    %v3661 = vpop.f32.mrb[0].mxu0
    %v3662 = vadd.f32 0.0, %v3661
    %v3663 = vpop.f32.mrb[0].mxu0
    %v3664 = vpop.f32.mrb[0].mxu0
    %3665 = vdwg.mxu0
    %3666 = vmatprep.subr.bf16.mxu0 %v2124
    %3667 = vmatpush1.bf16.msra.mxu0 %v2123
    %3668 = vmatprep.subr.bf16.mxu0 %v2133
    %3669 = vmatpush1.bf16.msra.mxu0 %v2132
    %3670 = vmatprep.subr.bf16.mxu0 %v2142
    %3671 = vmatpush1.bf16.msra.mxu0 %v2141
    %3672 = vmatprep.subr.bf16.mxu0 %v2151
    %3673 = vmatpush1.bf16.msra.mxu0 %v2150
    %3674 = vmatprep.subr.bf16.mxu0 %v2160
    %3675 = vmatpush1.bf16.msra.mxu0 %v2159
    %3676 = vmatprep.subr.bf16.mxu0 %v2169
    %3677 = vmatpush1.bf16.msra.mxu0 %v2168
    %3678 = vmatprep.subr.bf16.mxu0 %v2178
    %3679 = vmatpush1.bf16.msra.mxu0 %v2177
    %3680 = vmatprep.subr.bf16.mxu0 %v2187
    %3681 = vmatpush1.bf16.msra.mxu0 %v2186
    %3682 = vmatprep.subr.bf16.mxu0 0
    %3683 = vmatpush1.bf16.msra.mxu0 0
    %3684 = vmatprep.subr.bf16.mxu0 0
    %3685 = vmatpush1.bf16.msra.mxu0 0
    %3686 = vmatprep.subr.bf16.mxu0 0
    %3687 = vmatpush1.bf16.msra.mxu0 0
    %3688 = vmatprep.subr.bf16.mxu0 0
    %3689 = vmatpush1.bf16.msra.mxu0 0
    %3690 = vmatprep.subr.bf16.mxu0 0
    %3691 = vmatpush1.bf16.msra.mxu0 0
    %3692 = vmatprep.subr.bf16.mxu0 0
    %3693 = vmatpush1.bf16.msra.mxu0 0
    %3694 = vmatprep.subr.bf16.mxu0 0
    %3695 = vmatpush1.bf16.msra.mxu0 0
    %3696 = vmatprep.subr.bf16.mxu0 0
    %3697 = vmatpush1.bf16.msra.mxu0 0
    %3698 = vmatprep.mubr.bf16.mxu0 0
    %3699 = vmatmul.mubr.bf16.gmra.mrb[0].mxu0 %v3378
    %v3700 = vpop.f32.mrb[0].mxu0
    %v3701 = vadd.f32 %v3660, %v3700
    %v3702 = vpop.f32.mrb[0].mxu0
    %v3703 = vadd.f32 %v3662, %v3702
    %v3704 = vpop.f32.mrb[0].mxu0
    %v3705 = vpop.f32.mrb[0].mxu0
    %3706 = vdwg.mxu0
    %3707 = vmatprep.subr.bf16.mxu0 0
    %3708 = vmatpush1.bf16.msra.mxu0 %v1981
    %3709 = vmatprep.subr.bf16.mxu0 0
    %3710 = vmatpush1.bf16.msra.mxu0 %v1990
    %3711 = vmatprep.subr.bf16.mxu0 0
    %3712 = vmatpush1.bf16.msra.mxu0 %v1999
    %3713 = vmatprep.subr.bf16.mxu0 0
    %3714 = vmatpush1.bf16.msra.mxu0 %v2008
    %3715 = vmatprep.subr.bf16.mxu0 0
    %3716 = vmatpush1.bf16.msra.mxu0 %v2017
    %3717 = vmatprep.subr.bf16.mxu0 0
    %3718 = vmatpush1.bf16.msra.mxu0 %v2026
    %3719 = vmatprep.subr.bf16.mxu0 0
    %3720 = vmatpush1.bf16.msra.mxu0 %v2035
    %3721 = vmatprep.subr.bf16.mxu0 0
    %3722 = vmatpush1.bf16.msra.mxu0 %v2044
    %3723 = vmatprep.subr.bf16.mxu0 0
    %3724 = vmatpush1.bf16.msra.mxu0 %v2053
    %3725 = vmatprep.subr.bf16.mxu0 0
    %3726 = vmatpush1.bf16.msra.mxu0 %v2062
    %3727 = vmatprep.subr.bf16.mxu0 0
    %3728 = vmatpush1.bf16.msra.mxu0 %v2071
    %3729 = vmatprep.subr.bf16.mxu0 0
    %3730 = vmatpush1.bf16.msra.mxu0 %v2080
    %3731 = vmatprep.subr.bf16.mxu0 0
    %3732 = vmatpush1.bf16.msra.mxu0 %v2089
    %3733 = vmatprep.subr.bf16.mxu0 0
    %3734 = vmatpush1.bf16.msra.mxu0 %v2098
    %3735 = vmatprep.subr.bf16.mxu0 0
    %3736 = vmatpush1.bf16.msra.mxu0 %v2107
    %3737 = vmatprep.subr.bf16.mxu0 0
    %3738 = vmatpush1.bf16.msra.mxu0 %v2116
    %3739 = vmatprep.mubr.bf16.mxu0 %v3377
    %3740 = vmatmul.mubr.bf16.gmra.mrb[0].mxu0 %v3376
    %v3741 = vpop.f32.mrb[0].mxu0
    %v3742 = vadd.f32 0.0, %v3741
    %v3743 = vpop.f32.mrb[0].mxu0
    %v3744 = vpop.f32.mrb[0].mxu0
    %v3745 = vpop.f32.mrb[0].mxu0
    %3746 = vdwg.mxu0
    %3747 = vmatprep.subr.bf16.mxu0 0
    %3748 = vmatpush1.bf16.msra.mxu0 %v2125
    %3749 = vmatprep.subr.bf16.mxu0 0
    %3750 = vmatpush1.bf16.msra.mxu0 %v2134
    %3751 = vmatprep.subr.bf16.mxu0 0
    %3752 = vmatpush1.bf16.msra.mxu0 %v2143
    %3753 = vmatprep.subr.bf16.mxu0 0
    %3754 = vmatpush1.bf16.msra.mxu0 %v2152
    %3755 = vmatprep.subr.bf16.mxu0 0
    %3756 = vmatpush1.bf16.msra.mxu0 %v2161
    %3757 = vmatprep.subr.bf16.mxu0 0
    %3758 = vmatpush1.bf16.msra.mxu0 %v2170
    %3759 = vmatprep.subr.bf16.mxu0 0
    %3760 = vmatpush1.bf16.msra.mxu0 %v2179
    %3761 = vmatprep.subr.bf16.mxu0 0
    %3762 = vmatpush1.bf16.msra.mxu0 %v2188
    %3763 = vmatprep.subr.bf16.mxu0 0
    %3764 = vmatpush1.bf16.msra.mxu0 0
    %3765 = vmatprep.subr.bf16.mxu0 0
    %3766 = vmatpush1.bf16.msra.mxu0 0
    %3767 = vmatprep.subr.bf16.mxu0 0
    %3768 = vmatpush1.bf16.msra.mxu0 0
    %3769 = vmatprep.subr.bf16.mxu0 0
    %3770 = vmatpush1.bf16.msra.mxu0 0
    %3771 = vmatprep.subr.bf16.mxu0 0
    %3772 = vmatpush1.bf16.msra.mxu0 0
    %3773 = vmatprep.subr.bf16.mxu0 0
    %3774 = vmatpush1.bf16.msra.mxu0 0
    %3775 = vmatprep.subr.bf16.mxu0 0
    %3776 = vmatpush1.bf16.msra.mxu0 0
    %3777 = vmatprep.subr.bf16.mxu0 0
    %3778 = vmatpush1.bf16.msra.mxu0 0
    %3779 = vmatprep.mubr.bf16.mxu0 0
    %3780 = vmatmul.mubr.bf16.gmra.mrb[0].mxu0 %v3378
    %v3781 = vpop.f32.mrb[0].mxu0
    %v3782 = vadd.f32 %v3742, %v3781
    %v3783 = vpop.f32.mrb[0].mxu0
    %v3784 = vpop.f32.mrb[0].mxu0
    %v3785 = vpop.f32.mrb[0].mxu0
    %3786 = vdwg.mxu0
    %v3787 = vadd.f32 %v3367, %v3455
    %v3788 = vadd.f32 %v3368, %v3457
    %v3789 = vadd.f32 %v3369, %v3537
    %v3790 = vxor.u32 %v3787, 2147483648
    %v3791 = vxor.u32 %v3788, 2147483648
    %v3792 = vxor.u32 %v3789, 2147483648
    %v3793 = vmul.f32 %v3790, 1.442695
    %v3794 = vpow.pop %v3793
    %v3795 = vmul.f32 %v3791, 1.442695
    %v3796 = vpow.pop %v3795
    %v3797 = vmul.f32 %v3792, 1.442695
    %v3798 = vpow.pop %v3797
    %v3799 = vadd.f32 %v3794, 1.0
    %v3800 = vadd.f32 %v3796, 1.0
    %v3801 = vadd.f32 %v3798, 1.0
    %v3802 = vrcp.pop %v3799
    %v3803 = vmul.f32 1.0, %v3802
    %v3804 = vrcp.pop %v3800
    %v3805 = vmul.f32 1.0, %v3804
    %v3806 = vrcp.pop %v3801
    %v3807 = vmul.f32 1.0, %v3806
    %v3808 = vadd.f32 %v3370, %v3539
    %v3809 = vadd.f32 %v3371, %v3619
    %v3810 = vadd.f32 %v3372, %v3621
    %v3811 = vxor.u32 %v3808, 2147483648
    %v3812 = vxor.u32 %v3809, 2147483648
    %v3813 = vxor.u32 %v3810, 2147483648
    %v3814 = vmul.f32 %v3811, 1.442695
    %v3815 = vpow.pop %v3814
    %v3816 = vmul.f32 %v3812, 1.442695
    %v3817 = vpow.pop %v3816
    %v3818 = vmul.f32 %v3813, 1.442695
    %v3819 = vpow.pop %v3818
    %v3820 = vadd.f32 %v3815, 1.0
    %v3821 = vadd.f32 %v3817, 1.0
    %v3822 = vadd.f32 %v3819, 1.0
    %v3823 = vrcp.pop %v3820
    %v3824 = vmul.f32 1.0, %v3823
    %v3825 = vrcp.pop %v3821
    %v3826 = vmul.f32 1.0, %v3825
    %v3827 = vrcp.pop %v3822
    %v3828 = vmul.f32 1.0, %v3827
    %v3829 = vadd.f32 %v3701, %v313
    %v3830 = vadd.f32 %v3703, %v317
    %v3831 = vadd.f32 %v3782, %v321
    %v3832 = vmul.f32 %v3803, %v3829
    %v3833 = vmul.f32 %v3805, %v3830
    %v3834 = vmul.f32 %v3807, %v3831
    %v3835 = vadd.f32 %v3373, %v3832
    %v3836 = vadd.f32 %v3374, %v3833
    %v3837 = vadd.f32 %v3375, %v3834
    %v3838 = vtanh.pop %v3835
    %v3839 = vtanh.pop %v3836
    %v3840 = vtanh.pop %v3837
    %v3841 = vsub.f32 %v3360, %v3838
    %v3842 = vsub.f32 %v3361, %v3839
    %v3843 = vsub.f32 %v3362, %v3840
    %v3844 = vmul.f32 %v3824, %v3841
    %v3845 = vmul.f32 %v3826, %v3842
    %v3846 = vmul.f32 %v3828, %v3843
    %v3847 = vadd.f32 %v3838, %v3844
    %v3848 = vadd.f32 %v3839, %v3845
    %v3849 = vadd.f32 %v3840, %v3846
    %v3850 = vmax.f32 %v3363, %v3847
    %v3851 = vmax.f32 %v3364, %v3848
    %v3852 = vmax.f32 %v3365, %v3849
    %s3853 = scalar_lea.vmem [#allocation4], 216
    %v3854 = vld [vmem:[%s3853] sm:$0xff]
    %v3855 = vld [vmem:[%s3853 + $0x8] sm:$0xff]
    %v3856 = vld [vmem:[%s3853 + $0x10] sm:$0xff]
    %v3857 = vld [vmem:[%s3853 + $0x18] sm:$0xff]
    %v3858 = vld [vmem:[%s3853 + $0x20] sm:$0xff]
    %v3859 = vld [vmem:[%s3853 + $0x28] sm:$0xff]
    %v3860 = vld [vmem:[%s3853 + $0x30] sm:$0xff]
    %v3861 = vld [vmem:[%s3853 + $0x38] sm:$0xff]
    %v3862 = vld [vmem:[%s3853 + $0x40] sm:$0xff]
    %v3863 = vpack.c.bf16 %v3847, %v3847
    %v3864 = vpack.c.bf16 %v3848, %v3848
    %v3865 = vpack.c.bf16 %v3849, %v3849
    %3866 = vmatprep.subr.bf16.mxu0 %v1974
    %3867 = vmatpush1.bf16.msra.mxu0 %v1973
    %3868 = vmatprep.subr.bf16.mxu0 %v1983
    %3869 = vmatpush1.bf16.msra.mxu0 %v1982
    %3870 = vmatprep.subr.bf16.mxu0 %v1992
    %3871 = vmatpush1.bf16.msra.mxu0 %v1991
    %3872 = vmatprep.subr.bf16.mxu0 %v2001
    %3873 = vmatpush1.bf16.msra.mxu0 %v2000
    %3874 = vmatprep.subr.bf16.mxu0 %v2010
    %3875 = vmatpush1.bf16.msra.mxu0 %v2009
    %3876 = vmatprep.subr.bf16.mxu0 %v2019
    %3877 = vmatpush1.bf16.msra.mxu0 %v2018
    %3878 = vmatprep.subr.bf16.mxu0 %v2028
    %3879 = vmatpush1.bf16.msra.mxu0 %v2027
    %3880 = vmatprep.subr.bf16.mxu0 %v2037
    %3881 = vmatpush1.bf16.msra.mxu0 %v2036
    %3882 = vmatprep.subr.bf16.mxu0 %v2046
    %3883 = vmatpush1.bf16.msra.mxu0 %v2045
    %3884 = vmatprep.subr.bf16.mxu0 %v2055
    %3885 = vmatpush1.bf16.msra.mxu0 %v2054
    %3886 = vmatprep.subr.bf16.mxu0 %v2064
    %3887 = vmatpush1.bf16.msra.mxu0 %v2063
    %3888 = vmatprep.subr.bf16.mxu0 %v2073
    %3889 = vmatpush1.bf16.msra.mxu0 %v2072
    %3890 = vmatprep.subr.bf16.mxu0 %v2082
    %3891 = vmatpush1.bf16.msra.mxu0 %v2081
    %3892 = vmatprep.subr.bf16.mxu0 %v2091
    %3893 = vmatpush1.bf16.msra.mxu0 %v2090
    %3894 = vmatprep.subr.bf16.mxu0 %v2100
    %3895 = vmatpush1.bf16.msra.mxu0 %v2099
    %3896 = vmatprep.subr.bf16.mxu0 %v2109
    %3897 = vmatpush1.bf16.msra.mxu0 %v2108
    %3898 = vmatprep.mubr.bf16.mxu0 %v3864
    %3899 = vmatmul.mubr.bf16.gmra.mrb[0].mxu0 %v3863
    %v3900 = vpop.f32.mrb[0].mxu0
    %v3901 = vadd.f32 0.0, %v3900
    %v3902 = vpop.f32.mrb[0].mxu0
    %v3903 = vadd.f32 0.0, %v3902
    %v3904 = vpop.f32.mrb[0].mxu0
    %v3905 = vpop.f32.mrb[0].mxu0
    %3906 = vdwg.mxu0
    %3907 = vmatprep.subr.bf16.mxu0 %v2118
    %3908 = vmatpush1.bf16.msra.mxu0 %v2117
    %3909 = vmatprep.subr.bf16.mxu0 %v2127
    %3910 = vmatpush1.bf16.msra.mxu0 %v2126
    %3911 = vmatprep.subr.bf16.mxu0 %v2136
    %3912 = vmatpush1.bf16.msra.mxu0 %v2135
    %3913 = vmatprep.subr.bf16.mxu0 %v2145
    %3914 = vmatpush1.bf16.msra.mxu0 %v2144
    %3915 = vmatprep.subr.bf16.mxu0 %v2154
    %3916 = vmatpush1.bf16.msra.mxu0 %v2153
    %3917 = vmatprep.subr.bf16.mxu0 %v2163
    %3918 = vmatpush1.bf16.msra.mxu0 %v2162
    %3919 = vmatprep.subr.bf16.mxu0 %v2172
    %3920 = vmatpush1.bf16.msra.mxu0 %v2171
    %3921 = vmatprep.subr.bf16.mxu0 %v2181
    %3922 = vmatpush1.bf16.msra.mxu0 %v2180
    %3923 = vmatprep.subr.bf16.mxu0 0
    %3924 = vmatpush1.bf16.msra.mxu0 0
    %3925 = vmatprep.subr.bf16.mxu0 0
    %3926 = vmatpush1.bf16.msra.mxu0 0
    %3927 = vmatprep.subr.bf16.mxu0 0
    %3928 = vmatpush1.bf16.msra.mxu0 0
    %3929 = vmatprep.subr.bf16.mxu0 0
    %3930 = vmatpush1.bf16.msra.mxu0 0
    %3931 = vmatprep.subr.bf16.mxu0 0
    %3932 = vmatpush1.bf16.msra.mxu0 0
    %3933 = vmatprep.subr.bf16.mxu0 0
    %3934 = vmatpush1.bf16.msra.mxu0 0
    %3935 = vmatprep.subr.bf16.mxu0 0
    %3936 = vmatpush1.bf16.msra.mxu0 0
    %3937 = vmatprep.subr.bf16.mxu0 0
    %3938 = vmatpush1.bf16.msra.mxu0 0
    %3939 = vmatprep.mubr.bf16.mxu0 0
    %3940 = vmatmul.mubr.bf16.gmra.mrb[0].mxu0 %v3865
    %v3941 = vpop.f32.mrb[0].mxu0
    %v3942 = vadd.f32 %v3901, %v3941
    %v3943 = vpop.f32.mrb[0].mxu0
    %v3944 = vadd.f32 %v3903, %v3943
    %v3945 = vpop.f32.mrb[0].mxu0
    %v3946 = vpop.f32.mrb[0].mxu0
    %3947 = vdwg.mxu0
    %3948 = vmatprep.subr.bf16.mxu0 %v1976
    %3949 = vmatpush1.bf16.msra.mxu0 %v1975
    %3950 = vmatprep.subr.bf16.mxu0 %v1985
    %3951 = vmatpush1.bf16.msra.mxu0 %v1984
    %3952 = vmatprep.subr.bf16.mxu0 %v1994
    %3953 = vmatpush1.bf16.msra.mxu0 %v1993
    %3954 = vmatprep.subr.bf16.mxu0 %v2003
    %3955 = vmatpush1.bf16.msra.mxu0 %v2002
    %3956 = vmatprep.subr.bf16.mxu0 %v2012
    %3957 = vmatpush1.bf16.msra.mxu0 %v2011
    %3958 = vmatprep.subr.bf16.mxu0 %v2021
    %3959 = vmatpush1.bf16.msra.mxu0 %v2020
    %3960 = vmatprep.subr.bf16.mxu0 %v2030
    %3961 = vmatpush1.bf16.msra.mxu0 %v2029
    %3962 = vmatprep.subr.bf16.mxu0 %v2039
    %3963 = vmatpush1.bf16.msra.mxu0 %v2038
    %3964 = vmatprep.subr.bf16.mxu0 %v2048
    %3965 = vmatpush1.bf16.msra.mxu0 %v2047
    %3966 = vmatprep.subr.bf16.mxu0 %v2057
    %3967 = vmatpush1.bf16.msra.mxu0 %v2056
    %3968 = vmatprep.subr.bf16.mxu0 %v2066
    %3969 = vmatpush1.bf16.msra.mxu0 %v2065
    %3970 = vmatprep.subr.bf16.mxu0 %v2075
    %3971 = vmatpush1.bf16.msra.mxu0 %v2074
    %3972 = vmatprep.subr.bf16.mxu0 %v2084
    %3973 = vmatpush1.bf16.msra.mxu0 %v2083
    %3974 = vmatprep.subr.bf16.mxu0 %v2093
    %3975 = vmatpush1.bf16.msra.mxu0 %v2092
    %3976 = vmatprep.subr.bf16.mxu0 %v2102
    %3977 = vmatpush1.bf16.msra.mxu0 %v2101
    %3978 = vmatprep.subr.bf16.mxu0 %v2111
    %3979 = vmatpush1.bf16.msra.mxu0 %v2110
    %3980 = vmatprep.mubr.bf16.mxu0 %v3864
    %3981 = vmatmul.mubr.bf16.gmra.mrb[0].mxu0 %v3863
    %v3982 = vpop.f32.mrb[0].mxu0
    %v3983 = vadd.f32 0.0, %v3982
    %v3984 = vpop.f32.mrb[0].mxu0
    %v3985 = vadd.f32 0.0, %v3984
    %v3986 = vpop.f32.mrb[0].mxu0
    %v3987 = vpop.f32.mrb[0].mxu0
    %3988 = vdwg.mxu0
    %3989 = vmatprep.subr.bf16.mxu0 %v2120
    %3990 = vmatpush1.bf16.msra.mxu0 %v2119
    %3991 = vmatprep.subr.bf16.mxu0 %v2129
    %3992 = vmatpush1.bf16.msra.mxu0 %v2128
    %3993 = vmatprep.subr.bf16.mxu0 %v2138
    %3994 = vmatpush1.bf16.msra.mxu0 %v2137
    %3995 = vmatprep.subr.bf16.mxu0 %v2147
    %3996 = vmatpush1.bf16.msra.mxu0 %v2146
    %3997 = vmatprep.subr.bf16.mxu0 %v2156
    %3998 = vmatpush1.bf16.msra.mxu0 %v2155
    %3999 = vmatprep.subr.bf16.mxu0 %v2165
    %4000 = vmatpush1.bf16.msra.mxu0 %v2164
    %4001 = vmatprep.subr.bf16.mxu0 %v2174
    %4002 = vmatpush1.bf16.msra.mxu0 %v2173
    %4003 = vmatprep.subr.bf16.mxu0 %v2183
    %4004 = vmatpush1.bf16.msra.mxu0 %v2182
    %4005 = vmatprep.subr.bf16.mxu0 0
    %4006 = vmatpush1.bf16.msra.mxu0 0
    %4007 = vmatprep.subr.bf16.mxu0 0
    %4008 = vmatpush1.bf16.msra.mxu0 0
    %4009 = vmatprep.subr.bf16.mxu0 0
    %4010 = vmatpush1.bf16.msra.mxu0 0
    %4011 = vmatprep.subr.bf16.mxu0 0
    %4012 = vmatpush1.bf16.msra.mxu0 0
    %4013 = vmatprep.subr.bf16.mxu0 0
    %4014 = vmatpush1.bf16.msra.mxu0 0
    %4015 = vmatprep.subr.bf16.mxu0 0
    %4016 = vmatpush1.bf16.msra.mxu0 0
    %4017 = vmatprep.subr.bf16.mxu0 0
    %4018 = vmatpush1.bf16.msra.mxu0 0
    %4019 = vmatprep.subr.bf16.mxu0 0
    %4020 = vmatpush1.bf16.msra.mxu0 0
    %4021 = vmatprep.mubr.bf16.mxu0 0
    %4022 = vmatmul.mubr.bf16.gmra.mrb[0].mxu0 %v3865
    %v4023 = vpop.f32.mrb[0].mxu0
    %v4024 = vadd.f32 %v3983, %v4023
    %v4025 = vpop.f32.mrb[0].mxu0
    %v4026 = vadd.f32 %v3985, %v4025
    %v4027 = vpop.f32.mrb[0].mxu0
    %v4028 = vpop.f32.mrb[0].mxu0
    %4029 = vdwg.mxu0
    %4030 = vmatprep.subr.bf16.mxu0 %v1978
    %4031 = vmatpush1.bf16.msra.mxu0 %v1977
    %4032 = vmatprep.subr.bf16.mxu0 %v1987
    %4033 = vmatpush1.bf16.msra.mxu0 %v1986
    %4034 = vmatprep.subr.bf16.mxu0 %v1996
    %4035 = vmatpush1.bf16.msra.mxu0 %v1995
    %4036 = vmatprep.subr.bf16.mxu0 %v2005
    %4037 = vmatpush1.bf16.msra.mxu0 %v2004
    %4038 = vmatprep.subr.bf16.mxu0 %v2014
    %4039 = vmatpush1.bf16.msra.mxu0 %v2013
    %4040 = vmatprep.subr.bf16.mxu0 %v2023
    %4041 = vmatpush1.bf16.msra.mxu0 %v2022
    %4042 = vmatprep.subr.bf16.mxu0 %v2032
    %4043 = vmatpush1.bf16.msra.mxu0 %v2031
    %4044 = vmatprep.subr.bf16.mxu0 %v2041
    %4045 = vmatpush1.bf16.msra.mxu0 %v2040
    %4046 = vmatprep.subr.bf16.mxu0 %v2050
    %4047 = vmatpush1.bf16.msra.mxu0 %v2049
    %4048 = vmatprep.subr.bf16.mxu0 %v2059
    %4049 = vmatpush1.bf16.msra.mxu0 %v2058
    %4050 = vmatprep.subr.bf16.mxu0 %v2068
    %4051 = vmatpush1.bf16.msra.mxu0 %v2067
    %4052 = vmatprep.subr.bf16.mxu0 %v2077
    %4053 = vmatpush1.bf16.msra.mxu0 %v2076
    %4054 = vmatprep.subr.bf16.mxu0 %v2086
    %4055 = vmatpush1.bf16.msra.mxu0 %v2085
    %4056 = vmatprep.subr.bf16.mxu0 %v2095
    %4057 = vmatpush1.bf16.msra.mxu0 %v2094
    %4058 = vmatprep.subr.bf16.mxu0 %v2104
    %4059 = vmatpush1.bf16.msra.mxu0 %v2103
    %4060 = vmatprep.subr.bf16.mxu0 %v2113
    %4061 = vmatpush1.bf16.msra.mxu0 %v2112
    %4062 = vmatprep.mubr.bf16.mxu0 %v3864
    %4063 = vmatmul.mubr.bf16.gmra.mrb[0].mxu0 %v3863
    %v4064 = vpop.f32.mrb[0].mxu0
    %v4065 = vadd.f32 0.0, %v4064
    %v4066 = vpop.f32.mrb[0].mxu0
    %v4067 = vadd.f32 0.0, %v4066
    %v4068 = vpop.f32.mrb[0].mxu0
    %v4069 = vpop.f32.mrb[0].mxu0
    %4070 = vdwg.mxu0
    %4071 = vmatprep.subr.bf16.mxu0 %v2122
    %4072 = vmatpush1.bf16.msra.mxu0 %v2121
    %4073 = vmatprep.subr.bf16.mxu0 %v2131
    %4074 = vmatpush1.bf16.msra.mxu0 %v2130
    %4075 = vmatprep.subr.bf16.mxu0 %v2140
    %4076 = vmatpush1.bf16.msra.mxu0 %v2139
    %4077 = vmatprep.subr.bf16.mxu0 %v2149
    %4078 = vmatpush1.bf16.msra.mxu0 %v2148
    %4079 = vmatprep.subr.bf16.mxu0 %v2158
    %4080 = vmatpush1.bf16.msra.mxu0 %v2157
    %4081 = vmatprep.subr.bf16.mxu0 %v2167
    %4082 = vmatpush1.bf16.msra.mxu0 %v2166
    %4083 = vmatprep.subr.bf16.mxu0 %v2176
    %4084 = vmatpush1.bf16.msra.mxu0 %v2175
    %4085 = vmatprep.subr.bf16.mxu0 %v2185
    %4086 = vmatpush1.bf16.msra.mxu0 %v2184
    %4087 = vmatprep.subr.bf16.mxu0 0
    %4088 = vmatpush1.bf16.msra.mxu0 0
    %4089 = vmatprep.subr.bf16.mxu0 0
    %4090 = vmatpush1.bf16.msra.mxu0 0
    %4091 = vmatprep.subr.bf16.mxu0 0
    %4092 = vmatpush1.bf16.msra.mxu0 0
    %4093 = vmatprep.subr.bf16.mxu0 0
    %4094 = vmatpush1.bf16.msra.mxu0 0
    %4095 = vmatprep.subr.bf16.mxu0 0
    %4096 = vmatpush1.bf16.msra.mxu0 0
    %4097 = vmatprep.subr.bf16.mxu0 0
    %4098 = vmatpush1.bf16.msra.mxu0 0
    %4099 = vmatprep.subr.bf16.mxu0 0
    %4100 = vmatpush1.bf16.msra.mxu0 0
    %4101 = vmatprep.subr.bf16.mxu0 0
    %4102 = vmatpush1.bf16.msra.mxu0 0
    %4103 = vmatprep.mubr.bf16.mxu0 0
    %4104 = vmatmul.mubr.bf16.gmra.mrb[0].mxu0 %v3865
    %v4105 = vpop.f32.mrb[0].mxu0
    %v4106 = vadd.f32 %v4065, %v4105
    %v4107 = vpop.f32.mrb[0].mxu0
    %v4108 = vadd.f32 %v4067, %v4107
    %v4109 = vpop.f32.mrb[0].mxu0
    %v4110 = vpop.f32.mrb[0].mxu0
    %4111 = vdwg.mxu0
    %4112 = vmatprep.subr.bf16.mxu0 %v1980
    %4113 = vmatpush1.bf16.msra.mxu0 %v1979
    %4114 = vmatprep.subr.bf16.mxu0 %v1989
    %4115 = vmatpush1.bf16.msra.mxu0 %v1988
    %4116 = vmatprep.subr.bf16.mxu0 %v1998
    %4117 = vmatpush1.bf16.msra.mxu0 %v1997
    %4118 = vmatprep.subr.bf16.mxu0 %v2007
    %4119 = vmatpush1.bf16.msra.mxu0 %v2006
    %4120 = vmatprep.subr.bf16.mxu0 %v2016
    %4121 = vmatpush1.bf16.msra.mxu0 %v2015
    %4122 = vmatprep.subr.bf16.mxu0 %v2025
    %4123 = vmatpush1.bf16.msra.mxu0 %v2024
    %4124 = vmatprep.subr.bf16.mxu0 %v2034
    %4125 = vmatpush1.bf16.msra.mxu0 %v2033
    %4126 = vmatprep.subr.bf16.mxu0 %v2043
    %4127 = vmatpush1.bf16.msra.mxu0 %v2042
    %4128 = vmatprep.subr.bf16.mxu0 %v2052
    %4129 = vmatpush1.bf16.msra.mxu0 %v2051
    %4130 = vmatprep.subr.bf16.mxu0 %v2061
    %4131 = vmatpush1.bf16.msra.mxu0 %v2060
    %4132 = vmatprep.subr.bf16.mxu0 %v2070
    %4133 = vmatpush1.bf16.msra.mxu0 %v2069
    %4134 = vmatprep.subr.bf16.mxu0 %v2079
    %4135 = vmatpush1.bf16.msra.mxu0 %v2078
    %4136 = vmatprep.subr.bf16.mxu0 %v2088
    %4137 = vmatpush1.bf16.msra.mxu0 %v2087
    %4138 = vmatprep.subr.bf16.mxu0 %v2097
    %4139 = vmatpush1.bf16.msra.mxu0 %v2096
    %4140 = vmatprep.subr.bf16.mxu0 %v2106
    %4141 = vmatpush1.bf16.msra.mxu0 %v2105
    %4142 = vmatprep.subr.bf16.mxu0 %v2115
    %4143 = vmatpush1.bf16.msra.mxu0 %v2114
    %4144 = vmatprep.mubr.bf16.mxu0 %v3864
    %4145 = vmatmul.mubr.bf16.gmra.mrb[0].mxu0 %v3863
    %v4146 = vpop.f32.mrb[0].mxu0
    %v4147 = vadd.f32 0.0, %v4146
    %v4148 = vpop.f32.mrb[0].mxu0
    %v4149 = vadd.f32 0.0, %v4148
    %v4150 = vpop.f32.mrb[0].mxu0
    %v4151 = vpop.f32.mrb[0].mxu0
    %4152 = vdwg.mxu0
    %4153 = vmatprep.subr.bf16.mxu0 %v2124
    %4154 = vmatpush1.bf16.msra.mxu0 %v2123
    %4155 = vmatprep.subr.bf16.mxu0 %v2133
    %4156 = vmatpush1.bf16.msra.mxu0 %v2132
    %4157 = vmatprep.subr.bf16.mxu0 %v2142
    %4158 = vmatpush1.bf16.msra.mxu0 %v2141
    %4159 = vmatprep.subr.bf16.mxu0 %v2151
    %4160 = vmatpush1.bf16.msra.mxu0 %v2150
    %4161 = vmatprep.subr.bf16.mxu0 %v2160
    %4162 = vmatpush1.bf16.msra.mxu0 %v2159
    %4163 = vmatprep.subr.bf16.mxu0 %v2169
    %4164 = vmatpush1.bf16.msra.mxu0 %v2168
    %4165 = vmatprep.subr.bf16.mxu0 %v2178
    %4166 = vmatpush1.bf16.msra.mxu0 %v2177
    %4167 = vmatprep.subr.bf16.mxu0 %v2187
    %4168 = vmatpush1.bf16.msra.mxu0 %v2186
    %4169 = vmatprep.subr.bf16.mxu0 0
    %4170 = vmatpush1.bf16.msra.mxu0 0
    %4171 = vmatprep.subr.bf16.mxu0 0
    %4172 = vmatpush1.bf16.msra.mxu0 0
    %4173 = vmatprep.subr.bf16.mxu0 0
    %4174 = vmatpush1.bf16.msra.mxu0 0
    %4175 = vmatprep.subr.bf16.mxu0 0
    %4176 = vmatpush1.bf16.msra.mxu0 0
    %4177 = vmatprep.subr.bf16.mxu0 0
    %4178 = vmatpush1.bf16.msra.mxu0 0
    %4179 = vmatprep.subr.bf16.mxu0 0
    %4180 = vmatpush1.bf16.msra.mxu0 0
    %4181 = vmatprep.subr.bf16.mxu0 0
    %4182 = vmatpush1.bf16.msra.mxu0 0
    %4183 = vmatprep.subr.bf16.mxu0 0
    %4184 = vmatpush1.bf16.msra.mxu0 0
    %4185 = vmatprep.mubr.bf16.mxu0 0
    %4186 = vmatmul.mubr.bf16.gmra.mrb[0].mxu0 %v3865
    %v4187 = vpop.f32.mrb[0].mxu0
    %v4188 = vadd.f32 %v4147, %v4187
    %v4189 = vpop.f32.mrb[0].mxu0
    %v4190 = vadd.f32 %v4149, %v4189
    %v4191 = vpop.f32.mrb[0].mxu0
    %v4192 = vpop.f32.mrb[0].mxu0
    %4193 = vdwg.mxu0
    %4194 = vmatprep.subr.bf16.mxu0 0
    %4195 = vmatpush1.bf16.msra.mxu0 %v1981
    %4196 = vmatprep.subr.bf16.mxu0 0
    %4197 = vmatpush1.bf16.msra.mxu0 %v1990
    %4198 = vmatprep.subr.bf16.mxu0 0
    %4199 = vmatpush1.bf16.msra.mxu0 %v1999
    %4200 = vmatprep.subr.bf16.mxu0 0
    %4201 = vmatpush1.bf16.msra.mxu0 %v2008
    %4202 = vmatprep.subr.bf16.mxu0 0
    %4203 = vmatpush1.bf16.msra.mxu0 %v2017
    %4204 = vmatprep.subr.bf16.mxu0 0
    %4205 = vmatpush1.bf16.msra.mxu0 %v2026
    %4206 = vmatprep.subr.bf16.mxu0 0
    %4207 = vmatpush1.bf16.msra.mxu0 %v2035
    %4208 = vmatprep.subr.bf16.mxu0 0
    %4209 = vmatpush1.bf16.msra.mxu0 %v2044
    %4210 = vmatprep.subr.bf16.mxu0 0
    %4211 = vmatpush1.bf16.msra.mxu0 %v2053
    %4212 = vmatprep.subr.bf16.mxu0 0
    %4213 = vmatpush1.bf16.msra.mxu0 %v2062
    %4214 = vmatprep.subr.bf16.mxu0 0
    %4215 = vmatpush1.bf16.msra.mxu0 %v2071
    %4216 = vmatprep.subr.bf16.mxu0 0
    %4217 = vmatpush1.bf16.msra.mxu0 %v2080
    %4218 = vmatprep.subr.bf16.mxu0 0
    %4219 = vmatpush1.bf16.msra.mxu0 %v2089
    %4220 = vmatprep.subr.bf16.mxu0 0
    %4221 = vmatpush1.bf16.msra.mxu0 %v2098
    %4222 = vmatprep.subr.bf16.mxu0 0
    %4223 = vmatpush1.bf16.msra.mxu0 %v2107
    %4224 = vmatprep.subr.bf16.mxu0 0
    %4225 = vmatpush1.bf16.msra.mxu0 %v2116
    %4226 = vmatprep.mubr.bf16.mxu0 %v3864
    %4227 = vmatmul.mubr.bf16.gmra.mrb[0].mxu0 %v3863
    %v4228 = vpop.f32.mrb[0].mxu0
    %v4229 = vadd.f32 0.0, %v4228
    %v4230 = vpop.f32.mrb[0].mxu0
    %v4231 = vpop.f32.mrb[0].mxu0
    %v4232 = vpop.f32.mrb[0].mxu0
    %4233 = vdwg.mxu0
    %4234 = vmatprep.subr.bf16.mxu0 0
    %4235 = vmatpush1.bf16.msra.mxu0 %v2125
    %4236 = vmatprep.subr.bf16.mxu0 0
    %4237 = vmatpush1.bf16.msra.mxu0 %v2134
    %4238 = vmatprep.subr.bf16.mxu0 0
    %4239 = vmatpush1.bf16.msra.mxu0 %v2143
    %4240 = vmatprep.subr.bf16.mxu0 0
    %4241 = vmatpush1.bf16.msra.mxu0 %v2152
    %4242 = vmatprep.subr.bf16.mxu0 0
    %4243 = vmatpush1.bf16.msra.mxu0 %v2161
    %4244 = vmatprep.subr.bf16.mxu0 0
    %4245 = vmatpush1.bf16.msra.mxu0 %v2170
    %4246 = vmatprep.subr.bf16.mxu0 0
    %4247 = vmatpush1.bf16.msra.mxu0 %v2179
    %4248 = vmatprep.subr.bf16.mxu0 0
    %4249 = vmatpush1.bf16.msra.mxu0 %v2188
    %4250 = vmatprep.subr.bf16.mxu0 0
    %4251 = vmatpush1.bf16.msra.mxu0 0
    %4252 = vmatprep.subr.bf16.mxu0 0
    %4253 = vmatpush1.bf16.msra.mxu0 0
    %4254 = vmatprep.subr.bf16.mxu0 0
    %4255 = vmatpush1.bf16.msra.mxu0 0
    %4256 = vmatprep.subr.bf16.mxu0 0
    %4257 = vmatpush1.bf16.msra.mxu0 0
    %4258 = vmatprep.subr.bf16.mxu0 0
    %4259 = vmatpush1.bf16.msra.mxu0 0
    %4260 = vmatprep.subr.bf16.mxu0 0
    %4261 = vmatpush1.bf16.msra.mxu0 0
    %4262 = vmatprep.subr.bf16.mxu0 0
    %4263 = vmatpush1.bf16.msra.mxu0 0
    %4264 = vmatprep.subr.bf16.mxu0 0
    %4265 = vmatpush1.bf16.msra.mxu0 0
    %4266 = vmatprep.mubr.bf16.mxu0 0
    %4267 = vmatmul.mubr.bf16.gmra.mrb[0].mxu0 %v3865
    %v4268 = vpop.f32.mrb[0].mxu0
    %v4269 = vadd.f32 %v4229, %v4268
    %v4270 = vpop.f32.mrb[0].mxu0
    %v4271 = vpop.f32.mrb[0].mxu0
    %v4272 = vpop.f32.mrb[0].mxu0
    %4273 = vdwg.mxu0
    %v4274 = vadd.f32 %v3854, %v3942
    %v4275 = vadd.f32 %v3855, %v3944
    %v4276 = vadd.f32 %v3856, %v4024
    %v4277 = vxor.u32 %v4274, 2147483648
    %v4278 = vxor.u32 %v4275, 2147483648
    %v4279 = vxor.u32 %v4276, 2147483648
    %v4280 = vmul.f32 %v4277, 1.442695
    %v4281 = vpow.pop %v4280
    %v4282 = vmul.f32 %v4278, 1.442695
    %v4283 = vpow.pop %v4282
    %v4284 = vmul.f32 %v4279, 1.442695
    %v4285 = vpow.pop %v4284
    %v4286 = vadd.f32 %v4281, 1.0
    %v4287 = vadd.f32 %v4283, 1.0
    %v4288 = vadd.f32 %v4285, 1.0
    %v4289 = vrcp.pop %v4286
    %v4290 = vmul.f32 1.0, %v4289
    %v4291 = vrcp.pop %v4287
    %v4292 = vmul.f32 1.0, %v4291
    %v4293 = vrcp.pop %v4288
    %v4294 = vmul.f32 1.0, %v4293
    %v4295 = vadd.f32 %v3857, %v4026
    %v4296 = vadd.f32 %v3858, %v4106
    %v4297 = vadd.f32 %v3859, %v4108
    %v4298 = vxor.u32 %v4295, 2147483648
    %v4299 = vxor.u32 %v4296, 2147483648
    %v4300 = vxor.u32 %v4297, 2147483648
    %v4301 = vmul.f32 %v4298, 1.442695
    %v4302 = vpow.pop %v4301
    %v4303 = vmul.f32 %v4299, 1.442695
    %v4304 = vpow.pop %v4303
    %v4305 = vmul.f32 %v4300, 1.442695
    %v4306 = vpow.pop %v4305
    %v4307 = vadd.f32 %v4302, 1.0
    %v4308 = vadd.f32 %v4304, 1.0
    %v4309 = vadd.f32 %v4306, 1.0
    %v4310 = vrcp.pop %v4307
    %v4311 = vmul.f32 1.0, %v4310
    %v4312 = vrcp.pop %v4308
    %v4313 = vmul.f32 1.0, %v4312
    %v4314 = vrcp.pop %v4309
    %v4315 = vmul.f32 1.0, %v4314
    %v4316 = vadd.f32 %v4188, %v313
    %v4317 = vadd.f32 %v4190, %v317
    %v4318 = vadd.f32 %v4269, %v321
    %v4319 = vmul.f32 %v4290, %v4316
    %v4320 = vmul.f32 %v4292, %v4317
    %v4321 = vmul.f32 %v4294, %v4318
    %v4322 = vadd.f32 %v3860, %v4319
    %v4323 = vadd.f32 %v3861, %v4320
    %v4324 = vadd.f32 %v3862, %v4321
    %v4325 = vtanh.pop %v4322
    %v4326 = vtanh.pop %v4323
    %v4327 = vtanh.pop %v4324
    %v4328 = vsub.f32 %v3847, %v4325
    %v4329 = vsub.f32 %v3848, %v4326
    %v4330 = vsub.f32 %v3849, %v4327
    %v4331 = vmul.f32 %v4311, %v4328
    %v4332 = vmul.f32 %v4313, %v4329
    %v4333 = vmul.f32 %v4315, %v4330
    %v4334 = vadd.f32 %v4325, %v4331
    %v4335 = vadd.f32 %v4326, %v4332
    %v4336 = vadd.f32 %v4327, %v4333
    %v4337 = vmax.f32 %v3850, %v4334
    %v4338 = vmax.f32 %v3851, %v4335
    %v4339 = vmax.f32 %v3852, %v4336
    %s4340 = scalar_lea.vmem [#allocation4], 288
    %v4341 = vld [vmem:[%s4340] sm:$0xff]
    %v4342 = vld [vmem:[%s4340 + $0x8] sm:$0xff]
    %v4343 = vld [vmem:[%s4340 + $0x10] sm:$0xff]
    %v4344 = vld [vmem:[%s4340 + $0x18] sm:$0xff]
    %v4345 = vld [vmem:[%s4340 + $0x20] sm:$0xff]
    %v4346 = vld [vmem:[%s4340 + $0x28] sm:$0xff]
    %v4347 = vld [vmem:[%s4340 + $0x30] sm:$0xff]
    %v4348 = vld [vmem:[%s4340 + $0x38] sm:$0xff]
    %v4349 = vld [vmem:[%s4340 + $0x40] sm:$0xff]
    %v4350 = vpack.c.bf16 %v4334, %v4334
    %v4351 = vpack.c.bf16 %v4335, %v4335
    %v4352 = vpack.c.bf16 %v4336, %v4336
    %4353 = vmatprep.subr.bf16.mxu0 %v1974
    %4354 = vmatpush1.bf16.msra.mxu0 %v1973
    %4355 = vmatprep.subr.bf16.mxu0 %v1983
    %4356 = vmatpush1.bf16.msra.mxu0 %v1982
    %4357 = vmatprep.subr.bf16.mxu0 %v1992
    %4358 = vmatpush1.bf16.msra.mxu0 %v1991
    %4359 = vmatprep.subr.bf16.mxu0 %v2001
    %4360 = vmatpush1.bf16.msra.mxu0 %v2000
    %4361 = vmatprep.subr.bf16.mxu0 %v2010
    %4362 = vmatpush1.bf16.msra.mxu0 %v2009
    %4363 = vmatprep.subr.bf16.mxu0 %v2019
    %4364 = vmatpush1.bf16.msra.mxu0 %v2018
    %4365 = vmatprep.subr.bf16.mxu0 %v2028
    %4366 = vmatpush1.bf16.msra.mxu0 %v2027
    %4367 = vmatprep.subr.bf16.mxu0 %v2037
    %4368 = vmatpush1.bf16.msra.mxu0 %v2036
    %4369 = vmatprep.subr.bf16.mxu0 %v2046
    %4370 = vmatpush1.bf16.msra.mxu0 %v2045
    %4371 = vmatprep.subr.bf16.mxu0 %v2055
    %4372 = vmatpush1.bf16.msra.mxu0 %v2054
    %4373 = vmatprep.subr.bf16.mxu0 %v2064
    %4374 = vmatpush1.bf16.msra.mxu0 %v2063
    %4375 = vmatprep.subr.bf16.mxu0 %v2073
    %4376 = vmatpush1.bf16.msra.mxu0 %v2072
    %4377 = vmatprep.subr.bf16.mxu0 %v2082
    %4378 = vmatpush1.bf16.msra.mxu0 %v2081
    %4379 = vmatprep.subr.bf16.mxu0 %v2091
    %4380 = vmatpush1.bf16.msra.mxu0 %v2090
    %4381 = vmatprep.subr.bf16.mxu0 %v2100
    %4382 = vmatpush1.bf16.msra.mxu0 %v2099
    %4383 = vmatprep.subr.bf16.mxu0 %v2109
    %4384 = vmatpush1.bf16.msra.mxu0 %v2108
    %4385 = vmatprep.mubr.bf16.mxu0 %v4351
    %4386 = vmatmul.mubr.bf16.gmra.mrb[0].mxu0 %v4350
    %v4387 = vpop.f32.mrb[0].mxu0
    %v4388 = vadd.f32 0.0, %v4387
    %v4389 = vpop.f32.mrb[0].mxu0
    %v4390 = vadd.f32 0.0, %v4389
    %v4391 = vpop.f32.mrb[0].mxu0
    %v4392 = vpop.f32.mrb[0].mxu0
    %4393 = vdwg.mxu0
    %4394 = vmatprep.subr.bf16.mxu0 %v2118
    %4395 = vmatpush1.bf16.msra.mxu0 %v2117
    %4396 = vmatprep.subr.bf16.mxu0 %v2127
    %4397 = vmatpush1.bf16.msra.mxu0 %v2126
    %4398 = vmatprep.subr.bf16.mxu0 %v2136
    %4399 = vmatpush1.bf16.msra.mxu0 %v2135
    %4400 = vmatprep.subr.bf16.mxu0 %v2145
    %4401 = vmatpush1.bf16.msra.mxu0 %v2144
    %4402 = vmatprep.subr.bf16.mxu0 %v2154
    %4403 = vmatpush1.bf16.msra.mxu0 %v2153
    %4404 = vmatprep.subr.bf16.mxu0 %v2163
    %4405 = vmatpush1.bf16.msra.mxu0 %v2162
    %4406 = vmatprep.subr.bf16.mxu0 %v2172
    %4407 = vmatpush1.bf16.msra.mxu0 %v2171
    %4408 = vmatprep.subr.bf16.mxu0 %v2181
    %4409 = vmatpush1.bf16.msra.mxu0 %v2180
    %4410 = vmatprep.subr.bf16.mxu0 0
    %4411 = vmatpush1.bf16.msra.mxu0 0
    %4412 = vmatprep.subr.bf16.mxu0 0
    %4413 = vmatpush1.bf16.msra.mxu0 0
    %4414 = vmatprep.subr.bf16.mxu0 0
    %4415 = vmatpush1.bf16.msra.mxu0 0
    %4416 = vmatprep.subr.bf16.mxu0 0
    %4417 = vmatpush1.bf16.msra.mxu0 0
    %4418 = vmatprep.subr.bf16.mxu0 0
    %4419 = vmatpush1.bf16.msra.mxu0 0
    %4420 = vmatprep.subr.bf16.mxu0 0
    %4421 = vmatpush1.bf16.msra.mxu0 0
    %4422 = vmatprep.subr.bf16.mxu0 0
    %4423 = vmatpush1.bf16.msra.mxu0 0
    %4424 = vmatprep.subr.bf16.mxu0 0
    %4425 = vmatpush1.bf16.msra.mxu0 0
    %4426 = vmatprep.mubr.bf16.mxu0 0
    %4427 = vmatmul.mubr.bf16.gmra.mrb[0].mxu0 %v4352
    %v4428 = vpop.f32.mrb[0].mxu0
    %v4429 = vadd.f32 %v4388, %v4428
    %v4430 = vpop.f32.mrb[0].mxu0
    %v4431 = vadd.f32 %v4390, %v4430
    %v4432 = vpop.f32.mrb[0].mxu0
    %v4433 = vpop.f32.mrb[0].mxu0
    %4434 = vdwg.mxu0
    %4435 = vmatprep.subr.bf16.mxu0 %v1976
    %4436 = vmatpush1.bf16.msra.mxu0 %v1975
    %4437 = vmatprep.subr.bf16.mxu0 %v1985
    %4438 = vmatpush1.bf16.msra.mxu0 %v1984
    %4439 = vmatprep.subr.bf16.mxu0 %v1994
    %4440 = vmatpush1.bf16.msra.mxu0 %v1993
    %4441 = vmatprep.subr.bf16.mxu0 %v2003
    %4442 = vmatpush1.bf16.msra.mxu0 %v2002
    %4443 = vmatprep.subr.bf16.mxu0 %v2012
    %4444 = vmatpush1.bf16.msra.mxu0 %v2011
    %4445 = vmatprep.subr.bf16.mxu0 %v2021
    %4446 = vmatpush1.bf16.msra.mxu0 %v2020
    %4447 = vmatprep.subr.bf16.mxu0 %v2030
    %4448 = vmatpush1.bf16.msra.mxu0 %v2029
    %4449 = vmatprep.subr.bf16.mxu0 %v2039
    %4450 = vmatpush1.bf16.msra.mxu0 %v2038
    %4451 = vmatprep.subr.bf16.mxu0 %v2048
    %4452 = vmatpush1.bf16.msra.mxu0 %v2047
    %4453 = vmatprep.subr.bf16.mxu0 %v2057
    %4454 = vmatpush1.bf16.msra.mxu0 %v2056
    %4455 = vmatprep.subr.bf16.mxu0 %v2066
    %4456 = vmatpush1.bf16.msra.mxu0 %v2065
    %4457 = vmatprep.subr.bf16.mxu0 %v2075
    %4458 = vmatpush1.bf16.msra.mxu0 %v2074
    %4459 = vmatprep.subr.bf16.mxu0 %v2084
    %4460 = vmatpush1.bf16.msra.mxu0 %v2083
    %4461 = vmatprep.subr.bf16.mxu0 %v2093
    %4462 = vmatpush1.bf16.msra.mxu0 %v2092
    %4463 = vmatprep.subr.bf16.mxu0 %v2102
    %4464 = vmatpush1.bf16.msra.mxu0 %v2101
    %4465 = vmatprep.subr.bf16.mxu0 %v2111
    %4466 = vmatpush1.bf16.msra.mxu0 %v2110
    %4467 = vmatprep.mubr.bf16.mxu0 %v4351
    %4468 = vmatmul.mubr.bf16.gmra.mrb[0].mxu0 %v4350
    %v4469 = vpop.f32.mrb[0].mxu0
    %v4470 = vadd.f32 0.0, %v4469
    %v4471 = vpop.f32.mrb[0].mxu0
    %v4472 = vadd.f32 0.0, %v4471
    %v4473 = vpop.f32.mrb[0].mxu0
    %v4474 = vpop.f32.mrb[0].mxu0
    %4475 = vdwg.mxu0
    %4476 = vmatprep.subr.bf16.mxu0 %v2120
    %4477 = vmatpush1.bf16.msra.mxu0 %v2119
    %4478 = vmatprep.subr.bf16.mxu0 %v2129
    %4479 = vmatpush1.bf16.msra.mxu0 %v2128
    %4480 = vmatprep.subr.bf16.mxu0 %v2138
    %4481 = vmatpush1.bf16.msra.mxu0 %v2137
    %4482 = vmatprep.subr.bf16.mxu0 %v2147
    %4483 = vmatpush1.bf16.msra.mxu0 %v2146
    %4484 = vmatprep.subr.bf16.mxu0 %v2156
    %4485 = vmatpush1.bf16.msra.mxu0 %v2155
    %4486 = vmatprep.subr.bf16.mxu0 %v2165
    %4487 = vmatpush1.bf16.msra.mxu0 %v2164
    %4488 = vmatprep.subr.bf16.mxu0 %v2174
    %4489 = vmatpush1.bf16.msra.mxu0 %v2173
    %4490 = vmatprep.subr.bf16.mxu0 %v2183
    %4491 = vmatpush1.bf16.msra.mxu0 %v2182
    %4492 = vmatprep.subr.bf16.mxu0 0
    %4493 = vmatpush1.bf16.msra.mxu0 0
    %4494 = vmatprep.subr.bf16.mxu0 0
    %4495 = vmatpush1.bf16.msra.mxu0 0
    %4496 = vmatprep.subr.bf16.mxu0 0
    %4497 = vmatpush1.bf16.msra.mxu0 0
    %4498 = vmatprep.subr.bf16.mxu0 0
    %4499 = vmatpush1.bf16.msra.mxu0 0
    %4500 = vmatprep.subr.bf16.mxu0 0
    %4501 = vmatpush1.bf16.msra.mxu0 0
    %4502 = vmatprep.subr.bf16.mxu0 0
    %4503 = vmatpush1.bf16.msra.mxu0 0
    %4504 = vmatprep.subr.bf16.mxu0 0
    %4505 = vmatpush1.bf16.msra.mxu0 0
    %4506 = vmatprep.subr.bf16.mxu0 0
    %4507 = vmatpush1.bf16.msra.mxu0 0
    %4508 = vmatprep.mubr.bf16.mxu0 0
    %4509 = vmatmul.mubr.bf16.gmra.mrb[0].mxu0 %v4352
    %v4510 = vpop.f32.mrb[0].mxu0
    %v4511 = vadd.f32 %v4470, %v4510
    %v4512 = vpop.f32.mrb[0].mxu0
    %v4513 = vadd.f32 %v4472, %v4512
    %v4514 = vpop.f32.mrb[0].mxu0
    %v4515 = vpop.f32.mrb[0].mxu0
    %4516 = vdwg.mxu0
    %4517 = vmatprep.subr.bf16.mxu0 %v1978
    %4518 = vmatpush1.bf16.msra.mxu0 %v1977
    %4519 = vmatprep.subr.bf16.mxu0 %v1987
    %4520 = vmatpush1.bf16.msra.mxu0 %v1986
    %4521 = vmatprep.subr.bf16.mxu0 %v1996
    %4522 = vmatpush1.bf16.msra.mxu0 %v1995
    %4523 = vmatprep.subr.bf16.mxu0 %v2005
    %4524 = vmatpush1.bf16.msra.mxu0 %v2004
    %4525 = vmatprep.subr.bf16.mxu0 %v2014
    %4526 = vmatpush1.bf16.msra.mxu0 %v2013
    %4527 = vmatprep.subr.bf16.mxu0 %v2023
    %4528 = vmatpush1.bf16.msra.mxu0 %v2022
    %4529 = vmatprep.subr.bf16.mxu0 %v2032
    %4530 = vmatpush1.bf16.msra.mxu0 %v2031
    %4531 = vmatprep.subr.bf16.mxu0 %v2041
    %4532 = vmatpush1.bf16.msra.mxu0 %v2040
    %4533 = vmatprep.subr.bf16.mxu0 %v2050
    %4534 = vmatpush1.bf16.msra.mxu0 %v2049
    %4535 = vmatprep.subr.bf16.mxu0 %v2059
    %4536 = vmatpush1.bf16.msra.mxu0 %v2058
    %4537 = vmatprep.subr.bf16.mxu0 %v2068
    %4538 = vmatpush1.bf16.msra.mxu0 %v2067
    %4539 = vmatprep.subr.bf16.mxu0 %v2077
    %4540 = vmatpush1.bf16.msra.mxu0 %v2076
    %4541 = vmatprep.subr.bf16.mxu0 %v2086
    %4542 = vmatpush1.bf16.msra.mxu0 %v2085
    %4543 = vmatprep.subr.bf16.mxu0 %v2095
    %4544 = vmatpush1.bf16.msra.mxu0 %v2094
    %4545 = vmatprep.subr.bf16.mxu0 %v2104
    %4546 = vmatpush1.bf16.msra.mxu0 %v2103
    %4547 = vmatprep.subr.bf16.mxu0 %v2113
    %4548 = vmatpush1.bf16.msra.mxu0 %v2112
    %4549 = vmatprep.mubr.bf16.mxu0 %v4351
    %4550 = vmatmul.mubr.bf16.gmra.mrb[0].mxu0 %v4350
    %v4551 = vpop.f32.mrb[0].mxu0
    %v4552 = vadd.f32 0.0, %v4551
    %v4553 = vpop.f32.mrb[0].mxu0
    %v4554 = vadd.f32 0.0, %v4553
    %v4555 = vpop.f32.mrb[0].mxu0
    %v4556 = vpop.f32.mrb[0].mxu0
    %4557 = vdwg.mxu0
    %4558 = vmatprep.subr.bf16.mxu0 %v2122
    %4559 = vmatpush1.bf16.msra.mxu0 %v2121
    %4560 = vmatprep.subr.bf16.mxu0 %v2131
    %4561 = vmatpush1.bf16.msra.mxu0 %v2130
    %4562 = vmatprep.subr.bf16.mxu0 %v2140
    %4563 = vmatpush1.bf16.msra.mxu0 %v2139
    %4564 = vmatprep.subr.bf16.mxu0 %v2149
    %4565 = vmatpush1.bf16.msra.mxu0 %v2148
    %4566 = vmatprep.subr.bf16.mxu0 %v2158
    %4567 = vmatpush1.bf16.msra.mxu0 %v2157
    %4568 = vmatprep.subr.bf16.mxu0 %v2167
    %4569 = vmatpush1.bf16.msra.mxu0 %v2166
    %4570 = vmatprep.subr.bf16.mxu0 %v2176
    %4571 = vmatpush1.bf16.msra.mxu0 %v2175
    %4572 = vmatprep.subr.bf16.mxu0 %v2185
    %4573 = vmatpush1.bf16.msra.mxu0 %v2184
    %4574 = vmatprep.subr.bf16.mxu0 0
    %4575 = vmatpush1.bf16.msra.mxu0 0
    %4576 = vmatprep.subr.bf16.mxu0 0
    %4577 = vmatpush1.bf16.msra.mxu0 0
    %4578 = vmatprep.subr.bf16.mxu0 0
    %4579 = vmatpush1.bf16.msra.mxu0 0
    %4580 = vmatprep.subr.bf16.mxu0 0
    %4581 = vmatpush1.bf16.msra.mxu0 0
    %4582 = vmatprep.subr.bf16.mxu0 0
    %4583 = vmatpush1.bf16.msra.mxu0 0
    %4584 = vmatprep.subr.bf16.mxu0 0
    %4585 = vmatpush1.bf16.msra.mxu0 0
    %4586 = vmatprep.subr.bf16.mxu0 0
    %4587 = vmatpush1.bf16.msra.mxu0 0
    %4588 = vmatprep.subr.bf16.mxu0 0
    %4589 = vmatpush1.bf16.msra.mxu0 0
    %4590 = vmatprep.mubr.bf16.mxu0 0
    %4591 = vmatmul.mubr.bf16.gmra.mrb[0].mxu0 %v4352
    %v4592 = vpop.f32.mrb[0].mxu0
    %v4593 = vadd.f32 %v4552, %v4592
    %v4594 = vpop.f32.mrb[0].mxu0
    %v4595 = vadd.f32 %v4554, %v4594
    %v4596 = vpop.f32.mrb[0].mxu0
    %v4597 = vpop.f32.mrb[0].mxu0
    %4598 = vdwg.mxu0
    %4599 = vmatprep.subr.bf16.mxu0 %v1980
    %4600 = vmatpush1.bf16.msra.mxu0 %v1979
    %4601 = vmatprep.subr.bf16.mxu0 %v1989
    %4602 = vmatpush1.bf16.msra.mxu0 %v1988
    %4603 = vmatprep.subr.bf16.mxu0 %v1998
    %4604 = vmatpush1.bf16.msra.mxu0 %v1997
    %4605 = vmatprep.subr.bf16.mxu0 %v2007
    %4606 = vmatpush1.bf16.msra.mxu0 %v2006
    %4607 = vmatprep.subr.bf16.mxu0 %v2016
    %4608 = vmatpush1.bf16.msra.mxu0 %v2015
    %4609 = vmatprep.subr.bf16.mxu0 %v2025
    %4610 = vmatpush1.bf16.msra.mxu0 %v2024
    %4611 = vmatprep.subr.bf16.mxu0 %v2034
    %4612 = vmatpush1.bf16.msra.mxu0 %v2033
    %4613 = vmatprep.subr.bf16.mxu0 %v2043
    %4614 = vmatpush1.bf16.msra.mxu0 %v2042
    %4615 = vmatprep.subr.bf16.mxu0 %v2052
    %4616 = vmatpush1.bf16.msra.mxu0 %v2051
    %4617 = vmatprep.subr.bf16.mxu0 %v2061
    %4618 = vmatpush1.bf16.msra.mxu0 %v2060
    %4619 = vmatprep.subr.bf16.mxu0 %v2070
    %4620 = vmatpush1.bf16.msra.mxu0 %v2069
    %4621 = vmatprep.subr.bf16.mxu0 %v2079
    %4622 = vmatpush1.bf16.msra.mxu0 %v2078
    %4623 = vmatprep.subr.bf16.mxu0 %v2088
    %4624 = vmatpush1.bf16.msra.mxu0 %v2087
    %4625 = vmatprep.subr.bf16.mxu0 %v2097
    %4626 = vmatpush1.bf16.msra.mxu0 %v2096
    %4627 = vmatprep.subr.bf16.mxu0 %v2106
    %4628 = vmatpush1.bf16.msra.mxu0 %v2105
    %4629 = vmatprep.subr.bf16.mxu0 %v2115
    %4630 = vmatpush1.bf16.msra.mxu0 %v2114
    %4631 = vmatprep.mubr.bf16.mxu0 %v4351
    %4632 = vmatmul.mubr.bf16.gmra.mrb[0].mxu0 %v4350
    %v4633 = vpop.f32.mrb[0].mxu0
    %v4634 = vadd.f32 0.0, %v4633
    %v4635 = vpop.f32.mrb[0].mxu0
    %v4636 = vadd.f32 0.0, %v4635
    %v4637 = vpop.f32.mrb[0].mxu0
    %v4638 = vpop.f32.mrb[0].mxu0
    %4639 = vdwg.mxu0
    %4640 = vmatprep.subr.bf16.mxu0 %v2124
    %4641 = vmatpush1.bf16.msra.mxu0 %v2123
    %4642 = vmatprep.subr.bf16.mxu0 %v2133
    %4643 = vmatpush1.bf16.msra.mxu0 %v2132
    %4644 = vmatprep.subr.bf16.mxu0 %v2142
    %4645 = vmatpush1.bf16.msra.mxu0 %v2141
    %4646 = vmatprep.subr.bf16.mxu0 %v2151
    %4647 = vmatpush1.bf16.msra.mxu0 %v2150
    %4648 = vmatprep.subr.bf16.mxu0 %v2160
    %4649 = vmatpush1.bf16.msra.mxu0 %v2159
    %4650 = vmatprep.subr.bf16.mxu0 %v2169
    %4651 = vmatpush1.bf16.msra.mxu0 %v2168
    %4652 = vmatprep.subr.bf16.mxu0 %v2178
    %4653 = vmatpush1.bf16.msra.mxu0 %v2177
    %4654 = vmatprep.subr.bf16.mxu0 %v2187
    %4655 = vmatpush1.bf16.msra.mxu0 %v2186
    %4656 = vmatprep.subr.bf16.mxu0 0
    %4657 = vmatpush1.bf16.msra.mxu0 0
    %4658 = vmatprep.subr.bf16.mxu0 0
    %4659 = vmatpush1.bf16.msra.mxu0 0
    %4660 = vmatprep.subr.bf16.mxu0 0
    %4661 = vmatpush1.bf16.msra.mxu0 0
    %4662 = vmatprep.subr.bf16.mxu0 0
    %4663 = vmatpush1.bf16.msra.mxu0 0
    %4664 = vmatprep.subr.bf16.mxu0 0
    %4665 = vmatpush1.bf16.msra.mxu0 0
    %4666 = vmatprep.subr.bf16.mxu0 0
    %4667 = vmatpush1.bf16.msra.mxu0 0
    %4668 = vmatprep.subr.bf16.mxu0 0
    %4669 = vmatpush1.bf16.msra.mxu0 0
    %4670 = vmatprep.subr.bf16.mxu0 0
    %4671 = vmatpush1.bf16.msra.mxu0 0
    %4672 = vmatprep.mubr.bf16.mxu0 0
    %4673 = vmatmul.mubr.bf16.gmra.mrb[0].mxu0 %v4352
    %v4674 = vpop.f32.mrb[0].mxu0
    %v4675 = vadd.f32 %v4634, %v4674
    %v4676 = vpop.f32.mrb[0].mxu0
    %v4677 = vadd.f32 %v4636, %v4676
    %v4678 = vpop.f32.mrb[0].mxu0
    %v4679 = vpop.f32.mrb[0].mxu0
    %4680 = vdwg.mxu0
    %4681 = vmatprep.subr.bf16.mxu0 0
    %4682 = vmatpush1.bf16.msra.mxu0 %v1981
    %4683 = vmatprep.subr.bf16.mxu0 0
    %4684 = vmatpush1.bf16.msra.mxu0 %v1990
    %4685 = vmatprep.subr.bf16.mxu0 0
    %4686 = vmatpush1.bf16.msra.mxu0 %v1999
    %4687 = vmatprep.subr.bf16.mxu0 0
    %4688 = vmatpush1.bf16.msra.mxu0 %v2008
    %4689 = vmatprep.subr.bf16.mxu0 0
    %4690 = vmatpush1.bf16.msra.mxu0 %v2017
    %4691 = vmatprep.subr.bf16.mxu0 0
    %4692 = vmatpush1.bf16.msra.mxu0 %v2026
    %4693 = vmatprep.subr.bf16.mxu0 0
    %4694 = vmatpush1.bf16.msra.mxu0 %v2035
    %4695 = vmatprep.subr.bf16.mxu0 0
    %4696 = vmatpush1.bf16.msra.mxu0 %v2044
    %4697 = vmatprep.subr.bf16.mxu0 0
    %4698 = vmatpush1.bf16.msra.mxu0 %v2053
    %4699 = vmatprep.subr.bf16.mxu0 0
    %4700 = vmatpush1.bf16.msra.mxu0 %v2062
    %4701 = vmatprep.subr.bf16.mxu0 0
    %4702 = vmatpush1.bf16.msra.mxu0 %v2071
    %4703 = vmatprep.subr.bf16.mxu0 0
    %4704 = vmatpush1.bf16.msra.mxu0 %v2080
    %4705 = vmatprep.subr.bf16.mxu0 0
    %4706 = vmatpush1.bf16.msra.mxu0 %v2089
    %4707 = vmatprep.subr.bf16.mxu0 0
    %4708 = vmatpush1.bf16.msra.mxu0 %v2098
    %4709 = vmatprep.subr.bf16.mxu0 0
    %4710 = vmatpush1.bf16.msra.mxu0 %v2107
    %4711 = vmatprep.subr.bf16.mxu0 0
    %4712 = vmatpush1.bf16.msra.mxu0 %v2116
    %4713 = vmatprep.mubr.bf16.mxu0 %v4351
    %4714 = vmatmul.mubr.bf16.gmra.mrb[0].mxu0 %v4350
    %v4715 = vpop.f32.mrb[0].mxu0
    %v4716 = vadd.f32 0.0, %v4715
    %v4717 = vpop.f32.mrb[0].mxu0
    %v4718 = vpop.f32.mrb[0].mxu0
    %v4719 = vpop.f32.mrb[0].mxu0
    %4720 = vdwg.mxu0
    %4721 = vmatprep.subr.bf16.mxu0 0
    %4722 = vmatpush1.bf16.msra.mxu0 %v2125
    %4723 = vmatprep.subr.bf16.mxu0 0
    %4724 = vmatpush1.bf16.msra.mxu0 %v2134
    %4725 = vmatprep.subr.bf16.mxu0 0
    %4726 = vmatpush1.bf16.msra.mxu0 %v2143
    %4727 = vmatprep.subr.bf16.mxu0 0
    %4728 = vmatpush1.bf16.msra.mxu0 %v2152
    %4729 = vmatprep.subr.bf16.mxu0 0
    %4730 = vmatpush1.bf16.msra.mxu0 %v2161
    %4731 = vmatprep.subr.bf16.mxu0 0
    %4732 = vmatpush1.bf16.msra.mxu0 %v2170
    %4733 = vmatprep.subr.bf16.mxu0 0
    %4734 = vmatpush1.bf16.msra.mxu0 %v2179
    %4735 = vmatprep.subr.bf16.mxu0 0
    %4736 = vmatpush1.bf16.msra.mxu0 %v2188
    %4737 = vmatprep.subr.bf16.mxu0 0
    %4738 = vmatpush1.bf16.msra.mxu0 0
    %4739 = vmatprep.subr.bf16.mxu0 0
    %4740 = vmatpush1.bf16.msra.mxu0 0
    %4741 = vmatprep.subr.bf16.mxu0 0
    %4742 = vmatpush1.bf16.msra.mxu0 0
    %4743 = vmatprep.subr.bf16.mxu0 0
    %4744 = vmatpush1.bf16.msra.mxu0 0
    %4745 = vmatprep.subr.bf16.mxu0 0
    %4746 = vmatpush1.bf16.msra.mxu0 0
    %4747 = vmatprep.subr.bf16.mxu0 0
    %4748 = vmatpush1.bf16.msra.mxu0 0
    %4749 = vmatprep.subr.bf16.mxu0 0
    %4750 = vmatpush1.bf16.msra.mxu0 0
    %4751 = vmatprep.subr.bf16.mxu0 0
    %4752 = vmatpush1.bf16.msra.mxu0 0
    %4753 = vmatprep.mubr.bf16.mxu0 0
    %4754 = vmatmul.mubr.bf16.gmra.mrb[0].mxu0 %v4352
    %v4755 = vpop.f32.mrb[0].mxu0
    %v4756 = vadd.f32 %v4716, %v4755
    %v4757 = vpop.f32.mrb[0].mxu0
    %v4758 = vpop.f32.mrb[0].mxu0
    %v4759 = vpop.f32.mrb[0].mxu0
    %4760 = vdwg.mxu0
    %v4761 = vadd.f32 %v4341, %v4429
    %v4762 = vadd.f32 %v4342, %v4431
    %v4763 = vadd.f32 %v4343, %v4511
    %v4764 = vxor.u32 %v4761, 2147483648
    %v4765 = vxor.u32 %v4762, 2147483648
    %v4766 = vxor.u32 %v4763, 2147483648
    %v4767 = vmul.f32 %v4764, 1.442695
    %v4768 = vpow.pop %v4767
    %v4769 = vmul.f32 %v4765, 1.442695
    %v4770 = vpow.pop %v4769
    %v4771 = vmul.f32 %v4766, 1.442695
    %v4772 = vpow.pop %v4771
    %v4773 = vadd.f32 %v4768, 1.0
    %v4774 = vadd.f32 %v4770, 1.0
    %v4775 = vadd.f32 %v4772, 1.0
    %v4776 = vrcp.pop %v4773
    %v4777 = vmul.f32 1.0, %v4776
    %v4778 = vrcp.pop %v4774
    %v4779 = vmul.f32 1.0, %v4778
    %v4780 = vrcp.pop %v4775
    %v4781 = vmul.f32 1.0, %v4780
    %v4782 = vadd.f32 %v4344, %v4513
    %v4783 = vadd.f32 %v4345, %v4593
    %v4784 = vadd.f32 %v4346, %v4595
    %v4785 = vxor.u32 %v4782, 2147483648
    %v4786 = vxor.u32 %v4783, 2147483648
    %v4787 = vxor.u32 %v4784, 2147483648
    %v4788 = vmul.f32 %v4785, 1.442695
    %v4789 = vpow.pop %v4788
    %v4790 = vmul.f32 %v4786, 1.442695
    %v4791 = vpow.pop %v4790
    %v4792 = vmul.f32 %v4787, 1.442695
    %v4793 = vpow.pop %v4792
    %v4794 = vadd.f32 %v4789, 1.0
    %v4795 = vadd.f32 %v4791, 1.0
    %v4796 = vadd.f32 %v4793, 1.0
    %v4797 = vrcp.pop %v4794
    %v4798 = vmul.f32 1.0, %v4797
    %v4799 = vrcp.pop %v4795
    %v4800 = vmul.f32 1.0, %v4799
    %v4801 = vrcp.pop %v4796
    %v4802 = vmul.f32 1.0, %v4801
    %v4803 = vadd.f32 %v4675, %v313
    %v4804 = vadd.f32 %v4677, %v317
    %v4805 = vadd.f32 %v4756, %v321
    %v4806 = vmul.f32 %v4777, %v4803
    %v4807 = vmul.f32 %v4779, %v4804
    %v4808 = vmul.f32 %v4781, %v4805
    %v4809 = vadd.f32 %v4347, %v4806
    %v4810 = vadd.f32 %v4348, %v4807
    %v4811 = vadd.f32 %v4349, %v4808
    %v4812 = vtanh.pop %v4809
    %v4813 = vtanh.pop %v4810
    %v4814 = vtanh.pop %v4811
    %v4815 = vsub.f32 %v4334, %v4812
    %v4816 = vsub.f32 %v4335, %v4813
    %v4817 = vsub.f32 %v4336, %v4814
    %v4818 = vmul.f32 %v4798, %v4815
    %v4819 = vmul.f32 %v4800, %v4816
    %v4820 = vmul.f32 %v4802, %v4817
    %v4821 = vadd.f32 %v4812, %v4818
    %v4822 = vadd.f32 %v4813, %v4819
    %v4823 = vadd.f32 %v4814, %v4820
    %v4824 = vmax.f32 %v4337, %v4821
    %v4825 = vmax.f32 %v4338, %v4822
    %v4826 = vmax.f32 %v4339, %v4823
    %s4827 = scalar_lea.vmem [#allocation4], 360
    %v4828 = vld [vmem:[%s4827] sm:$0xff]
    %v4829 = vld [vmem:[%s4827 + $0x8] sm:$0xff]
    %v4830 = vld [vmem:[%s4827 + $0x10] sm:$0xff]
    %v4831 = vld [vmem:[%s4827 + $0x18] sm:$0xff]
    %v4832 = vld [vmem:[%s4827 + $0x20] sm:$0xff]
    %v4833 = vld [vmem:[%s4827 + $0x28] sm:$0xff]
    %v4834 = vld [vmem:[%s4827 + $0x30] sm:$0xff]
    %v4835 = vld [vmem:[%s4827 + $0x38] sm:$0xff]
    %v4836 = vld [vmem:[%s4827 + $0x40] sm:$0xff]
    %v4837 = vpack.c.bf16 %v4821, %v4821
    %v4838 = vpack.c.bf16 %v4822, %v4822
    %v4839 = vpack.c.bf16 %v4823, %v4823
    %4840 = vmatprep.subr.bf16.mxu0 %v1974
    %4841 = vmatpush1.bf16.msra.mxu0 %v1973
    %4842 = vmatprep.subr.bf16.mxu0 %v1983
    %4843 = vmatpush1.bf16.msra.mxu0 %v1982
    %4844 = vmatprep.subr.bf16.mxu0 %v1992
    %4845 = vmatpush1.bf16.msra.mxu0 %v1991
    %4846 = vmatprep.subr.bf16.mxu0 %v2001
    %4847 = vmatpush1.bf16.msra.mxu0 %v2000
    %4848 = vmatprep.subr.bf16.mxu0 %v2010
    %4849 = vmatpush1.bf16.msra.mxu0 %v2009
    %4850 = vmatprep.subr.bf16.mxu0 %v2019
    %4851 = vmatpush1.bf16.msra.mxu0 %v2018
    %4852 = vmatprep.subr.bf16.mxu0 %v2028
    %4853 = vmatpush1.bf16.msra.mxu0 %v2027
    %4854 = vmatprep.subr.bf16.mxu0 %v2037
    %4855 = vmatpush1.bf16.msra.mxu0 %v2036
    %4856 = vmatprep.subr.bf16.mxu0 %v2046
    %4857 = vmatpush1.bf16.msra.mxu0 %v2045
    %4858 = vmatprep.subr.bf16.mxu0 %v2055
    %4859 = vmatpush1.bf16.msra.mxu0 %v2054
    %4860 = vmatprep.subr.bf16.mxu0 %v2064
    %4861 = vmatpush1.bf16.msra.mxu0 %v2063
    %4862 = vmatprep.subr.bf16.mxu0 %v2073
    %4863 = vmatpush1.bf16.msra.mxu0 %v2072
    %4864 = vmatprep.subr.bf16.mxu0 %v2082
    %4865 = vmatpush1.bf16.msra.mxu0 %v2081
    %4866 = vmatprep.subr.bf16.mxu0 %v2091
    %4867 = vmatpush1.bf16.msra.mxu0 %v2090
    %4868 = vmatprep.subr.bf16.mxu0 %v2100
    %4869 = vmatpush1.bf16.msra.mxu0 %v2099
    %4870 = vmatprep.subr.bf16.mxu0 %v2109
    %4871 = vmatpush1.bf16.msra.mxu0 %v2108
    %4872 = vmatprep.mubr.bf16.mxu0 %v4838
    %4873 = vmatmul.mubr.bf16.gmra.mrb[0].mxu0 %v4837
    %v4874 = vpop.f32.mrb[0].mxu0
    %v4875 = vadd.f32 0.0, %v4874
    %v4876 = vpop.f32.mrb[0].mxu0
    %v4877 = vadd.f32 0.0, %v4876
    %v4878 = vpop.f32.mrb[0].mxu0
    %v4879 = vpop.f32.mrb[0].mxu0
    %4880 = vdwg.mxu0
    %4881 = vmatprep.subr.bf16.mxu0 %v2118
    %4882 = vmatpush1.bf16.msra.mxu0 %v2117
    %4883 = vmatprep.subr.bf16.mxu0 %v2127
    %4884 = vmatpush1.bf16.msra.mxu0 %v2126
    %4885 = vmatprep.subr.bf16.mxu0 %v2136
    %4886 = vmatpush1.bf16.msra.mxu0 %v2135
    %4887 = vmatprep.subr.bf16.mxu0 %v2145
    %4888 = vmatpush1.bf16.msra.mxu0 %v2144
    %4889 = vmatprep.subr.bf16.mxu0 %v2154
    %4890 = vmatpush1.bf16.msra.mxu0 %v2153
    %4891 = vmatprep.subr.bf16.mxu0 %v2163
    %4892 = vmatpush1.bf16.msra.mxu0 %v2162
    %4893 = vmatprep.subr.bf16.mxu0 %v2172
    %4894 = vmatpush1.bf16.msra.mxu0 %v2171
    %4895 = vmatprep.subr.bf16.mxu0 %v2181
    %4896 = vmatpush1.bf16.msra.mxu0 %v2180
    %4897 = vmatprep.subr.bf16.mxu0 0
    %4898 = vmatpush1.bf16.msra.mxu0 0
    %4899 = vmatprep.subr.bf16.mxu0 0
    %4900 = vmatpush1.bf16.msra.mxu0 0
    %4901 = vmatprep.subr.bf16.mxu0 0
    %4902 = vmatpush1.bf16.msra.mxu0 0
    %4903 = vmatprep.subr.bf16.mxu0 0
    %4904 = vmatpush1.bf16.msra.mxu0 0
    %4905 = vmatprep.subr.bf16.mxu0 0
    %4906 = vmatpush1.bf16.msra.mxu0 0
    %4907 = vmatprep.subr.bf16.mxu0 0
    %4908 = vmatpush1.bf16.msra.mxu0 0
    %4909 = vmatprep.subr.bf16.mxu0 0
    %4910 = vmatpush1.bf16.msra.mxu0 0
    %4911 = vmatprep.subr.bf16.mxu0 0
    %4912 = vmatpush1.bf16.msra.mxu0 0
    %4913 = vmatprep.mubr.bf16.mxu0 0
    %4914 = vmatmul.mubr.bf16.gmra.mrb[0].mxu0 %v4839
    %v4915 = vpop.f32.mrb[0].mxu0
    %v4916 = vadd.f32 %v4875, %v4915
    %v4917 = vpop.f32.mrb[0].mxu0
    %v4918 = vadd.f32 %v4877, %v4917
    %v4919 = vpop.f32.mrb[0].mxu0
    %v4920 = vpop.f32.mrb[0].mxu0
    %4921 = vdwg.mxu0
    %4922 = vmatprep.subr.bf16.mxu0 %v1976
    %4923 = vmatpush1.bf16.msra.mxu0 %v1975
    %4924 = vmatprep.subr.bf16.mxu0 %v1985
    %4925 = vmatpush1.bf16.msra.mxu0 %v1984
    %4926 = vmatprep.subr.bf16.mxu0 %v1994
    %4927 = vmatpush1.bf16.msra.mxu0 %v1993
    %4928 = vmatprep.subr.bf16.mxu0 %v2003
    %4929 = vmatpush1.bf16.msra.mxu0 %v2002
    %4930 = vmatprep.subr.bf16.mxu0 %v2012
    %4931 = vmatpush1.bf16.msra.mxu0 %v2011
    %4932 = vmatprep.subr.bf16.mxu0 %v2021
    %4933 = vmatpush1.bf16.msra.mxu0 %v2020
    %4934 = vmatprep.subr.bf16.mxu0 %v2030
    %4935 = vmatpush1.bf16.msra.mxu0 %v2029
    %4936 = vmatprep.subr.bf16.mxu0 %v2039
    %4937 = vmatpush1.bf16.msra.mxu0 %v2038
    %4938 = vmatprep.subr.bf16.mxu0 %v2048
    %4939 = vmatpush1.bf16.msra.mxu0 %v2047
    %4940 = vmatprep.subr.bf16.mxu0 %v2057
    %4941 = vmatpush1.bf16.msra.mxu0 %v2056
    %4942 = vmatprep.subr.bf16.mxu0 %v2066
    %4943 = vmatpush1.bf16.msra.mxu0 %v2065
    %4944 = vmatprep.subr.bf16.mxu0 %v2075
    %4945 = vmatpush1.bf16.msra.mxu0 %v2074
    %4946 = vmatprep.subr.bf16.mxu0 %v2084
    %4947 = vmatpush1.bf16.msra.mxu0 %v2083
    %4948 = vmatprep.subr.bf16.mxu0 %v2093
    %4949 = vmatpush1.bf16.msra.mxu0 %v2092
    %4950 = vmatprep.subr.bf16.mxu0 %v2102
    %4951 = vmatpush1.bf16.msra.mxu0 %v2101
    %4952 = vmatprep.subr.bf16.mxu0 %v2111
    %4953 = vmatpush1.bf16.msra.mxu0 %v2110
    %4954 = vmatprep.mubr.bf16.mxu0 %v4838
    %4955 = vmatmul.mubr.bf16.gmra.mrb[0].mxu0 %v4837
    %v4956 = vpop.f32.mrb[0].mxu0
    %v4957 = vadd.f32 0.0, %v4956
    %v4958 = vpop.f32.mrb[0].mxu0
    %v4959 = vadd.f32 0.0, %v4958
    %v4960 = vpop.f32.mrb[0].mxu0
    %v4961 = vpop.f32.mrb[0].mxu0
    %4962 = vdwg.mxu0
    %4963 = vmatprep.subr.bf16.mxu0 %v2120
    %4964 = vmatpush1.bf16.msra.mxu0 %v2119
    %4965 = vmatprep.subr.bf16.mxu0 %v2129
    %4966 = vmatpush1.bf16.msra.mxu0 %v2128
    %4967 = vmatprep.subr.bf16.mxu0 %v2138
    %4968 = vmatpush1.bf16.msra.mxu0 %v2137
    %4969 = vmatprep.subr.bf16.mxu0 %v2147
    %4970 = vmatpush1.bf16.msra.mxu0 %v2146
    %4971 = vmatprep.subr.bf16.mxu0 %v2156
    %4972 = vmatpush1.bf16.msra.mxu0 %v2155
    %4973 = vmatprep.subr.bf16.mxu0 %v2165
    %4974 = vmatpush1.bf16.msra.mxu0 %v2164
    %4975 = vmatprep.subr.bf16.mxu0 %v2174
    %4976 = vmatpush1.bf16.msra.mxu0 %v2173
    %4977 = vmatprep.subr.bf16.mxu0 %v2183
    %4978 = vmatpush1.bf16.msra.mxu0 %v2182
    %4979 = vmatprep.subr.bf16.mxu0 0
    %4980 = vmatpush1.bf16.msra.mxu0 0
    %4981 = vmatprep.subr.bf16.mxu0 0
    %4982 = vmatpush1.bf16.msra.mxu0 0
    %4983 = vmatprep.subr.bf16.mxu0 0
    %4984 = vmatpush1.bf16.msra.mxu0 0
    %4985 = vmatprep.subr.bf16.mxu0 0
    %4986 = vmatpush1.bf16.msra.mxu0 0
    %4987 = vmatprep.subr.bf16.mxu0 0
    %4988 = vmatpush1.bf16.msra.mxu0 0
    %4989 = vmatprep.subr.bf16.mxu0 0
    %4990 = vmatpush1.bf16.msra.mxu0 0
    %4991 = vmatprep.subr.bf16.mxu0 0
    %4992 = vmatpush1.bf16.msra.mxu0 0
    %4993 = vmatprep.subr.bf16.mxu0 0
    %4994 = vmatpush1.bf16.msra.mxu0 0
    %4995 = vmatprep.mubr.bf16.mxu0 0
    %4996 = vmatmul.mubr.bf16.gmra.mrb[0].mxu0 %v4839
    %v4997 = vpop.f32.mrb[0].mxu0
    %v4998 = vadd.f32 %v4957, %v4997
    %v4999 = vpop.f32.mrb[0].mxu0
    %v5000 = vadd.f32 %v4959, %v4999
    %v5001 = vpop.f32.mrb[0].mxu0
    %v5002 = vpop.f32.mrb[0].mxu0
    %5003 = vdwg.mxu0
    %5004 = vmatprep.subr.bf16.mxu0 %v1978
    %5005 = vmatpush1.bf16.msra.mxu0 %v1977
    %5006 = vmatprep.subr.bf16.mxu0 %v1987
    %5007 = vmatpush1.bf16.msra.mxu0 %v1986
    %5008 = vmatprep.subr.bf16.mxu0 %v1996
    %5009 = vmatpush1.bf16.msra.mxu0 %v1995
    %5010 = vmatprep.subr.bf16.mxu0 %v2005
    %5011 = vmatpush1.bf16.msra.mxu0 %v2004
    %5012 = vmatprep.subr.bf16.mxu0 %v2014
    %5013 = vmatpush1.bf16.msra.mxu0 %v2013
    %5014 = vmatprep.subr.bf16.mxu0 %v2023
    %5015 = vmatpush1.bf16.msra.mxu0 %v2022
    %5016 = vmatprep.subr.bf16.mxu0 %v2032
    %5017 = vmatpush1.bf16.msra.mxu0 %v2031
    %5018 = vmatprep.subr.bf16.mxu0 %v2041
    %5019 = vmatpush1.bf16.msra.mxu0 %v2040
    %5020 = vmatprep.subr.bf16.mxu0 %v2050
    %5021 = vmatpush1.bf16.msra.mxu0 %v2049
    %5022 = vmatprep.subr.bf16.mxu0 %v2059
    %5023 = vmatpush1.bf16.msra.mxu0 %v2058
    %5024 = vmatprep.subr.bf16.mxu0 %v2068
    %5025 = vmatpush1.bf16.msra.mxu0 %v2067
    %5026 = vmatprep.subr.bf16.mxu0 %v2077
    %5027 = vmatpush1.bf16.msra.mxu0 %v2076
    %5028 = vmatprep.subr.bf16.mxu0 %v2086
    %5029 = vmatpush1.bf16.msra.mxu0 %v2085
    %5030 = vmatprep.subr.bf16.mxu0 %v2095
    %5031 = vmatpush1.bf16.msra.mxu0 %v2094
    %5032 = vmatprep.subr.bf16.mxu0 %v2104
    %5033 = vmatpush1.bf16.msra.mxu0 %v2103
    %5034 = vmatprep.subr.bf16.mxu0 %v2113
    %5035 = vmatpush1.bf16.msra.mxu0 %v2112
    %5036 = vmatprep.mubr.bf16.mxu0 %v4838
    %5037 = vmatmul.mubr.bf16.gmra.mrb[0].mxu0 %v4837
    %v5038 = vpop.f32.mrb[0].mxu0
    %v5039 = vadd.f32 0.0, %v5038
    %v5040 = vpop.f32.mrb[0].mxu0
    %v5041 = vadd.f32 0.0, %v5040
    %v5042 = vpop.f32.mrb[0].mxu0
    %v5043 = vpop.f32.mrb[0].mxu0
    %5044 = vdwg.mxu0
    %5045 = vmatprep.subr.bf16.mxu0 %v2122
    %5046 = vmatpush1.bf16.msra.mxu0 %v2121
    %5047 = vmatprep.subr.bf16.mxu0 %v2131
    %5048 = vmatpush1.bf16.msra.mxu0 %v2130
    %5049 = vmatprep.subr.bf16.mxu0 %v2140
    %5050 = vmatpush1.bf16.msra.mxu0 %v2139
    %5051 = vmatprep.subr.bf16.mxu0 %v2149
    %5052 = vmatpush1.bf16.msra.mxu0 %v2148
    %5053 = vmatprep.subr.bf16.mxu0 %v2158
    %5054 = vmatpush1.bf16.msra.mxu0 %v2157
    %5055 = vmatprep.subr.bf16.mxu0 %v2167
    %5056 = vmatpush1.bf16.msra.mxu0 %v2166
    %5057 = vmatprep.subr.bf16.mxu0 %v2176
    %5058 = vmatpush1.bf16.msra.mxu0 %v2175
    %5059 = vmatprep.subr.bf16.mxu0 %v2185
    %5060 = vmatpush1.bf16.msra.mxu0 %v2184
    %5061 = vmatprep.subr.bf16.mxu0 0
    %5062 = vmatpush1.bf16.msra.mxu0 0
    %5063 = vmatprep.subr.bf16.mxu0 0
    %5064 = vmatpush1.bf16.msra.mxu0 0
    %5065 = vmatprep.subr.bf16.mxu0 0
    %5066 = vmatpush1.bf16.msra.mxu0 0
    %5067 = vmatprep.subr.bf16.mxu0 0
    %5068 = vmatpush1.bf16.msra.mxu0 0
    %5069 = vmatprep.subr.bf16.mxu0 0
    %5070 = vmatpush1.bf16.msra.mxu0 0
    %5071 = vmatprep.subr.bf16.mxu0 0
    %5072 = vmatpush1.bf16.msra.mxu0 0
    %5073 = vmatprep.subr.bf16.mxu0 0
    %5074 = vmatpush1.bf16.msra.mxu0 0
    %5075 = vmatprep.subr.bf16.mxu0 0
    %5076 = vmatpush1.bf16.msra.mxu0 0
    %5077 = vmatprep.mubr.bf16.mxu0 0
    %5078 = vmatmul.mubr.bf16.gmra.mrb[0].mxu0 %v4839
    %v5079 = vpop.f32.mrb[0].mxu0
    %v5080 = vadd.f32 %v5039, %v5079
    %v5081 = vpop.f32.mrb[0].mxu0
    %v5082 = vadd.f32 %v5041, %v5081
    %v5083 = vpop.f32.mrb[0].mxu0
    %v5084 = vpop.f32.mrb[0].mxu0
    %5085 = vdwg.mxu0
    %5086 = vmatprep.subr.bf16.mxu0 %v1980
    %5087 = vmatpush1.bf16.msra.mxu0 %v1979
    %5088 = vmatprep.subr.bf16.mxu0 %v1989
    %5089 = vmatpush1.bf16.msra.mxu0 %v1988
    %5090 = vmatprep.subr.bf16.mxu0 %v1998
    %5091 = vmatpush1.bf16.msra.mxu0 %v1997
    %5092 = vmatprep.subr.bf16.mxu0 %v2007
    %5093 = vmatpush1.bf16.msra.mxu0 %v2006
    %5094 = vmatprep.subr.bf16.mxu0 %v2016
    %5095 = vmatpush1.bf16.msra.mxu0 %v2015
    %5096 = vmatprep.subr.bf16.mxu0 %v2025
    %5097 = vmatpush1.bf16.msra.mxu0 %v2024
    %5098 = vmatprep.subr.bf16.mxu0 %v2034
    %5099 = vmatpush1.bf16.msra.mxu0 %v2033
    %5100 = vmatprep.subr.bf16.mxu0 %v2043
    %5101 = vmatpush1.bf16.msra.mxu0 %v2042
    %5102 = vmatprep.subr.bf16.mxu0 %v2052
    %5103 = vmatpush1.bf16.msra.mxu0 %v2051
    %5104 = vmatprep.subr.bf16.mxu0 %v2061
    %5105 = vmatpush1.bf16.msra.mxu0 %v2060
    %5106 = vmatprep.subr.bf16.mxu0 %v2070
    %5107 = vmatpush1.bf16.msra.mxu0 %v2069
    %5108 = vmatprep.subr.bf16.mxu0 %v2079
    %5109 = vmatpush1.bf16.msra.mxu0 %v2078
    %5110 = vmatprep.subr.bf16.mxu0 %v2088
    %5111 = vmatpush1.bf16.msra.mxu0 %v2087
    %5112 = vmatprep.subr.bf16.mxu0 %v2097
    %5113 = vmatpush1.bf16.msra.mxu0 %v2096
    %5114 = vmatprep.subr.bf16.mxu0 %v2106
    %5115 = vmatpush1.bf16.msra.mxu0 %v2105
    %5116 = vmatprep.subr.bf16.mxu0 %v2115
    %5117 = vmatpush1.bf16.msra.mxu0 %v2114
    %5118 = vmatprep.mubr.bf16.mxu0 %v4838
    %5119 = vmatmul.mubr.bf16.gmra.mrb[0].mxu0 %v4837
    %v5120 = vpop.f32.mrb[0].mxu0
    %v5121 = vadd.f32 0.0, %v5120
    %v5122 = vpop.f32.mrb[0].mxu0
    %v5123 = vadd.f32 0.0, %v5122
    %v5124 = vpop.f32.mrb[0].mxu0
    %v5125 = vpop.f32.mrb[0].mxu0
    %5126 = vdwg.mxu0
    %5127 = vmatprep.subr.bf16.mxu0 %v2124
    %5128 = vmatpush1.bf16.msra.mxu0 %v2123
    %5129 = vmatprep.subr.bf16.mxu0 %v2133
    %5130 = vmatpush1.bf16.msra.mxu0 %v2132
    %5131 = vmatprep.subr.bf16.mxu0 %v2142
    %5132 = vmatpush1.bf16.msra.mxu0 %v2141
    %5133 = vmatprep.subr.bf16.mxu0 %v2151
    %5134 = vmatpush1.bf16.msra.mxu0 %v2150
    %5135 = vmatprep.subr.bf16.mxu0 %v2160
    %5136 = vmatpush1.bf16.msra.mxu0 %v2159
    %5137 = vmatprep.subr.bf16.mxu0 %v2169
    %5138 = vmatpush1.bf16.msra.mxu0 %v2168
    %5139 = vmatprep.subr.bf16.mxu0 %v2178
    %5140 = vmatpush1.bf16.msra.mxu0 %v2177
    %5141 = vmatprep.subr.bf16.mxu0 %v2187
    %5142 = vmatpush1.bf16.msra.mxu0 %v2186
    %5143 = vmatprep.subr.bf16.mxu0 0
    %5144 = vmatpush1.bf16.msra.mxu0 0
    %5145 = vmatprep.subr.bf16.mxu0 0
    %5146 = vmatpush1.bf16.msra.mxu0 0
    %5147 = vmatprep.subr.bf16.mxu0 0
    %5148 = vmatpush1.bf16.msra.mxu0 0
    %5149 = vmatprep.subr.bf16.mxu0 0
    %5150 = vmatpush1.bf16.msra.mxu0 0
    %5151 = vmatprep.subr.bf16.mxu0 0
    %5152 = vmatpush1.bf16.msra.mxu0 0
    %5153 = vmatprep.subr.bf16.mxu0 0
    %5154 = vmatpush1.bf16.msra.mxu0 0
    %5155 = vmatprep.subr.bf16.mxu0 0
    %5156 = vmatpush1.bf16.msra.mxu0 0
    %5157 = vmatprep.subr.bf16.mxu0 0
    %5158 = vmatpush1.bf16.msra.mxu0 0
    %5159 = vmatprep.mubr.bf16.mxu0 0
    %5160 = vmatmul.mubr.bf16.gmra.mrb[0].mxu0 %v4839
    %v5161 = vpop.f32.mrb[0].mxu0
    %v5162 = vadd.f32 %v5121, %v5161
    %v5163 = vpop.f32.mrb[0].mxu0
    %v5164 = vadd.f32 %v5123, %v5163
    %v5165 = vpop.f32.mrb[0].mxu0
    %v5166 = vpop.f32.mrb[0].mxu0
    %5167 = vdwg.mxu0
    %5168 = vmatprep.subr.bf16.mxu0 0
    %5169 = vmatpush1.bf16.msra.mxu0 %v1981
    %5170 = vmatprep.subr.bf16.mxu0 0
    %5171 = vmatpush1.bf16.msra.mxu0 %v1990
    %5172 = vmatprep.subr.bf16.mxu0 0
    %5173 = vmatpush1.bf16.msra.mxu0 %v1999
    %5174 = vmatprep.subr.bf16.mxu0 0
    %5175 = vmatpush1.bf16.msra.mxu0 %v2008
    %5176 = vmatprep.subr.bf16.mxu0 0
    %5177 = vmatpush1.bf16.msra.mxu0 %v2017
    %5178 = vmatprep.subr.bf16.mxu0 0
    %5179 = vmatpush1.bf16.msra.mxu0 %v2026
    %5180 = vmatprep.subr.bf16.mxu0 0
    %5181 = vmatpush1.bf16.msra.mxu0 %v2035
    %5182 = vmatprep.subr.bf16.mxu0 0
    %5183 = vmatpush1.bf16.msra.mxu0 %v2044
    %5184 = vmatprep.subr.bf16.mxu0 0
    %5185 = vmatpush1.bf16.msra.mxu0 %v2053
    %5186 = vmatprep.subr.bf16.mxu0 0
    %5187 = vmatpush1.bf16.msra.mxu0 %v2062
    %5188 = vmatprep.subr.bf16.mxu0 0
    %5189 = vmatpush1.bf16.msra.mxu0 %v2071
    %5190 = vmatprep.subr.bf16.mxu0 0
    %5191 = vmatpush1.bf16.msra.mxu0 %v2080
    %5192 = vmatprep.subr.bf16.mxu0 0
    %5193 = vmatpush1.bf16.msra.mxu0 %v2089
    %5194 = vmatprep.subr.bf16.mxu0 0
    %5195 = vmatpush1.bf16.msra.mxu0 %v2098
    %5196 = vmatprep.subr.bf16.mxu0 0
    %5197 = vmatpush1.bf16.msra.mxu0 %v2107
    %5198 = vmatprep.subr.bf16.mxu0 0
    %5199 = vmatpush1.bf16.msra.mxu0 %v2116
    %5200 = vmatprep.mubr.bf16.mxu0 %v4838
    %5201 = vmatmul.mubr.bf16.gmra.mrb[0].mxu0 %v4837
    %v5202 = vpop.f32.mrb[0].mxu0
    %v5203 = vadd.f32 0.0, %v5202
    %v5204 = vpop.f32.mrb[0].mxu0
    %v5205 = vpop.f32.mrb[0].mxu0
    %v5206 = vpop.f32.mrb[0].mxu0
    %5207 = vdwg.mxu0
    %5208 = vmatprep.subr.bf16.mxu0 0
    %5209 = vmatpush1.bf16.msra.mxu0 %v2125
    %5210 = vmatprep.subr.bf16.mxu0 0
    %5211 = vmatpush1.bf16.msra.mxu0 %v2134
    %5212 = vmatprep.subr.bf16.mxu0 0
    %5213 = vmatpush1.bf16.msra.mxu0 %v2143
    %5214 = vmatprep.subr.bf16.mxu0 0
    %5215 = vmatpush1.bf16.msra.mxu0 %v2152
    %5216 = vmatprep.subr.bf16.mxu0 0
    %5217 = vmatpush1.bf16.msra.mxu0 %v2161
    %5218 = vmatprep.subr.bf16.mxu0 0
    %5219 = vmatpush1.bf16.msra.mxu0 %v2170
    %5220 = vmatprep.subr.bf16.mxu0 0
    %5221 = vmatpush1.bf16.msra.mxu0 %v2179
    %5222 = vmatprep.subr.bf16.mxu0 0
    %5223 = vmatpush1.bf16.msra.mxu0 %v2188
    %5224 = vmatprep.subr.bf16.mxu0 0
    %5225 = vmatpush1.bf16.msra.mxu0 0
    %5226 = vmatprep.subr.bf16.mxu0 0
    %5227 = vmatpush1.bf16.msra.mxu0 0
    %5228 = vmatprep.subr.bf16.mxu0 0
    %5229 = vmatpush1.bf16.msra.mxu0 0
    %5230 = vmatprep.subr.bf16.mxu0 0
    %5231 = vmatpush1.bf16.msra.mxu0 0
    %5232 = vmatprep.subr.bf16.mxu0 0
    %5233 = vmatpush1.bf16.msra.mxu0 0
    %5234 = vmatprep.subr.bf16.mxu0 0
    %5235 = vmatpush1.bf16.msra.mxu0 0
    %5236 = vmatprep.subr.bf16.mxu0 0
    %5237 = vmatpush1.bf16.msra.mxu0 0
    %5238 = vmatprep.subr.bf16.mxu0 0
    %5239 = vmatpush1.bf16.msra.mxu0 0
    %5240 = vmatprep.mubr.bf16.mxu0 0
    %5241 = vmatmul.mubr.bf16.gmra.mrb[0].mxu0 %v4839
    %v5242 = vpop.f32.mrb[0].mxu0
    %v5243 = vadd.f32 %v5203, %v5242
    %v5244 = vpop.f32.mrb[0].mxu0
    %v5245 = vpop.f32.mrb[0].mxu0
    %v5246 = vpop.f32.mrb[0].mxu0
    %5247 = vdwg.mxu0
    %v5248 = vadd.f32 %v4828, %v4916
    %v5249 = vadd.f32 %v4829, %v4918
    %v5250 = vadd.f32 %v4830, %v4998
    %v5251 = vxor.u32 %v5248, 2147483648
    %v5252 = vxor.u32 %v5249, 2147483648
    %v5253 = vxor.u32 %v5250, 2147483648
    %v5254 = vmul.f32 %v5251, 1.442695
    %v5255 = vpow.pop %v5254
    %v5256 = vmul.f32 %v5252, 1.442695
    %v5257 = vpow.pop %v5256
    %v5258 = vmul.f32 %v5253, 1.442695
    %v5259 = vpow.pop %v5258
    %v5260 = vadd.f32 %v5255, 1.0
    %v5261 = vadd.f32 %v5257, 1.0
    %v5262 = vadd.f32 %v5259, 1.0
    %v5263 = vrcp.pop %v5260
    %v5264 = vmul.f32 1.0, %v5263
    %v5265 = vrcp.pop %v5261
    %v5266 = vmul.f32 1.0, %v5265
    %v5267 = vrcp.pop %v5262
    %v5268 = vmul.f32 1.0, %v5267
    %v5269 = vadd.f32 %v4831, %v5000
    %v5270 = vadd.f32 %v4832, %v5080
    %v5271 = vadd.f32 %v4833, %v5082
    %v5272 = vxor.u32 %v5269, 2147483648
    %v5273 = vxor.u32 %v5270, 2147483648
    %v5274 = vxor.u32 %v5271, 2147483648
    %v5275 = vmul.f32 %v5272, 1.442695
    %v5276 = vpow.pop %v5275
    %v5277 = vmul.f32 %v5273, 1.442695
    %v5278 = vpow.pop %v5277
    %v5279 = vmul.f32 %v5274, 1.442695
    %v5280 = vpow.pop %v5279
    %v5281 = vadd.f32 %v5276, 1.0
    %v5282 = vadd.f32 %v5278, 1.0
    %v5283 = vadd.f32 %v5280, 1.0
    %v5284 = vrcp.pop %v5281
    %v5285 = vmul.f32 1.0, %v5284
    %v5286 = vrcp.pop %v5282
    %v5287 = vmul.f32 1.0, %v5286
    %v5288 = vrcp.pop %v5283
    %v5289 = vmul.f32 1.0, %v5288
    %v5290 = vadd.f32 %v5162, %v313
    %v5291 = vadd.f32 %v5164, %v317
    %v5292 = vadd.f32 %v5243, %v321
    %v5293 = vmul.f32 %v5264, %v5290
    %v5294 = vmul.f32 %v5266, %v5291
    %v5295 = vmul.f32 %v5268, %v5292
    %v5296 = vadd.f32 %v4834, %v5293
    %v5297 = vadd.f32 %v4835, %v5294
    %v5298 = vadd.f32 %v4836, %v5295
    %v5299 = vtanh.pop %v5296
    %v5300 = vtanh.pop %v5297
    %v5301 = vtanh.pop %v5298
    %v5302 = vsub.f32 %v4821, %v5299
    %v5303 = vsub.f32 %v4822, %v5300
    %v5304 = vsub.f32 %v4823, %v5301
    %v5305 = vmul.f32 %v5285, %v5302
    %v5306 = vmul.f32 %v5287, %v5303
    %v5307 = vmul.f32 %v5289, %v5304
    %v5308 = vadd.f32 %v5299, %v5305
    %v5309 = vadd.f32 %v5300, %v5306
    %v5310 = vadd.f32 %v5301, %v5307
    %v5311 = vmax.f32 %v4824, %v5308
    %v5312 = vmax.f32 %v4825, %v5309
    %v5313 = vmax.f32 %v4826, %v5310
    %s5314 = scalar_lea.vmem [#allocation4], 432
    %v5315 = vld [vmem:[%s5314] sm:$0xff]
    %v5316 = vld [vmem:[%s5314 + $0x8] sm:$0xff]
    %v5317 = vld [vmem:[%s5314 + $0x10] sm:$0xff]
    %v5318 = vld [vmem:[%s5314 + $0x18] sm:$0xff]
    %v5319 = vld [vmem:[%s5314 + $0x20] sm:$0xff]
    %v5320 = vld [vmem:[%s5314 + $0x28] sm:$0xff]
    %v5321 = vld [vmem:[%s5314 + $0x30] sm:$0xff]
    %v5322 = vld [vmem:[%s5314 + $0x38] sm:$0xff]
    %v5323 = vld [vmem:[%s5314 + $0x40] sm:$0xff]
    %v5324 = vpack.c.bf16 %v5308, %v5308
    %v5325 = vpack.c.bf16 %v5309, %v5309
    %v5326 = vpack.c.bf16 %v5310, %v5310
    %5327 = vmatprep.subr.bf16.mxu0 %v1974
    %5328 = vmatpush1.bf16.msra.mxu0 %v1973
    %5329 = vmatprep.subr.bf16.mxu0 %v1983
    %5330 = vmatpush1.bf16.msra.mxu0 %v1982
    %5331 = vmatprep.subr.bf16.mxu0 %v1992
    %5332 = vmatpush1.bf16.msra.mxu0 %v1991
    %5333 = vmatprep.subr.bf16.mxu0 %v2001
    %5334 = vmatpush1.bf16.msra.mxu0 %v2000
    %5335 = vmatprep.subr.bf16.mxu0 %v2010
    %5336 = vmatpush1.bf16.msra.mxu0 %v2009
    %5337 = vmatprep.subr.bf16.mxu0 %v2019
    %5338 = vmatpush1.bf16.msra.mxu0 %v2018
    %5339 = vmatprep.subr.bf16.mxu0 %v2028
    %5340 = vmatpush1.bf16.msra.mxu0 %v2027
    %5341 = vmatprep.subr.bf16.mxu0 %v2037
    %5342 = vmatpush1.bf16.msra.mxu0 %v2036
    %5343 = vmatprep.subr.bf16.mxu0 %v2046
    %5344 = vmatpush1.bf16.msra.mxu0 %v2045
    %5345 = vmatprep.subr.bf16.mxu0 %v2055
    %5346 = vmatpush1.bf16.msra.mxu0 %v2054
    %5347 = vmatprep.subr.bf16.mxu0 %v2064
    %5348 = vmatpush1.bf16.msra.mxu0 %v2063
    %5349 = vmatprep.subr.bf16.mxu0 %v2073
    %5350 = vmatpush1.bf16.msra.mxu0 %v2072
    %5351 = vmatprep.subr.bf16.mxu0 %v2082
    %5352 = vmatpush1.bf16.msra.mxu0 %v2081
    %5353 = vmatprep.subr.bf16.mxu0 %v2091
    %5354 = vmatpush1.bf16.msra.mxu0 %v2090
    %5355 = vmatprep.subr.bf16.mxu0 %v2100
    %5356 = vmatpush1.bf16.msra.mxu0 %v2099
    %5357 = vmatprep.subr.bf16.mxu0 %v2109
    %5358 = vmatpush1.bf16.msra.mxu0 %v2108
    %5359 = vmatprep.mubr.bf16.mxu0 %v5325
    %5360 = vmatmul.mubr.bf16.gmra.mrb[0].mxu0 %v5324
    %v5361 = vpop.f32.mrb[0].mxu0
    %v5362 = vadd.f32 0.0, %v5361
    %v5363 = vpop.f32.mrb[0].mxu0
    %v5364 = vadd.f32 0.0, %v5363
    %v5365 = vpop.f32.mrb[0].mxu0
    %v5366 = vpop.f32.mrb[0].mxu0
    %5367 = vdwg.mxu0
    %5368 = vmatprep.subr.bf16.mxu0 %v2118
    %5369 = vmatpush1.bf16.msra.mxu0 %v2117
    %5370 = vmatprep.subr.bf16.mxu0 %v2127
    %5371 = vmatpush1.bf16.msra.mxu0 %v2126
    %5372 = vmatprep.subr.bf16.mxu0 %v2136
    %5373 = vmatpush1.bf16.msra.mxu0 %v2135
    %5374 = vmatprep.subr.bf16.mxu0 %v2145
    %5375 = vmatpush1.bf16.msra.mxu0 %v2144
    %5376 = vmatprep.subr.bf16.mxu0 %v2154
    %5377 = vmatpush1.bf16.msra.mxu0 %v2153
    %5378 = vmatprep.subr.bf16.mxu0 %v2163
    %5379 = vmatpush1.bf16.msra.mxu0 %v2162
    %5380 = vmatprep.subr.bf16.mxu0 %v2172
    %5381 = vmatpush1.bf16.msra.mxu0 %v2171
    %5382 = vmatprep.subr.bf16.mxu0 %v2181
    %5383 = vmatpush1.bf16.msra.mxu0 %v2180
    %5384 = vmatprep.subr.bf16.mxu0 0
    %5385 = vmatpush1.bf16.msra.mxu0 0
    %5386 = vmatprep.subr.bf16.mxu0 0
    %5387 = vmatpush1.bf16.msra.mxu0 0
    %5388 = vmatprep.subr.bf16.mxu0 0
    %5389 = vmatpush1.bf16.msra.mxu0 0
    %5390 = vmatprep.subr.bf16.mxu0 0
    %5391 = vmatpush1.bf16.msra.mxu0 0
    %5392 = vmatprep.subr.bf16.mxu0 0
    %5393 = vmatpush1.bf16.msra.mxu0 0
    %5394 = vmatprep.subr.bf16.mxu0 0
    %5395 = vmatpush1.bf16.msra.mxu0 0
    %5396 = vmatprep.subr.bf16.mxu0 0
    %5397 = vmatpush1.bf16.msra.mxu0 0
    %5398 = vmatprep.subr.bf16.mxu0 0
    %5399 = vmatpush1.bf16.msra.mxu0 0
    %5400 = vmatprep.mubr.bf16.mxu0 0
    %5401 = vmatmul.mubr.bf16.gmra.mrb[0].mxu0 %v5326
    %v5402 = vpop.f32.mrb[0].mxu0
    %v5403 = vadd.f32 %v5362, %v5402
    %v5404 = vpop.f32.mrb[0].mxu0
    %v5405 = vadd.f32 %v5364, %v5404
    %v5406 = vpop.f32.mrb[0].mxu0
    %v5407 = vpop.f32.mrb[0].mxu0
    %5408 = vdwg.mxu0
    %5409 = vmatprep.subr.bf16.mxu0 %v1976
    %5410 = vmatpush1.bf16.msra.mxu0 %v1975
    %5411 = vmatprep.subr.bf16.mxu0 %v1985
    %5412 = vmatpush1.bf16.msra.mxu0 %v1984
    %5413 = vmatprep.subr.bf16.mxu0 %v1994
    %5414 = vmatpush1.bf16.msra.mxu0 %v1993
    %5415 = vmatprep.subr.bf16.mxu0 %v2003
    %5416 = vmatpush1.bf16.msra.mxu0 %v2002
    %5417 = vmatprep.subr.bf16.mxu0 %v2012
    %5418 = vmatpush1.bf16.msra.mxu0 %v2011
    %5419 = vmatprep.subr.bf16.mxu0 %v2021
    %5420 = vmatpush1.bf16.msra.mxu0 %v2020
    %5421 = vmatprep.subr.bf16.mxu0 %v2030
    %5422 = vmatpush1.bf16.msra.mxu0 %v2029
    %5423 = vmatprep.subr.bf16.mxu0 %v2039
    %5424 = vmatpush1.bf16.msra.mxu0 %v2038
    %5425 = vmatprep.subr.bf16.mxu0 %v2048
    %5426 = vmatpush1.bf16.msra.mxu0 %v2047
    %5427 = vmatprep.subr.bf16.mxu0 %v2057
    %5428 = vmatpush1.bf16.msra.mxu0 %v2056
    %5429 = vmatprep.subr.bf16.mxu0 %v2066
    %5430 = vmatpush1.bf16.msra.mxu0 %v2065
    %5431 = vmatprep.subr.bf16.mxu0 %v2075
    %5432 = vmatpush1.bf16.msra.mxu0 %v2074
    %5433 = vmatprep.subr.bf16.mxu0 %v2084
    %5434 = vmatpush1.bf16.msra.mxu0 %v2083
    %5435 = vmatprep.subr.bf16.mxu0 %v2093
    %5436 = vmatpush1.bf16.msra.mxu0 %v2092
    %5437 = vmatprep.subr.bf16.mxu0 %v2102
    %5438 = vmatpush1.bf16.msra.mxu0 %v2101
    %5439 = vmatprep.subr.bf16.mxu0 %v2111
    %5440 = vmatpush1.bf16.msra.mxu0 %v2110
    %5441 = vmatprep.mubr.bf16.mxu0 %v5325
    %5442 = vmatmul.mubr.bf16.gmra.mrb[0].mxu0 %v5324
    %v5443 = vpop.f32.mrb[0].mxu0
    %v5444 = vadd.f32 0.0, %v5443
    %v5445 = vpop.f32.mrb[0].mxu0
    %v5446 = vadd.f32 0.0, %v5445
    %v5447 = vpop.f32.mrb[0].mxu0
    %v5448 = vpop.f32.mrb[0].mxu0
    %5449 = vdwg.mxu0
    %5450 = vmatprep.subr.bf16.mxu0 %v2120
    %5451 = vmatpush1.bf16.msra.mxu0 %v2119
    %5452 = vmatprep.subr.bf16.mxu0 %v2129
    %5453 = vmatpush1.bf16.msra.mxu0 %v2128
    %5454 = vmatprep.subr.bf16.mxu0 %v2138
    %5455 = vmatpush1.bf16.msra.mxu0 %v2137
    %5456 = vmatprep.subr.bf16.mxu0 %v2147
    %5457 = vmatpush1.bf16.msra.mxu0 %v2146
    %5458 = vmatprep.subr.bf16.mxu0 %v2156
    %5459 = vmatpush1.bf16.msra.mxu0 %v2155
    %5460 = vmatprep.subr.bf16.mxu0 %v2165
    %5461 = vmatpush1.bf16.msra.mxu0 %v2164
    %5462 = vmatprep.subr.bf16.mxu0 %v2174
    %5463 = vmatpush1.bf16.msra.mxu0 %v2173
    %5464 = vmatprep.subr.bf16.mxu0 %v2183
    %5465 = vmatpush1.bf16.msra.mxu0 %v2182
    %5466 = vmatprep.subr.bf16.mxu0 0
    %5467 = vmatpush1.bf16.msra.mxu0 0
    %5468 = vmatprep.subr.bf16.mxu0 0
    %5469 = vmatpush1.bf16.msra.mxu0 0
    %5470 = vmatprep.subr.bf16.mxu0 0
    %5471 = vmatpush1.bf16.msra.mxu0 0
    %5472 = vmatprep.subr.bf16.mxu0 0
    %5473 = vmatpush1.bf16.msra.mxu0 0
    %5474 = vmatprep.subr.bf16.mxu0 0
    %5475 = vmatpush1.bf16.msra.mxu0 0
    %5476 = vmatprep.subr.bf16.mxu0 0
    %5477 = vmatpush1.bf16.msra.mxu0 0
    %5478 = vmatprep.subr.bf16.mxu0 0
    %5479 = vmatpush1.bf16.msra.mxu0 0
    %5480 = vmatprep.subr.bf16.mxu0 0
    %5481 = vmatpush1.bf16.msra.mxu0 0
    %5482 = vmatprep.mubr.bf16.mxu0 0
    %5483 = vmatmul.mubr.bf16.gmra.mrb[0].mxu0 %v5326
    %v5484 = vpop.f32.mrb[0].mxu0
    %v5485 = vadd.f32 %v5444, %v5484
    %v5486 = vpop.f32.mrb[0].mxu0
    %v5487 = vadd.f32 %v5446, %v5486
    %v5488 = vpop.f32.mrb[0].mxu0
    %v5489 = vpop.f32.mrb[0].mxu0
    %5490 = vdwg.mxu0
    %5491 = vmatprep.subr.bf16.mxu0 %v1978
    %5492 = vmatpush1.bf16.msra.mxu0 %v1977
    %5493 = vmatprep.subr.bf16.mxu0 %v1987
    %5494 = vmatpush1.bf16.msra.mxu0 %v1986
    %5495 = vmatprep.subr.bf16.mxu0 %v1996
    %5496 = vmatpush1.bf16.msra.mxu0 %v1995
    %5497 = vmatprep.subr.bf16.mxu0 %v2005
    %5498 = vmatpush1.bf16.msra.mxu0 %v2004
    %5499 = vmatprep.subr.bf16.mxu0 %v2014
    %5500 = vmatpush1.bf16.msra.mxu0 %v2013
    %5501 = vmatprep.subr.bf16.mxu0 %v2023
    %5502 = vmatpush1.bf16.msra.mxu0 %v2022
    %5503 = vmatprep.subr.bf16.mxu0 %v2032
    %5504 = vmatpush1.bf16.msra.mxu0 %v2031
    %5505 = vmatprep.subr.bf16.mxu0 %v2041
    %5506 = vmatpush1.bf16.msra.mxu0 %v2040
    %5507 = vmatprep.subr.bf16.mxu0 %v2050
    %5508 = vmatpush1.bf16.msra.mxu0 %v2049
    %5509 = vmatprep.subr.bf16.mxu0 %v2059
    %5510 = vmatpush1.bf16.msra.mxu0 %v2058
    %5511 = vmatprep.subr.bf16.mxu0 %v2068
    %5512 = vmatpush1.bf16.msra.mxu0 %v2067
    %5513 = vmatprep.subr.bf16.mxu0 %v2077
    %5514 = vmatpush1.bf16.msra.mxu0 %v2076
    %5515 = vmatprep.subr.bf16.mxu0 %v2086
    %5516 = vmatpush1.bf16.msra.mxu0 %v2085
    %5517 = vmatprep.subr.bf16.mxu0 %v2095
    %5518 = vmatpush1.bf16.msra.mxu0 %v2094
    %5519 = vmatprep.subr.bf16.mxu0 %v2104
    %5520 = vmatpush1.bf16.msra.mxu0 %v2103
    %5521 = vmatprep.subr.bf16.mxu0 %v2113
    %5522 = vmatpush1.bf16.msra.mxu0 %v2112
    %5523 = vmatprep.mubr.bf16.mxu0 %v5325
    %5524 = vmatmul.mubr.bf16.gmra.mrb[0].mxu0 %v5324
    %v5525 = vpop.f32.mrb[0].mxu0
    %v5526 = vadd.f32 0.0, %v5525
    %v5527 = vpop.f32.mrb[0].mxu0
    %v5528 = vadd.f32 0.0, %v5527
    %v5529 = vpop.f32.mrb[0].mxu0
    %v5530 = vpop.f32.mrb[0].mxu0
    %5531 = vdwg.mxu0
    %5532 = vmatprep.subr.bf16.mxu0 %v2122
    %5533 = vmatpush1.bf16.msra.mxu0 %v2121
    %5534 = vmatprep.subr.bf16.mxu0 %v2131
    %5535 = vmatpush1.bf16.msra.mxu0 %v2130
    %5536 = vmatprep.subr.bf16.mxu0 %v2140
    %5537 = vmatpush1.bf16.msra.mxu0 %v2139
    %5538 = vmatprep.subr.bf16.mxu0 %v2149
    %5539 = vmatpush1.bf16.msra.mxu0 %v2148
    %5540 = vmatprep.subr.bf16.mxu0 %v2158
    %5541 = vmatpush1.bf16.msra.mxu0 %v2157
    %5542 = vmatprep.subr.bf16.mxu0 %v2167
    %5543 = vmatpush1.bf16.msra.mxu0 %v2166
    %5544 = vmatprep.subr.bf16.mxu0 %v2176
    %5545 = vmatpush1.bf16.msra.mxu0 %v2175
    %5546 = vmatprep.subr.bf16.mxu0 %v2185
    %5547 = vmatpush1.bf16.msra.mxu0 %v2184
    %5548 = vmatprep.subr.bf16.mxu0 0
    %5549 = vmatpush1.bf16.msra.mxu0 0
    %5550 = vmatprep.subr.bf16.mxu0 0
    %5551 = vmatpush1.bf16.msra.mxu0 0
    %5552 = vmatprep.subr.bf16.mxu0 0
    %5553 = vmatpush1.bf16.msra.mxu0 0
    %5554 = vmatprep.subr.bf16.mxu0 0
    %5555 = vmatpush1.bf16.msra.mxu0 0
    %5556 = vmatprep.subr.bf16.mxu0 0
    %5557 = vmatpush1.bf16.msra.mxu0 0
    %5558 = vmatprep.subr.bf16.mxu0 0
    %5559 = vmatpush1.bf16.msra.mxu0 0
    %5560 = vmatprep.subr.bf16.mxu0 0
    %5561 = vmatpush1.bf16.msra.mxu0 0
    %5562 = vmatprep.subr.bf16.mxu0 0
    %5563 = vmatpush1.bf16.msra.mxu0 0
    %5564 = vmatprep.mubr.bf16.mxu0 0
    %5565 = vmatmul.mubr.bf16.gmra.mrb[0].mxu0 %v5326
    %v5566 = vpop.f32.mrb[0].mxu0
    %v5567 = vadd.f32 %v5526, %v5566
    %v5568 = vpop.f32.mrb[0].mxu0
    %v5569 = vadd.f32 %v5528, %v5568
    %v5570 = vpop.f32.mrb[0].mxu0
    %v5571 = vpop.f32.mrb[0].mxu0
    %5572 = vdwg.mxu0
    %5573 = vmatprep.subr.bf16.mxu0 %v1980
    %5574 = vmatpush1.bf16.msra.mxu0 %v1979
    %5575 = vmatprep.subr.bf16.mxu0 %v1989
    %5576 = vmatpush1.bf16.msra.mxu0 %v1988
    %5577 = vmatprep.subr.bf16.mxu0 %v1998
    %5578 = vmatpush1.bf16.msra.mxu0 %v1997
    %5579 = vmatprep.subr.bf16.mxu0 %v2007
    %5580 = vmatpush1.bf16.msra.mxu0 %v2006
    %5581 = vmatprep.subr.bf16.mxu0 %v2016
    %5582 = vmatpush1.bf16.msra.mxu0 %v2015
    %5583 = vmatprep.subr.bf16.mxu0 %v2025
    %5584 = vmatpush1.bf16.msra.mxu0 %v2024
    %5585 = vmatprep.subr.bf16.mxu0 %v2034
    %5586 = vmatpush1.bf16.msra.mxu0 %v2033
    %5587 = vmatprep.subr.bf16.mxu0 %v2043
    %5588 = vmatpush1.bf16.msra.mxu0 %v2042
    %5589 = vmatprep.subr.bf16.mxu0 %v2052
    %5590 = vmatpush1.bf16.msra.mxu0 %v2051
    %5591 = vmatprep.subr.bf16.mxu0 %v2061
    %5592 = vmatpush1.bf16.msra.mxu0 %v2060
    %5593 = vmatprep.subr.bf16.mxu0 %v2070
    %5594 = vmatpush1.bf16.msra.mxu0 %v2069
    %5595 = vmatprep.subr.bf16.mxu0 %v2079
    %5596 = vmatpush1.bf16.msra.mxu0 %v2078
    %5597 = vmatprep.subr.bf16.mxu0 %v2088
    %5598 = vmatpush1.bf16.msra.mxu0 %v2087
    %5599 = vmatprep.subr.bf16.mxu0 %v2097
    %5600 = vmatpush1.bf16.msra.mxu0 %v2096
    %5601 = vmatprep.subr.bf16.mxu0 %v2106
    %5602 = vmatpush1.bf16.msra.mxu0 %v2105
    %5603 = vmatprep.subr.bf16.mxu0 %v2115
    %5604 = vmatpush1.bf16.msra.mxu0 %v2114
    %5605 = vmatprep.mubr.bf16.mxu0 %v5325
    %5606 = vmatmul.mubr.bf16.gmra.mrb[0].mxu0 %v5324
    %v5607 = vpop.f32.mrb[0].mxu0
    %v5608 = vadd.f32 0.0, %v5607
    %v5609 = vpop.f32.mrb[0].mxu0
    %v5610 = vadd.f32 0.0, %v5609
    %v5611 = vpop.f32.mrb[0].mxu0
    %v5612 = vpop.f32.mrb[0].mxu0
    %5613 = vdwg.mxu0
    %5614 = vmatprep.subr.bf16.mxu0 %v2124
    %5615 = vmatpush1.bf16.msra.mxu0 %v2123
    %5616 = vmatprep.subr.bf16.mxu0 %v2133
    %5617 = vmatpush1.bf16.msra.mxu0 %v2132
    %5618 = vmatprep.subr.bf16.mxu0 %v2142
    %5619 = vmatpush1.bf16.msra.mxu0 %v2141
    %5620 = vmatprep.subr.bf16.mxu0 %v2151
    %5621 = vmatpush1.bf16.msra.mxu0 %v2150
    %5622 = vmatprep.subr.bf16.mxu0 %v2160
    %5623 = vmatpush1.bf16.msra.mxu0 %v2159
    %5624 = vmatprep.subr.bf16.mxu0 %v2169
    %5625 = vmatpush1.bf16.msra.mxu0 %v2168
    %5626 = vmatprep.subr.bf16.mxu0 %v2178
    %5627 = vmatpush1.bf16.msra.mxu0 %v2177
    %5628 = vmatprep.subr.bf16.mxu0 %v2187
    %5629 = vmatpush1.bf16.msra.mxu0 %v2186
    %5630 = vmatprep.subr.bf16.mxu0 0
    %5631 = vmatpush1.bf16.msra.mxu0 0
    %5632 = vmatprep.subr.bf16.mxu0 0
    %5633 = vmatpush1.bf16.msra.mxu0 0
    %5634 = vmatprep.subr.bf16.mxu0 0
    %5635 = vmatpush1.bf16.msra.mxu0 0
    %5636 = vmatprep.subr.bf16.mxu0 0
    %5637 = vmatpush1.bf16.msra.mxu0 0
    %5638 = vmatprep.subr.bf16.mxu0 0
    %5639 = vmatpush1.bf16.msra.mxu0 0
    %5640 = vmatprep.subr.bf16.mxu0 0
    %5641 = vmatpush1.bf16.msra.mxu0 0
    %5642 = vmatprep.subr.bf16.mxu0 0
    %5643 = vmatpush1.bf16.msra.mxu0 0
    %5644 = vmatprep.subr.bf16.mxu0 0
    %5645 = vmatpush1.bf16.msra.mxu0 0
    %5646 = vmatprep.mubr.bf16.mxu0 0
    %5647 = vmatmul.mubr.bf16.gmra.mrb[0].mxu0 %v5326
    %v5648 = vpop.f32.mrb[0].mxu0
    %v5649 = vadd.f32 %v5608, %v5648
    %v5650 = vpop.f32.mrb[0].mxu0
    %v5651 = vadd.f32 %v5610, %v5650
    %v5652 = vpop.f32.mrb[0].mxu0
    %v5653 = vpop.f32.mrb[0].mxu0
    %5654 = vdwg.mxu0
    %5655 = vmatprep.subr.bf16.mxu0 0
    %5656 = vmatpush1.bf16.msra.mxu0 %v1981
    %5657 = vmatprep.subr.bf16.mxu0 0
    %5658 = vmatpush1.bf16.msra.mxu0 %v1990
    %5659 = vmatprep.subr.bf16.mxu0 0
    %5660 = vmatpush1.bf16.msra.mxu0 %v1999
    %5661 = vmatprep.subr.bf16.mxu0 0
    %5662 = vmatpush1.bf16.msra.mxu0 %v2008
    %5663 = vmatprep.subr.bf16.mxu0 0
    %5664 = vmatpush1.bf16.msra.mxu0 %v2017
    %5665 = vmatprep.subr.bf16.mxu0 0
    %5666 = vmatpush1.bf16.msra.mxu0 %v2026
    %5667 = vmatprep.subr.bf16.mxu0 0
    %5668 = vmatpush1.bf16.msra.mxu0 %v2035
    %5669 = vmatprep.subr.bf16.mxu0 0
    %5670 = vmatpush1.bf16.msra.mxu0 %v2044
    %5671 = vmatprep.subr.bf16.mxu0 0
    %5672 = vmatpush1.bf16.msra.mxu0 %v2053
    %5673 = vmatprep.subr.bf16.mxu0 0
    %5674 = vmatpush1.bf16.msra.mxu0 %v2062
    %5675 = vmatprep.subr.bf16.mxu0 0
    %5676 = vmatpush1.bf16.msra.mxu0 %v2071
    %5677 = vmatprep.subr.bf16.mxu0 0
    %5678 = vmatpush1.bf16.msra.mxu0 %v2080
    %5679 = vmatprep.subr.bf16.mxu0 0
    %5680 = vmatpush1.bf16.msra.mxu0 %v2089
    %5681 = vmatprep.subr.bf16.mxu0 0
    %5682 = vmatpush1.bf16.msra.mxu0 %v2098
    %5683 = vmatprep.subr.bf16.mxu0 0
    %5684 = vmatpush1.bf16.msra.mxu0 %v2107
    %5685 = vmatprep.subr.bf16.mxu0 0
    %5686 = vmatpush1.bf16.msra.mxu0 %v2116
    %5687 = vmatprep.mubr.bf16.mxu0 %v5325
    %5688 = vmatmul.mubr.bf16.gmra.mrb[0].mxu0 %v5324
    %v5689 = vpop.f32.mrb[0].mxu0
    %v5690 = vadd.f32 0.0, %v5689
    %v5691 = vpop.f32.mrb[0].mxu0
    %v5692 = vpop.f32.mrb[0].mxu0
    %v5693 = vpop.f32.mrb[0].mxu0
    %5694 = vdwg.mxu0
    %5695 = vmatprep.subr.bf16.mxu0 0
    %5696 = vmatpush1.bf16.msra.mxu0 %v2125
    %5697 = vmatprep.subr.bf16.mxu0 0
    %5698 = vmatpush1.bf16.msra.mxu0 %v2134
    %5699 = vmatprep.subr.bf16.mxu0 0
    %5700 = vmatpush1.bf16.msra.mxu0 %v2143
    %5701 = vmatprep.subr.bf16.mxu0 0
    %5702 = vmatpush1.bf16.msra.mxu0 %v2152
    %5703 = vmatprep.subr.bf16.mxu0 0
    %5704 = vmatpush1.bf16.msra.mxu0 %v2161
    %5705 = vmatprep.subr.bf16.mxu0 0
    %5706 = vmatpush1.bf16.msra.mxu0 %v2170
    %5707 = vmatprep.subr.bf16.mxu0 0
    %5708 = vmatpush1.bf16.msra.mxu0 %v2179
    %5709 = vmatprep.subr.bf16.mxu0 0
    %5710 = vmatpush1.bf16.msra.mxu0 %v2188
    %5711 = vmatprep.subr.bf16.mxu0 0
    %5712 = vmatpush1.bf16.msra.mxu0 0
    %5713 = vmatprep.subr.bf16.mxu0 0
    %5714 = vmatpush1.bf16.msra.mxu0 0
    %5715 = vmatprep.subr.bf16.mxu0 0
    %5716 = vmatpush1.bf16.msra.mxu0 0
    %5717 = vmatprep.subr.bf16.mxu0 0
    %5718 = vmatpush1.bf16.msra.mxu0 0
    %5719 = vmatprep.subr.bf16.mxu0 0
    %5720 = vmatpush1.bf16.msra.mxu0 0
    %5721 = vmatprep.subr.bf16.mxu0 0
    %5722 = vmatpush1.bf16.msra.mxu0 0
    %5723 = vmatprep.subr.bf16.mxu0 0
    %5724 = vmatpush1.bf16.msra.mxu0 0
    %5725 = vmatprep.subr.bf16.mxu0 0
    %5726 = vmatpush1.bf16.msra.mxu0 0
    %5727 = vmatprep.mubr.bf16.mxu0 0
    %5728 = vmatmul.mubr.bf16.gmra.mrb[0].mxu0 %v5326
    %v5729 = vpop.f32.mrb[0].mxu0
    %v5730 = vadd.f32 %v5690, %v5729
    %v5731 = vpop.f32.mrb[0].mxu0
    %v5732 = vpop.f32.mrb[0].mxu0
    %v5733 = vpop.f32.mrb[0].mxu0
    %5734 = vdwg.mxu0
    %v5735 = vadd.f32 %v5315, %v5403
    %v5736 = vadd.f32 %v5316, %v5405
    %v5737 = vadd.f32 %v5317, %v5485
    %v5738 = vxor.u32 %v5735, 2147483648
    %v5739 = vxor.u32 %v5736, 2147483648
    %v5740 = vxor.u32 %v5737, 2147483648
    %v5741 = vmul.f32 %v5738, 1.442695
    %v5742 = vpow.pop %v5741
    %v5743 = vmul.f32 %v5739, 1.442695
    %v5744 = vpow.pop %v5743
    %v5745 = vmul.f32 %v5740, 1.442695
    %v5746 = vpow.pop %v5745
    %v5747 = vadd.f32 %v5742, 1.0
    %v5748 = vadd.f32 %v5744, 1.0
    %v5749 = vadd.f32 %v5746, 1.0
    %v5750 = vrcp.pop %v5747
    %v5751 = vmul.f32 1.0, %v5750
    %v5752 = vrcp.pop %v5748
    %v5753 = vmul.f32 1.0, %v5752
    %v5754 = vrcp.pop %v5749
    %v5755 = vmul.f32 1.0, %v5754
    %v5756 = vadd.f32 %v5318, %v5487
    %v5757 = vadd.f32 %v5319, %v5567
    %v5758 = vadd.f32 %v5320, %v5569
    %v5759 = vxor.u32 %v5756, 2147483648
    %v5760 = vxor.u32 %v5757, 2147483648
    %v5761 = vxor.u32 %v5758, 2147483648
    %v5762 = vmul.f32 %v5759, 1.442695
    %v5763 = vpow.pop %v5762
    %v5764 = vmul.f32 %v5760, 1.442695
    %v5765 = vpow.pop %v5764
    %v5766 = vmul.f32 %v5761, 1.442695
    %v5767 = vpow.pop %v5766
    %v5768 = vadd.f32 %v5763, 1.0
    %v5769 = vadd.f32 %v5765, 1.0
    %v5770 = vadd.f32 %v5767, 1.0
    %v5771 = vrcp.pop %v5768
    %v5772 = vmul.f32 1.0, %v5771
    %v5773 = vrcp.pop %v5769
    %v5774 = vmul.f32 1.0, %v5773
    %v5775 = vrcp.pop %v5770
    %v5776 = vmul.f32 1.0, %v5775
    %v5777 = vadd.f32 %v5649, %v313
    %v5778 = vadd.f32 %v5651, %v317
    %v5779 = vadd.f32 %v5730, %v321
    %v5780 = vmul.f32 %v5751, %v5777
    %v5781 = vmul.f32 %v5753, %v5778
    %v5782 = vmul.f32 %v5755, %v5779
    %v5783 = vadd.f32 %v5321, %v5780
    %v5784 = vadd.f32 %v5322, %v5781
    %v5785 = vadd.f32 %v5323, %v5782
    %v5786 = vtanh.pop %v5783
    %v5787 = vtanh.pop %v5784
    %v5788 = vtanh.pop %v5785
    %v5789 = vsub.f32 %v5308, %v5786
    %v5790 = vsub.f32 %v5309, %v5787
    %v5791 = vsub.f32 %v5310, %v5788
    %v5792 = vmul.f32 %v5772, %v5789
    %v5793 = vmul.f32 %v5774, %v5790
    %v5794 = vmul.f32 %v5776, %v5791
    %v5795 = vadd.f32 %v5786, %v5792
    %v5796 = vadd.f32 %v5787, %v5793
    %v5797 = vadd.f32 %v5788, %v5794
    %v5798 = vmax.f32 %v5311, %v5795
    %v5799 = vmax.f32 %v5312, %v5796
    %v5800 = vmax.f32 %v5313, %v5797
    %s5801 = scalar_lea.vmem [#allocation4], 504
    %v5802 = vld [vmem:[%s5801] sm:$0xff]
    %v5803 = vld [vmem:[%s5801 + $0x8] sm:$0xff]
    %v5804 = vld [vmem:[%s5801 + $0x10] sm:$0xff]
    %v5805 = vld [vmem:[%s5801 + $0x18] sm:$0xff]
    %v5806 = vld [vmem:[%s5801 + $0x20] sm:$0xff]
    %v5807 = vld [vmem:[%s5801 + $0x28] sm:$0xff]
    %v5808 = vld [vmem:[%s5801 + $0x30] sm:$0xff]
    %v5809 = vld [vmem:[%s5801 + $0x38] sm:$0xff]
    %v5810 = vld [vmem:[%s5801 + $0x40] sm:$0xff]
    %v5811 = vpack.c.bf16 %v5795, %v5795
    %v5812 = vpack.c.bf16 %v5796, %v5796
    %v5813 = vpack.c.bf16 %v5797, %v5797
    %5814 = vmatprep.subr.bf16.mxu0 %v1974
    %5815 = vmatpush1.bf16.msra.mxu0 %v1973
    %5816 = vmatprep.subr.bf16.mxu0 %v1983
    %5817 = vmatpush1.bf16.msra.mxu0 %v1982
    %5818 = vmatprep.subr.bf16.mxu0 %v1992
    %5819 = vmatpush1.bf16.msra.mxu0 %v1991
    %5820 = vmatprep.subr.bf16.mxu0 %v2001
    %5821 = vmatpush1.bf16.msra.mxu0 %v2000
    %5822 = vmatprep.subr.bf16.mxu0 %v2010
    %5823 = vmatpush1.bf16.msra.mxu0 %v2009
    %5824 = vmatprep.subr.bf16.mxu0 %v2019
    %5825 = vmatpush1.bf16.msra.mxu0 %v2018
    %5826 = vmatprep.subr.bf16.mxu0 %v2028
    %5827 = vmatpush1.bf16.msra.mxu0 %v2027
    %5828 = vmatprep.subr.bf16.mxu0 %v2037
    %5829 = vmatpush1.bf16.msra.mxu0 %v2036
    %5830 = vmatprep.subr.bf16.mxu0 %v2046
    %5831 = vmatpush1.bf16.msra.mxu0 %v2045
    %5832 = vmatprep.subr.bf16.mxu0 %v2055
    %5833 = vmatpush1.bf16.msra.mxu0 %v2054
    %5834 = vmatprep.subr.bf16.mxu0 %v2064
    %5835 = vmatpush1.bf16.msra.mxu0 %v2063
    %5836 = vmatprep.subr.bf16.mxu0 %v2073
    %5837 = vmatpush1.bf16.msra.mxu0 %v2072
    %5838 = vmatprep.subr.bf16.mxu0 %v2082
    %5839 = vmatpush1.bf16.msra.mxu0 %v2081
    %5840 = vmatprep.subr.bf16.mxu0 %v2091
    %5841 = vmatpush1.bf16.msra.mxu0 %v2090
    %5842 = vmatprep.subr.bf16.mxu0 %v2100
    %5843 = vmatpush1.bf16.msra.mxu0 %v2099
    %5844 = vmatprep.subr.bf16.mxu0 %v2109
    %5845 = vmatpush1.bf16.msra.mxu0 %v2108
    %5846 = vmatprep.mubr.bf16.mxu0 %v5812
    %5847 = vmatmul.mubr.bf16.gmra.mrb[0].mxu0 %v5811
    %v5848 = vpop.f32.mrb[0].mxu0
    %v5849 = vadd.f32 0.0, %v5848
    %v5850 = vpop.f32.mrb[0].mxu0
    %v5851 = vadd.f32 0.0, %v5850
    %v5852 = vpop.f32.mrb[0].mxu0
    %v5853 = vpop.f32.mrb[0].mxu0
    %5854 = vdwg.mxu0
    %5855 = vmatprep.subr.bf16.mxu0 %v2118
    %5856 = vmatpush1.bf16.msra.mxu0 %v2117
    %5857 = vmatprep.subr.bf16.mxu0 %v2127
    %5858 = vmatpush1.bf16.msra.mxu0 %v2126
    %5859 = vmatprep.subr.bf16.mxu0 %v2136
    %5860 = vmatpush1.bf16.msra.mxu0 %v2135
    %5861 = vmatprep.subr.bf16.mxu0 %v2145
    %5862 = vmatpush1.bf16.msra.mxu0 %v2144
    %5863 = vmatprep.subr.bf16.mxu0 %v2154
    %5864 = vmatpush1.bf16.msra.mxu0 %v2153
    %5865 = vmatprep.subr.bf16.mxu0 %v2163
    %5866 = vmatpush1.bf16.msra.mxu0 %v2162
    %5867 = vmatprep.subr.bf16.mxu0 %v2172
    %5868 = vmatpush1.bf16.msra.mxu0 %v2171
    %5869 = vmatprep.subr.bf16.mxu0 %v2181
    %5870 = vmatpush1.bf16.msra.mxu0 %v2180
    %5871 = vmatprep.subr.bf16.mxu0 0
    %5872 = vmatpush1.bf16.msra.mxu0 0
    %5873 = vmatprep.subr.bf16.mxu0 0
    %5874 = vmatpush1.bf16.msra.mxu0 0
    %5875 = vmatprep.subr.bf16.mxu0 0
    %5876 = vmatpush1.bf16.msra.mxu0 0
    %5877 = vmatprep.subr.bf16.mxu0 0
    %5878 = vmatpush1.bf16.msra.mxu0 0
    %5879 = vmatprep.subr.bf16.mxu0 0
    %5880 = vmatpush1.bf16.msra.mxu0 0
    %5881 = vmatprep.subr.bf16.mxu0 0
    %5882 = vmatpush1.bf16.msra.mxu0 0
    %5883 = vmatprep.subr.bf16.mxu0 0
    %5884 = vmatpush1.bf16.msra.mxu0 0
    %5885 = vmatprep.subr.bf16.mxu0 0
    %5886 = vmatpush1.bf16.msra.mxu0 0
    %5887 = vmatprep.mubr.bf16.mxu0 0
    %5888 = vmatmul.mubr.bf16.gmra.mrb[0].mxu0 %v5813
    %v5889 = vpop.f32.mrb[0].mxu0
    %v5890 = vadd.f32 %v5849, %v5889
    %v5891 = vpop.f32.mrb[0].mxu0
    %v5892 = vadd.f32 %v5851, %v5891
    %v5893 = vpop.f32.mrb[0].mxu0
    %v5894 = vpop.f32.mrb[0].mxu0
    %5895 = vdwg.mxu0
    %5896 = vmatprep.subr.bf16.mxu0 %v1976
    %5897 = vmatpush1.bf16.msra.mxu0 %v1975
    %5898 = vmatprep.subr.bf16.mxu0 %v1985
    %5899 = vmatpush1.bf16.msra.mxu0 %v1984
    %5900 = vmatprep.subr.bf16.mxu0 %v1994
    %5901 = vmatpush1.bf16.msra.mxu0 %v1993
    %5902 = vmatprep.subr.bf16.mxu0 %v2003
    %5903 = vmatpush1.bf16.msra.mxu0 %v2002
    %5904 = vmatprep.subr.bf16.mxu0 %v2012
    %5905 = vmatpush1.bf16.msra.mxu0 %v2011
    %5906 = vmatprep.subr.bf16.mxu0 %v2021
    %5907 = vmatpush1.bf16.msra.mxu0 %v2020
    %5908 = vmatprep.subr.bf16.mxu0 %v2030
    %5909 = vmatpush1.bf16.msra.mxu0 %v2029
    %5910 = vmatprep.subr.bf16.mxu0 %v2039
    %5911 = vmatpush1.bf16.msra.mxu0 %v2038
    %5912 = vmatprep.subr.bf16.mxu0 %v2048
    %5913 = vmatpush1.bf16.msra.mxu0 %v2047
    %5914 = vmatprep.subr.bf16.mxu0 %v2057
    %5915 = vmatpush1.bf16.msra.mxu0 %v2056
    %5916 = vmatprep.subr.bf16.mxu0 %v2066
    %5917 = vmatpush1.bf16.msra.mxu0 %v2065
    %5918 = vmatprep.subr.bf16.mxu0 %v2075
    %5919 = vmatpush1.bf16.msra.mxu0 %v2074
    %5920 = vmatprep.subr.bf16.mxu0 %v2084
    %5921 = vmatpush1.bf16.msra.mxu0 %v2083
    %5922 = vmatprep.subr.bf16.mxu0 %v2093
    %5923 = vmatpush1.bf16.msra.mxu0 %v2092
    %5924 = vmatprep.subr.bf16.mxu0 %v2102
    %5925 = vmatpush1.bf16.msra.mxu0 %v2101
    %5926 = vmatprep.subr.bf16.mxu0 %v2111
    %5927 = vmatpush1.bf16.msra.mxu0 %v2110
    %5928 = vmatprep.mubr.bf16.mxu0 %v5812
    %5929 = vmatmul.mubr.bf16.gmra.mrb[0].mxu0 %v5811
    %v5930 = vpop.f32.mrb[0].mxu0
    %v5931 = vadd.f32 0.0, %v5930
    %v5932 = vpop.f32.mrb[0].mxu0
    %v5933 = vadd.f32 0.0, %v5932
    %v5934 = vpop.f32.mrb[0].mxu0
    %v5935 = vpop.f32.mrb[0].mxu0
    %5936 = vdwg.mxu0
    %5937 = vmatprep.subr.bf16.mxu0 %v2120
    %5938 = vmatpush1.bf16.msra.mxu0 %v2119
    %5939 = vmatprep.subr.bf16.mxu0 %v2129
    %5940 = vmatpush1.bf16.msra.mxu0 %v2128
    %5941 = vmatprep.subr.bf16.mxu0 %v2138
    %5942 = vmatpush1.bf16.msra.mxu0 %v2137
    %5943 = vmatprep.subr.bf16.mxu0 %v2147
    %5944 = vmatpush1.bf16.msra.mxu0 %v2146
    %5945 = vmatprep.subr.bf16.mxu0 %v2156
    %5946 = vmatpush1.bf16.msra.mxu0 %v2155
    %5947 = vmatprep.subr.bf16.mxu0 %v2165
    %5948 = vmatpush1.bf16.msra.mxu0 %v2164
    %5949 = vmatprep.subr.bf16.mxu0 %v2174
    %5950 = vmatpush1.bf16.msra.mxu0 %v2173
    %5951 = vmatprep.subr.bf16.mxu0 %v2183
    %5952 = vmatpush1.bf16.msra.mxu0 %v2182
    %5953 = vmatprep.subr.bf16.mxu0 0
    %5954 = vmatpush1.bf16.msra.mxu0 0
    %5955 = vmatprep.subr.bf16.mxu0 0
    %5956 = vmatpush1.bf16.msra.mxu0 0
    %5957 = vmatprep.subr.bf16.mxu0 0
    %5958 = vmatpush1.bf16.msra.mxu0 0
    %5959 = vmatprep.subr.bf16.mxu0 0
    %5960 = vmatpush1.bf16.msra.mxu0 0
    %5961 = vmatprep.subr.bf16.mxu0 0
    %5962 = vmatpush1.bf16.msra.mxu0 0
    %5963 = vmatprep.subr.bf16.mxu0 0
    %5964 = vmatpush1.bf16.msra.mxu0 0
    %5965 = vmatprep.subr.bf16.mxu0 0
    %5966 = vmatpush1.bf16.msra.mxu0 0
    %5967 = vmatprep.subr.bf16.mxu0 0
    %5968 = vmatpush1.bf16.msra.mxu0 0
    %5969 = vmatprep.mubr.bf16.mxu0 0
    %5970 = vmatmul.mubr.bf16.gmra.mrb[0].mxu0 %v5813
    %v5971 = vpop.f32.mrb[0].mxu0
    %v5972 = vadd.f32 %v5931, %v5971
    %v5973 = vpop.f32.mrb[0].mxu0
    %v5974 = vadd.f32 %v5933, %v5973
    %v5975 = vpop.f32.mrb[0].mxu0
    %v5976 = vpop.f32.mrb[0].mxu0
    %5977 = vdwg.mxu0
    %5978 = vmatprep.subr.bf16.mxu0 %v1978
    %5979 = vmatpush1.bf16.msra.mxu0 %v1977
    %5980 = vmatprep.subr.bf16.mxu0 %v1987
    %5981 = vmatpush1.bf16.msra.mxu0 %v1986
    %5982 = vmatprep.subr.bf16.mxu0 %v1996
    %5983 = vmatpush1.bf16.msra.mxu0 %v1995
    %5984 = vmatprep.subr.bf16.mxu0 %v2005
    %5985 = vmatpush1.bf16.msra.mxu0 %v2004
    %5986 = vmatprep.subr.bf16.mxu0 %v2014
    %5987 = vmatpush1.bf16.msra.mxu0 %v2013
    %5988 = vmatprep.subr.bf16.mxu0 %v2023
    %5989 = vmatpush1.bf16.msra.mxu0 %v2022
    %5990 = vmatprep.subr.bf16.mxu0 %v2032
    %5991 = vmatpush1.bf16.msra.mxu0 %v2031
    %5992 = vmatprep.subr.bf16.mxu0 %v2041
    %5993 = vmatpush1.bf16.msra.mxu0 %v2040
    %5994 = vmatprep.subr.bf16.mxu0 %v2050
    %5995 = vmatpush1.bf16.msra.mxu0 %v2049
    %5996 = vmatprep.subr.bf16.mxu0 %v2059
    %5997 = vmatpush1.bf16.msra.mxu0 %v2058
    %5998 = vmatprep.subr.bf16.mxu0 %v2068
    %5999 = vmatpush1.bf16.msra.mxu0 %v2067
    %6000 = vmatprep.subr.bf16.mxu0 %v2077
    %6001 = vmatpush1.bf16.msra.mxu0 %v2076
    %6002 = vmatprep.subr.bf16.mxu0 %v2086
    %6003 = vmatpush1.bf16.msra.mxu0 %v2085
    %6004 = vmatprep.subr.bf16.mxu0 %v2095
    %6005 = vmatpush1.bf16.msra.mxu0 %v2094
    %6006 = vmatprep.subr.bf16.mxu0 %v2104
    %6007 = vmatpush1.bf16.msra.mxu0 %v2103
    %6008 = vmatprep.subr.bf16.mxu0 %v2113
    %6009 = vmatpush1.bf16.msra.mxu0 %v2112
    %6010 = vmatprep.mubr.bf16.mxu0 %v5812
    %6011 = vmatmul.mubr.bf16.gmra.mrb[0].mxu0 %v5811
    %v6012 = vpop.f32.mrb[0].mxu0
    %v6013 = vadd.f32 0.0, %v6012
    %v6014 = vpop.f32.mrb[0].mxu0
    %v6015 = vadd.f32 0.0, %v6014
    %v6016 = vpop.f32.mrb[0].mxu0
    %v6017 = vpop.f32.mrb[0].mxu0
    %6018 = vdwg.mxu0
    %6019 = vmatprep.subr.bf16.mxu0 %v2122
    %6020 = vmatpush1.bf16.msra.mxu0 %v2121
    %6021 = vmatprep.subr.bf16.mxu0 %v2131
    %6022 = vmatpush1.bf16.msra.mxu0 %v2130
    %6023 = vmatprep.subr.bf16.mxu0 %v2140
    %6024 = vmatpush1.bf16.msra.mxu0 %v2139
    %6025 = vmatprep.subr.bf16.mxu0 %v2149
    %6026 = vmatpush1.bf16.msra.mxu0 %v2148
    %6027 = vmatprep.subr.bf16.mxu0 %v2158
    %6028 = vmatpush1.bf16.msra.mxu0 %v2157
    %6029 = vmatprep.subr.bf16.mxu0 %v2167
    %6030 = vmatpush1.bf16.msra.mxu0 %v2166
    %6031 = vmatprep.subr.bf16.mxu0 %v2176
    %6032 = vmatpush1.bf16.msra.mxu0 %v2175
    %6033 = vmatprep.subr.bf16.mxu0 %v2185
    %6034 = vmatpush1.bf16.msra.mxu0 %v2184
    %6035 = vmatprep.subr.bf16.mxu0 0
    %6036 = vmatpush1.bf16.msra.mxu0 0
    %6037 = vmatprep.subr.bf16.mxu0 0
    %6038 = vmatpush1.bf16.msra.mxu0 0
    %6039 = vmatprep.subr.bf16.mxu0 0
    %6040 = vmatpush1.bf16.msra.mxu0 0
    %6041 = vmatprep.subr.bf16.mxu0 0
    %6042 = vmatpush1.bf16.msra.mxu0 0
    %6043 = vmatprep.subr.bf16.mxu0 0
    %6044 = vmatpush1.bf16.msra.mxu0 0
    %6045 = vmatprep.subr.bf16.mxu0 0
    %6046 = vmatpush1.bf16.msra.mxu0 0
    %6047 = vmatprep.subr.bf16.mxu0 0
    %6048 = vmatpush1.bf16.msra.mxu0 0
    %6049 = vmatprep.subr.bf16.mxu0 0
    %6050 = vmatpush1.bf16.msra.mxu0 0
    %6051 = vmatprep.mubr.bf16.mxu0 0
    %6052 = vmatmul.mubr.bf16.gmra.mrb[0].mxu0 %v5813
    %v6053 = vpop.f32.mrb[0].mxu0
    %v6054 = vadd.f32 %v6013, %v6053
    %v6055 = vpop.f32.mrb[0].mxu0
    %v6056 = vadd.f32 %v6015, %v6055
    %v6057 = vpop.f32.mrb[0].mxu0
    %v6058 = vpop.f32.mrb[0].mxu0
    %6059 = vdwg.mxu0
    %6060 = vmatprep.subr.bf16.mxu0 %v1980
    %6061 = vmatpush1.bf16.msra.mxu0 %v1979
    %6062 = vmatprep.subr.bf16.mxu0 %v1989
    %6063 = vmatpush1.bf16.msra.mxu0 %v1988
    %6064 = vmatprep.subr.bf16.mxu0 %v1998
    %6065 = vmatpush1.bf16.msra.mxu0 %v1997
    %6066 = vmatprep.subr.bf16.mxu0 %v2007
    %6067 = vmatpush1.bf16.msra.mxu0 %v2006
    %6068 = vmatprep.subr.bf16.mxu0 %v2016
    %6069 = vmatpush1.bf16.msra.mxu0 %v2015
    %6070 = vmatprep.subr.bf16.mxu0 %v2025
    %6071 = vmatpush1.bf16.msra.mxu0 %v2024
    %6072 = vmatprep.subr.bf16.mxu0 %v2034
    %6073 = vmatpush1.bf16.msra.mxu0 %v2033
    %6074 = vmatprep.subr.bf16.mxu0 %v2043
    %6075 = vmatpush1.bf16.msra.mxu0 %v2042
    %6076 = vmatprep.subr.bf16.mxu0 %v2052
    %6077 = vmatpush1.bf16.msra.mxu0 %v2051
    %6078 = vmatprep.subr.bf16.mxu0 %v2061
    %6079 = vmatpush1.bf16.msra.mxu0 %v2060
    %6080 = vmatprep.subr.bf16.mxu0 %v2070
    %6081 = vmatpush1.bf16.msra.mxu0 %v2069
    %6082 = vmatprep.subr.bf16.mxu0 %v2079
    %6083 = vmatpush1.bf16.msra.mxu0 %v2078
    %6084 = vmatprep.subr.bf16.mxu0 %v2088
    %6085 = vmatpush1.bf16.msra.mxu0 %v2087
    %6086 = vmatprep.subr.bf16.mxu0 %v2097
    %6087 = vmatpush1.bf16.msra.mxu0 %v2096
    %6088 = vmatprep.subr.bf16.mxu0 %v2106
    %6089 = vmatpush1.bf16.msra.mxu0 %v2105
    %6090 = vmatprep.subr.bf16.mxu0 %v2115
    %6091 = vmatpush1.bf16.msra.mxu0 %v2114
    %6092 = vmatprep.mubr.bf16.mxu0 %v5812
    %6093 = vmatmul.mubr.bf16.gmra.mrb[0].mxu0 %v5811
    %v6094 = vpop.f32.mrb[0].mxu0
    %v6095 = vadd.f32 0.0, %v6094
    %v6096 = vpop.f32.mrb[0].mxu0
    %v6097 = vadd.f32 0.0, %v6096
    %v6098 = vpop.f32.mrb[0].mxu0
    %v6099 = vpop.f32.mrb[0].mxu0
    %6100 = vdwg.mxu0
    %6101 = vmatprep.subr.bf16.mxu0 %v2124
    %6102 = vmatpush1.bf16.msra.mxu0 %v2123
    %6103 = vmatprep.subr.bf16.mxu0 %v2133
    %6104 = vmatpush1.bf16.msra.mxu0 %v2132
    %6105 = vmatprep.subr.bf16.mxu0 %v2142
    %6106 = vmatpush1.bf16.msra.mxu0 %v2141
    %6107 = vmatprep.subr.bf16.mxu0 %v2151
    %6108 = vmatpush1.bf16.msra.mxu0 %v2150
    %6109 = vmatprep.subr.bf16.mxu0 %v2160
    %6110 = vmatpush1.bf16.msra.mxu0 %v2159
    %6111 = vmatprep.subr.bf16.mxu0 %v2169
    %6112 = vmatpush1.bf16.msra.mxu0 %v2168
    %6113 = vmatprep.subr.bf16.mxu0 %v2178
    %6114 = vmatpush1.bf16.msra.mxu0 %v2177
    %6115 = vmatprep.subr.bf16.mxu0 %v2187
    %6116 = vmatpush1.bf16.msra.mxu0 %v2186
    %6117 = vmatprep.subr.bf16.mxu0 0
    %6118 = vmatpush1.bf16.msra.mxu0 0
    %6119 = vmatprep.subr.bf16.mxu0 0
    %6120 = vmatpush1.bf16.msra.mxu0 0
    %6121 = vmatprep.subr.bf16.mxu0 0
    %6122 = vmatpush1.bf16.msra.mxu0 0
    %6123 = vmatprep.subr.bf16.mxu0 0
    %6124 = vmatpush1.bf16.msra.mxu0 0
    %6125 = vmatprep.subr.bf16.mxu0 0
    %6126 = vmatpush1.bf16.msra.mxu0 0
    %6127 = vmatprep.subr.bf16.mxu0 0
    %6128 = vmatpush1.bf16.msra.mxu0 0
    %6129 = vmatprep.subr.bf16.mxu0 0
    %6130 = vmatpush1.bf16.msra.mxu0 0
    %6131 = vmatprep.subr.bf16.mxu0 0
    %6132 = vmatpush1.bf16.msra.mxu0 0
    %6133 = vmatprep.mubr.bf16.mxu0 0
    %6134 = vmatmul.mubr.bf16.gmra.mrb[0].mxu0 %v5813
    %v6135 = vpop.f32.mrb[0].mxu0
    %v6136 = vadd.f32 %v6095, %v6135
    %v6137 = vpop.f32.mrb[0].mxu0
    %v6138 = vadd.f32 %v6097, %v6137
    %v6139 = vpop.f32.mrb[0].mxu0
    %v6140 = vpop.f32.mrb[0].mxu0
    %6141 = vdwg.mxu0
    %6142 = vmatprep.subr.bf16.mxu0 0
    %6143 = vmatpush1.bf16.msra.mxu0 %v1981
    %6144 = vmatprep.subr.bf16.mxu0 0
    %6145 = vmatpush1.bf16.msra.mxu0 %v1990
    %6146 = vmatprep.subr.bf16.mxu0 0
    %6147 = vmatpush1.bf16.msra.mxu0 %v1999
    %6148 = vmatprep.subr.bf16.mxu0 0
    %6149 = vmatpush1.bf16.msra.mxu0 %v2008
    %6150 = vmatprep.subr.bf16.mxu0 0
    %6151 = vmatpush1.bf16.msra.mxu0 %v2017
    %6152 = vmatprep.subr.bf16.mxu0 0
    %6153 = vmatpush1.bf16.msra.mxu0 %v2026
    %6154 = vmatprep.subr.bf16.mxu0 0
    %6155 = vmatpush1.bf16.msra.mxu0 %v2035
    %6156 = vmatprep.subr.bf16.mxu0 0
    %6157 = vmatpush1.bf16.msra.mxu0 %v2044
    %6158 = vmatprep.subr.bf16.mxu0 0
    %6159 = vmatpush1.bf16.msra.mxu0 %v2053
    %6160 = vmatprep.subr.bf16.mxu0 0
    %6161 = vmatpush1.bf16.msra.mxu0 %v2062
    %6162 = vmatprep.subr.bf16.mxu0 0
    %6163 = vmatpush1.bf16.msra.mxu0 %v2071
    %6164 = vmatprep.subr.bf16.mxu0 0
    %6165 = vmatpush1.bf16.msra.mxu0 %v2080
    %6166 = vmatprep.subr.bf16.mxu0 0
    %6167 = vmatpush1.bf16.msra.mxu0 %v2089
    %6168 = vmatprep.subr.bf16.mxu0 0
    %6169 = vmatpush1.bf16.msra.mxu0 %v2098
    %6170 = vmatprep.subr.bf16.mxu0 0
    %6171 = vmatpush1.bf16.msra.mxu0 %v2107
    %6172 = vmatprep.subr.bf16.mxu0 0
    %6173 = vmatpush1.bf16.msra.mxu0 %v2116
    %6174 = vmatprep.mubr.bf16.mxu0 %v5812
    %6175 = vmatmul.mubr.bf16.gmra.mrb[0].mxu0 %v5811
    %v6176 = vpop.f32.mrb[0].mxu0
    %v6177 = vadd.f32 0.0, %v6176
    %v6178 = vpop.f32.mrb[0].mxu0
    %v6179 = vpop.f32.mrb[0].mxu0
    %v6180 = vpop.f32.mrb[0].mxu0
    %6181 = vdwg.mxu0
    %6182 = vmatprep.subr.bf16.mxu0 0
    %6183 = vmatpush1.bf16.msra.mxu0 %v2125
    %6184 = vmatprep.subr.bf16.mxu0 0
    %6185 = vmatpush1.bf16.msra.mxu0 %v2134
    %6186 = vmatprep.subr.bf16.mxu0 0
    %6187 = vmatpush1.bf16.msra.mxu0 %v2143
    %6188 = vmatprep.subr.bf16.mxu0 0
    %6189 = vmatpush1.bf16.msra.mxu0 %v2152
    %6190 = vmatprep.subr.bf16.mxu0 0
    %6191 = vmatpush1.bf16.msra.mxu0 %v2161
    %6192 = vmatprep.subr.bf16.mxu0 0
    %6193 = vmatpush1.bf16.msra.mxu0 %v2170
    %6194 = vmatprep.subr.bf16.mxu0 0
    %6195 = vmatpush1.bf16.msra.mxu0 %v2179
    %6196 = vmatprep.subr.bf16.mxu0 0
    %6197 = vmatpush1.bf16.msra.mxu0 %v2188
    %6198 = vmatprep.subr.bf16.mxu0 0
    %6199 = vmatpush1.bf16.msra.mxu0 0
    %6200 = vmatprep.subr.bf16.mxu0 0
    %6201 = vmatpush1.bf16.msra.mxu0 0
    %6202 = vmatprep.subr.bf16.mxu0 0
    %6203 = vmatpush1.bf16.msra.mxu0 0
    %6204 = vmatprep.subr.bf16.mxu0 0
    %6205 = vmatpush1.bf16.msra.mxu0 0
    %6206 = vmatprep.subr.bf16.mxu0 0
    %6207 = vmatpush1.bf16.msra.mxu0 0
    %6208 = vmatprep.subr.bf16.mxu0 0
    %6209 = vmatpush1.bf16.msra.mxu0 0
    %6210 = vmatprep.subr.bf16.mxu0 0
    %6211 = vmatpush1.bf16.msra.mxu0 0
    %6212 = vmatprep.subr.bf16.mxu0 0
    %6213 = vmatpush1.bf16.msra.mxu0 0
    %6214 = vmatprep.mubr.bf16.mxu0 0
    %6215 = vmatmul.mubr.bf16.gmra.mrb[0].mxu0 %v5813
    %v6216 = vpop.f32.mrb[0].mxu0
    %v6217 = vadd.f32 %v6177, %v6216
    %v6218 = vpop.f32.mrb[0].mxu0
    %v6219 = vpop.f32.mrb[0].mxu0
    %v6220 = vpop.f32.mrb[0].mxu0
    %6221 = vdwg.mxu0
    %v6222 = vadd.f32 %v5802, %v5890
    %v6223 = vadd.f32 %v5803, %v5892
    %v6224 = vadd.f32 %v5804, %v5972
    %v6225 = vxor.u32 %v6222, 2147483648
    %v6226 = vxor.u32 %v6223, 2147483648
    %v6227 = vxor.u32 %v6224, 2147483648
    %v6228 = vmul.f32 %v6225, 1.442695
    %v6229 = vpow.pop %v6228
    %v6230 = vmul.f32 %v6226, 1.442695
    %v6231 = vpow.pop %v6230
    %v6232 = vmul.f32 %v6227, 1.442695
    %v6233 = vpow.pop %v6232
    %v6234 = vadd.f32 %v6229, 1.0
    %v6235 = vadd.f32 %v6231, 1.0
    %v6236 = vadd.f32 %v6233, 1.0
    %v6237 = vrcp.pop %v6234
    %v6238 = vmul.f32 1.0, %v6237
    %v6239 = vrcp.pop %v6235
    %v6240 = vmul.f32 1.0, %v6239
    %v6241 = vrcp.pop %v6236
    %v6242 = vmul.f32 1.0, %v6241
    %v6243 = vadd.f32 %v5805, %v5974
    %v6244 = vadd.f32 %v5806, %v6054
    %v6245 = vadd.f32 %v5807, %v6056
    %v6246 = vxor.u32 %v6243, 2147483648
    %v6247 = vxor.u32 %v6244, 2147483648
    %v6248 = vxor.u32 %v6245, 2147483648
    %v6249 = vmul.f32 %v6246, 1.442695
    %v6250 = vpow.pop %v6249
    %v6251 = vmul.f32 %v6247, 1.442695
    %v6252 = vpow.pop %v6251
    %v6253 = vmul.f32 %v6248, 1.442695
    %v6254 = vpow.pop %v6253
    %v6255 = vadd.f32 %v6250, 1.0
    %v6256 = vadd.f32 %v6252, 1.0
    %v6257 = vadd.f32 %v6254, 1.0
    %v6258 = vrcp.pop %v6255
    %v6259 = vmul.f32 1.0, %v6258
    %v6260 = vrcp.pop %v6256
    %v6261 = vmul.f32 1.0, %v6260
    %v6262 = vrcp.pop %v6257
    %v6263 = vmul.f32 1.0, %v6262
    %v6264 = vadd.f32 %v6136, %v313
    %v6265 = vadd.f32 %v6138, %v317
    %v6266 = vadd.f32 %v6217, %v321
    %v6267 = vmul.f32 %v6238, %v6264
    %v6268 = vmul.f32 %v6240, %v6265
    %v6269 = vmul.f32 %v6242, %v6266
    %v6270 = vadd.f32 %v5808, %v6267
    %v6271 = vadd.f32 %v5809, %v6268
    %v6272 = vadd.f32 %v5810, %v6269
    %v6273 = vtanh.pop %v6270
    %v6274 = vtanh.pop %v6271
    %v6275 = vtanh.pop %v6272
    %v6276 = vsub.f32 %v5795, %v6273
    %v6277 = vsub.f32 %v5796, %v6274
    %v6278 = vsub.f32 %v5797, %v6275
    %v6279 = vmul.f32 %v6259, %v6276
    %v6280 = vmul.f32 %v6261, %v6277
    %v6281 = vmul.f32 %v6263, %v6278
    %v6282 = vadd.f32 %v6273, %v6279
    %v6283 = vadd.f32 %v6274, %v6280
    %v6284 = vadd.f32 %v6275, %v6281
    %v6285 = vmax.f32 %v5798, %v6282
    %v6286 = vmax.f32 %v5799, %v6283
    %v6287 = vmax.f32 %v5800, %v6284
    %6288 = vst [vmem:[#allocation2] sm:$0xff] %v6282
    %6289 = vst [vmem:[#allocation2 + $0x8] sm:$0xff] %v6283
    %6290 = vst [vmem:[#allocation2 + $0x10] sm:$0xff] %v6284
    %6291 = vst [vmem:[#allocation3] sm:$0xff] %v6285
    %6292 = vst [vmem:[#allocation3 + $0x8] sm:$0xff] %v6286
    %6293 = vst [vmem:[#allocation3 + $0x10] sm:$0xff] %v6287
    // Predicated region
    $region46: #{tpu_custom_call.1} parent=1 // pred_check
      %p6294 = pneg %p58
    $region47: #{tpu_custom_call.1} parent=1 // pred_check_branch
      %6296 = sbr.rel (%p6294) target = $region49
    $region48: #{tpu_custom_call.1} parent=1 // pred_region
      %v6297 = vld [vmem:[%s5] sm:$0xff]
      %vm6298 = vcmask 64512
      %v6300 = vsel %vm6298, %v6297, 0
      %6302 = vmatprep.subr.mxu0 %v6286
      %6303 = vmatpush1.msra.mxu0 %v6285
      %6304 = vmatprep.subr.mxu0 0.0
      %6305 = vmatpush1.msra.mxu0 0.0
      %6306 = vmatprep.subr.mxu0 0.0
      %6307 = vmatpush1.msra.mxu0 0.0
      %6308 = vmatprep.subr.mxu0 0.0
      %6309 = vmatpush1.msra.mxu0 0.0
      %6310 = vmatprep.subr.mxu0 0.0
      %6311 = vmatpush1.msra.mxu0 0.0
      %6312 = vmatprep.subr.mxu0 0.0
      %6313 = vmatpush1.msra.mxu0 0.0
      %6314 = vmatprep.subr.mxu0 0.0
      %6315 = vmatpush1.msra.mxu0 0.0
      %6316 = vmatprep.subr.mxu0 0.0
      %6317 = vmatpush1.msra.mxu0 0.0
      %6318 = vmatprep.subr.mxu0 0.0
      %6319 = vmatpush1.msra.mxu0 0.0
      %6320 = vmatprep.subr.mxu0 0.0
      %6321 = vmatpush1.msra.mxu0 0.0
      %6322 = vmatprep.subr.mxu0 0.0
      %6323 = vmatpush1.msra.mxu0 0.0
      %6324 = vmatprep.subr.mxu0 0.0
      %6325 = vmatpush1.msra.mxu0 0.0
      %6326 = vmatprep.subr.mxu0 0.0
      %6327 = vmatpush1.msra.mxu0 0.0
      %6328 = vmatprep.subr.mxu0 0.0
      %6329 = vmatpush1.msra.mxu0 0.0
      %6330 = vmatprep.subr.mxu0 0.0
      %6331 = vmatpush1.msra.mxu0 0.0
      %6332 = vmatprep.subr.mxu0 0.0
      %6333 = vmatpush1.msra.mxu0 0.0
      %6334 = vmatprep.subr.mxu0 0.0
      %6335 = vmatpush1.msra.mxu0 0.0
      %6336 = vmatprep.subr.mxu0 0.0
      %6337 = vmatpush1.msra.mxu0 0.0
      %6338 = vmatprep.subr.mxu0 0.0
      %6339 = vmatpush1.msra.mxu0 0.0
      %6340 = vmatprep.subr.mxu0 0.0
      %6341 = vmatpush1.msra.mxu0 0.0
      %6342 = vmatprep.subr.mxu0 0.0
      %6343 = vmatpush1.msra.mxu0 0.0
      %6344 = vmatprep.subr.mxu0 0.0
      %6345 = vmatpush1.msra.mxu0 0.0
      %6346 = vmatprep.subr.mxu0 0.0
      %6347 = vmatpush1.msra.mxu0 0.0
      %6348 = vmatprep.subr.mxu0 0.0
      %6349 = vmatpush1.msra.mxu0 0.0
      %6350 = vmatprep.subr.mxu0 0.0
      %6351 = vmatpush1.msra.mxu0 0.0
      %6352 = vmatprep.subr.mxu0 0.0
      %6353 = vmatpush1.msra.mxu0 0.0
      %6354 = vmatprep.subr.mxu0 0.0
      %6355 = vmatpush1.msra.mxu0 0.0
      %6356 = vmatprep.subr.mxu0 0.0
      %6357 = vmatpush1.msra.mxu0 0.0
      %6358 = vmatprep.subr.mxu0 0.0
      %6359 = vmatpush1.msra.mxu0 0.0
      %6360 = vmatprep.subr.mxu0 0.0
      %6361 = vmatpush1.msra.mxu0 0.0
      %6362 = vmatprep.subr.mxu0 0.0
      %6363 = vmatpush1.msra.mxu0 0.0
      %6364 = vmatprep.subr.mxu0 0.0
      %6365 = vmatpush1.msra.mxu0 0.0
      %6366 = vmatprep.mubr.f32.mxu0 0.0
      %6367 = vmatmul.mubr.f32.gmra.mrb[0].mxu0 %v6300
      %v6368 = vpop.f32.mrb[0].mxu0
      %v6369 = vadd.f32 0.0, %v6368
      %v6370 = vpop.f32.mrb[0].mxu0
      %v6371 = vadd.f32 0.0, %v6370
      %6372 = vdwg.mxu0
      %6373 = vmatprep.subr.mxu0 0.0
      %6374 = vmatpush1.msra.mxu0 %v6287
      %6375 = vmatprep.subr.mxu0 0.0
      %6376 = vmatpush1.msra.mxu0 0.0
      %6377 = vmatprep.subr.mxu0 0.0
      %6378 = vmatpush1.msra.mxu0 0.0
      %6379 = vmatprep.subr.mxu0 0.0
      %6380 = vmatpush1.msra.mxu0 0.0
      %6381 = vmatprep.subr.mxu0 0.0
      %6382 = vmatpush1.msra.mxu0 0.0
      %6383 = vmatprep.subr.mxu0 0.0
      %6384 = vmatpush1.msra.mxu0 0.0
      %6385 = vmatprep.subr.mxu0 0.0
      %6386 = vmatpush1.msra.mxu0 0.0
      %6387 = vmatprep.subr.mxu0 0.0
      %6388 = vmatpush1.msra.mxu0 0.0
      %6389 = vmatprep.subr.mxu0 0.0
      %6390 = vmatpush1.msra.mxu0 0.0
      %6391 = vmatprep.subr.mxu0 0.0
      %6392 = vmatpush1.msra.mxu0 0.0
      %6393 = vmatprep.subr.mxu0 0.0
      %6394 = vmatpush1.msra.mxu0 0.0
      %6395 = vmatprep.subr.mxu0 0.0
      %6396 = vmatpush1.msra.mxu0 0.0
      %6397 = vmatprep.subr.mxu0 0.0
      %6398 = vmatpush1.msra.mxu0 0.0
      %6399 = vmatprep.subr.mxu0 0.0
      %6400 = vmatpush1.msra.mxu0 0.0
      %6401 = vmatprep.subr.mxu0 0.0
      %6402 = vmatpush1.msra.mxu0 0.0
      %6403 = vmatprep.subr.mxu0 0.0
      %6404 = vmatpush1.msra.mxu0 0.0
      %6405 = vmatprep.subr.mxu0 0.0
      %6406 = vmatpush1.msra.mxu0 0.0
      %6407 = vmatprep.subr.mxu0 0.0
      %6408 = vmatpush1.msra.mxu0 0.0
      %6409 = vmatprep.subr.mxu0 0.0
      %6410 = vmatpush1.msra.mxu0 0.0
      %6411 = vmatprep.subr.mxu0 0.0
      %6412 = vmatpush1.msra.mxu0 0.0
      %6413 = vmatprep.subr.mxu0 0.0
      %6414 = vmatpush1.msra.mxu0 0.0
      %6415 = vmatprep.subr.mxu0 0.0
      %6416 = vmatpush1.msra.mxu0 0.0
      %6417 = vmatprep.subr.mxu0 0.0
      %6418 = vmatpush1.msra.mxu0 0.0
      %6419 = vmatprep.subr.mxu0 0.0
      %6420 = vmatpush1.msra.mxu0 0.0
      %6421 = vmatprep.subr.mxu0 0.0
      %6422 = vmatpush1.msra.mxu0 0.0
      %6423 = vmatprep.subr.mxu0 0.0
      %6424 = vmatpush1.msra.mxu0 0.0
      %6425 = vmatprep.subr.mxu0 0.0
      %6426 = vmatpush1.msra.mxu0 0.0
      %6427 = vmatprep.subr.mxu0 0.0
      %6428 = vmatpush1.msra.mxu0 0.0
      %6429 = vmatprep.subr.mxu0 0.0
      %6430 = vmatpush1.msra.mxu0 0.0
      %6431 = vmatprep.subr.mxu0 0.0
      %6432 = vmatpush1.msra.mxu0 0.0
      %6433 = vmatprep.subr.mxu0 0.0
      %6434 = vmatpush1.msra.mxu0 0.0
      %6435 = vmatprep.subr.mxu0 0.0
      %6436 = vmatpush1.msra.mxu0 0.0
      %6437 = vmatprep.mubr.f32.mxu0 0.0
      %6438 = vmatmul.mubr.f32.gmra.mrb[0].mxu0 %v6300
      %v6439 = vpop.f32.mrb[0].mxu0
      %v6440 = vadd.f32 0.0, %v6439
      %v6441 = vpop.f32.mrb[0].mxu0
      %6442 = vdwg.mxu0
      %v6443 = vsub.f32 %v6285, %v6369
      %v6444 = vsub.f32 %v6286, %v6371
      %v6445 = vsub.f32 %v6287, %v6440
      %v6446 = vand.u32 2147483647, %v6443
      %v6447 = vand.u32 2147483647, %v6444
      %v6448 = vand.u32 2147483647, %v6445
      %v6449 = vld [vmem:[%s6] sm:$0xff]
      %v6450 = vld [vmem:[%s6 + $0x8] sm:$0xff]
      %v6451 = vld [vmem:[%s6 + $0x10] sm:$0xff]
      %v6452 = vld [vmem:[%s6 + $0x18] sm:$0xff]
      %v6453 = vld [vmem:[%s6 + $0x20] sm:$0xff]
      %v6454 = vld [vmem:[%s6 + $0x28] sm:$0xff]
      %v6455 = vld [vmem:[%s6 + $0x30] sm:$0xff]
      %v6456 = vld [vmem:[%s6 + $0x38] sm:$0xff]
      %v6457 = vld [vmem:[%s6 + $0x40] sm:$0xff]
      %v6458 = vld [vmem:[%s6 + $0x48] sm:$0xff]
      %v6459 = vld [vmem:[%s6 + $0x50] sm:$0xff]
      %v6460 = vld [vmem:[%s6 + $0x58] sm:$0xff]
      %v6461 = vld [vmem:[%s6 + $0x60] sm:$0xff]
      %v6462 = vld [vmem:[%s6 + $0x68] sm:$0xff]
      %v6463 = vld [vmem:[%s6 + $0x70] sm:$0xff]
      %v6464 = vld [vmem:[%s6 + $0x78] sm:$0xff]
      %v6465 = vld [vmem:[%s6 + $0x80] sm:$0xff]
      %v6466 = vld [vmem:[%s6 + $0x88] sm:$0xff]
      %v6467 = vld [vmem:[%s6 + $0x90] sm:$0xff]
      %v6468 = vld [vmem:[%s6 + $0x98] sm:$0xff]
      %v6469 = vld [vmem:[%s6 + $0xa0] sm:$0xff]
      %v6470 = vld [vmem:[%s6 + $0xa8] sm:$0xff]
      %v6471 = vld [vmem:[%s6 + $0xb0] sm:$0xff]
      %v6472 = vld [vmem:[%s6 + $0xb8] sm:$0xff]
      %v6473 = vld [vmem:[%s6 + $0xc0] sm:$0xff]
      %v6474 = vld [vmem:[%s6 + $0xc8] sm:$0xff]
      %v6475 = vld [vmem:[%s6 + $0xd0] sm:$0xff]
      %v6476 = vld [vmem:[%s6 + $0xd8] sm:$0xff]
      %v6477 = vld [vmem:[%s6 + $0xe0] sm:$0xff]
      %v6478 = vld [vmem:[%s6 + $0xe8] sm:$0xff]
      %v6479 = vld [vmem:[%s6 + $0xf0] sm:$0xff]
      %v6480 = vld [vmem:[%s6 + $0xf8] sm:$0xff]
      %v6481 = vld [vmem:[%s6 + $0x100] sm:$0xff]
      %v6482 = vld [vmem:[%s6 + $0x108] sm:$0xff]
      %v6483 = vld [vmem:[%s6 + $0x110] sm:$0xff]
      %v6484 = vld [vmem:[%s6 + $0x118] sm:$0xff]
      %v6485 = vld [vmem:[%s6 + $0x120] sm:$0xff]
      %v6486 = vld [vmem:[%s6 + $0x128] sm:$0xff]
      %v6487 = vld [vmem:[%s6 + $0x130] sm:$0xff]
      %v6488 = vld [vmem:[%s6 + $0x138] sm:$0xff]
      %v6489 = vld [vmem:[%s6 + $0x140] sm:$0xff]
      %v6490 = vld [vmem:[%s6 + $0x148] sm:$0xff]
      %v6491 = vld [vmem:[%s6 + $0x150] sm:$0xff]
      %v6492 = vld [vmem:[%s6 + $0x158] sm:$0xff]
      %v6493 = vld [vmem:[%s6 + $0x160] sm:$0xff]
      %v6494 = vld [vmem:[%s6 + $0x168] sm:$0xff]
      %v6495 = vld [vmem:[%s6 + $0x170] sm:$0xff]
      %v6496 = vld [vmem:[%s6 + $0x178] sm:$0xff]
      %v6497 = vld [vmem:[%s7] sm:$0x1]
      %v6499 = vlaneseq
      %v6500 = vshrl.u32 %v6499, 7
      %v6501 = vsub.s32 0, %v6500
      %v6502 = vrot.slane %v6497, %v6501
      %6504 = vmatprep.subr.mxu0 0.0
      %6505 = vmatpush1.msra.mxu0 %v6449
      %6506 = vmatprep.subr.mxu0 0.0
      %6507 = vmatpush1.msra.mxu0 %v6450
      %6508 = vmatprep.subr.mxu0 0.0
      %6509 = vmatpush1.msra.mxu0 %v6451
      %6510 = vmatprep.subr.mxu0 0.0
      %6511 = vmatpush1.msra.mxu0 %v6452
      %6512 = vmatprep.subr.mxu0 0.0
      %6513 = vmatpush1.msra.mxu0 %v6453
      %6514 = vmatprep.subr.mxu0 0.0
      %6515 = vmatpush1.msra.mxu0 %v6454
      %6516 = vmatprep.subr.mxu0 0.0
      %6517 = vmatpush1.msra.mxu0 %v6455
      %6518 = vmatprep.subr.mxu0 0.0
      %6519 = vmatpush1.msra.mxu0 %v6456
      %6520 = vmatprep.subr.mxu0 0.0
      %6521 = vmatpush1.msra.mxu0 %v6457
      %6522 = vmatprep.subr.mxu0 0.0
      %6523 = vmatpush1.msra.mxu0 %v6458
      %6524 = vmatprep.subr.mxu0 0.0
      %6525 = vmatpush1.msra.mxu0 %v6459
      %6526 = vmatprep.subr.mxu0 0.0
      %6527 = vmatpush1.msra.mxu0 %v6460
      %6528 = vmatprep.subr.mxu0 0.0
      %6529 = vmatpush1.msra.mxu0 %v6461
      %6530 = vmatprep.subr.mxu0 0.0
      %6531 = vmatpush1.msra.mxu0 %v6462
      %6532 = vmatprep.subr.mxu0 0.0
      %6533 = vmatpush1.msra.mxu0 %v6463
      %6534 = vmatprep.subr.mxu0 0.0
      %6535 = vmatpush1.msra.mxu0 %v6464
      %6536 = vmatprep.subr.mxu0 0.0
      %6537 = vmatpush1.msra.mxu0 %v6465
      %6538 = vmatprep.subr.mxu0 0.0
      %6539 = vmatpush1.msra.mxu0 %v6466
      %6540 = vmatprep.subr.mxu0 0.0
      %6541 = vmatpush1.msra.mxu0 %v6467
      %6542 = vmatprep.subr.mxu0 0.0
      %6543 = vmatpush1.msra.mxu0 %v6468
      %6544 = vmatprep.subr.mxu0 0.0
      %6545 = vmatpush1.msra.mxu0 %v6469
      %6546 = vmatprep.subr.mxu0 0.0
      %6547 = vmatpush1.msra.mxu0 %v6470
      %6548 = vmatprep.subr.mxu0 0.0
      %6549 = vmatpush1.msra.mxu0 %v6471
      %6550 = vmatprep.subr.mxu0 0.0
      %6551 = vmatpush1.msra.mxu0 %v6472
      %6552 = vmatprep.subr.mxu0 0.0
      %6553 = vmatpush1.msra.mxu0 %v6473
      %6554 = vmatprep.subr.mxu0 0.0
      %6555 = vmatpush1.msra.mxu0 %v6474
      %6556 = vmatprep.subr.mxu0 0.0
      %6557 = vmatpush1.msra.mxu0 %v6475
      %6558 = vmatprep.subr.mxu0 0.0
      %6559 = vmatpush1.msra.mxu0 %v6476
      %6560 = vmatprep.subr.mxu0 0.0
      %6561 = vmatpush1.msra.mxu0 %v6477
      %6562 = vmatprep.subr.mxu0 0.0
      %6563 = vmatpush1.msra.mxu0 %v6478
      %6564 = vmatprep.subr.mxu0 0.0
      %6565 = vmatpush1.msra.mxu0 %v6479
      %6566 = vmatprep.subr.mxu0 0.0
      %6567 = vmatpush1.msra.mxu0 %v6480
      %6568 = vmatprep.mubr.f32.mxu0 %v6447
      %6569 = vmatmul.mubr.f32.gmra.mrb[0].mxu0 %v6446
      %v6570 = vpop.f32.mrb[0].mxu0
      %v6571 = vadd.f32 %v6502, %v6570
      %v6572 = vpop.f32.mrb[0].mxu0
      %6573 = vdwg.mxu0
      %6574 = vmatprep.subr.mxu0 0.0
      %6575 = vmatpush1.msra.mxu0 %v6481
      %6576 = vmatprep.subr.mxu0 0.0
      %6577 = vmatpush1.msra.mxu0 %v6482
      %6578 = vmatprep.subr.mxu0 0.0
      %6579 = vmatpush1.msra.mxu0 %v6483
      %6580 = vmatprep.subr.mxu0 0.0
      %6581 = vmatpush1.msra.mxu0 %v6484
      %6582 = vmatprep.subr.mxu0 0.0
      %6583 = vmatpush1.msra.mxu0 %v6485
      %6584 = vmatprep.subr.mxu0 0.0
      %6585 = vmatpush1.msra.mxu0 %v6486
      %6586 = vmatprep.subr.mxu0 0.0
      %6587 = vmatpush1.msra.mxu0 %v6487
      %6588 = vmatprep.subr.mxu0 0.0
      %6589 = vmatpush1.msra.mxu0 %v6488
      %6590 = vmatprep.subr.mxu0 0.0
      %6591 = vmatpush1.msra.mxu0 %v6489
      %6592 = vmatprep.subr.mxu0 0.0
      %6593 = vmatpush1.msra.mxu0 %v6490
      %6594 = vmatprep.subr.mxu0 0.0
      %6595 = vmatpush1.msra.mxu0 %v6491
      %6596 = vmatprep.subr.mxu0 0.0
      %6597 = vmatpush1.msra.mxu0 %v6492
      %6598 = vmatprep.subr.mxu0 0.0
      %6599 = vmatpush1.msra.mxu0 %v6493
      %6600 = vmatprep.subr.mxu0 0.0
      %6601 = vmatpush1.msra.mxu0 %v6494
      %6602 = vmatprep.subr.mxu0 0.0
      %6603 = vmatpush1.msra.mxu0 %v6495
      %6604 = vmatprep.subr.mxu0 0.0
      %6605 = vmatpush1.msra.mxu0 %v6496
      %6606 = vmatprep.subr.mxu0 0.0
      %6607 = vmatpush1.msra.mxu0 0.0
      %6608 = vmatprep.subr.mxu0 0.0
      %6609 = vmatpush1.msra.mxu0 0.0
      %6610 = vmatprep.subr.mxu0 0.0
      %6611 = vmatpush1.msra.mxu0 0.0
      %6612 = vmatprep.subr.mxu0 0.0
      %6613 = vmatpush1.msra.mxu0 0.0
      %6614 = vmatprep.subr.mxu0 0.0
      %6615 = vmatpush1.msra.mxu0 0.0
      %6616 = vmatprep.subr.mxu0 0.0
      %6617 = vmatpush1.msra.mxu0 0.0
      %6618 = vmatprep.subr.mxu0 0.0
      %6619 = vmatpush1.msra.mxu0 0.0
      %6620 = vmatprep.subr.mxu0 0.0
      %6621 = vmatpush1.msra.mxu0 0.0
      %6622 = vmatprep.subr.mxu0 0.0
      %6623 = vmatpush1.msra.mxu0 0.0
      %6624 = vmatprep.subr.mxu0 0.0
      %6625 = vmatpush1.msra.mxu0 0.0
      %6626 = vmatprep.subr.mxu0 0.0
      %6627 = vmatpush1.msra.mxu0 0.0
      %6628 = vmatprep.subr.mxu0 0.0
      %6629 = vmatpush1.msra.mxu0 0.0
      %6630 = vmatprep.subr.mxu0 0.0
      %6631 = vmatpush1.msra.mxu0 0.0
      %6632 = vmatprep.subr.mxu0 0.0
      %6633 = vmatpush1.msra.mxu0 0.0
      %6634 = vmatprep.subr.mxu0 0.0
      %6635 = vmatpush1.msra.mxu0 0.0
      %6636 = vmatprep.subr.mxu0 0.0
      %6637 = vmatpush1.msra.mxu0 0.0
      %6638 = vmatprep.mubr.f32.mxu0 0.0
      %6639 = vmatmul.mubr.f32.gmra.mrb[0].mxu0 %v6448
      %v6640 = vpop.f32.mrb[0].mxu0
      %v6641 = vadd.f32 %v6571, %v6640
      %v6642 = vpop.f32.mrb[0].mxu0
      %6643 = vdwg.mxu0
      %vm6644 = vcmask 15360
      %6645 = vst.msk [vmem:[%s8] sm:$0xff] %vm6644, %v6641
    $region49: #{tpu_custom_call.1} parent=1 // pred_fallthru
      _
    // Predicated region
    $region50: #{tpu_custom_call.1} parent=1 // pred_check
      _
    $region51: #{tpu_custom_call.1} parent=1 // pred_check_branch
      %6647 = sbr.rel (0) target = $region53
    $region52: #{tpu_custom_call.1} parent=1 // pred_region
      _
    $region53: #{tpu_custom_call.1} parent=1 // pred_fallthru
      _
    // Predicated region
    $region54: #{tpu_custom_call.1} parent=1 // pred_check
      _
    $region55: #{tpu_custom_call.1} parent=1 // pred_check_branch
      %6649 = sbr.rel (0) target = $region57
    $region56: #{tpu_custom_call.1} parent=1 // pred_region
      _
    $region57: #{tpu_custom_call.1} parent=1 // pred_fallthru
      _
    %6650 = vsyncpa [#allocation6], 1
    %6651 = vsyncpa [#allocation8], 1

</llo_original>
